<compile_context>
chip_gen: v6e
topology: v6e:2x2x1
jax: 0.10.0
libtpu: 0.0.40
codegen_flags: <defaults>
</compile_context>

<pallas_src>
import jax
import jax.numpy as jnp
from jax import lax
from jax.experimental import pallas as pl
from jax.experimental.pallas import tpu as pltpu

PMAX = 3      # largest spatial padding used (7x7 conv, pad=3)
PAD_H = 8     # sublane-aligned H border in the shared scratch (>= PMAX)
PAD_W = 128   # lane-aligned zero halo in W (>= 2*PMAX); replaces edge masks


def _conv3out(pad_buf, cin_base, cin, k, w_ref, b_ref, H, W):
    """'same' conv with 3 output channels + ReLU over H/W-zero-padded planes
    stored in the shared VMEM scratch.

    - Loads are lane-aligned (sublane offset only).
    - W halo: XLU lane-roll over the zero-padded width Wp = W + 128, then a
      lane-aligned [:, :W] slice; wrapped columns land in the zero pad for
      |dw| <= 3 in both directions, so no edge masks are needed.
    - Each shifted tap is computed once per (ci, kh, kw) and reused across the
      3 output channels.
    - The input-channel loop is a lax.fori_loop (accumulators as carry) to
      bound vreg live ranges for the 7x7 / 12-channel convs.
    """
    pad = (k - 1) // 2
    row0 = PAD_H - pad
    kk = k * k
    Wp = W + PAD_W

    def body(ci, accs):
        ch = cin_base + ci
        plane = pad_buf.at[ch]                        # (H + 2*PAD_H, Wp) view
        new = list(accs)
        for kh in range(k):
            # Lane-aligned read, sublane offset only (cheap).
            rows = plane[pl.ds(row0 + kh, H), :]      # (H, Wp)
            for kw in range(k):
                dw = kw - pad
                if dw == 0:
                    tap = rows[:, :W]
                else:
                    tap = pltpu.roll(rows, (-dw) % Wp, axis=1)[:, :W]
                for co in range(3):
                    wv = w_ref[(co * cin + ci) * kk + kh * k + kw]
                    new[co] = new[co] + tap * wv
        return tuple(new)

    zero = jnp.zeros((H, W), jnp.float32)
    accs = lax.fori_loop(0, cin, body, (zero, zero, zero))
    return [jnp.maximum(accs[co] + b_ref[co], 0.0) for co in range(3)]


def aodnet_kernel(x_ref, w1, b1, w2, b2, w3, b3, w4, b4, w5, b5,
                  o_ref, pad_buf):
    H = x_ref.shape[2]
    W = x_ref.shape[3]
    Wp = W + PAD_W

    # The (H, W) interior of every plane is fully rewritten by stash() each
    # grid step; only the top/bottom halo bands and the 128-lane W pad strip
    # must be zero.  They are re-zeroed every step so the kernel stays correct
    # when the batch axis is sharded across TensorCores ("parallel"); the cost
    # is << 1% of the tap work.
    zband = jnp.zeros((PAD_H, Wp), jnp.float32)
    zpad = jnp.zeros((H, PAD_W), jnp.float32)
    for ch in range(12):
        pad_buf[ch, 0:PAD_H, :] = zband
        pad_buf[ch, PAD_H + H:PAD_H + H + PAD_H, :] = zband
        pad_buf[ch, PAD_H:PAD_H + H, W:Wp] = zpad

    # e_conv1: 1x1, pad 0 -> per-channel scale-and-add directly on the input.
    x1 = []
    for co in range(3):
        acc = None
        for ci in range(3):
            term = x_ref[0, ci] * w1[co * 3 + ci]
            acc = term if acc is None else acc + term
        x1.append(jnp.maximum(acc + b1[co], 0.0))

    def stash(planes, base):
        # Interior-only write [PAD_H:PAD_H+H, 0:W]; never touches the halos.
        for i, p in enumerate(planes):
            pad_buf[base + i, PAD_H:PAD_H + H, 0:W] = p

    # Channel slots in pad_buf: [0:3]=x1, [3:6]=x2, [6:9]=x3, [9:12]=x4.
    # torch.cat along the channel dim == contiguous slot ranges below.
    stash(x1, 0)
    x2 = _conv3out(pad_buf, 0, 3, 3, w2, b2, H, W)     # conv2(x1)
    stash(x2, 3)
    x3 = _conv3out(pad_buf, 0, 6, 5, w3, b3, H, W)     # conv3(cat(x1,x2))
    stash(x3, 6)
    x4 = _conv3out(pad_buf, 3, 6, 7, w4, b4, H, W)     # conv4(cat(x2,x3))
    stash(x4, 9)
    x5 = _conv3out(pad_buf, 0, 12, 3, w5, b5, H, W)    # conv5(cat(x1..x4))

    # clean_image = relu(x5 * x - x5 + 1); re-read x here instead of keeping
    # the input planes live across the whole kernel body.
    for c in range(3):
        xc = x_ref[0, c]
        o_ref[0, c] = jnp.maximum(x5[c] * xc - x5[c] + 1.0, 0.0)


def aodnet_forward(x, params):
    N, C, H, W = x.shape
    assert C == 3
    # The lane-roll halo path assumes a lane-dense W (multiple of 128).
    assert W % 128 == 0, "kernel requires W to be a multiple of 128"
    (w1, b1), (w2, b2), (w3, b3), (w4, b4), (w5, b5) = params
    flat = lambda w: w.reshape(-1).astype(jnp.float32)
    smem_spec = pl.BlockSpec(memory_space=pltpu.MemorySpace.SMEM)

    # Advisory cost: 1746 full-plane MAC taps per image + the final fusion.
    taps = 3 * 3 * 1 + 3 * 3 * 9 + 3 * 6 * 25 + 3 * 6 * 49 + 3 * 12 * 9
    flops = 2 * N * H * W * taps + 4 * N * 3 * H * W
    param_bytes = sum(int(w.size) + int(b.size) for (w, b) in params) * 4
    bytes_accessed = 2 * N * 3 * H * W * 4 + param_bytes

    # VMEM budget: padded whole-image scratch + double-buffered I/O blocks,
    # capped per chip generation with headroom for Mosaic internal scratch.
    scratch_bytes = 12 * (H + 2 * PAD_H) * (W + PAD_W) * 4
    io_bytes = 2 * 2 * (3 * H * W * 4)          # double-buffered in + out blocks
    need = scratch_bytes + io_bytes + (8 << 20)
    try:
        phys = int(pltpu.get_tpu_info().vmem_capacity_bytes)
    except Exception:
        phys = 64 << 20                          # conservative (v7x per-TC)
    cap = max(phys - (16 << 20), 32 << 20)       # ~112 MiB v5e/v6e, ~48 MiB v7x
    vmem_limit = int(min(max(need, 32 << 20), cap))
    # TODO(synk): if `need` exceeds `cap` (large images on v7x), switch to an
    # H-tiled grid with cascaded 7-row halos and pl.Buffered(1) I/O blocks.

    return pl.pallas_call(
        aodnet_kernel,
        out_shape=jax.ShapeDtypeStruct((N, 3, H, W), jnp.float32),
        grid_spec=pltpu.PrefetchScalarGridSpec(
            num_scalar_prefetch=0,
            grid=(N,),
            in_specs=[pl.BlockSpec((1, 3, H, W), lambda n: (n, 0, 0, 0))]
                     + [smem_spec] * 10,
            out_specs=pl.BlockSpec((1, 3, H, W), lambda n: (n, 0, 0, 0)),
            scratch_shapes=[
                pltpu.VMEM((12, H + 2 * PAD_H, W + PAD_W), jnp.float32),
            ],
        ),
        compiler_params=pltpu.CompilerParams(
            dimension_semantics=("parallel",),
            vmem_limit_bytes=vmem_limit),
        cost_estimate=pl.CostEstimate(
            flops=int(flops), transcendentals=0,
            bytes_accessed=int(bytes_accessed)),
    )(x,
      flat(w1), b1.astype(jnp.float32),
      flat(w2), b2.astype(jnp.float32),
      flat(w3), b3.astype(jnp.float32),
      flat(w4), b4.astype(jnp.float32),
      flat(w5), b5.astype(jnp.float32))


def init_params(key):
    """Deterministic PyTorch-like (kaiming-uniform bound) init; shapes from __init__."""
    shapes = [((3, 3, 1, 1), (3,)),
              ((3, 3, 3, 3), (3,)),
              ((3, 6, 5, 5), (3,)),
              ((3, 6, 7, 7), (3,)),
              ((3, 12, 3, 3), (3,))]
    params = []
    for i, (ws, bs) in enumerate(shapes):
        kw, kb = jax.random.split(jax.random.fold_in(key, i))
        fan_in = ws[1] * ws[2] * ws[3]
        bound = 1.0 / float(fan_in) ** 0.5
        w = jax.random.uniform(kw, ws, jnp.float32, -bound, bound)
        b = jax.random.uniform(kb, bs, jnp.float32, -bound, bound)
        params.append((w, b))
    return params


# ---- plain-JAX reference (for numerical check only) -------------------------
def _conv_ref(x, w, b, pad):
    y = jax.lax.conv_general_dilated(
        x, w, (1, 1), [(pad, pad), (pad, pad)],
        dimension_numbers=('NCHW', 'OIHW', 'NCHW'))
    return jax.nn.relu(y + b[None, :, None, None])


def forward_ref(x, params):
    (w1, b1), (w2, b2), (w3, b3), (w4, b4), (w5, b5) = params
    x1 = _conv_ref(x, w1, b1, 0)
    x2 = _conv_ref(x1, w2, b2, 1)
    x3 = _conv_ref(jnp.concatenate([x1, x2], 1), w3, b3, 2)
    x4 = _conv_ref(jnp.concatenate([x2, x3], 1), w4, b4, 3)
    x5 = _conv_ref(jnp.concatenate([x1, x2, x3, x4], 1), w5, b5, 1)
    return jax.nn.relu(x5 * x - x5 + 1.0)


if __name__ == "__main__":
    key = jax.random.PRNGKey(0)
    params = init_params(jax.random.fold_in(key, 1))
    # Small but lane-dense test image: N=2, C=3, H=16, W=128.
    x = jax.random.uniform(jax.random.fold_in(key, 2), (2, 3, 16, 128),
                           jnp.float32)

    out = aodnet_forward(x, params)
    jax.block_until_ready(out)

    ref = forward_ref(x, params)
    assert out.shape == ref.shape and out.dtype == ref.dtype
    err = float(jnp.max(jnp.abs(out - ref)))
    assert err < 1e-4, f"max abs error {err}"

    print("KERNEL_OK")
</pallas_src>

<mosaic_0001>
module attributes {stable_mosaic.version = 11 : i64} {
  func.func @aodnet_kernel(%arg0: i32, %arg1: memref<1x3x16x128xf32, #tpu.memory_space<vmem>>, %arg2: memref<9xf32, #tpu.memory_space<smem>>, %arg3: memref<3xf32, #tpu.memory_space<smem>>, %arg4: memref<81xf32, #tpu.memory_space<smem>>, %arg5: memref<3xf32, #tpu.memory_space<smem>>, %arg6: memref<450xf32, #tpu.memory_space<smem>>, %arg7: memref<3xf32, #tpu.memory_space<smem>>, %arg8: memref<882xf32, #tpu.memory_space<smem>>, %arg9: memref<3xf32, #tpu.memory_space<smem>>, %arg10: memref<324xf32, #tpu.memory_space<smem>>, %arg11: memref<3xf32, #tpu.memory_space<smem>>, %arg12: memref<1x3x16x128xf32, #tpu.memory_space<vmem>>, %arg13: memref<12x32x256xf32, #tpu.memory_space<vmem>>) attributes {dimension_semantics = [#tpu.dimension_semantics<parallel>], iteration_bounds = array<i64: 2>, scalar_prefetch = 0 : i64, scratch_operands = 1 : i64, tpu.core_type = #tpu.core_type<tc>, window_params = [{transform_indices = @transform_0, window_bounds = array<i64: 1, 3, 16, 128>}, {transform_indices = @transform_1, window_bounds = array<i64: 9>}, {transform_indices = @transform_2, window_bounds = array<i64: 3>}, {transform_indices = @transform_3, window_bounds = array<i64: 81>}, {transform_indices = @transform_4, window_bounds = array<i64: 3>}, {transform_indices = @transform_5, window_bounds = array<i64: 450>}, {transform_indices = @transform_6, window_bounds = array<i64: 3>}, {transform_indices = @transform_7, window_bounds = array<i64: 882>}, {transform_indices = @transform_8, window_bounds = array<i64: 3>}, {transform_indices = @transform_9, window_bounds = array<i64: 324>}, {transform_indices = @transform_10, window_bounds = array<i64: 3>}, {transform_indices = @transform_11, window_bounds = array<i64: 1, 3, 16, 128>}]} {
    %cst = arith.constant 0.000000e+00 : f32
    %0 = vector.broadcast %cst : f32 to vector<8x256xf32>
    %cst_0 = arith.constant 0.000000e+00 : f32
    %1 = vector.broadcast %cst_0 : f32 to vector<16x128xf32>
    %c0 = arith.constant 0 : index
    %c0_1 = arith.constant 0 : index
    %c0_2 = arith.constant 0 : index
    %2 = vector.load %arg13[%c0, %c0_1, %c0_2] : memref<12x32x256xf32, #tpu.memory_space<vmem>>, vector<1x8x256xf32>
    %3 = vector.shape_cast %2 : vector<1x8x256xf32> to vector<8x256xf32>
    %4 = vector.shape_cast %0 : vector<8x256xf32> to vector<1x8x256xf32>
    tpu.vector_store %arg13[%c0, %c0_1, %c0_2], %4 {strides = array<i32>} : memref<12x32x256xf32, #tpu.memory_space<vmem>>, vector<1x8x256xf32>,
    %c0_3 = arith.constant 0 : index
    %c24 = arith.constant 24 : index
    %c0_4 = arith.constant 0 : index
    %5 = vector.load %arg13[%c0_3, %c24, %c0_4] : memref<12x32x256xf32, #tpu.memory_space<vmem>>, vector<1x8x256xf32>
    %6 = vector.shape_cast %5 : vector<1x8x256xf32> to vector<8x256xf32>
    %7 = vector.shape_cast %0 : vector<8x256xf32> to vector<1x8x256xf32>
    tpu.vector_store %arg13[%c0_3, %c24, %c0_4], %7 {strides = array<i32>} : memref<12x32x256xf32, #tpu.memory_space<vmem>>, vector<1x8x256xf32>,
    %c0_5 = arith.constant 0 : index
    %c8 = arith.constant 8 : index
    %c128 = arith.constant 128 : index
    %8 = vector.load %arg13[%c0_5, %c8, %c128] : memref<12x32x256xf32, #tpu.memory_space<vmem>>, vector<1x16x128xf32>
    %9 = vector.shape_cast %8 : vector<1x16x128xf32> to vector<16x128xf32>
    %10 = vector.shape_cast %1 : vector<16x128xf32> to vector<1x16x128xf32>
    tpu.vector_store %arg13[%c0_5, %c8, %c128], %10 {strides = array<i32>} : memref<12x32x256xf32, #tpu.memory_space<vmem>>, vector<1x16x128xf32>,
    %c1 = arith.constant 1 : index
    %c0_6 = arith.constant 0 : index
    %c0_7 = arith.constant 0 : index
    %11 = vector.load %arg13[%c1, %c0_6, %c0_7] : memref<12x32x256xf32, #tpu.memory_space<vmem>>, vector<1x8x256xf32>
    %12 = vector.shape_cast %11 : vector<1x8x256xf32> to vector<8x256xf32>
    %13 = vector.shape_cast %0 : vector<8x256xf32> to vector<1x8x256xf32>
    tpu.vector_store %arg13[%c1, %c0_6, %c0_7], %13 {strides = array<i32>} : memref<12x32x256xf32, #tpu.memory_space<vmem>>, vector<1x8x256xf32>,
    %c1_8 = arith.constant 1 : index
    %c24_9 = arith.constant 24 : index
    %c0_10 = arith.constant 0 : index
    %14 = vector.load %arg13[%c1_8, %c24_9, %c0_10] : memref<12x32x256xf32, #tpu.memory_space<vmem>>, vector<1x8x256xf32>
    %15 = vector.shape_cast %14 : vector<1x8x256xf32> to vector<8x256xf32>
    %16 = vector.shape_cast %0 : vector<8x256xf32> to vector<1x8x256xf32>
    tpu.vector_store %arg13[%c1_8, %c24_9, %c0_10], %16 {strides = array<i32>} : memref<12x32x256xf32, #tpu.memory_space<vmem>>, vector<1x8x256xf32>,
    %c1_11 = arith.constant 1 : index
    %c8_12 = arith.constant 8 : index
    %c128_13 = arith.constant 128 : index
    %17 = vector.load %arg13[%c1_11, %c8_12, %c128_13] : memref<12x32x256xf32, #tpu.memory_space<vmem>>, vector<1x16x128xf32>
    %18 = vector.shape_cast %17 : vector<1x16x128xf32> to vector<16x128xf32>
    %19 = vector.shape_cast %1 : vector<16x128xf32> to vector<1x16x128xf32>
    tpu.vector_store %arg13[%c1_11, %c8_12, %c128_13], %19 {strides = array<i32>} : memref<12x32x256xf32, #tpu.memory_space<vmem>>, vector<1x16x128xf32>,
    %c2 = arith.constant 2 : index
    %c0_14 = arith.constant 0 : index
    %c0_15 = arith.constant 0 : index
    %20 = vector.load %arg13[%c2, %c0_14, %c0_15] : memref<12x32x256xf32, #tpu.memory_space<vmem>>, vector<1x8x256xf32>
    %21 = vector.shape_cast %20 : vector<1x8x256xf32> to vector<8x256xf32>
    %22 = vector.shape_cast %0 : vector<8x256xf32> to vector<1x8x256xf32>
    tpu.vector_store %arg13[%c2, %c0_14, %c0_15], %22 {strides = array<i32>} : memref<12x32x256xf32, #tpu.memory_space<vmem>>, vector<1x8x256xf32>,
    %c2_16 = arith.constant 2 : index
    %c24_17 = arith.constant 24 : index
    %c0_18 = arith.constant 0 : index
    %23 = vector.load %arg13[%c2_16, %c24_17, %c0_18] : memref<12x32x256xf32, #tpu.memory_space<vmem>>, vector<1x8x256xf32>
    %24 = vector.shape_cast %23 : vector<1x8x256xf32> to vector<8x256xf32>
    %25 = vector.shape_cast %0 : vector<8x256xf32> to vector<1x8x256xf32>
    tpu.vector_store %arg13[%c2_16, %c24_17, %c0_18], %25 {strides = array<i32>} : memref<12x32x256xf32, #tpu.memory_space<vmem>>, vector<1x8x256xf32>,
    %c2_19 = arith.constant 2 : index
    %c8_20 = arith.constant 8 : index
    %c128_21 = arith.constant 128 : index
    %26 = vector.load %arg13[%c2_19, %c8_20, %c128_21] : memref<12x32x256xf32, #tpu.memory_space<vmem>>, vector<1x16x128xf32>
    %27 = vector.shape_cast %26 : vector<1x16x128xf32> to vector<16x128xf32>
    %28 = vector.shape_cast %1 : vector<16x128xf32> to vector<1x16x128xf32>
    tpu.vector_store %arg13[%c2_19, %c8_20, %c128_21], %28 {strides = array<i32>} : memref<12x32x256xf32, #tpu.memory_space<vmem>>, vector<1x16x128xf32>,
    %c3 = arith.constant 3 : index
    %c0_22 = arith.constant 0 : index
    %c0_23 = arith.constant 0 : index
    %29 = vector.load %arg13[%c3, %c0_22, %c0_23] : memref<12x32x256xf32, #tpu.memory_space<vmem>>, vector<1x8x256xf32>
    %30 = vector.shape_cast %29 : vector<1x8x256xf32> to vector<8x256xf32>
    %31 = vector.shape_cast %0 : vector<8x256xf32> to vector<1x8x256xf32>
    tpu.vector_store %arg13[%c3, %c0_22, %c0_23], %31 {strides = array<i32>} : memref<12x32x256xf32, #tpu.memory_space<vmem>>, vector<1x8x256xf32>,
    %c3_24 = arith.constant 3 : index
    %c24_25 = arith.constant 24 : index
    %c0_26 = arith.constant 0 : index
    %32 = vector.load %arg13[%c3_24, %c24_25, %c0_26] : memref<12x32x256xf32, #tpu.memory_space<vmem>>, vector<1x8x256xf32>
    %33 = vector.shape_cast %32 : vector<1x8x256xf32> to vector<8x256xf32>
    %34 = vector.shape_cast %0 : vector<8x256xf32> to vector<1x8x256xf32>
    tpu.vector_store %arg13[%c3_24, %c24_25, %c0_26], %34 {strides = array<i32>} : memref<12x32x256xf32, #tpu.memory_space<vmem>>, vector<1x8x256xf32>,
    %c3_27 = arith.constant 3 : index
    %c8_28 = arith.constant 8 : index
    %c128_29 = arith.constant 128 : index
    %35 = vector.load %arg13[%c3_27, %c8_28, %c128_29] : memref<12x32x256xf32, #tpu.memory_space<vmem>>, vector<1x16x128xf32>
    %36 = vector.shape_cast %35 : vector<1x16x128xf32> to vector<16x128xf32>
    %37 = vector.shape_cast %1 : vector<16x128xf32> to vector<1x16x128xf32>
    tpu.vector_store %arg13[%c3_27, %c8_28, %c128_29], %37 {strides = array<i32>} : memref<12x32x256xf32, #tpu.memory_space<vmem>>, vector<1x16x128xf32>,
    %c4 = arith.constant 4 : index
    %c0_30 = arith.constant 0 : index
    %c0_31 = arith.constant 0 : index
    %38 = vector.load %arg13[%c4, %c0_30, %c0_31] : memref<12x32x256xf32, #tpu.memory_space<vmem>>, vector<1x8x256xf32>
    %39 = vector.shape_cast %38 : vector<1x8x256xf32> to vector<8x256xf32>
    %40 = vector.shape_cast %0 : vector<8x256xf32> to vector<1x8x256xf32>
    tpu.vector_store %arg13[%c4, %c0_30, %c0_31], %40 {strides = array<i32>} : memref<12x32x256xf32, #tpu.memory_space<vmem>>, vector<1x8x256xf32>,
    %c4_32 = arith.constant 4 : index
    %c24_33 = arith.constant 24 : index
    %c0_34 = arith.constant 0 : index
    %41 = vector.load %arg13[%c4_32, %c24_33, %c0_34] : memref<12x32x256xf32, #tpu.memory_space<vmem>>, vector<1x8x256xf32>
    %42 = vector.shape_cast %41 : vector<1x8x256xf32> to vector<8x256xf32>
    %43 = vector.shape_cast %0 : vector<8x256xf32> to vector<1x8x256xf32>
    tpu.vector_store %arg13[%c4_32, %c24_33, %c0_34], %43 {strides = array<i32>} : memref<12x32x256xf32, #tpu.memory_space<vmem>>, vector<1x8x256xf32>,
    %c4_35 = arith.constant 4 : index
    %c8_36 = arith.constant 8 : index
    %c128_37 = arith.constant 128 : index
    %44 = vector.load %arg13[%c4_35, %c8_36, %c128_37] : memref<12x32x256xf32, #tpu.memory_space<vmem>>, vector<1x16x128xf32>
    %45 = vector.shape_cast %44 : vector<1x16x128xf32> to vector<16x128xf32>
    %46 = vector.shape_cast %1 : vector<16x128xf32> to vector<1x16x128xf32>
    tpu.vector_store %arg13[%c4_35, %c8_36, %c128_37], %46 {strides = array<i32>} : memref<12x32x256xf32, #tpu.memory_space<vmem>>, vector<1x16x128xf32>,
    %c5 = arith.constant 5 : index
    %c0_38 = arith.constant 0 : index
    %c0_39 = arith.constant 0 : index
    %47 = vector.load %arg13[%c5, %c0_38, %c0_39] : memref<12x32x256xf32, #tpu.memory_space<vmem>>, vector<1x8x256xf32>
    %48 = vector.shape_cast %47 : vector<1x8x256xf32> to vector<8x256xf32>
    %49 = vector.shape_cast %0 : vector<8x256xf32> to vector<1x8x256xf32>
    tpu.vector_store %arg13[%c5, %c0_38, %c0_39], %49 {strides = array<i32>} : memref<12x32x256xf32, #tpu.memory_space<vmem>>, vector<1x8x256xf32>,
    %c5_40 = arith.constant 5 : index
    %c24_41 = arith.constant 24 : index
    %c0_42 = arith.constant 0 : index
    %50 = vector.load %arg13[%c5_40, %c24_41, %c0_42] : memref<12x32x256xf32, #tpu.memory_space<vmem>>, vector<1x8x256xf32>
    %51 = vector.shape_cast %50 : vector<1x8x256xf32> to vector<8x256xf32>
    %52 = vector.shape_cast %0 : vector<8x256xf32> to vector<1x8x256xf32>
    tpu.vector_store %arg13[%c5_40, %c24_41, %c0_42], %52 {strides = array<i32>} : memref<12x32x256xf32, #tpu.memory_space<vmem>>, vector<1x8x256xf32>,
    %c5_43 = arith.constant 5 : index
    %c8_44 = arith.constant 8 : index
    %c128_45 = arith.constant 128 : index
    %53 = vector.load %arg13[%c5_43, %c8_44, %c128_45] : memref<12x32x256xf32, #tpu.memory_space<vmem>>, vector<1x16x128xf32>
    %54 = vector.shape_cast %53 : vector<1x16x128xf32> to vector<16x128xf32>
    %55 = vector.shape_cast %1 : vector<16x128xf32> to vector<1x16x128xf32>
    tpu.vector_store %arg13[%c5_43, %c8_44, %c128_45], %55 {strides = array<i32>} : memref<12x32x256xf32, #tpu.memory_space<vmem>>, vector<1x16x128xf32>,
    %c6 = arith.constant 6 : index
    %c0_46 = arith.constant 0 : index
    %c0_47 = arith.constant 0 : index
    %56 = vector.load %arg13[%c6, %c0_46, %c0_47] : memref<12x32x256xf32, #tpu.memory_space<vmem>>, vector<1x8x256xf32>
    %57 = vector.shape_cast %56 : vector<1x8x256xf32> to vector<8x256xf32>
    %58 = vector.shape_cast %0 : vector<8x256xf32> to vector<1x8x256xf32>
    tpu.vector_store %arg13[%c6, %c0_46, %c0_47], %58 {strides = array<i32>} : memref<12x32x256xf32, #tpu.memory_space<vmem>>, vector<1x8x256xf32>,
    %c6_48 = arith.constant 6 : index
    %c24_49 = arith.constant 24 : index
    %c0_50 = arith.constant 0 : index
    %59 = vector.load %arg13[%c6_48, %c24_49, %c0_50] : memref<12x32x256xf32, #tpu.memory_space<vmem>>, vector<1x8x256xf32>
    %60 = vector.shape_cast %59 : vector<1x8x256xf32> to vector<8x256xf32>
    %61 = vector.shape_cast %0 : vector<8x256xf32> to vector<1x8x256xf32>
    tpu.vector_store %arg13[%c6_48, %c24_49, %c0_50], %61 {strides = array<i32>} : memref<12x32x256xf32, #tpu.memory_space<vmem>>, vector<1x8x256xf32>,
    %c6_51 = arith.constant 6 : index
    %c8_52 = arith.constant 8 : index
    %c128_53 = arith.constant 128 : index
    %62 = vector.load %arg13[%c6_51, %c8_52, %c128_53] : memref<12x32x256xf32, #tpu.memory_space<vmem>>, vector<1x16x128xf32>
    %63 = vector.shape_cast %62 : vector<1x16x128xf32> to vector<16x128xf32>
    %64 = vector.shape_cast %1 : vector<16x128xf32> to vector<1x16x128xf32>
    tpu.vector_store %arg13[%c6_51, %c8_52, %c128_53], %64 {strides = array<i32>} : memref<12x32x256xf32, #tpu.memory_space<vmem>>, vector<1x16x128xf32>,
    %c7 = arith.constant 7 : index
    %c0_54 = arith.constant 0 : index
    %c0_55 = arith.constant 0 : index
    %65 = vector.load %arg13[%c7, %c0_54, %c0_55] : memref<12x32x256xf32, #tpu.memory_space<vmem>>, vector<1x8x256xf32>
    %66 = vector.shape_cast %65 : vector<1x8x256xf32> to vector<8x256xf32>
    %67 = vector.shape_cast %0 : vector<8x256xf32> to vector<1x8x256xf32>
    tpu.vector_store %arg13[%c7, %c0_54, %c0_55], %67 {strides = array<i32>} : memref<12x32x256xf32, #tpu.memory_space<vmem>>, vector<1x8x256xf32>,
    %c7_56 = arith.constant 7 : index
    %c24_57 = arith.constant 24 : index
    %c0_58 = arith.constant 0 : index
    %68 = vector.load %arg13[%c7_56, %c24_57, %c0_58] : memref<12x32x256xf32, #tpu.memory_space<vmem>>, vector<1x8x256xf32>
    %69 = vector.shape_cast %68 : vector<1x8x256xf32> to vector<8x256xf32>
    %70 = vector.shape_cast %0 : vector<8x256xf32> to vector<1x8x256xf32>
    tpu.vector_store %arg13[%c7_56, %c24_57, %c0_58], %70 {strides = array<i32>} : memref<12x32x256xf32, #tpu.memory_space<vmem>>, vector<1x8x256xf32>,
    %c7_59 = arith.constant 7 : index
    %c8_60 = arith.constant 8 : index
    %c128_61 = arith.constant 128 : index
    %71 = vector.load %arg13[%c7_59, %c8_60, %c128_61] : memref<12x32x256xf32, #tpu.memory_space<vmem>>, vector<1x16x128xf32>
    %72 = vector.shape_cast %71 : vector<1x16x128xf32> to vector<16x128xf32>
    %73 = vector.shape_cast %1 : vector<16x128xf32> to vector<1x16x128xf32>
    tpu.vector_store %arg13[%c7_59, %c8_60, %c128_61], %73 {strides = array<i32>} : memref<12x32x256xf32, #tpu.memory_space<vmem>>, vector<1x16x128xf32>,
    %c8_62 = arith.constant 8 : index
    %c0_63 = arith.constant 0 : index
    %c0_64 = arith.constant 0 : index
    %74 = vector.load %arg13[%c8_62, %c0_63, %c0_64] : memref<12x32x256xf32, #tpu.memory_space<vmem>>, vector<1x8x256xf32>
    %75 = vector.shape_cast %74 : vector<1x8x256xf32> to vector<8x256xf32>
    %76 = vector.shape_cast %0 : vector<8x256xf32> to vector<1x8x256xf32>
    tpu.vector_store %arg13[%c8_62, %c0_63, %c0_64], %76 {strides = array<i32>} : memref<12x32x256xf32, #tpu.memory_space<vmem>>, vector<1x8x256xf32>,
    %c8_65 = arith.constant 8 : index
    %c24_66 = arith.constant 24 : index
    %c0_67 = arith.constant 0 : index
    %77 = vector.load %arg13[%c8_65, %c24_66, %c0_67] : memref<12x32x256xf32, #tpu.memory_space<vmem>>, vector<1x8x256xf32>
    %78 = vector.shape_cast %77 : vector<1x8x256xf32> to vector<8x256xf32>
    %79 = vector.shape_cast %0 : vector<8x256xf32> to vector<1x8x256xf32>
    tpu.vector_store %arg13[%c8_65, %c24_66, %c0_67], %79 {strides = array<i32>} : memref<12x32x256xf32, #tpu.memory_space<vmem>>, vector<1x8x256xf32>,
    %c8_68 = arith.constant 8 : index
    %c8_69 = arith.constant 8 : index
    %c128_70 = arith.constant 128 : index
    %80 = vector.load %arg13[%c8_68, %c8_69, %c128_70] : memref<12x32x256xf32, #tpu.memory_space<vmem>>, vector<1x16x128xf32>
    %81 = vector.shape_cast %80 : vector<1x16x128xf32> to vector<16x128xf32>
    %82 = vector.shape_cast %1 : vector<16x128xf32> to vector<1x16x128xf32>
    tpu.vector_store %arg13[%c8_68, %c8_69, %c128_70], %82 {strides = array<i32>} : memref<12x32x256xf32, #tpu.memory_space<vmem>>, vector<1x16x128xf32>,
    %c9 = arith.constant 9 : index
    %c0_71 = arith.constant 0 : index
    %c0_72 = arith.constant 0 : index
    %83 = vector.load %arg13[%c9, %c0_71, %c0_72] : memref<12x32x256xf32, #tpu.memory_space<vmem>>, vector<1x8x256xf32>
    %84 = vector.shape_cast %83 : vector<1x8x256xf32> to vector<8x256xf32>
    %85 = vector.shape_cast %0 : vector<8x256xf32> to vector<1x8x256xf32>
    tpu.vector_store %arg13[%c9, %c0_71, %c0_72], %85 {strides = array<i32>} : memref<12x32x256xf32, #tpu.memory_space<vmem>>, vector<1x8x256xf32>,
    %c9_73 = arith.constant 9 : index
    %c24_74 = arith.constant 24 : index
    %c0_75 = arith.constant 0 : index
    %86 = vector.load %arg13[%c9_73, %c24_74, %c0_75] : memref<12x32x256xf32, #tpu.memory_space<vmem>>, vector<1x8x256xf32>
    %87 = vector.shape_cast %86 : vector<1x8x256xf32> to vector<8x256xf32>
    %88 = vector.shape_cast %0 : vector<8x256xf32> to vector<1x8x256xf32>
    tpu.vector_store %arg13[%c9_73, %c24_74, %c0_75], %88 {strides = array<i32>} : memref<12x32x256xf32, #tpu.memory_space<vmem>>, vector<1x8x256xf32>,
    %c9_76 = arith.constant 9 : index
    %c8_77 = arith.constant 8 : index
    %c128_78 = arith.constant 128 : index
    %89 = vector.load %arg13[%c9_76, %c8_77, %c128_78] : memref<12x32x256xf32, #tpu.memory_space<vmem>>, vector<1x16x128xf32>
    %90 = vector.shape_cast %89 : vector<1x16x128xf32> to vector<16x128xf32>
    %91 = vector.shape_cast %1 : vector<16x128xf32> to vector<1x16x128xf32>
    tpu.vector_store %arg13[%c9_76, %c8_77, %c128_78], %91 {strides = array<i32>} : memref<12x32x256xf32, #tpu.memory_space<vmem>>, vector<1x16x128xf32>,
    %c10 = arith.constant 10 : index
    %c0_79 = arith.constant 0 : index
    %c0_80 = arith.constant 0 : index
    %92 = vector.load %arg13[%c10, %c0_79, %c0_80] : memref<12x32x256xf32, #tpu.memory_space<vmem>>, vector<1x8x256xf32>
    %93 = vector.shape_cast %92 : vector<1x8x256xf32> to vector<8x256xf32>
    %94 = vector.shape_cast %0 : vector<8x256xf32> to vector<1x8x256xf32>
    tpu.vector_store %arg13[%c10, %c0_79, %c0_80], %94 {strides = array<i32>} : memref<12x32x256xf32, #tpu.memory_space<vmem>>, vector<1x8x256xf32>,
    %c10_81 = arith.constant 10 : index
    %c24_82 = arith.constant 24 : index
    %c0_83 = arith.constant 0 : index
    %95 = vector.load %arg13[%c10_81, %c24_82, %c0_83] : memref<12x32x256xf32, #tpu.memory_space<vmem>>, vector<1x8x256xf32>
    %96 = vector.shape_cast %95 : vector<1x8x256xf32> to vector<8x256xf32>
    %97 = vector.shape_cast %0 : vector<8x256xf32> to vector<1x8x256xf32>
    tpu.vector_store %arg13[%c10_81, %c24_82, %c0_83], %97 {strides = array<i32>} : memref<12x32x256xf32, #tpu.memory_space<vmem>>, vector<1x8x256xf32>,
    %c10_84 = arith.constant 10 : index
    %c8_85 = arith.constant 8 : index
    %c128_86 = arith.constant 128 : index
    %98 = vector.load %arg13[%c10_84, %c8_85, %c128_86] : memref<12x32x256xf32, #tpu.memory_space<vmem>>, vector<1x16x128xf32>
    %99 = vector.shape_cast %98 : vector<1x16x128xf32> to vector<16x128xf32>
    %100 = vector.shape_cast %1 : vector<16x128xf32> to vector<1x16x128xf32>
    tpu.vector_store %arg13[%c10_84, %c8_85, %c128_86], %100 {strides = array<i32>} : memref<12x32x256xf32, #tpu.memory_space<vmem>>, vector<1x16x128xf32>,
    %c11 = arith.constant 11 : index
    %c0_87 = arith.constant 0 : index
    %c0_88 = arith.constant 0 : index
    %101 = vector.load %arg13[%c11, %c0_87, %c0_88] : memref<12x32x256xf32, #tpu.memory_space<vmem>>, vector<1x8x256xf32>
    %102 = vector.shape_cast %101 : vector<1x8x256xf32> to vector<8x256xf32>
    %103 = vector.shape_cast %0 : vector<8x256xf32> to vector<1x8x256xf32>
    tpu.vector_store %arg13[%c11, %c0_87, %c0_88], %103 {strides = array<i32>} : memref<12x32x256xf32, #tpu.memory_space<vmem>>, vector<1x8x256xf32>,
    %c11_89 = arith.constant 11 : index
    %c24_90 = arith.constant 24 : index
    %c0_91 = arith.constant 0 : index
    %104 = vector.load %arg13[%c11_89, %c24_90, %c0_91] : memref<12x32x256xf32, #tpu.memory_space<vmem>>, vector<1x8x256xf32>
    %105 = vector.shape_cast %104 : vector<1x8x256xf32> to vector<8x256xf32>
    %106 = vector.shape_cast %0 : vector<8x256xf32> to vector<1x8x256xf32>
    tpu.vector_store %arg13[%c11_89, %c24_90, %c0_91], %106 {strides = array<i32>} : memref<12x32x256xf32, #tpu.memory_space<vmem>>, vector<1x8x256xf32>,
    %c11_92 = arith.constant 11 : index
    %c8_93 = arith.constant 8 : index
    %c128_94 = arith.constant 128 : index
    %107 = vector.load %arg13[%c11_92, %c8_93, %c128_94] : memref<12x32x256xf32, #tpu.memory_space<vmem>>, vector<1x16x128xf32>
    %108 = vector.shape_cast %107 : vector<1x16x128xf32> to vector<16x128xf32>
    %109 = vector.shape_cast %1 : vector<16x128xf32> to vector<1x16x128xf32>
    tpu.vector_store %arg13[%c11_92, %c8_93, %c128_94], %109 {strides = array<i32>} : memref<12x32x256xf32, #tpu.memory_space<vmem>>, vector<1x16x128xf32>,
    %c0_95 = arith.constant 0 : index
    %c0_96 = arith.constant 0 : index
    %c0_97 = arith.constant 0 : index
    %c0_98 = arith.constant 0 : index
    %110 = vector.load %arg1[%c0_95, %c0_96, %c0_97, %c0_98] : memref<1x3x16x128xf32, #tpu.memory_space<vmem>>, vector<1x1x16x128xf32>
    %111 = vector.shape_cast %110 : vector<1x1x16x128xf32> to vector<16x128xf32>
    %c0_99 = arith.constant 0 : index
    %112 = memref.load %arg2[%c0_99] : memref<9xf32, #tpu.memory_space<smem>>
    %113 = vector.broadcast %112 : f32 to vector<16x128xf32>
    %114 = arith.mulf %111, %113 : vector<16x128xf32>
    %c0_100 = arith.constant 0 : index
    %c1_101 = arith.constant 1 : index
    %c0_102 = arith.constant 0 : index
    %c0_103 = arith.constant 0 : index
    %115 = vector.load %arg1[%c0_100, %c1_101, %c0_102, %c0_103] : memref<1x3x16x128xf32, #tpu.memory_space<vmem>>, vector<1x1x16x128xf32>
    %116 = vector.shape_cast %115 : vector<1x1x16x128xf32> to vector<16x128xf32>
    %c1_104 = arith.constant 1 : index
    %117 = memref.load %arg2[%c1_104] : memref<9xf32, #tpu.memory_space<smem>>
    %118 = vector.broadcast %117 : f32 to vector<16x128xf32>
    %119 = arith.mulf %116, %118 : vector<16x128xf32>
    %120 = arith.addf %114, %119 : vector<16x128xf32>
    %c0_105 = arith.constant 0 : index
    %c2_106 = arith.constant 2 : index
    %c0_107 = arith.constant 0 : index
    %c0_108 = arith.constant 0 : index
    %121 = vector.load %arg1[%c0_105, %c2_106, %c0_107, %c0_108] : memref<1x3x16x128xf32, #tpu.memory_space<vmem>>, vector<1x1x16x128xf32>
    %122 = vector.shape_cast %121 : vector<1x1x16x128xf32> to vector<16x128xf32>
    %c2_109 = arith.constant 2 : index
    %123 = memref.load %arg2[%c2_109] : memref<9xf32, #tpu.memory_space<smem>>
    %124 = vector.broadcast %123 : f32 to vector<16x128xf32>
    %125 = arith.mulf %122, %124 : vector<16x128xf32>
    %126 = arith.addf %120, %125 : vector<16x128xf32>
    %c0_110 = arith.constant 0 : index
    %127 = memref.load %arg3[%c0_110] : memref<3xf32, #tpu.memory_space<smem>>
    %128 = vector.broadcast %127 : f32 to vector<16x128xf32>
    %129 = arith.addf %126, %128 : vector<16x128xf32>
    %cst_111 = arith.constant 0.000000e+00 : f32
    %130 = vector.broadcast %cst_111 : f32 to vector<16x128xf32>
    %131 = arith.maximumf %129, %130 : vector<16x128xf32>
    %c0_112 = arith.constant 0 : index
    %c0_113 = arith.constant 0 : index
    %c0_114 = arith.constant 0 : index
    %c0_115 = arith.constant 0 : index
    %132 = vector.load %arg1[%c0_112, %c0_113, %c0_114, %c0_115] : memref<1x3x16x128xf32, #tpu.memory_space<vmem>>, vector<1x1x16x128xf32>
    %133 = vector.shape_cast %132 : vector<1x1x16x128xf32> to vector<16x128xf32>
    %c3_116 = arith.constant 3 : index
    %134 = memref.load %arg2[%c3_116] : memref<9xf32, #tpu.memory_space<smem>>
    %135 = vector.broadcast %134 : f32 to vector<16x128xf32>
    %136 = arith.mulf %133, %135 : vector<16x128xf32>
    %c0_117 = arith.constant 0 : index
    %c1_118 = arith.constant 1 : index
    %c0_119 = arith.constant 0 : index
    %c0_120 = arith.constant 0 : index
    %137 = vector.load %arg1[%c0_117, %c1_118, %c0_119, %c0_120] : memref<1x3x16x128xf32, #tpu.memory_space<vmem>>, vector<1x1x16x128xf32>
    %138 = vector.shape_cast %137 : vector<1x1x16x128xf32> to vector<16x128xf32>
    %c4_121 = arith.constant 4 : index
    %139 = memref.load %arg2[%c4_121] : memref<9xf32, #tpu.memory_space<smem>>
    %140 = vector.broadcast %139 : f32 to vector<16x128xf32>
    %141 = arith.mulf %138, %140 : vector<16x128xf32>
    %142 = arith.addf %136, %141 : vector<16x128xf32>
    %c0_122 = arith.constant 0 : index
    %c2_123 = arith.constant 2 : index
    %c0_124 = arith.constant 0 : index
    %c0_125 = arith.constant 0 : index
    %143 = vector.load %arg1[%c0_122, %c2_123, %c0_124, %c0_125] : memref<1x3x16x128xf32, #tpu.memory_space<vmem>>, vector<1x1x16x128xf32>
    %144 = vector.shape_cast %143 : vector<1x1x16x128xf32> to vector<16x128xf32>
    %c5_126 = arith.constant 5 : index
    %145 = memref.load %arg2[%c5_126] : memref<9xf32, #tpu.memory_space<smem>>
    %146 = vector.broadcast %145 : f32 to vector<16x128xf32>
    %147 = arith.mulf %144, %146 : vector<16x128xf32>
    %148 = arith.addf %142, %147 : vector<16x128xf32>
    %c1_127 = arith.constant 1 : index
    %149 = memref.load %arg3[%c1_127] : memref<3xf32, #tpu.memory_space<smem>>
    %150 = vector.broadcast %149 : f32 to vector<16x128xf32>
    %151 = arith.addf %148, %150 : vector<16x128xf32>
    %cst_128 = arith.constant 0.000000e+00 : f32
    %152 = vector.broadcast %cst_128 : f32 to vector<16x128xf32>
    %153 = arith.maximumf %151, %152 : vector<16x128xf32>
    %c0_129 = arith.constant 0 : index
    %c0_130 = arith.constant 0 : index
    %c0_131 = arith.constant 0 : index
    %c0_132 = arith.constant 0 : index
    %154 = vector.load %arg1[%c0_129, %c0_130, %c0_131, %c0_132] : memref<1x3x16x128xf32, #tpu.memory_space<vmem>>, vector<1x1x16x128xf32>
    %155 = vector.shape_cast %154 : vector<1x1x16x128xf32> to vector<16x128xf32>
    %c6_133 = arith.constant 6 : index
    %156 = memref.load %arg2[%c6_133] : memref<9xf32, #tpu.memory_space<smem>>
    %157 = vector.broadcast %156 : f32 to vector<16x128xf32>
    %158 = arith.mulf %155, %157 : vector<16x128xf32>
    %c0_134 = arith.constant 0 : index
    %c1_135 = arith.constant 1 : index
    %c0_136 = arith.constant 0 : index
    %c0_137 = arith.constant 0 : index
    %159 = vector.load %arg1[%c0_134, %c1_135, %c0_136, %c0_137] : memref<1x3x16x128xf32, #tpu.memory_space<vmem>>, vector<1x1x16x128xf32>
    %160 = vector.shape_cast %159 : vector<1x1x16x128xf32> to vector<16x128xf32>
    %c7_138 = arith.constant 7 : index
    %161 = memref.load %arg2[%c7_138] : memref<9xf32, #tpu.memory_space<smem>>
    %162 = vector.broadcast %161 : f32 to vector<16x128xf32>
    %163 = arith.mulf %160, %162 : vector<16x128xf32>
    %164 = arith.addf %158, %163 : vector<16x128xf32>
    %c0_139 = arith.constant 0 : index
    %c2_140 = arith.constant 2 : index
    %c0_141 = arith.constant 0 : index
    %c0_142 = arith.constant 0 : index
    %165 = vector.load %arg1[%c0_139, %c2_140, %c0_141, %c0_142] : memref<1x3x16x128xf32, #tpu.memory_space<vmem>>, vector<1x1x16x128xf32>
    %166 = vector.shape_cast %165 : vector<1x1x16x128xf32> to vector<16x128xf32>
    %c8_143 = arith.constant 8 : index
    %167 = memref.load %arg2[%c8_143] : memref<9xf32, #tpu.memory_space<smem>>
    %168 = vector.broadcast %167 : f32 to vector<16x128xf32>
    %169 = arith.mulf %166, %168 : vector<16x128xf32>
    %170 = arith.addf %164, %169 : vector<16x128xf32>
    %c2_144 = arith.constant 2 : index
    %171 = memref.load %arg3[%c2_144] : memref<3xf32, #tpu.memory_space<smem>>
    %172 = vector.broadcast %171 : f32 to vector<16x128xf32>
    %173 = arith.addf %170, %172 : vector<16x128xf32>
    %cst_145 = arith.constant 0.000000e+00 : f32
    %174 = vector.broadcast %cst_145 : f32 to vector<16x128xf32>
    %175 = arith.maximumf %173, %174 : vector<16x128xf32>
    %c0_146 = arith.constant 0 : index
    %c8_147 = arith.constant 8 : index
    %c0_148 = arith.constant 0 : index
    %176 = vector.load %arg13[%c0_146, %c8_147, %c0_148] : memref<12x32x256xf32, #tpu.memory_space<vmem>>, vector<1x16x128xf32>
    %177 = vector.shape_cast %176 : vector<1x16x128xf32> to vector<16x128xf32>
    %178 = vector.shape_cast %131 : vector<16x128xf32> to vector<1x16x128xf32>
    tpu.vector_store %arg13[%c0_146, %c8_147, %c0_148], %178 {strides = array<i32>} : memref<12x32x256xf32, #tpu.memory_space<vmem>>, vector<1x16x128xf32>,
    %c1_149 = arith.constant 1 : index
    %c8_150 = arith.constant 8 : index
    %c0_151 = arith.constant 0 : index
    %179 = vector.load %arg13[%c1_149, %c8_150, %c0_151] : memref<12x32x256xf32, #tpu.memory_space<vmem>>, vector<1x16x128xf32>
    %180 = vector.shape_cast %179 : vector<1x16x128xf32> to vector<16x128xf32>
    %181 = vector.shape_cast %153 : vector<16x128xf32> to vector<1x16x128xf32>
    tpu.vector_store %arg13[%c1_149, %c8_150, %c0_151], %181 {strides = array<i32>} : memref<12x32x256xf32, #tpu.memory_space<vmem>>, vector<1x16x128xf32>,
    %c2_152 = arith.constant 2 : index
    %c8_153 = arith.constant 8 : index
    %c0_154 = arith.constant 0 : index
    %182 = vector.load %arg13[%c2_152, %c8_153, %c0_154] : memref<12x32x256xf32, #tpu.memory_space<vmem>>, vector<1x16x128xf32>
    %183 = vector.shape_cast %182 : vector<1x16x128xf32> to vector<16x128xf32>
    %184 = vector.shape_cast %175 : vector<16x128xf32> to vector<1x16x128xf32>
    tpu.vector_store %arg13[%c2_152, %c8_153, %c0_154], %184 {strides = array<i32>} : memref<12x32x256xf32, #tpu.memory_space<vmem>>, vector<1x16x128xf32>,
    %cst_155 = arith.constant 0.000000e+00 : f32
    %185 = vector.broadcast %cst_155 : f32 to vector<16x128xf32>
    %c0_i32 = arith.constant 0 : i32
    %c3_i32 = arith.constant 3 : i32
    %186 = arith.addi %c0_i32, %c3_i32 : i32
    %c1_i32 = arith.constant 1 : i32
    %187:3 = scf.for %arg14 = %c0_i32 to %186 step %c1_i32 iter_args(%arg15 = %185, %arg16 = %185, %arg17 = %185) -> (vector<16x128xf32>, vector<16x128xf32>, vector<16x128xf32>)  : i32 {
      %c0_i32_251 = arith.constant 0 : i32
      %317 = arith.addi %c0_i32_251, %arg14 : i32
      %c0_i32_252 = arith.constant 0 : i32
      %c0_i32_253 = arith.constant 0 : i32
      %318 = tpu.memref_slice %arg13[%317, %c0_i32_252, %c0_i32_253] : memref<12x32x256xf32, #tpu.memory_space<vmem>> -> memref<1x32x256xf32, #tpu.memory_space<vmem>>
      %319 = tpu.memref_squeeze %318 : memref<1x32x256xf32, #tpu.memory_space<vmem>> -> memref<32x256xf32, #tpu.memory_space<vmem>>
      %c7_254 = arith.constant 7 : index
      %c0_255 = arith.constant 0 : index
      %320 = vector.load %319[%c7_254, %c0_255] : memref<32x256xf32, #tpu.memory_space<vmem>>, vector<16x256xf32>
      %c1_i32_256 = arith.constant 1 : i32
      %321 = tpu.dynamic_rotate %320 by %c1_i32_256 dim 1 : vector<16x256xf32>, i32 -> vector<16x256xf32>
      %322 = vector.extract_strided_slice %321 {offsets = [0, 0], sizes = [16, 128], strides = [1, 1]} : vector<16x256xf32> to vector<16x128xf32>
      %c0_i32_257 = arith.constant 0 : i32
      %323 = arith.addi %c0_i32_257, %arg14 : i32
      %c9_i32 = arith.constant 9 : i32
      %324 = arith.muli %323, %c9_i32 : i32
      %c0_i32_258 = arith.constant 0 : i32
      %325 = arith.addi %324, %c0_i32_258 : i32
      %c0_i32_259 = arith.constant 0 : i32
      %326 = arith.addi %325, %c0_i32_259 : i32
      %327 = arith.index_cast %326 : i32 to index
      %328 = memref.load %arg4[%327] : memref<81xf32, #tpu.memory_space<smem>>
      %329 = vector.broadcast %328 : f32 to vector<16x128xf32>
      %330 = arith.mulf %322, %329 : vector<16x128xf32>
      %331 = arith.addf %arg15, %330 : vector<16x128xf32>
      %c3_i32_260 = arith.constant 3 : i32
      %332 = arith.addi %c3_i32_260, %arg14 : i32
      %c9_i32_261 = arith.constant 9 : i32
      %333 = arith.muli %332, %c9_i32_261 : i32
      %c0_i32_262 = arith.constant 0 : i32
      %334 = arith.addi %333, %c0_i32_262 : i32
      %c0_i32_263 = arith.constant 0 : i32
      %335 = arith.addi %334, %c0_i32_263 : i32
      %336 = arith.index_cast %335 : i32 to index
      %337 = memref.load %arg4[%336] : memref<81xf32, #tpu.memory_space<smem>>
      %338 = vector.broadcast %337 : f32 to vector<16x128xf32>
      %339 = arith.mulf %322, %338 : vector<16x128xf32>
      %340 = arith.addf %arg16, %339 : vector<16x128xf32>
      %c6_i32_264 = arith.constant 6 : i32
      %341 = arith.addi %c6_i32_264, %arg14 : i32
      %c9_i32_265 = arith.constant 9 : i32
      %342 = arith.muli %341, %c9_i32_265 : i32
      %c0_i32_266 = arith.constant 0 : i32
      %343 = arith.addi %342, %c0_i32_266 : i32
      %c0_i32_267 = arith.constant 0 : i32
      %344 = arith.addi %343, %c0_i32_267 : i32
      %345 = arith.index_cast %344 : i32 to index
      %346 = memref.load %arg4[%345] : memref<81xf32, #tpu.memory_space<smem>>
      %347 = vector.broadcast %346 : f32 to vector<16x128xf32>
      %348 = arith.mulf %322, %347 : vector<16x128xf32>
      %349 = arith.addf %arg17, %348 : vector<16x128xf32>
      %350 = vector.extract_strided_slice %320 {offsets = [0, 0], sizes = [16, 128], strides = [1, 1]} : vector<16x256xf32> to vector<16x128xf32>
      %c0_i32_268 = arith.constant 0 : i32
      %351 = arith.addi %c0_i32_268, %arg14 : i32
      %c9_i32_269 = arith.constant 9 : i32
      %352 = arith.muli %351, %c9_i32_269 : i32
      %c0_i32_270 = arith.constant 0 : i32
      %353 = arith.addi %352, %c0_i32_270 : i32
      %c1_i32_271 = arith.constant 1 : i32
      %354 = arith.addi %353, %c1_i32_271 : i32
      %355 = arith.index_cast %354 : i32 to index
      %356 = memref.load %arg4[%355] : memref<81xf32, #tpu.memory_space<smem>>
      %357 = vector.broadcast %356 : f32 to vector<16x128xf32>
      %358 = arith.mulf %350, %357 : vector<16x128xf32>
      %359 = arith.addf %331, %358 : vector<16x128xf32>
      %c3_i32_272 = arith.constant 3 : i32
      %360 = arith.addi %c3_i32_272, %arg14 : i32
      %c9_i32_273 = arith.constant 9 : i32
      %361 = arith.muli %360, %c9_i32_273 : i32
      %c0_i32_274 = arith.constant 0 : i32
      %362 = arith.addi %361, %c0_i32_274 : i32
      %c1_i32_275 = arith.constant 1 : i32
      %363 = arith.addi %362, %c1_i32_275 : i32
      %364 = arith.index_cast %363 : i32 to index
      %365 = memref.load %arg4[%364] : memref<81xf32, #tpu.memory_space<smem>>
      %366 = vector.broadcast %365 : f32 to vector<16x128xf32>
      %367 = arith.mulf %350, %366 : vector<16x128xf32>
      %368 = arith.addf %340, %367 : vector<16x128xf32>
      %c6_i32_276 = arith.constant 6 : i32
      %369 = arith.addi %c6_i32_276, %arg14 : i32
      %c9_i32_277 = arith.constant 9 : i32
      %370 = arith.muli %369, %c9_i32_277 : i32
      %c0_i32_278 = arith.constant 0 : i32
      %371 = arith.addi %370, %c0_i32_278 : i32
      %c1_i32_279 = arith.constant 1 : i32
      %372 = arith.addi %371, %c1_i32_279 : i32
      %373 = arith.index_cast %372 : i32 to index
      %374 = memref.load %arg4[%373] : memref<81xf32, #tpu.memory_space<smem>>
      %375 = vector.broadcast %374 : f32 to vector<16x128xf32>
      %376 = arith.mulf %350, %375 : vector<16x128xf32>
      %377 = arith.addf %349, %376 : vector<16x128xf32>
      %c255_i32 = arith.constant 255 : i32
      %378 = tpu.dynamic_rotate %320 by %c255_i32 dim 1 : vector<16x256xf32>, i32 -> vector<16x256xf32>
      %379 = vector.extract_strided_slice %378 {offsets = [0, 0], sizes = [16, 128], strides = [1, 1]} : vector<16x256xf32> to vector<16x128xf32>
      %c0_i32_280 = arith.constant 0 : i32
      %380 = arith.addi %c0_i32_280, %arg14 : i32
      %c9_i32_281 = arith.constant 9 : i32
      %381 = arith.muli %380, %c9_i32_281 : i32
      %c0_i32_282 = arith.constant 0 : i32
      %382 = arith.addi %381, %c0_i32_282 : i32
      %c2_i32 = arith.constant 2 : i32
      %383 = arith.addi %382, %c2_i32 : i32
      %384 = arith.index_cast %383 : i32 to index
      %385 = memref.load %arg4[%384] : memref<81xf32, #tpu.memory_space<smem>>
      %386 = vector.broadcast %385 : f32 to vector<16x128xf32>
      %387 = arith.mulf %379, %386 : vector<16x128xf32>
      %388 = arith.addf %359, %387 : vector<16x128xf32>
      %c3_i32_283 = arith.constant 3 : i32
      %389 = arith.addi %c3_i32_283, %arg14 : i32
      %c9_i32_284 = arith.constant 9 : i32
      %390 = arith.muli %389, %c9_i32_284 : i32
      %c0_i32_285 = arith.constant 0 : i32
      %391 = arith.addi %390, %c0_i32_285 : i32
      %c2_i32_286 = arith.constant 2 : i32
      %392 = arith.addi %391, %c2_i32_286 : i32
      %393 = arith.index_cast %392 : i32 to index
      %394 = memref.load %arg4[%393] : memref<81xf32, #tpu.memory_space<smem>>
      %395 = vector.broadcast %394 : f32 to vector<16x128xf32>
      %396 = arith.mulf %379, %395 : vector<16x128xf32>
      %397 = arith.addf %368, %396 : vector<16x128xf32>
      %c6_i32_287 = arith.constant 6 : i32
      %398 = arith.addi %c6_i32_287, %arg14 : i32
      %c9_i32_288 = arith.constant 9 : i32
      %399 = arith.muli %398, %c9_i32_288 : i32
      %c0_i32_289 = arith.constant 0 : i32
      %400 = arith.addi %399, %c0_i32_289 : i32
      %c2_i32_290 = arith.constant 2 : i32
      %401 = arith.addi %400, %c2_i32_290 : i32
      %402 = arith.index_cast %401 : i32 to index
      %403 = memref.load %arg4[%402] : memref<81xf32, #tpu.memory_space<smem>>
      %404 = vector.broadcast %403 : f32 to vector<16x128xf32>
      %405 = arith.mulf %379, %404 : vector<16x128xf32>
      %406 = arith.addf %377, %405 : vector<16x128xf32>
      %c0_i32_291 = arith.constant 0 : i32
      %c0_i32_292 = arith.constant 0 : i32
      %407 = tpu.memref_slice %arg13[%317, %c0_i32_291, %c0_i32_292] : memref<12x32x256xf32, #tpu.memory_space<vmem>> -> memref<1x32x256xf32, #tpu.memory_space<vmem>>
      %408 = tpu.memref_squeeze %407 : memref<1x32x256xf32, #tpu.memory_space<vmem>> -> memref<32x256xf32, #tpu.memory_space<vmem>>
      %c8_293 = arith.constant 8 : index
      %c0_294 = arith.constant 0 : index
      %409 = vector.load %408[%c8_293, %c0_294] : memref<32x256xf32, #tpu.memory_space<vmem>>, vector<16x256xf32>
      %c1_i32_295 = arith.constant 1 : i32
      %410 = tpu.dynamic_rotate %409 by %c1_i32_295 dim 1 : vector<16x256xf32>, i32 -> vector<16x256xf32>
      %411 = vector.extract_strided_slice %410 {offsets = [0, 0], sizes = [16, 128], strides = [1, 1]} : vector<16x256xf32> to vector<16x128xf32>
      %c0_i32_296 = arith.constant 0 : i32
      %412 = arith.addi %c0_i32_296, %arg14 : i32
      %c9_i32_297 = arith.constant 9 : i32
      %413 = arith.muli %412, %c9_i32_297 : i32
      %c3_i32_298 = arith.constant 3 : i32
      %414 = arith.addi %413, %c3_i32_298 : i32
      %c0_i32_299 = arith.constant 0 : i32
      %415 = arith.addi %414, %c0_i32_299 : i32
      %416 = arith.index_cast %415 : i32 to index
      %417 = memref.load %arg4[%416] : memref<81xf32, #tpu.memory_space<smem>>
      %418 = vector.broadcast %417 : f32 to vector<16x128xf32>
      %419 = arith.mulf %411, %418 : vector<16x128xf32>
      %420 = arith.addf %388, %419 : vector<16x128xf32>
      %c3_i32_300 = arith.constant 3 : i32
      %421 = arith.addi %c3_i32_300, %arg14 : i32
      %c9_i32_301 = arith.constant 9 : i32
      %422 = arith.muli %421, %c9_i32_301 : i32
      %c3_i32_302 = arith.constant 3 : i32
      %423 = arith.addi %422, %c3_i32_302 : i32
      %c0_i32_303 = arith.constant 0 : i32
      %424 = arith.addi %423, %c0_i32_303 : i32
      %425 = arith.index_cast %424 : i32 to index
      %426 = memref.load %arg4[%425] : memref<81xf32, #tpu.memory_space<smem>>
      %427 = vector.broadcast %426 : f32 to vector<16x128xf32>
      %428 = arith.mulf %411, %427 : vector<16x128xf32>
      %429 = arith.addf %397, %428 : vector<16x128xf32>
      %c6_i32_304 = arith.constant 6 : i32
      %430 = arith.addi %c6_i32_304, %arg14 : i32
      %c9_i32_305 = arith.constant 9 : i32
      %431 = arith.muli %430, %c9_i32_305 : i32
      %c3_i32_306 = arith.constant 3 : i32
      %432 = arith.addi %431, %c3_i32_306 : i32
      %c0_i32_307 = arith.constant 0 : i32
      %433 = arith.addi %432, %c0_i32_307 : i32
      %434 = arith.index_cast %433 : i32 to index
      %435 = memref.load %arg4[%434] : memref<81xf32, #tpu.memory_space<smem>>
      %436 = vector.broadcast %435 : f32 to vector<16x128xf32>
      %437 = arith.mulf %411, %436 : vector<16x128xf32>
      %438 = arith.addf %406, %437 : vector<16x128xf32>
      %439 = vector.extract_strided_slice %409 {offsets = [0, 0], sizes = [16, 128], strides = [1, 1]} : vector<16x256xf32> to vector<16x128xf32>
      %c0_i32_308 = arith.constant 0 : i32
      %440 = arith.addi %c0_i32_308, %arg14 : i32
      %c9_i32_309 = arith.constant 9 : i32
      %441 = arith.muli %440, %c9_i32_309 : i32
      %c3_i32_310 = arith.constant 3 : i32
      %442 = arith.addi %441, %c3_i32_310 : i32
      %c1_i32_311 = arith.constant 1 : i32
      %443 = arith.addi %442, %c1_i32_311 : i32
      %444 = arith.index_cast %443 : i32 to index
      %445 = memref.load %arg4[%444] : memref<81xf32, #tpu.memory_space<smem>>
      %446 = vector.broadcast %445 : f32 to vector<16x128xf32>
      %447 = arith.mulf %439, %446 : vector<16x128xf32>
      %448 = arith.addf %420, %447 : vector<16x128xf32>
      %c3_i32_312 = arith.constant 3 : i32
      %449 = arith.addi %c3_i32_312, %arg14 : i32
      %c9_i32_313 = arith.constant 9 : i32
      %450 = arith.muli %449, %c9_i32_313 : i32
      %c3_i32_314 = arith.constant 3 : i32
      %451 = arith.addi %450, %c3_i32_314 : i32
      %c1_i32_315 = arith.constant 1 : i32
      %452 = arith.addi %451, %c1_i32_315 : i32
      %453 = arith.index_cast %452 : i32 to index
      %454 = memref.load %arg4[%453] : memref<81xf32, #tpu.memory_space<smem>>
      %455 = vector.broadcast %454 : f32 to vector<16x128xf32>
      %456 = arith.mulf %439, %455 : vector<16x128xf32>
      %457 = arith.addf %429, %456 : vector<16x128xf32>
      %c6_i32_316 = arith.constant 6 : i32
      %458 = arith.addi %c6_i32_316, %arg14 : i32
      %c9_i32_317 = arith.constant 9 : i32
      %459 = arith.muli %458, %c9_i32_317 : i32
      %c3_i32_318 = arith.constant 3 : i32
      %460 = arith.addi %459, %c3_i32_318 : i32
      %c1_i32_319 = arith.constant 1 : i32
      %461 = arith.addi %460, %c1_i32_319 : i32
      %462 = arith.index_cast %461 : i32 to index
      %463 = memref.load %arg4[%462] : memref<81xf32, #tpu.memory_space<smem>>
      %464 = vector.broadcast %463 : f32 to vector<16x128xf32>
      %465 = arith.mulf %439, %464 : vector<16x128xf32>
      %466 = arith.addf %438, %465 : vector<16x128xf32>
      %c255_i32_320 = arith.constant 255 : i32
      %467 = tpu.dynamic_rotate %409 by %c255_i32_320 dim 1 : vector<16x256xf32>, i32 -> vector<16x256xf32>
      %468 = vector.extract_strided_slice %467 {offsets = [0, 0], sizes = [16, 128], strides = [1, 1]} : vector<16x256xf32> to vector<16x128xf32>
      %c0_i32_321 = arith.constant 0 : i32
      %469 = arith.addi %c0_i32_321, %arg14 : i32
      %c9_i32_322 = arith.constant 9 : i32
      %470 = arith.muli %469, %c9_i32_322 : i32
      %c3_i32_323 = arith.constant 3 : i32
      %471 = arith.addi %470, %c3_i32_323 : i32
      %c2_i32_324 = arith.constant 2 : i32
      %472 = arith.addi %471, %c2_i32_324 : i32
      %473 = arith.index_cast %472 : i32 to index
      %474 = memref.load %arg4[%473] : memref<81xf32, #tpu.memory_space<smem>>
      %475 = vector.broadcast %474 : f32 to vector<16x128xf32>
      %476 = arith.mulf %468, %475 : vector<16x128xf32>
      %477 = arith.addf %448, %476 : vector<16x128xf32>
      %c3_i32_325 = arith.constant 3 : i32
      %478 = arith.addi %c3_i32_325, %arg14 : i32
      %c9_i32_326 = arith.constant 9 : i32
      %479 = arith.muli %478, %c9_i32_326 : i32
      %c3_i32_327 = arith.constant 3 : i32
      %480 = arith.addi %479, %c3_i32_327 : i32
      %c2_i32_328 = arith.constant 2 : i32
      %481 = arith.addi %480, %c2_i32_328 : i32
      %482 = arith.index_cast %481 : i32 to index
      %483 = memref.load %arg4[%482] : memref<81xf32, #tpu.memory_space<smem>>
      %484 = vector.broadcast %483 : f32 to vector<16x128xf32>
      %485 = arith.mulf %468, %484 : vector<16x128xf32>
      %486 = arith.addf %457, %485 : vector<16x128xf32>
      %c6_i32_329 = arith.constant 6 : i32
      %487 = arith.addi %c6_i32_329, %arg14 : i32
      %c9_i32_330 = arith.constant 9 : i32
      %488 = arith.muli %487, %c9_i32_330 : i32
      %c3_i32_331 = arith.constant 3 : i32
      %489 = arith.addi %488, %c3_i32_331 : i32
      %c2_i32_332 = arith.constant 2 : i32
      %490 = arith.addi %489, %c2_i32_332 : i32
      %491 = arith.index_cast %490 : i32 to index
      %492 = memref.load %arg4[%491] : memref<81xf32, #tpu.memory_space<smem>>
      %493 = vector.broadcast %492 : f32 to vector<16x128xf32>
      %494 = arith.mulf %468, %493 : vector<16x128xf32>
      %495 = arith.addf %466, %494 : vector<16x128xf32>
      %c0_i32_333 = arith.constant 0 : i32
      %c0_i32_334 = arith.constant 0 : i32
      %496 = tpu.memref_slice %arg13[%317, %c0_i32_333, %c0_i32_334] : memref<12x32x256xf32, #tpu.memory_space<vmem>> -> memref<1x32x256xf32, #tpu.memory_space<vmem>>
      %497 = tpu.memref_squeeze %496 : memref<1x32x256xf32, #tpu.memory_space<vmem>> -> memref<32x256xf32, #tpu.memory_space<vmem>>
      %c9_335 = arith.constant 9 : index
      %c0_336 = arith.constant 0 : index
      %498 = vector.load %497[%c9_335, %c0_336] : memref<32x256xf32, #tpu.memory_space<vmem>>, vector<16x256xf32>
      %c1_i32_337 = arith.constant 1 : i32
      %499 = tpu.dynamic_rotate %498 by %c1_i32_337 dim 1 : vector<16x256xf32>, i32 -> vector<16x256xf32>
      %500 = vector.extract_strided_slice %499 {offsets = [0, 0], sizes = [16, 128], strides = [1, 1]} : vector<16x256xf32> to vector<16x128xf32>
      %c0_i32_338 = arith.constant 0 : i32
      %501 = arith.addi %c0_i32_338, %arg14 : i32
      %c9_i32_339 = arith.constant 9 : i32
      %502 = arith.muli %501, %c9_i32_339 : i32
      %c6_i32_340 = arith.constant 6 : i32
      %503 = arith.addi %502, %c6_i32_340 : i32
      %c0_i32_341 = arith.constant 0 : i32
      %504 = arith.addi %503, %c0_i32_341 : i32
      %505 = arith.index_cast %504 : i32 to index
      %506 = memref.load %arg4[%505] : memref<81xf32, #tpu.memory_space<smem>>
      %507 = vector.broadcast %506 : f32 to vector<16x128xf32>
      %508 = arith.mulf %500, %507 : vector<16x128xf32>
      %509 = arith.addf %477, %508 : vector<16x128xf32>
      %c3_i32_342 = arith.constant 3 : i32
      %510 = arith.addi %c3_i32_342, %arg14 : i32
      %c9_i32_343 = arith.constant 9 : i32
      %511 = arith.muli %510, %c9_i32_343 : i32
      %c6_i32_344 = arith.constant 6 : i32
      %512 = arith.addi %511, %c6_i32_344 : i32
      %c0_i32_345 = arith.constant 0 : i32
      %513 = arith.addi %512, %c0_i32_345 : i32
      %514 = arith.index_cast %513 : i32 to index
      %515 = memref.load %arg4[%514] : memref<81xf32, #tpu.memory_space<smem>>
      %516 = vector.broadcast %515 : f32 to vector<16x128xf32>
      %517 = arith.mulf %500, %516 : vector<16x128xf32>
      %518 = arith.addf %486, %517 : vector<16x128xf32>
      %c6_i32_346 = arith.constant 6 : i32
      %519 = arith.addi %c6_i32_346, %arg14 : i32
      %c9_i32_347 = arith.constant 9 : i32
      %520 = arith.muli %519, %c9_i32_347 : i32
      %c6_i32_348 = arith.constant 6 : i32
      %521 = arith.addi %520, %c6_i32_348 : i32
      %c0_i32_349 = arith.constant 0 : i32
      %522 = arith.addi %521, %c0_i32_349 : i32
      %523 = arith.index_cast %522 : i32 to index
      %524 = memref.load %arg4[%523] : memref<81xf32, #tpu.memory_space<smem>>
      %525 = vector.broadcast %524 : f32 to vector<16x128xf32>
      %526 = arith.mulf %500, %525 : vector<16x128xf32>
      %527 = arith.addf %495, %526 : vector<16x128xf32>
      %528 = vector.extract_strided_slice %498 {offsets = [0, 0], sizes = [16, 128], strides = [1, 1]} : vector<16x256xf32> to vector<16x128xf32>
      %c0_i32_350 = arith.constant 0 : i32
      %529 = arith.addi %c0_i32_350, %arg14 : i32
      %c9_i32_351 = arith.constant 9 : i32
      %530 = arith.muli %529, %c9_i32_351 : i32
      %c6_i32_352 = arith.constant 6 : i32
      %531 = arith.addi %530, %c6_i32_352 : i32
      %c1_i32_353 = arith.constant 1 : i32
      %532 = arith.addi %531, %c1_i32_353 : i32
      %533 = arith.index_cast %532 : i32 to index
      %534 = memref.load %arg4[%533] : memref<81xf32, #tpu.memory_space<smem>>
      %535 = vector.broadcast %534 : f32 to vector<16x128xf32>
      %536 = arith.mulf %528, %535 : vector<16x128xf32>
      %537 = arith.addf %509, %536 : vector<16x128xf32>
      %c3_i32_354 = arith.constant 3 : i32
      %538 = arith.addi %c3_i32_354, %arg14 : i32
      %c9_i32_355 = arith.constant 9 : i32
      %539 = arith.muli %538, %c9_i32_355 : i32
      %c6_i32_356 = arith.constant 6 : i32
      %540 = arith.addi %539, %c6_i32_356 : i32
      %c1_i32_357 = arith.constant 1 : i32
      %541 = arith.addi %540, %c1_i32_357 : i32
      %542 = arith.index_cast %541 : i32 to index
      %543 = memref.load %arg4[%542] : memref<81xf32, #tpu.memory_space<smem>>
      %544 = vector.broadcast %543 : f32 to vector<16x128xf32>
      %545 = arith.mulf %528, %544 : vector<16x128xf32>
      %546 = arith.addf %518, %545 : vector<16x128xf32>
      %c6_i32_358 = arith.constant 6 : i32
      %547 = arith.addi %c6_i32_358, %arg14 : i32
      %c9_i32_359 = arith.constant 9 : i32
      %548 = arith.muli %547, %c9_i32_359 : i32
      %c6_i32_360 = arith.constant 6 : i32
      %549 = arith.addi %548, %c6_i32_360 : i32
      %c1_i32_361 = arith.constant 1 : i32
      %550 = arith.addi %549, %c1_i32_361 : i32
      %551 = arith.index_cast %550 : i32 to index
      %552 = memref.load %arg4[%551] : memref<81xf32, #tpu.memory_space<smem>>
      %553 = vector.broadcast %552 : f32 to vector<16x128xf32>
      %554 = arith.mulf %528, %553 : vector<16x128xf32>
      %555 = arith.addf %527, %554 : vector<16x128xf32>
      %c255_i32_362 = arith.constant 255 : i32
      %556 = tpu.dynamic_rotate %498 by %c255_i32_362 dim 1 : vector<16x256xf32>, i32 -> vector<16x256xf32>
      %557 = vector.extract_strided_slice %556 {offsets = [0, 0], sizes = [16, 128], strides = [1, 1]} : vector<16x256xf32> to vector<16x128xf32>
      %c0_i32_363 = arith.constant 0 : i32
      %558 = arith.addi %c0_i32_363, %arg14 : i32
      %c9_i32_364 = arith.constant 9 : i32
      %559 = arith.muli %558, %c9_i32_364 : i32
      %c6_i32_365 = arith.constant 6 : i32
      %560 = arith.addi %559, %c6_i32_365 : i32
      %c2_i32_366 = arith.constant 2 : i32
      %561 = arith.addi %560, %c2_i32_366 : i32
      %562 = arith.index_cast %561 : i32 to index
      %563 = memref.load %arg4[%562] : memref<81xf32, #tpu.memory_space<smem>>
      %564 = vector.broadcast %563 : f32 to vector<16x128xf32>
      %565 = arith.mulf %557, %564 : vector<16x128xf32>
      %566 = arith.addf %537, %565 : vector<16x128xf32>
      %c3_i32_367 = arith.constant 3 : i32
      %567 = arith.addi %c3_i32_367, %arg14 : i32
      %c9_i32_368 = arith.constant 9 : i32
      %568 = arith.muli %567, %c9_i32_368 : i32
      %c6_i32_369 = arith.constant 6 : i32
      %569 = arith.addi %568, %c6_i32_369 : i32
      %c2_i32_370 = arith.constant 2 : i32
      %570 = arith.addi %569, %c2_i32_370 : i32
      %571 = arith.index_cast %570 : i32 to index
      %572 = memref.load %arg4[%571] : memref<81xf32, #tpu.memory_space<smem>>
      %573 = vector.broadcast %572 : f32 to vector<16x128xf32>
      %574 = arith.mulf %557, %573 : vector<16x128xf32>
      %575 = arith.addf %546, %574 : vector<16x128xf32>
      %c6_i32_371 = arith.constant 6 : i32
      %576 = arith.addi %c6_i32_371, %arg14 : i32
      %c9_i32_372 = arith.constant 9 : i32
      %577 = arith.muli %576, %c9_i32_372 : i32
      %c6_i32_373 = arith.constant 6 : i32
      %578 = arith.addi %577, %c6_i32_373 : i32
      %c2_i32_374 = arith.constant 2 : i32
      %579 = arith.addi %578, %c2_i32_374 : i32
      %580 = arith.index_cast %579 : i32 to index
      %581 = memref.load %arg4[%580] : memref<81xf32, #tpu.memory_space<smem>>
      %582 = vector.broadcast %581 : f32 to vector<16x128xf32>
      %583 = arith.mulf %557, %582 : vector<16x128xf32>
      %584 = arith.addf %555, %583 : vector<16x128xf32>
      scf.yield %566, %575, %584 : vector<16x128xf32>, vector<16x128xf32>, vector<16x128xf32>
    }
    %c3_i32_156 = arith.constant 3 : i32
    %c0_157 = arith.constant 0 : index
    %188 = memref.load %arg5[%c0_157] : memref<3xf32, #tpu.memory_space<smem>>
    %189 = vector.broadcast %188 : f32 to vector<16x128xf32>
    %190 = arith.addf %187#0, %189 : vector<16x128xf32>
    %cst_158 = arith.constant 0.000000e+00 : f32
    %191 = vector.broadcast %cst_158 : f32 to vector<16x128xf32>
    %192 = arith.maximumf %190, %191 : vector<16x128xf32>
    %c1_159 = arith.constant 1 : index
    %193 = memref.load %arg5[%c1_159] : memref<3xf32, #tpu.memory_space<smem>>
    %194 = vector.broadcast %193 : f32 to vector<16x128xf32>
    %195 = arith.addf %187#1, %194 : vector<16x128xf32>
    %cst_160 = arith.constant 0.000000e+00 : f32
    %196 = vector.broadcast %cst_160 : f32 to vector<16x128xf32>
    %197 = arith.maximumf %195, %196 : vector<16x128xf32>
    %c2_161 = arith.constant 2 : index
    %198 = memref.load %arg5[%c2_161] : memref<3xf32, #tpu.memory_space<smem>>
    %199 = vector.broadcast %198 : f32 to vector<16x128xf32>
    %200 = arith.addf %187#2, %199 : vector<16x128xf32>
    %cst_162 = arith.constant 0.000000e+00 : f32
    %201 = vector.broadcast %cst_162 : f32 to vector<16x128xf32>
    %202 = arith.maximumf %200, %201 : vector<16x128xf32>
    %c3_163 = arith.constant 3 : index
    %c8_164 = arith.constant 8 : index
    %c0_165 = arith.constant 0 : index
    %203 = vector.load %arg13[%c3_163, %c8_164, %c0_165] : memref<12x32x256xf32, #tpu.memory_space<vmem>>, vector<1x16x128xf32>
    %204 = vector.shape_cast %203 : vector<1x16x128xf32> to vector<16x128xf32>
    %205 = vector.shape_cast %192 : vector<16x128xf32> to vector<1x16x128xf32>
    tpu.vector_store %arg13[%c3_163, %c8_164, %c0_165], %205 {strides = array<i32>} : memref<12x32x256xf32, #tpu.memory_space<vmem>>, vector<1x16x128xf32>,
    %c4_166 = arith.constant 4 : index
    %c8_167 = arith.constant 8 : index
    %c0_168 = arith.constant 0 : index
    %206 = vector.load %arg13[%c4_166, %c8_167, %c0_168] : memref<12x32x256xf32, #tpu.memory_space<vmem>>, vector<1x16x128xf32>
    %207 = vector.shape_cast %206 : vector<1x16x128xf32> to vector<16x128xf32>
    %208 = vector.shape_cast %197 : vector<16x128xf32> to vector<1x16x128xf32>
    tpu.vector_store %arg13[%c4_166, %c8_167, %c0_168], %208 {strides = array<i32>} : memref<12x32x256xf32, #tpu.memory_space<vmem>>, vector<1x16x128xf32>,
    %c5_169 = arith.constant 5 : index
    %c8_170 = arith.constant 8 : index
    %c0_171 = arith.constant 0 : index
    %209 = vector.load %arg13[%c5_169, %c8_170, %c0_171] : memref<12x32x256xf32, #tpu.memory_space<vmem>>, vector<1x16x128xf32>
    %210 = vector.shape_cast %209 : vector<1x16x128xf32> to vector<16x128xf32>
    %211 = vector.shape_cast %202 : vector<16x128xf32> to vector<1x16x128xf32>
    tpu.vector_store %arg13[%c5_169, %c8_170, %c0_171], %211 {strides = array<i32>} : memref<12x32x256xf32, #tpu.memory_space<vmem>>, vector<1x16x128xf32>,
    %cst_172 = arith.constant 0.000000e+00 : f32
    %212 = vector.broadcast %cst_172 : f32 to vector<16x128xf32>
    %c0_i32_173 = arith.constant 0 : i32
    %c6_i32 = arith.constant 6 : i32
    %213 = arith.addi %c0_i32_173, %c6_i32 : i32
    %c1_i32_174 = arith.constant 1 : i32
    %214:3 = scf.for %arg14 = %c0_i32_173 to %213 step %c1_i32_174 iter_args(%arg15 = %212, %arg16 = %212, %arg17 = %212) -> (vector<16x128xf32>, vector<16x128xf32>, vector<16x128xf32>)  : i32 {
      %c0_i32_251 = arith.constant 0 : i32
      %317 = arith.addi %c0_i32_251, %arg14 : i32
      %c0_i32_252 = arith.constant 0 : i32
      %c0_i32_253 = arith.constant 0 : i32
      %318 = tpu.memref_slice %arg13[%317, %c0_i32_252, %c0_i32_253] : memref<12x32x256xf32, #tpu.memory_space<vmem>> -> memref<1x32x256xf32, #tpu.memory_space<vmem>>
      %319 = tpu.memref_squeeze %318 : memref<1x32x256xf32, #tpu.memory_space<vmem>> -> memref<32x256xf32, #tpu.memory_space<vmem>>
      %c6_254 = arith.constant 6 : index
      %c0_255 = arith.constant 0 : index
      %320 = vector.load %319[%c6_254, %c0_255] : memref<32x256xf32, #tpu.memory_space<vmem>>, vector<16x256xf32>
      %c2_i32 = arith.constant 2 : i32
      %321 = tpu.dynamic_rotate %320 by %c2_i32 dim 1 : vector<16x256xf32>, i32 -> vector<16x256xf32>
      %322 = vector.extract_strided_slice %321 {offsets = [0, 0], sizes = [16, 128], strides = [1, 1]} : vector<16x256xf32> to vector<16x128xf32>
      %c0_i32_256 = arith.constant 0 : i32
      %323 = arith.addi %c0_i32_256, %arg14 : i32
      %c25_i32 = arith.constant 25 : i32
      %324 = arith.muli %323, %c25_i32 : i32
      %c0_i32_257 = arith.constant 0 : i32
      %325 = arith.addi %324, %c0_i32_257 : i32
      %c0_i32_258 = arith.constant 0 : i32
      %326 = arith.addi %325, %c0_i32_258 : i32
      %327 = arith.index_cast %326 : i32 to index
      %328 = memref.load %arg6[%327] : memref<450xf32, #tpu.memory_space<smem>>
      %329 = vector.broadcast %328 : f32 to vector<16x128xf32>
      %330 = arith.mulf %322, %329 : vector<16x128xf32>
      %331 = arith.addf %arg15, %330 : vector<16x128xf32>
      %c6_i32_259 = arith.constant 6 : i32
      %332 = arith.addi %c6_i32_259, %arg14 : i32
      %c25_i32_260 = arith.constant 25 : i32
      %333 = arith.muli %332, %c25_i32_260 : i32
      %c0_i32_261 = arith.constant 0 : i32
      %334 = arith.addi %333, %c0_i32_261 : i32
      %c0_i32_262 = arith.constant 0 : i32
      %335 = arith.addi %334, %c0_i32_262 : i32
      %336 = arith.index_cast %335 : i32 to index
      %337 = memref.load %arg6[%336] : memref<450xf32, #tpu.memory_space<smem>>
      %338 = vector.broadcast %337 : f32 to vector<16x128xf32>
      %339 = arith.mulf %322, %338 : vector<16x128xf32>
      %340 = arith.addf %arg16, %339 : vector<16x128xf32>
      %c12_i32_263 = arith.constant 12 : i32
      %341 = arith.addi %c12_i32_263, %arg14 : i32
      %c25_i32_264 = arith.constant 25 : i32
      %342 = arith.muli %341, %c25_i32_264 : i32
      %c0_i32_265 = arith.constant 0 : i32
      %343 = arith.addi %342, %c0_i32_265 : i32
      %c0_i32_266 = arith.constant 0 : i32
      %344 = arith.addi %343, %c0_i32_266 : i32
      %345 = arith.index_cast %344 : i32 to index
      %346 = memref.load %arg6[%345] : memref<450xf32, #tpu.memory_space<smem>>
      %347 = vector.broadcast %346 : f32 to vector<16x128xf32>
      %348 = arith.mulf %322, %347 : vector<16x128xf32>
      %349 = arith.addf %arg17, %348 : vector<16x128xf32>
      %c1_i32_267 = arith.constant 1 : i32
      %350 = tpu.dynamic_rotate %320 by %c1_i32_267 dim 1 : vector<16x256xf32>, i32 -> vector<16x256xf32>
      %351 = vector.extract_strided_slice %350 {offsets = [0, 0], sizes = [16, 128], strides = [1, 1]} : vector<16x256xf32> to vector<16x128xf32>
      %c0_i32_268 = arith.constant 0 : i32
      %352 = arith.addi %c0_i32_268, %arg14 : i32
      %c25_i32_269 = arith.constant 25 : i32
      %353 = arith.muli %352, %c25_i32_269 : i32
      %c0_i32_270 = arith.constant 0 : i32
      %354 = arith.addi %353, %c0_i32_270 : i32
      %c1_i32_271 = arith.constant 1 : i32
      %355 = arith.addi %354, %c1_i32_271 : i32
      %356 = arith.index_cast %355 : i32 to index
      %357 = memref.load %arg6[%356] : memref<450xf32, #tpu.memory_space<smem>>
      %358 = vector.broadcast %357 : f32 to vector<16x128xf32>
      %359 = arith.mulf %351, %358 : vector<16x128xf32>
      %360 = arith.addf %331, %359 : vector<16x128xf32>
      %c6_i32_272 = arith.constant 6 : i32
      %361 = arith.addi %c6_i32_272, %arg14 : i32
      %c25_i32_273 = arith.constant 25 : i32
      %362 = arith.muli %361, %c25_i32_273 : i32
      %c0_i32_274 = arith.constant 0 : i32
      %363 = arith.addi %362, %c0_i32_274 : i32
      %c1_i32_275 = arith.constant 1 : i32
      %364 = arith.addi %363, %c1_i32_275 : i32
      %365 = arith.index_cast %364 : i32 to index
      %366 = memref.load %arg6[%365] : memref<450xf32, #tpu.memory_space<smem>>
      %367 = vector.broadcast %366 : f32 to vector<16x128xf32>
      %368 = arith.mulf %351, %367 : vector<16x128xf32>
      %369 = arith.addf %340, %368 : vector<16x128xf32>
      %c12_i32_276 = arith.constant 12 : i32
      %370 = arith.addi %c12_i32_276, %arg14 : i32
      %c25_i32_277 = arith.constant 25 : i32
      %371 = arith.muli %370, %c25_i32_277 : i32
      %c0_i32_278 = arith.constant 0 : i32
      %372 = arith.addi %371, %c0_i32_278 : i32
      %c1_i32_279 = arith.constant 1 : i32
      %373 = arith.addi %372, %c1_i32_279 : i32
      %374 = arith.index_cast %373 : i32 to index
      %375 = memref.load %arg6[%374] : memref<450xf32, #tpu.memory_space<smem>>
      %376 = vector.broadcast %375 : f32 to vector<16x128xf32>
      %377 = arith.mulf %351, %376 : vector<16x128xf32>
      %378 = arith.addf %349, %377 : vector<16x128xf32>
      %379 = vector.extract_strided_slice %320 {offsets = [0, 0], sizes = [16, 128], strides = [1, 1]} : vector<16x256xf32> to vector<16x128xf32>
      %c0_i32_280 = arith.constant 0 : i32
      %380 = arith.addi %c0_i32_280, %arg14 : i32
      %c25_i32_281 = arith.constant 25 : i32
      %381 = arith.muli %380, %c25_i32_281 : i32
      %c0_i32_282 = arith.constant 0 : i32
      %382 = arith.addi %381, %c0_i32_282 : i32
      %c2_i32_283 = arith.constant 2 : i32
      %383 = arith.addi %382, %c2_i32_283 : i32
      %384 = arith.index_cast %383 : i32 to index
      %385 = memref.load %arg6[%384] : memref<450xf32, #tpu.memory_space<smem>>
      %386 = vector.broadcast %385 : f32 to vector<16x128xf32>
      %387 = arith.mulf %379, %386 : vector<16x128xf32>
      %388 = arith.addf %360, %387 : vector<16x128xf32>
      %c6_i32_284 = arith.constant 6 : i32
      %389 = arith.addi %c6_i32_284, %arg14 : i32
      %c25_i32_285 = arith.constant 25 : i32
      %390 = arith.muli %389, %c25_i32_285 : i32
      %c0_i32_286 = arith.constant 0 : i32
      %391 = arith.addi %390, %c0_i32_286 : i32
      %c2_i32_287 = arith.constant 2 : i32
      %392 = arith.addi %391, %c2_i32_287 : i32
      %393 = arith.index_cast %392 : i32 to index
      %394 = memref.load %arg6[%393] : memref<450xf32, #tpu.memory_space<smem>>
      %395 = vector.broadcast %394 : f32 to vector<16x128xf32>
      %396 = arith.mulf %379, %395 : vector<16x128xf32>
      %397 = arith.addf %369, %396 : vector<16x128xf32>
      %c12_i32_288 = arith.constant 12 : i32
      %398 = arith.addi %c12_i32_288, %arg14 : i32
      %c25_i32_289 = arith.constant 25 : i32
      %399 = arith.muli %398, %c25_i32_289 : i32
      %c0_i32_290 = arith.constant 0 : i32
      %400 = arith.addi %399, %c0_i32_290 : i32
      %c2_i32_291 = arith.constant 2 : i32
      %401 = arith.addi %400, %c2_i32_291 : i32
      %402 = arith.index_cast %401 : i32 to index
      %403 = memref.load %arg6[%402] : memref<450xf32, #tpu.memory_space<smem>>
      %404 = vector.broadcast %403 : f32 to vector<16x128xf32>
      %405 = arith.mulf %379, %404 : vector<16x128xf32>
      %406 = arith.addf %378, %405 : vector<16x128xf32>
      %c255_i32 = arith.constant 255 : i32
      %407 = tpu.dynamic_rotate %320 by %c255_i32 dim 1 : vector<16x256xf32>, i32 -> vector<16x256xf32>
      %408 = vector.extract_strided_slice %407 {offsets = [0, 0], sizes = [16, 128], strides = [1, 1]} : vector<16x256xf32> to vector<16x128xf32>
      %c0_i32_292 = arith.constant 0 : i32
      %409 = arith.addi %c0_i32_292, %arg14 : i32
      %c25_i32_293 = arith.constant 25 : i32
      %410 = arith.muli %409, %c25_i32_293 : i32
      %c0_i32_294 = arith.constant 0 : i32
      %411 = arith.addi %410, %c0_i32_294 : i32
      %c3_i32_295 = arith.constant 3 : i32
      %412 = arith.addi %411, %c3_i32_295 : i32
      %413 = arith.index_cast %412 : i32 to index
      %414 = memref.load %arg6[%413] : memref<450xf32, #tpu.memory_space<smem>>
      %415 = vector.broadcast %414 : f32 to vector<16x128xf32>
      %416 = arith.mulf %408, %415 : vector<16x128xf32>
      %417 = arith.addf %388, %416 : vector<16x128xf32>
      %c6_i32_296 = arith.constant 6 : i32
      %418 = arith.addi %c6_i32_296, %arg14 : i32
      %c25_i32_297 = arith.constant 25 : i32
      %419 = arith.muli %418, %c25_i32_297 : i32
      %c0_i32_298 = arith.constant 0 : i32
      %420 = arith.addi %419, %c0_i32_298 : i32
      %c3_i32_299 = arith.constant 3 : i32
      %421 = arith.addi %420, %c3_i32_299 : i32
      %422 = arith.index_cast %421 : i32 to index
      %423 = memref.load %arg6[%422] : memref<450xf32, #tpu.memory_space<smem>>
      %424 = vector.broadcast %423 : f32 to vector<16x128xf32>
      %425 = arith.mulf %408, %424 : vector<16x128xf32>
      %426 = arith.addf %397, %425 : vector<16x128xf32>
      %c12_i32_300 = arith.constant 12 : i32
      %427 = arith.addi %c12_i32_300, %arg14 : i32
      %c25_i32_301 = arith.constant 25 : i32
      %428 = arith.muli %427, %c25_i32_301 : i32
      %c0_i32_302 = arith.constant 0 : i32
      %429 = arith.addi %428, %c0_i32_302 : i32
      %c3_i32_303 = arith.constant 3 : i32
      %430 = arith.addi %429, %c3_i32_303 : i32
      %431 = arith.index_cast %430 : i32 to index
      %432 = memref.load %arg6[%431] : memref<450xf32, #tpu.memory_space<smem>>
      %433 = vector.broadcast %432 : f32 to vector<16x128xf32>
      %434 = arith.mulf %408, %433 : vector<16x128xf32>
      %435 = arith.addf %406, %434 : vector<16x128xf32>
      %c254_i32 = arith.constant 254 : i32
      %436 = tpu.dynamic_rotate %320 by %c254_i32 dim 1 : vector<16x256xf32>, i32 -> vector<16x256xf32>
      %437 = vector.extract_strided_slice %436 {offsets = [0, 0], sizes = [16, 128], strides = [1, 1]} : vector<16x256xf32> to vector<16x128xf32>
      %c0_i32_304 = arith.constant 0 : i32
      %438 = arith.addi %c0_i32_304, %arg14 : i32
      %c25_i32_305 = arith.constant 25 : i32
      %439 = arith.muli %438, %c25_i32_305 : i32
      %c0_i32_306 = arith.constant 0 : i32
      %440 = arith.addi %439, %c0_i32_306 : i32
      %c4_i32 = arith.constant 4 : i32
      %441 = arith.addi %440, %c4_i32 : i32
      %442 = arith.index_cast %441 : i32 to index
      %443 = memref.load %arg6[%442] : memref<450xf32, #tpu.memory_space<smem>>
      %444 = vector.broadcast %443 : f32 to vector<16x128xf32>
      %445 = arith.mulf %437, %444 : vector<16x128xf32>
      %446 = arith.addf %417, %445 : vector<16x128xf32>
      %c6_i32_307 = arith.constant 6 : i32
      %447 = arith.addi %c6_i32_307, %arg14 : i32
      %c25_i32_308 = arith.constant 25 : i32
      %448 = arith.muli %447, %c25_i32_308 : i32
      %c0_i32_309 = arith.constant 0 : i32
      %449 = arith.addi %448, %c0_i32_309 : i32
      %c4_i32_310 = arith.constant 4 : i32
      %450 = arith.addi %449, %c4_i32_310 : i32
      %451 = arith.index_cast %450 : i32 to index
      %452 = memref.load %arg6[%451] : memref<450xf32, #tpu.memory_space<smem>>
      %453 = vector.broadcast %452 : f32 to vector<16x128xf32>
      %454 = arith.mulf %437, %453 : vector<16x128xf32>
      %455 = arith.addf %426, %454 : vector<16x128xf32>
      %c12_i32_311 = arith.constant 12 : i32
      %456 = arith.addi %c12_i32_311, %arg14 : i32
      %c25_i32_312 = arith.constant 25 : i32
      %457 = arith.muli %456, %c25_i32_312 : i32
      %c0_i32_313 = arith.constant 0 : i32
      %458 = arith.addi %457, %c0_i32_313 : i32
      %c4_i32_314 = arith.constant 4 : i32
      %459 = arith.addi %458, %c4_i32_314 : i32
      %460 = arith.index_cast %459 : i32 to index
      %461 = memref.load %arg6[%460] : memref<450xf32, #tpu.memory_space<smem>>
      %462 = vector.broadcast %461 : f32 to vector<16x128xf32>
      %463 = arith.mulf %437, %462 : vector<16x128xf32>
      %464 = arith.addf %435, %463 : vector<16x128xf32>
      %c0_i32_315 = arith.constant 0 : i32
      %c0_i32_316 = arith.constant 0 : i32
      %465 = tpu.memref_slice %arg13[%317, %c0_i32_315, %c0_i32_316] : memref<12x32x256xf32, #tpu.memory_space<vmem>> -> memref<1x32x256xf32, #tpu.memory_space<vmem>>
      %466 = tpu.memref_squeeze %465 : memref<1x32x256xf32, #tpu.memory_space<vmem>> -> memref<32x256xf32, #tpu.memory_space<vmem>>
      %c7_317 = arith.constant 7 : index
      %c0_318 = arith.constant 0 : index
      %467 = vector.load %466[%c7_317, %c0_318] : memref<32x256xf32, #tpu.memory_space<vmem>>, vector<16x256xf32>
      %c2_i32_319 = arith.constant 2 : i32
      %468 = tpu.dynamic_rotate %467 by %c2_i32_319 dim 1 : vector<16x256xf32>, i32 -> vector<16x256xf32>
      %469 = vector.extract_strided_slice %468 {offsets = [0, 0], sizes = [16, 128], strides = [1, 1]} : vector<16x256xf32> to vector<16x128xf32>
      %c0_i32_320 = arith.constant 0 : i32
      %470 = arith.addi %c0_i32_320, %arg14 : i32
      %c25_i32_321 = arith.constant 25 : i32
      %471 = arith.muli %470, %c25_i32_321 : i32
      %c5_i32 = arith.constant 5 : i32
      %472 = arith.addi %471, %c5_i32 : i32
      %c0_i32_322 = arith.constant 0 : i32
      %473 = arith.addi %472, %c0_i32_322 : i32
      %474 = arith.index_cast %473 : i32 to index
      %475 = memref.load %arg6[%474] : memref<450xf32, #tpu.memory_space<smem>>
      %476 = vector.broadcast %475 : f32 to vector<16x128xf32>
      %477 = arith.mulf %469, %476 : vector<16x128xf32>
      %478 = arith.addf %446, %477 : vector<16x128xf32>
      %c6_i32_323 = arith.constant 6 : i32
      %479 = arith.addi %c6_i32_323, %arg14 : i32
      %c25_i32_324 = arith.constant 25 : i32
      %480 = arith.muli %479, %c25_i32_324 : i32
      %c5_i32_325 = arith.constant 5 : i32
      %481 = arith.addi %480, %c5_i32_325 : i32
      %c0_i32_326 = arith.constant 0 : i32
      %482 = arith.addi %481, %c0_i32_326 : i32
      %483 = arith.index_cast %482 : i32 to index
      %484 = memref.load %arg6[%483] : memref<450xf32, #tpu.memory_space<smem>>
      %485 = vector.broadcast %484 : f32 to vector<16x128xf32>
      %486 = arith.mulf %469, %485 : vector<16x128xf32>
      %487 = arith.addf %455, %486 : vector<16x128xf32>
      %c12_i32_327 = arith.constant 12 : i32
      %488 = arith.addi %c12_i32_327, %arg14 : i32
      %c25_i32_328 = arith.constant 25 : i32
      %489 = arith.muli %488, %c25_i32_328 : i32
      %c5_i32_329 = arith.constant 5 : i32
      %490 = arith.addi %489, %c5_i32_329 : i32
      %c0_i32_330 = arith.constant 0 : i32
      %491 = arith.addi %490, %c0_i32_330 : i32
      %492 = arith.index_cast %491 : i32 to index
      %493 = memref.load %arg6[%492] : memref<450xf32, #tpu.memory_space<smem>>
      %494 = vector.broadcast %493 : f32 to vector<16x128xf32>
      %495 = arith.mulf %469, %494 : vector<16x128xf32>
      %496 = arith.addf %464, %495 : vector<16x128xf32>
      %c1_i32_331 = arith.constant 1 : i32
      %497 = tpu.dynamic_rotate %467 by %c1_i32_331 dim 1 : vector<16x256xf32>, i32 -> vector<16x256xf32>
      %498 = vector.extract_strided_slice %497 {offsets = [0, 0], sizes = [16, 128], strides = [1, 1]} : vector<16x256xf32> to vector<16x128xf32>
      %c0_i32_332 = arith.constant 0 : i32
      %499 = arith.addi %c0_i32_332, %arg14 : i32
      %c25_i32_333 = arith.constant 25 : i32
      %500 = arith.muli %499, %c25_i32_333 : i32
      %c5_i32_334 = arith.constant 5 : i32
      %501 = arith.addi %500, %c5_i32_334 : i32
      %c1_i32_335 = arith.constant 1 : i32
      %502 = arith.addi %501, %c1_i32_335 : i32
      %503 = arith.index_cast %502 : i32 to index
      %504 = memref.load %arg6[%503] : memref<450xf32, #tpu.memory_space<smem>>
      %505 = vector.broadcast %504 : f32 to vector<16x128xf32>
      %506 = arith.mulf %498, %505 : vector<16x128xf32>
      %507 = arith.addf %478, %506 : vector<16x128xf32>
      %c6_i32_336 = arith.constant 6 : i32
      %508 = arith.addi %c6_i32_336, %arg14 : i32
      %c25_i32_337 = arith.constant 25 : i32
      %509 = arith.muli %508, %c25_i32_337 : i32
      %c5_i32_338 = arith.constant 5 : i32
      %510 = arith.addi %509, %c5_i32_338 : i32
      %c1_i32_339 = arith.constant 1 : i32
      %511 = arith.addi %510, %c1_i32_339 : i32
      %512 = arith.index_cast %511 : i32 to index
      %513 = memref.load %arg6[%512] : memref<450xf32, #tpu.memory_space<smem>>
      %514 = vector.broadcast %513 : f32 to vector<16x128xf32>
      %515 = arith.mulf %498, %514 : vector<16x128xf32>
      %516 = arith.addf %487, %515 : vector<16x128xf32>
      %c12_i32_340 = arith.constant 12 : i32
      %517 = arith.addi %c12_i32_340, %arg14 : i32
      %c25_i32_341 = arith.constant 25 : i32
      %518 = arith.muli %517, %c25_i32_341 : i32
      %c5_i32_342 = arith.constant 5 : i32
      %519 = arith.addi %518, %c5_i32_342 : i32
      %c1_i32_343 = arith.constant 1 : i32
      %520 = arith.addi %519, %c1_i32_343 : i32
      %521 = arith.index_cast %520 : i32 to index
      %522 = memref.load %arg6[%521] : memref<450xf32, #tpu.memory_space<smem>>
      %523 = vector.broadcast %522 : f32 to vector<16x128xf32>
      %524 = arith.mulf %498, %523 : vector<16x128xf32>
      %525 = arith.addf %496, %524 : vector<16x128xf32>
      %526 = vector.extract_strided_slice %467 {offsets = [0, 0], sizes = [16, 128], strides = [1, 1]} : vector<16x256xf32> to vector<16x128xf32>
      %c0_i32_344 = arith.constant 0 : i32
      %527 = arith.addi %c0_i32_344, %arg14 : i32
      %c25_i32_345 = arith.constant 25 : i32
      %528 = arith.muli %527, %c25_i32_345 : i32
      %c5_i32_346 = arith.constant 5 : i32
      %529 = arith.addi %528, %c5_i32_346 : i32
      %c2_i32_347 = arith.constant 2 : i32
      %530 = arith.addi %529, %c2_i32_347 : i32
      %531 = arith.index_cast %530 : i32 to index
      %532 = memref.load %arg6[%531] : memref<450xf32, #tpu.memory_space<smem>>
      %533 = vector.broadcast %532 : f32 to vector<16x128xf32>
      %534 = arith.mulf %526, %533 : vector<16x128xf32>
      %535 = arith.addf %507, %534 : vector<16x128xf32>
      %c6_i32_348 = arith.constant 6 : i32
      %536 = arith.addi %c6_i32_348, %arg14 : i32
      %c25_i32_349 = arith.constant 25 : i32
      %537 = arith.muli %536, %c25_i32_349 : i32
      %c5_i32_350 = arith.constant 5 : i32
      %538 = arith.addi %537, %c5_i32_350 : i32
      %c2_i32_351 = arith.constant 2 : i32
      %539 = arith.addi %538, %c2_i32_351 : i32
      %540 = arith.index_cast %539 : i32 to index
      %541 = memref.load %arg6[%540] : memref<450xf32, #tpu.memory_space<smem>>
      %542 = vector.broadcast %541 : f32 to vector<16x128xf32>
      %543 = arith.mulf %526, %542 : vector<16x128xf32>
      %544 = arith.addf %516, %543 : vector<16x128xf32>
      %c12_i32_352 = arith.constant 12 : i32
      %545 = arith.addi %c12_i32_352, %arg14 : i32
      %c25_i32_353 = arith.constant 25 : i32
      %546 = arith.muli %545, %c25_i32_353 : i32
      %c5_i32_354 = arith.constant 5 : i32
      %547 = arith.addi %546, %c5_i32_354 : i32
      %c2_i32_355 = arith.constant 2 : i32
      %548 = arith.addi %547, %c2_i32_355 : i32
      %549 = arith.index_cast %548 : i32 to index
      %550 = memref.load %arg6[%549] : memref<450xf32, #tpu.memory_space<smem>>
      %551 = vector.broadcast %550 : f32 to vector<16x128xf32>
      %552 = arith.mulf %526, %551 : vector<16x128xf32>
      %553 = arith.addf %525, %552 : vector<16x128xf32>
      %c255_i32_356 = arith.constant 255 : i32
      %554 = tpu.dynamic_rotate %467 by %c255_i32_356 dim 1 : vector<16x256xf32>, i32 -> vector<16x256xf32>
      %555 = vector.extract_strided_slice %554 {offsets = [0, 0], sizes = [16, 128], strides = [1, 1]} : vector<16x256xf32> to vector<16x128xf32>
      %c0_i32_357 = arith.constant 0 : i32
      %556 = arith.addi %c0_i32_357, %arg14 : i32
      %c25_i32_358 = arith.constant 25 : i32
      %557 = arith.muli %556, %c25_i32_358 : i32
      %c5_i32_359 = arith.constant 5 : i32
      %558 = arith.addi %557, %c5_i32_359 : i32
      %c3_i32_360 = arith.constant 3 : i32
      %559 = arith.addi %558, %c3_i32_360 : i32
      %560 = arith.index_cast %559 : i32 to index
      %561 = memref.load %arg6[%560] : memref<450xf32, #tpu.memory_space<smem>>
      %562 = vector.broadcast %561 : f32 to vector<16x128xf32>
      %563 = arith.mulf %555, %562 : vector<16x128xf32>
      %564 = arith.addf %535, %563 : vector<16x128xf32>
      %c6_i32_361 = arith.constant 6 : i32
      %565 = arith.addi %c6_i32_361, %arg14 : i32
      %c25_i32_362 = arith.constant 25 : i32
      %566 = arith.muli %565, %c25_i32_362 : i32
      %c5_i32_363 = arith.constant 5 : i32
      %567 = arith.addi %566, %c5_i32_363 : i32
      %c3_i32_364 = arith.constant 3 : i32
      %568 = arith.addi %567, %c3_i32_364 : i32
      %569 = arith.index_cast %568 : i32 to index
      %570 = memref.load %arg6[%569] : memref<450xf32, #tpu.memory_space<smem>>
      %571 = vector.broadcast %570 : f32 to vector<16x128xf32>
      %572 = arith.mulf %555, %571 : vector<16x128xf32>
      %573 = arith.addf %544, %572 : vector<16x128xf32>
      %c12_i32_365 = arith.constant 12 : i32
      %574 = arith.addi %c12_i32_365, %arg14 : i32
      %c25_i32_366 = arith.constant 25 : i32
      %575 = arith.muli %574, %c25_i32_366 : i32
      %c5_i32_367 = arith.constant 5 : i32
      %576 = arith.addi %575, %c5_i32_367 : i32
      %c3_i32_368 = arith.constant 3 : i32
      %577 = arith.addi %576, %c3_i32_368 : i32
      %578 = arith.index_cast %577 : i32 to index
      %579 = memref.load %arg6[%578] : memref<450xf32, #tpu.memory_space<smem>>
      %580 = vector.broadcast %579 : f32 to vector<16x128xf32>
      %581 = arith.mulf %555, %580 : vector<16x128xf32>
      %582 = arith.addf %553, %581 : vector<16x128xf32>
      %c254_i32_369 = arith.constant 254 : i32
      %583 = tpu.dynamic_rotate %467 by %c254_i32_369 dim 1 : vector<16x256xf32>, i32 -> vector<16x256xf32>
      %584 = vector.extract_strided_slice %583 {offsets = [0, 0], sizes = [16, 128], strides = [1, 1]} : vector<16x256xf32> to vector<16x128xf32>
      %c0_i32_370 = arith.constant 0 : i32
      %585 = arith.addi %c0_i32_370, %arg14 : i32
      %c25_i32_371 = arith.constant 25 : i32
      %586 = arith.muli %585, %c25_i32_371 : i32
      %c5_i32_372 = arith.constant 5 : i32
      %587 = arith.addi %586, %c5_i32_372 : i32
      %c4_i32_373 = arith.constant 4 : i32
      %588 = arith.addi %587, %c4_i32_373 : i32
      %589 = arith.index_cast %588 : i32 to index
      %590 = memref.load %arg6[%589] : memref<450xf32, #tpu.memory_space<smem>>
      %591 = vector.broadcast %590 : f32 to vector<16x128xf32>
      %592 = arith.mulf %584, %591 : vector<16x128xf32>
      %593 = arith.addf %564, %592 : vector<16x128xf32>
      %c6_i32_374 = arith.constant 6 : i32
      %594 = arith.addi %c6_i32_374, %arg14 : i32
      %c25_i32_375 = arith.constant 25 : i32
      %595 = arith.muli %594, %c25_i32_375 : i32
      %c5_i32_376 = arith.constant 5 : i32
      %596 = arith.addi %595, %c5_i32_376 : i32
      %c4_i32_377 = arith.constant 4 : i32
      %597 = arith.addi %596, %c4_i32_377 : i32
      %598 = arith.index_cast %597 : i32 to index
      %599 = memref.load %arg6[%598] : memref<450xf32, #tpu.memory_space<smem>>
      %600 = vector.broadcast %599 : f32 to vector<16x128xf32>
      %601 = arith.mulf %584, %600 : vector<16x128xf32>
      %602 = arith.addf %573, %601 : vector<16x128xf32>
      %c12_i32_378 = arith.constant 12 : i32
      %603 = arith.addi %c12_i32_378, %arg14 : i32
      %c25_i32_379 = arith.constant 25 : i32
      %604 = arith.muli %603, %c25_i32_379 : i32
      %c5_i32_380 = arith.constant 5 : i32
      %605 = arith.addi %604, %c5_i32_380 : i32
      %c4_i32_381 = arith.constant 4 : i32
      %606 = arith.addi %605, %c4_i32_381 : i32
      %607 = arith.index_cast %606 : i32 to index
      %608 = memref.load %arg6[%607] : memref<450xf32, #tpu.memory_space<smem>>
      %609 = vector.broadcast %608 : f32 to vector<16x128xf32>
      %610 = arith.mulf %584, %609 : vector<16x128xf32>
      %611 = arith.addf %582, %610 : vector<16x128xf32>
      %c0_i32_382 = arith.constant 0 : i32
      %c0_i32_383 = arith.constant 0 : i32
      %612 = tpu.memref_slice %arg13[%317, %c0_i32_382, %c0_i32_383] : memref<12x32x256xf32, #tpu.memory_space<vmem>> -> memref<1x32x256xf32, #tpu.memory_space<vmem>>
      %613 = tpu.memref_squeeze %612 : memref<1x32x256xf32, #tpu.memory_space<vmem>> -> memref<32x256xf32, #tpu.memory_space<vmem>>
      %c8_384 = arith.constant 8 : index
      %c0_385 = arith.constant 0 : index
      %614 = vector.load %613[%c8_384, %c0_385] : memref<32x256xf32, #tpu.memory_space<vmem>>, vector<16x256xf32>
      %c2_i32_386 = arith.constant 2 : i32
      %615 = tpu.dynamic_rotate %614 by %c2_i32_386 dim 1 : vector<16x256xf32>, i32 -> vector<16x256xf32>
      %616 = vector.extract_strided_slice %615 {offsets = [0, 0], sizes = [16, 128], strides = [1, 1]} : vector<16x256xf32> to vector<16x128xf32>
      %c0_i32_387 = arith.constant 0 : i32
      %617 = arith.addi %c0_i32_387, %arg14 : i32
      %c25_i32_388 = arith.constant 25 : i32
      %618 = arith.muli %617, %c25_i32_388 : i32
      %c10_i32 = arith.constant 10 : i32
      %619 = arith.addi %618, %c10_i32 : i32
      %c0_i32_389 = arith.constant 0 : i32
      %620 = arith.addi %619, %c0_i32_389 : i32
      %621 = arith.index_cast %620 : i32 to index
      %622 = memref.load %arg6[%621] : memref<450xf32, #tpu.memory_space<smem>>
      %623 = vector.broadcast %622 : f32 to vector<16x128xf32>
      %624 = arith.mulf %616, %623 : vector<16x128xf32>
      %625 = arith.addf %593, %624 : vector<16x128xf32>
      %c6_i32_390 = arith.constant 6 : i32
      %626 = arith.addi %c6_i32_390, %arg14 : i32
      %c25_i32_391 = arith.constant 25 : i32
      %627 = arith.muli %626, %c25_i32_391 : i32
      %c10_i32_392 = arith.constant 10 : i32
      %628 = arith.addi %627, %c10_i32_392 : i32
      %c0_i32_393 = arith.constant 0 : i32
      %629 = arith.addi %628, %c0_i32_393 : i32
      %630 = arith.index_cast %629 : i32 to index
      %631 = memref.load %arg6[%630] : memref<450xf32, #tpu.memory_space<smem>>
      %632 = vector.broadcast %631 : f32 to vector<16x128xf32>
      %633 = arith.mulf %616, %632 : vector<16x128xf32>
      %634 = arith.addf %602, %633 : vector<16x128xf32>
      %c12_i32_394 = arith.constant 12 : i32
      %635 = arith.addi %c12_i32_394, %arg14 : i32
      %c25_i32_395 = arith.constant 25 : i32
      %636 = arith.muli %635, %c25_i32_395 : i32
      %c10_i32_396 = arith.constant 10 : i32
      %637 = arith.addi %636, %c10_i32_396 : i32
      %c0_i32_397 = arith.constant 0 : i32
      %638 = arith.addi %637, %c0_i32_397 : i32
      %639 = arith.index_cast %638 : i32 to index
      %640 = memref.load %arg6[%639] : memref<450xf32, #tpu.memory_space<smem>>
      %641 = vector.broadcast %640 : f32 to vector<16x128xf32>
      %642 = arith.mulf %616, %641 : vector<16x128xf32>
      %643 = arith.addf %611, %642 : vector<16x128xf32>
      %c1_i32_398 = arith.constant 1 : i32
      %644 = tpu.dynamic_rotate %614 by %c1_i32_398 dim 1 : vector<16x256xf32>, i32 -> vector<16x256xf32>
      %645 = vector.extract_strided_slice %644 {offsets = [0, 0], sizes = [16, 128], strides = [1, 1]} : vector<16x256xf32> to vector<16x128xf32>
      %c0_i32_399 = arith.constant 0 : i32
      %646 = arith.addi %c0_i32_399, %arg14 : i32
      %c25_i32_400 = arith.constant 25 : i32
      %647 = arith.muli %646, %c25_i32_400 : i32
      %c10_i32_401 = arith.constant 10 : i32
      %648 = arith.addi %647, %c10_i32_401 : i32
      %c1_i32_402 = arith.constant 1 : i32
      %649 = arith.addi %648, %c1_i32_402 : i32
      %650 = arith.index_cast %649 : i32 to index
      %651 = memref.load %arg6[%650] : memref<450xf32, #tpu.memory_space<smem>>
      %652 = vector.broadcast %651 : f32 to vector<16x128xf32>
      %653 = arith.mulf %645, %652 : vector<16x128xf32>
      %654 = arith.addf %625, %653 : vector<16x128xf32>
      %c6_i32_403 = arith.constant 6 : i32
      %655 = arith.addi %c6_i32_403, %arg14 : i32
      %c25_i32_404 = arith.constant 25 : i32
      %656 = arith.muli %655, %c25_i32_404 : i32
      %c10_i32_405 = arith.constant 10 : i32
      %657 = arith.addi %656, %c10_i32_405 : i32
      %c1_i32_406 = arith.constant 1 : i32
      %658 = arith.addi %657, %c1_i32_406 : i32
      %659 = arith.index_cast %658 : i32 to index
      %660 = memref.load %arg6[%659] : memref<450xf32, #tpu.memory_space<smem>>
      %661 = vector.broadcast %660 : f32 to vector<16x128xf32>
      %662 = arith.mulf %645, %661 : vector<16x128xf32>
      %663 = arith.addf %634, %662 : vector<16x128xf32>
      %c12_i32_407 = arith.constant 12 : i32
      %664 = arith.addi %c12_i32_407, %arg14 : i32
      %c25_i32_408 = arith.constant 25 : i32
      %665 = arith.muli %664, %c25_i32_408 : i32
      %c10_i32_409 = arith.constant 10 : i32
      %666 = arith.addi %665, %c10_i32_409 : i32
      %c1_i32_410 = arith.constant 1 : i32
      %667 = arith.addi %666, %c1_i32_410 : i32
      %668 = arith.index_cast %667 : i32 to index
      %669 = memref.load %arg6[%668] : memref<450xf32, #tpu.memory_space<smem>>
      %670 = vector.broadcast %669 : f32 to vector<16x128xf32>
      %671 = arith.mulf %645, %670 : vector<16x128xf32>
      %672 = arith.addf %643, %671 : vector<16x128xf32>
      %673 = vector.extract_strided_slice %614 {offsets = [0, 0], sizes = [16, 128], strides = [1, 1]} : vector<16x256xf32> to vector<16x128xf32>
      %c0_i32_411 = arith.constant 0 : i32
      %674 = arith.addi %c0_i32_411, %arg14 : i32
      %c25_i32_412 = arith.constant 25 : i32
      %675 = arith.muli %674, %c25_i32_412 : i32
      %c10_i32_413 = arith.constant 10 : i32
      %676 = arith.addi %675, %c10_i32_413 : i32
      %c2_i32_414 = arith.constant 2 : i32
      %677 = arith.addi %676, %c2_i32_414 : i32
      %678 = arith.index_cast %677 : i32 to index
      %679 = memref.load %arg6[%678] : memref<450xf32, #tpu.memory_space<smem>>
      %680 = vector.broadcast %679 : f32 to vector<16x128xf32>
      %681 = arith.mulf %673, %680 : vector<16x128xf32>
      %682 = arith.addf %654, %681 : vector<16x128xf32>
      %c6_i32_415 = arith.constant 6 : i32
      %683 = arith.addi %c6_i32_415, %arg14 : i32
      %c25_i32_416 = arith.constant 25 : i32
      %684 = arith.muli %683, %c25_i32_416 : i32
      %c10_i32_417 = arith.constant 10 : i32
      %685 = arith.addi %684, %c10_i32_417 : i32
      %c2_i32_418 = arith.constant 2 : i32
      %686 = arith.addi %685, %c2_i32_418 : i32
      %687 = arith.index_cast %686 : i32 to index
      %688 = memref.load %arg6[%687] : memref<450xf32, #tpu.memory_space<smem>>
      %689 = vector.broadcast %688 : f32 to vector<16x128xf32>
      %690 = arith.mulf %673, %689 : vector<16x128xf32>
      %691 = arith.addf %663, %690 : vector<16x128xf32>
      %c12_i32_419 = arith.constant 12 : i32
      %692 = arith.addi %c12_i32_419, %arg14 : i32
      %c25_i32_420 = arith.constant 25 : i32
      %693 = arith.muli %692, %c25_i32_420 : i32
      %c10_i32_421 = arith.constant 10 : i32
      %694 = arith.addi %693, %c10_i32_421 : i32
      %c2_i32_422 = arith.constant 2 : i32
      %695 = arith.addi %694, %c2_i32_422 : i32
      %696 = arith.index_cast %695 : i32 to index
      %697 = memref.load %arg6[%696] : memref<450xf32, #tpu.memory_space<smem>>
      %698 = vector.broadcast %697 : f32 to vector<16x128xf32>
      %699 = arith.mulf %673, %698 : vector<16x128xf32>
      %700 = arith.addf %672, %699 : vector<16x128xf32>
      %c255_i32_423 = arith.constant 255 : i32
      %701 = tpu.dynamic_rotate %614 by %c255_i32_423 dim 1 : vector<16x256xf32>, i32 -> vector<16x256xf32>
      %702 = vector.extract_strided_slice %701 {offsets = [0, 0], sizes = [16, 128], strides = [1, 1]} : vector<16x256xf32> to vector<16x128xf32>
      %c0_i32_424 = arith.constant 0 : i32
      %703 = arith.addi %c0_i32_424, %arg14 : i32
      %c25_i32_425 = arith.constant 25 : i32
      %704 = arith.muli %703, %c25_i32_425 : i32
      %c10_i32_426 = arith.constant 10 : i32
      %705 = arith.addi %704, %c10_i32_426 : i32
      %c3_i32_427 = arith.constant 3 : i32
      %706 = arith.addi %705, %c3_i32_427 : i32
      %707 = arith.index_cast %706 : i32 to index
      %708 = memref.load %arg6[%707] : memref<450xf32, #tpu.memory_space<smem>>
      %709 = vector.broadcast %708 : f32 to vector<16x128xf32>
      %710 = arith.mulf %702, %709 : vector<16x128xf32>
      %711 = arith.addf %682, %710 : vector<16x128xf32>
      %c6_i32_428 = arith.constant 6 : i32
      %712 = arith.addi %c6_i32_428, %arg14 : i32
      %c25_i32_429 = arith.constant 25 : i32
      %713 = arith.muli %712, %c25_i32_429 : i32
      %c10_i32_430 = arith.constant 10 : i32
      %714 = arith.addi %713, %c10_i32_430 : i32
      %c3_i32_431 = arith.constant 3 : i32
      %715 = arith.addi %714, %c3_i32_431 : i32
      %716 = arith.index_cast %715 : i32 to index
      %717 = memref.load %arg6[%716] : memref<450xf32, #tpu.memory_space<smem>>
      %718 = vector.broadcast %717 : f32 to vector<16x128xf32>
      %719 = arith.mulf %702, %718 : vector<16x128xf32>
      %720 = arith.addf %691, %719 : vector<16x128xf32>
      %c12_i32_432 = arith.constant 12 : i32
      %721 = arith.addi %c12_i32_432, %arg14 : i32
      %c25_i32_433 = arith.constant 25 : i32
      %722 = arith.muli %721, %c25_i32_433 : i32
      %c10_i32_434 = arith.constant 10 : i32
      %723 = arith.addi %722, %c10_i32_434 : i32
      %c3_i32_435 = arith.constant 3 : i32
      %724 = arith.addi %723, %c3_i32_435 : i32
      %725 = arith.index_cast %724 : i32 to index
      %726 = memref.load %arg6[%725] : memref<450xf32, #tpu.memory_space<smem>>
      %727 = vector.broadcast %726 : f32 to vector<16x128xf32>
      %728 = arith.mulf %702, %727 : vector<16x128xf32>
      %729 = arith.addf %700, %728 : vector<16x128xf32>
      %c254_i32_436 = arith.constant 254 : i32
      %730 = tpu.dynamic_rotate %614 by %c254_i32_436 dim 1 : vector<16x256xf32>, i32 -> vector<16x256xf32>
      %731 = vector.extract_strided_slice %730 {offsets = [0, 0], sizes = [16, 128], strides = [1, 1]} : vector<16x256xf32> to vector<16x128xf32>
      %c0_i32_437 = arith.constant 0 : i32
      %732 = arith.addi %c0_i32_437, %arg14 : i32
      %c25_i32_438 = arith.constant 25 : i32
      %733 = arith.muli %732, %c25_i32_438 : i32
      %c10_i32_439 = arith.constant 10 : i32
      %734 = arith.addi %733, %c10_i32_439 : i32
      %c4_i32_440 = arith.constant 4 : i32
      %735 = arith.addi %734, %c4_i32_440 : i32
      %736 = arith.index_cast %735 : i32 to index
      %737 = memref.load %arg6[%736] : memref<450xf32, #tpu.memory_space<smem>>
      %738 = vector.broadcast %737 : f32 to vector<16x128xf32>
      %739 = arith.mulf %731, %738 : vector<16x128xf32>
      %740 = arith.addf %711, %739 : vector<16x128xf32>
      %c6_i32_441 = arith.constant 6 : i32
      %741 = arith.addi %c6_i32_441, %arg14 : i32
      %c25_i32_442 = arith.constant 25 : i32
      %742 = arith.muli %741, %c25_i32_442 : i32
      %c10_i32_443 = arith.constant 10 : i32
      %743 = arith.addi %742, %c10_i32_443 : i32
      %c4_i32_444 = arith.constant 4 : i32
      %744 = arith.addi %743, %c4_i32_444 : i32
      %745 = arith.index_cast %744 : i32 to index
      %746 = memref.load %arg6[%745] : memref<450xf32, #tpu.memory_space<smem>>
      %747 = vector.broadcast %746 : f32 to vector<16x128xf32>
      %748 = arith.mulf %731, %747 : vector<16x128xf32>
      %749 = arith.addf %720, %748 : vector<16x128xf32>
      %c12_i32_445 = arith.constant 12 : i32
      %750 = arith.addi %c12_i32_445, %arg14 : i32
      %c25_i32_446 = arith.constant 25 : i32
      %751 = arith.muli %750, %c25_i32_446 : i32
      %c10_i32_447 = arith.constant 10 : i32
      %752 = arith.addi %751, %c10_i32_447 : i32
      %c4_i32_448 = arith.constant 4 : i32
      %753 = arith.addi %752, %c4_i32_448 : i32
      %754 = arith.index_cast %753 : i32 to index
      %755 = memref.load %arg6[%754] : memref<450xf32, #tpu.memory_space<smem>>
      %756 = vector.broadcast %755 : f32 to vector<16x128xf32>
      %757 = arith.mulf %731, %756 : vector<16x128xf32>
      %758 = arith.addf %729, %757 : vector<16x128xf32>
      %c0_i32_449 = arith.constant 0 : i32
      %c0_i32_450 = arith.constant 0 : i32
      %759 = tpu.memref_slice %arg13[%317, %c0_i32_449, %c0_i32_450] : memref<12x32x256xf32, #tpu.memory_space<vmem>> -> memref<1x32x256xf32, #tpu.memory_space<vmem>>
      %760 = tpu.memref_squeeze %759 : memref<1x32x256xf32, #tpu.memory_space<vmem>> -> memref<32x256xf32, #tpu.memory_space<vmem>>
      %c9_451 = arith.constant 9 : index
      %c0_452 = arith.constant 0 : index
      %761 = vector.load %760[%c9_451, %c0_452] : memref<32x256xf32, #tpu.memory_space<vmem>>, vector<16x256xf32>
      %c2_i32_453 = arith.constant 2 : i32
      %762 = tpu.dynamic_rotate %761 by %c2_i32_453 dim 1 : vector<16x256xf32>, i32 -> vector<16x256xf32>
      %763 = vector.extract_strided_slice %762 {offsets = [0, 0], sizes = [16, 128], strides = [1, 1]} : vector<16x256xf32> to vector<16x128xf32>
      %c0_i32_454 = arith.constant 0 : i32
      %764 = arith.addi %c0_i32_454, %arg14 : i32
      %c25_i32_455 = arith.constant 25 : i32
      %765 = arith.muli %764, %c25_i32_455 : i32
      %c15_i32 = arith.constant 15 : i32
      %766 = arith.addi %765, %c15_i32 : i32
      %c0_i32_456 = arith.constant 0 : i32
      %767 = arith.addi %766, %c0_i32_456 : i32
      %768 = arith.index_cast %767 : i32 to index
      %769 = memref.load %arg6[%768] : memref<450xf32, #tpu.memory_space<smem>>
      %770 = vector.broadcast %769 : f32 to vector<16x128xf32>
      %771 = arith.mulf %763, %770 : vector<16x128xf32>
      %772 = arith.addf %740, %771 : vector<16x128xf32>
      %c6_i32_457 = arith.constant 6 : i32
      %773 = arith.addi %c6_i32_457, %arg14 : i32
      %c25_i32_458 = arith.constant 25 : i32
      %774 = arith.muli %773, %c25_i32_458 : i32
      %c15_i32_459 = arith.constant 15 : i32
      %775 = arith.addi %774, %c15_i32_459 : i32
      %c0_i32_460 = arith.constant 0 : i32
      %776 = arith.addi %775, %c0_i32_460 : i32
      %777 = arith.index_cast %776 : i32 to index
      %778 = memref.load %arg6[%777] : memref<450xf32, #tpu.memory_space<smem>>
      %779 = vector.broadcast %778 : f32 to vector<16x128xf32>
      %780 = arith.mulf %763, %779 : vector<16x128xf32>
      %781 = arith.addf %749, %780 : vector<16x128xf32>
      %c12_i32_461 = arith.constant 12 : i32
      %782 = arith.addi %c12_i32_461, %arg14 : i32
      %c25_i32_462 = arith.constant 25 : i32
      %783 = arith.muli %782, %c25_i32_462 : i32
      %c15_i32_463 = arith.constant 15 : i32
      %784 = arith.addi %783, %c15_i32_463 : i32
      %c0_i32_464 = arith.constant 0 : i32
      %785 = arith.addi %784, %c0_i32_464 : i32
      %786 = arith.index_cast %785 : i32 to index
      %787 = memref.load %arg6[%786] : memref<450xf32, #tpu.memory_space<smem>>
      %788 = vector.broadcast %787 : f32 to vector<16x128xf32>
      %789 = arith.mulf %763, %788 : vector<16x128xf32>
      %790 = arith.addf %758, %789 : vector<16x128xf32>
      %c1_i32_465 = arith.constant 1 : i32
      %791 = tpu.dynamic_rotate %761 by %c1_i32_465 dim 1 : vector<16x256xf32>, i32 -> vector<16x256xf32>
      %792 = vector.extract_strided_slice %791 {offsets = [0, 0], sizes = [16, 128], strides = [1, 1]} : vector<16x256xf32> to vector<16x128xf32>
      %c0_i32_466 = arith.constant 0 : i32
      %793 = arith.addi %c0_i32_466, %arg14 : i32
      %c25_i32_467 = arith.constant 25 : i32
      %794 = arith.muli %793, %c25_i32_467 : i32
      %c15_i32_468 = arith.constant 15 : i32
      %795 = arith.addi %794, %c15_i32_468 : i32
      %c1_i32_469 = arith.constant 1 : i32
      %796 = arith.addi %795, %c1_i32_469 : i32
      %797 = arith.index_cast %796 : i32 to index
      %798 = memref.load %arg6[%797] : memref<450xf32, #tpu.memory_space<smem>>
      %799 = vector.broadcast %798 : f32 to vector<16x128xf32>
      %800 = arith.mulf %792, %799 : vector<16x128xf32>
      %801 = arith.addf %772, %800 : vector<16x128xf32>
      %c6_i32_470 = arith.constant 6 : i32
      %802 = arith.addi %c6_i32_470, %arg14 : i32
      %c25_i32_471 = arith.constant 25 : i32
      %803 = arith.muli %802, %c25_i32_471 : i32
      %c15_i32_472 = arith.constant 15 : i32
      %804 = arith.addi %803, %c15_i32_472 : i32
      %c1_i32_473 = arith.constant 1 : i32
      %805 = arith.addi %804, %c1_i32_473 : i32
      %806 = arith.index_cast %805 : i32 to index
      %807 = memref.load %arg6[%806] : memref<450xf32, #tpu.memory_space<smem>>
      %808 = vector.broadcast %807 : f32 to vector<16x128xf32>
      %809 = arith.mulf %792, %808 : vector<16x128xf32>
      %810 = arith.addf %781, %809 : vector<16x128xf32>
      %c12_i32_474 = arith.constant 12 : i32
      %811 = arith.addi %c12_i32_474, %arg14 : i32
      %c25_i32_475 = arith.constant 25 : i32
      %812 = arith.muli %811, %c25_i32_475 : i32
      %c15_i32_476 = arith.constant 15 : i32
      %813 = arith.addi %812, %c15_i32_476 : i32
      %c1_i32_477 = arith.constant 1 : i32
      %814 = arith.addi %813, %c1_i32_477 : i32
      %815 = arith.index_cast %814 : i32 to index
      %816 = memref.load %arg6[%815] : memref<450xf32, #tpu.memory_space<smem>>
      %817 = vector.broadcast %816 : f32 to vector<16x128xf32>
      %818 = arith.mulf %792, %817 : vector<16x128xf32>
      %819 = arith.addf %790, %818 : vector<16x128xf32>
      %820 = vector.extract_strided_slice %761 {offsets = [0, 0], sizes = [16, 128], strides = [1, 1]} : vector<16x256xf32> to vector<16x128xf32>
      %c0_i32_478 = arith.constant 0 : i32
      %821 = arith.addi %c0_i32_478, %arg14 : i32
      %c25_i32_479 = arith.constant 25 : i32
      %822 = arith.muli %821, %c25_i32_479 : i32
      %c15_i32_480 = arith.constant 15 : i32
      %823 = arith.addi %822, %c15_i32_480 : i32
      %c2_i32_481 = arith.constant 2 : i32
      %824 = arith.addi %823, %c2_i32_481 : i32
      %825 = arith.index_cast %824 : i32 to index
      %826 = memref.load %arg6[%825] : memref<450xf32, #tpu.memory_space<smem>>
      %827 = vector.broadcast %826 : f32 to vector<16x128xf32>
      %828 = arith.mulf %820, %827 : vector<16x128xf32>
      %829 = arith.addf %801, %828 : vector<16x128xf32>
      %c6_i32_482 = arith.constant 6 : i32
      %830 = arith.addi %c6_i32_482, %arg14 : i32
      %c25_i32_483 = arith.constant 25 : i32
      %831 = arith.muli %830, %c25_i32_483 : i32
      %c15_i32_484 = arith.constant 15 : i32
      %832 = arith.addi %831, %c15_i32_484 : i32
      %c2_i32_485 = arith.constant 2 : i32
      %833 = arith.addi %832, %c2_i32_485 : i32
      %834 = arith.index_cast %833 : i32 to index
      %835 = memref.load %arg6[%834] : memref<450xf32, #tpu.memory_space<smem>>
      %836 = vector.broadcast %835 : f32 to vector<16x128xf32>
      %837 = arith.mulf %820, %836 : vector<16x128xf32>
      %838 = arith.addf %810, %837 : vector<16x128xf32>
      %c12_i32_486 = arith.constant 12 : i32
      %839 = arith.addi %c12_i32_486, %arg14 : i32
      %c25_i32_487 = arith.constant 25 : i32
      %840 = arith.muli %839, %c25_i32_487 : i32
      %c15_i32_488 = arith.constant 15 : i32
      %841 = arith.addi %840, %c15_i32_488 : i32
      %c2_i32_489 = arith.constant 2 : i32
      %842 = arith.addi %841, %c2_i32_489 : i32
      %843 = arith.index_cast %842 : i32 to index
      %844 = memref.load %arg6[%843] : memref<450xf32, #tpu.memory_space<smem>>
      %845 = vector.broadcast %844 : f32 to vector<16x128xf32>
      %846 = arith.mulf %820, %845 : vector<16x128xf32>
      %847 = arith.addf %819, %846 : vector<16x128xf32>
      %c255_i32_490 = arith.constant 255 : i32
      %848 = tpu.dynamic_rotate %761 by %c255_i32_490 dim 1 : vector<16x256xf32>, i32 -> vector<16x256xf32>
      %849 = vector.extract_strided_slice %848 {offsets = [0, 0], sizes = [16, 128], strides = [1, 1]} : vector<16x256xf32> to vector<16x128xf32>
      %c0_i32_491 = arith.constant 0 : i32
      %850 = arith.addi %c0_i32_491, %arg14 : i32
      %c25_i32_492 = arith.constant 25 : i32
      %851 = arith.muli %850, %c25_i32_492 : i32
      %c15_i32_493 = arith.constant 15 : i32
      %852 = arith.addi %851, %c15_i32_493 : i32
      %c3_i32_494 = arith.constant 3 : i32
      %853 = arith.addi %852, %c3_i32_494 : i32
      %854 = arith.index_cast %853 : i32 to index
      %855 = memref.load %arg6[%854] : memref<450xf32, #tpu.memory_space<smem>>
      %856 = vector.broadcast %855 : f32 to vector<16x128xf32>
      %857 = arith.mulf %849, %856 : vector<16x128xf32>
      %858 = arith.addf %829, %857 : vector<16x128xf32>
      %c6_i32_495 = arith.constant 6 : i32
      %859 = arith.addi %c6_i32_495, %arg14 : i32
      %c25_i32_496 = arith.constant 25 : i32
      %860 = arith.muli %859, %c25_i32_496 : i32
      %c15_i32_497 = arith.constant 15 : i32
      %861 = arith.addi %860, %c15_i32_497 : i32
      %c3_i32_498 = arith.constant 3 : i32
      %862 = arith.addi %861, %c3_i32_498 : i32
      %863 = arith.index_cast %862 : i32 to index
      %864 = memref.load %arg6[%863] : memref<450xf32, #tpu.memory_space<smem>>
      %865 = vector.broadcast %864 : f32 to vector<16x128xf32>
      %866 = arith.mulf %849, %865 : vector<16x128xf32>
      %867 = arith.addf %838, %866 : vector<16x128xf32>
      %c12_i32_499 = arith.constant 12 : i32
      %868 = arith.addi %c12_i32_499, %arg14 : i32
      %c25_i32_500 = arith.constant 25 : i32
      %869 = arith.muli %868, %c25_i32_500 : i32
      %c15_i32_501 = arith.constant 15 : i32
      %870 = arith.addi %869, %c15_i32_501 : i32
      %c3_i32_502 = arith.constant 3 : i32
      %871 = arith.addi %870, %c3_i32_502 : i32
      %872 = arith.index_cast %871 : i32 to index
      %873 = memref.load %arg6[%872] : memref<450xf32, #tpu.memory_space<smem>>
      %874 = vector.broadcast %873 : f32 to vector<16x128xf32>
      %875 = arith.mulf %849, %874 : vector<16x128xf32>
      %876 = arith.addf %847, %875 : vector<16x128xf32>
      %c254_i32_503 = arith.constant 254 : i32
      %877 = tpu.dynamic_rotate %761 by %c254_i32_503 dim 1 : vector<16x256xf32>, i32 -> vector<16x256xf32>
      %878 = vector.extract_strided_slice %877 {offsets = [0, 0], sizes = [16, 128], strides = [1, 1]} : vector<16x256xf32> to vector<16x128xf32>
      %c0_i32_504 = arith.constant 0 : i32
      %879 = arith.addi %c0_i32_504, %arg14 : i32
      %c25_i32_505 = arith.constant 25 : i32
      %880 = arith.muli %879, %c25_i32_505 : i32
      %c15_i32_506 = arith.constant 15 : i32
      %881 = arith.addi %880, %c15_i32_506 : i32
      %c4_i32_507 = arith.constant 4 : i32
      %882 = arith.addi %881, %c4_i32_507 : i32
      %883 = arith.index_cast %882 : i32 to index
      %884 = memref.load %arg6[%883] : memref<450xf32, #tpu.memory_space<smem>>
      %885 = vector.broadcast %884 : f32 to vector<16x128xf32>
      %886 = arith.mulf %878, %885 : vector<16x128xf32>
      %887 = arith.addf %858, %886 : vector<16x128xf32>
      %c6_i32_508 = arith.constant 6 : i32
      %888 = arith.addi %c6_i32_508, %arg14 : i32
      %c25_i32_509 = arith.constant 25 : i32
      %889 = arith.muli %888, %c25_i32_509 : i32
      %c15_i32_510 = arith.constant 15 : i32
      %890 = arith.addi %889, %c15_i32_510 : i32
      %c4_i32_511 = arith.constant 4 : i32
      %891 = arith.addi %890, %c4_i32_511 : i32
      %892 = arith.index_cast %891 : i32 to index
      %893 = memref.load %arg6[%892] : memref<450xf32, #tpu.memory_space<smem>>
      %894 = vector.broadcast %893 : f32 to vector<16x128xf32>
      %895 = arith.mulf %878, %894 : vector<16x128xf32>
      %896 = arith.addf %867, %895 : vector<16x128xf32>
      %c12_i32_512 = arith.constant 12 : i32
      %897 = arith.addi %c12_i32_512, %arg14 : i32
      %c25_i32_513 = arith.constant 25 : i32
      %898 = arith.muli %897, %c25_i32_513 : i32
      %c15_i32_514 = arith.constant 15 : i32
      %899 = arith.addi %898, %c15_i32_514 : i32
      %c4_i32_515 = arith.constant 4 : i32
      %900 = arith.addi %899, %c4_i32_515 : i32
      %901 = arith.index_cast %900 : i32 to index
      %902 = memref.load %arg6[%901] : memref<450xf32, #tpu.memory_space<smem>>
      %903 = vector.broadcast %902 : f32 to vector<16x128xf32>
      %904 = arith.mulf %878, %903 : vector<16x128xf32>
      %905 = arith.addf %876, %904 : vector<16x128xf32>
      %c0_i32_516 = arith.constant 0 : i32
      %c0_i32_517 = arith.constant 0 : i32
      %906 = tpu.memref_slice %arg13[%317, %c0_i32_516, %c0_i32_517] : memref<12x32x256xf32, #tpu.memory_space<vmem>> -> memref<1x32x256xf32, #tpu.memory_space<vmem>>
      %907 = tpu.memref_squeeze %906 : memref<1x32x256xf32, #tpu.memory_space<vmem>> -> memref<32x256xf32, #tpu.memory_space<vmem>>
      %c10_518 = arith.constant 10 : index
      %c0_519 = arith.constant 0 : index
      %908 = vector.load %907[%c10_518, %c0_519] : memref<32x256xf32, #tpu.memory_space<vmem>>, vector<16x256xf32>
      %c2_i32_520 = arith.constant 2 : i32
      %909 = tpu.dynamic_rotate %908 by %c2_i32_520 dim 1 : vector<16x256xf32>, i32 -> vector<16x256xf32>
      %910 = vector.extract_strided_slice %909 {offsets = [0, 0], sizes = [16, 128], strides = [1, 1]} : vector<16x256xf32> to vector<16x128xf32>
      %c0_i32_521 = arith.constant 0 : i32
      %911 = arith.addi %c0_i32_521, %arg14 : i32
      %c25_i32_522 = arith.constant 25 : i32
      %912 = arith.muli %911, %c25_i32_522 : i32
      %c20_i32 = arith.constant 20 : i32
      %913 = arith.addi %912, %c20_i32 : i32
      %c0_i32_523 = arith.constant 0 : i32
      %914 = arith.addi %913, %c0_i32_523 : i32
      %915 = arith.index_cast %914 : i32 to index
      %916 = memref.load %arg6[%915] : memref<450xf32, #tpu.memory_space<smem>>
      %917 = vector.broadcast %916 : f32 to vector<16x128xf32>
      %918 = arith.mulf %910, %917 : vector<16x128xf32>
      %919 = arith.addf %887, %918 : vector<16x128xf32>
      %c6_i32_524 = arith.constant 6 : i32
      %920 = arith.addi %c6_i32_524, %arg14 : i32
      %c25_i32_525 = arith.constant 25 : i32
      %921 = arith.muli %920, %c25_i32_525 : i32
      %c20_i32_526 = arith.constant 20 : i32
      %922 = arith.addi %921, %c20_i32_526 : i32
      %c0_i32_527 = arith.constant 0 : i32
      %923 = arith.addi %922, %c0_i32_527 : i32
      %924 = arith.index_cast %923 : i32 to index
      %925 = memref.load %arg6[%924] : memref<450xf32, #tpu.memory_space<smem>>
      %926 = vector.broadcast %925 : f32 to vector<16x128xf32>
      %927 = arith.mulf %910, %926 : vector<16x128xf32>
      %928 = arith.addf %896, %927 : vector<16x128xf32>
      %c12_i32_528 = arith.constant 12 : i32
      %929 = arith.addi %c12_i32_528, %arg14 : i32
      %c25_i32_529 = arith.constant 25 : i32
      %930 = arith.muli %929, %c25_i32_529 : i32
      %c20_i32_530 = arith.constant 20 : i32
      %931 = arith.addi %930, %c20_i32_530 : i32
      %c0_i32_531 = arith.constant 0 : i32
      %932 = arith.addi %931, %c0_i32_531 : i32
      %933 = arith.index_cast %932 : i32 to index
      %934 = memref.load %arg6[%933] : memref<450xf32, #tpu.memory_space<smem>>
      %935 = vector.broadcast %934 : f32 to vector<16x128xf32>
      %936 = arith.mulf %910, %935 : vector<16x128xf32>
      %937 = arith.addf %905, %936 : vector<16x128xf32>
      %c1_i32_532 = arith.constant 1 : i32
      %938 = tpu.dynamic_rotate %908 by %c1_i32_532 dim 1 : vector<16x256xf32>, i32 -> vector<16x256xf32>
      %939 = vector.extract_strided_slice %938 {offsets = [0, 0], sizes = [16, 128], strides = [1, 1]} : vector<16x256xf32> to vector<16x128xf32>
      %c0_i32_533 = arith.constant 0 : i32
      %940 = arith.addi %c0_i32_533, %arg14 : i32
      %c25_i32_534 = arith.constant 25 : i32
      %941 = arith.muli %940, %c25_i32_534 : i32
      %c20_i32_535 = arith.constant 20 : i32
      %942 = arith.addi %941, %c20_i32_535 : i32
      %c1_i32_536 = arith.constant 1 : i32
      %943 = arith.addi %942, %c1_i32_536 : i32
      %944 = arith.index_cast %943 : i32 to index
      %945 = memref.load %arg6[%944] : memref<450xf32, #tpu.memory_space<smem>>
      %946 = vector.broadcast %945 : f32 to vector<16x128xf32>
      %947 = arith.mulf %939, %946 : vector<16x128xf32>
      %948 = arith.addf %919, %947 : vector<16x128xf32>
      %c6_i32_537 = arith.constant 6 : i32
      %949 = arith.addi %c6_i32_537, %arg14 : i32
      %c25_i32_538 = arith.constant 25 : i32
      %950 = arith.muli %949, %c25_i32_538 : i32
      %c20_i32_539 = arith.constant 20 : i32
      %951 = arith.addi %950, %c20_i32_539 : i32
      %c1_i32_540 = arith.constant 1 : i32
      %952 = arith.addi %951, %c1_i32_540 : i32
      %953 = arith.index_cast %952 : i32 to index
      %954 = memref.load %arg6[%953] : memref<450xf32, #tpu.memory_space<smem>>
      %955 = vector.broadcast %954 : f32 to vector<16x128xf32>
      %956 = arith.mulf %939, %955 : vector<16x128xf32>
      %957 = arith.addf %928, %956 : vector<16x128xf32>
      %c12_i32_541 = arith.constant 12 : i32
      %958 = arith.addi %c12_i32_541, %arg14 : i32
      %c25_i32_542 = arith.constant 25 : i32
      %959 = arith.muli %958, %c25_i32_542 : i32
      %c20_i32_543 = arith.constant 20 : i32
      %960 = arith.addi %959, %c20_i32_543 : i32
      %c1_i32_544 = arith.constant 1 : i32
      %961 = arith.addi %960, %c1_i32_544 : i32
      %962 = arith.index_cast %961 : i32 to index
      %963 = memref.load %arg6[%962] : memref<450xf32, #tpu.memory_space<smem>>
      %964 = vector.broadcast %963 : f32 to vector<16x128xf32>
      %965 = arith.mulf %939, %964 : vector<16x128xf32>
      %966 = arith.addf %937, %965 : vector<16x128xf32>
      %967 = vector.extract_strided_slice %908 {offsets = [0, 0], sizes = [16, 128], strides = [1, 1]} : vector<16x256xf32> to vector<16x128xf32>
      %c0_i32_545 = arith.constant 0 : i32
      %968 = arith.addi %c0_i32_545, %arg14 : i32
      %c25_i32_546 = arith.constant 25 : i32
      %969 = arith.muli %968, %c25_i32_546 : i32
      %c20_i32_547 = arith.constant 20 : i32
      %970 = arith.addi %969, %c20_i32_547 : i32
      %c2_i32_548 = arith.constant 2 : i32
      %971 = arith.addi %970, %c2_i32_548 : i32
      %972 = arith.index_cast %971 : i32 to index
      %973 = memref.load %arg6[%972] : memref<450xf32, #tpu.memory_space<smem>>
      %974 = vector.broadcast %973 : f32 to vector<16x128xf32>
      %975 = arith.mulf %967, %974 : vector<16x128xf32>
      %976 = arith.addf %948, %975 : vector<16x128xf32>
      %c6_i32_549 = arith.constant 6 : i32
      %977 = arith.addi %c6_i32_549, %arg14 : i32
      %c25_i32_550 = arith.constant 25 : i32
      %978 = arith.muli %977, %c25_i32_550 : i32
      %c20_i32_551 = arith.constant 20 : i32
      %979 = arith.addi %978, %c20_i32_551 : i32
      %c2_i32_552 = arith.constant 2 : i32
      %980 = arith.addi %979, %c2_i32_552 : i32
      %981 = arith.index_cast %980 : i32 to index
      %982 = memref.load %arg6[%981] : memref<450xf32, #tpu.memory_space<smem>>
      %983 = vector.broadcast %982 : f32 to vector<16x128xf32>
      %984 = arith.mulf %967, %983 : vector<16x128xf32>
      %985 = arith.addf %957, %984 : vector<16x128xf32>
      %c12_i32_553 = arith.constant 12 : i32
      %986 = arith.addi %c12_i32_553, %arg14 : i32
      %c25_i32_554 = arith.constant 25 : i32
      %987 = arith.muli %986, %c25_i32_554 : i32
      %c20_i32_555 = arith.constant 20 : i32
      %988 = arith.addi %987, %c20_i32_555 : i32
      %c2_i32_556 = arith.constant 2 : i32
      %989 = arith.addi %988, %c2_i32_556 : i32
      %990 = arith.index_cast %989 : i32 to index
      %991 = memref.load %arg6[%990] : memref<450xf32, #tpu.memory_space<smem>>
      %992 = vector.broadcast %991 : f32 to vector<16x128xf32>
      %993 = arith.mulf %967, %992 : vector<16x128xf32>
      %994 = arith.addf %966, %993 : vector<16x128xf32>
      %c255_i32_557 = arith.constant 255 : i32
      %995 = tpu.dynamic_rotate %908 by %c255_i32_557 dim 1 : vector<16x256xf32>, i32 -> vector<16x256xf32>
      %996 = vector.extract_strided_slice %995 {offsets = [0, 0], sizes = [16, 128], strides = [1, 1]} : vector<16x256xf32> to vector<16x128xf32>
      %c0_i32_558 = arith.constant 0 : i32
      %997 = arith.addi %c0_i32_558, %arg14 : i32
      %c25_i32_559 = arith.constant 25 : i32
      %998 = arith.muli %997, %c25_i32_559 : i32
      %c20_i32_560 = arith.constant 20 : i32
      %999 = arith.addi %998, %c20_i32_560 : i32
      %c3_i32_561 = arith.constant 3 : i32
      %1000 = arith.addi %999, %c3_i32_561 : i32
      %1001 = arith.index_cast %1000 : i32 to index
      %1002 = memref.load %arg6[%1001] : memref<450xf32, #tpu.memory_space<smem>>
      %1003 = vector.broadcast %1002 : f32 to vector<16x128xf32>
      %1004 = arith.mulf %996, %1003 : vector<16x128xf32>
      %1005 = arith.addf %976, %1004 : vector<16x128xf32>
      %c6_i32_562 = arith.constant 6 : i32
      %1006 = arith.addi %c6_i32_562, %arg14 : i32
      %c25_i32_563 = arith.constant 25 : i32
      %1007 = arith.muli %1006, %c25_i32_563 : i32
      %c20_i32_564 = arith.constant 20 : i32
      %1008 = arith.addi %1007, %c20_i32_564 : i32
      %c3_i32_565 = arith.constant 3 : i32
      %1009 = arith.addi %1008, %c3_i32_565 : i32
      %1010 = arith.index_cast %1009 : i32 to index
      %1011 = memref.load %arg6[%1010] : memref<450xf32, #tpu.memory_space<smem>>
      %1012 = vector.broadcast %1011 : f32 to vector<16x128xf32>
      %1013 = arith.mulf %996, %1012 : vector<16x128xf32>
      %1014 = arith.addf %985, %1013 : vector<16x128xf32>
      %c12_i32_566 = arith.constant 12 : i32
      %1015 = arith.addi %c12_i32_566, %arg14 : i32
      %c25_i32_567 = arith.constant 25 : i32
      %1016 = arith.muli %1015, %c25_i32_567 : i32
      %c20_i32_568 = arith.constant 20 : i32
      %1017 = arith.addi %1016, %c20_i32_568 : i32
      %c3_i32_569 = arith.constant 3 : i32
      %1018 = arith.addi %1017, %c3_i32_569 : i32
      %1019 = arith.index_cast %1018 : i32 to index
      %1020 = memref.load %arg6[%1019] : memref<450xf32, #tpu.memory_space<smem>>
      %1021 = vector.broadcast %1020 : f32 to vector<16x128xf32>
      %1022 = arith.mulf %996, %1021 : vector<16x128xf32>
      %1023 = arith.addf %994, %1022 : vector<16x128xf32>
      %c254_i32_570 = arith.constant 254 : i32
      %1024 = tpu.dynamic_rotate %908 by %c254_i32_570 dim 1 : vector<16x256xf32>, i32 -> vector<16x256xf32>
      %1025 = vector.extract_strided_slice %1024 {offsets = [0, 0], sizes = [16, 128], strides = [1, 1]} : vector<16x256xf32> to vector<16x128xf32>
      %c0_i32_571 = arith.constant 0 : i32
      %1026 = arith.addi %c0_i32_571, %arg14 : i32
      %c25_i32_572 = arith.constant 25 : i32
      %1027 = arith.muli %1026, %c25_i32_572 : i32
      %c20_i32_573 = arith.constant 20 : i32
      %1028 = arith.addi %1027, %c20_i32_573 : i32
      %c4_i32_574 = arith.constant 4 : i32
      %1029 = arith.addi %1028, %c4_i32_574 : i32
      %1030 = arith.index_cast %1029 : i32 to index
      %1031 = memref.load %arg6[%1030] : memref<450xf32, #tpu.memory_space<smem>>
      %1032 = vector.broadcast %1031 : f32 to vector<16x128xf32>
      %1033 = arith.mulf %1025, %1032 : vector<16x128xf32>
      %1034 = arith.addf %1005, %1033 : vector<16x128xf32>
      %c6_i32_575 = arith.constant 6 : i32
      %1035 = arith.addi %c6_i32_575, %arg14 : i32
      %c25_i32_576 = arith.constant 25 : i32
      %1036 = arith.muli %1035, %c25_i32_576 : i32
      %c20_i32_577 = arith.constant 20 : i32
      %1037 = arith.addi %1036, %c20_i32_577 : i32
      %c4_i32_578 = arith.constant 4 : i32
      %1038 = arith.addi %1037, %c4_i32_578 : i32
      %1039 = arith.index_cast %1038 : i32 to index
      %1040 = memref.load %arg6[%1039] : memref<450xf32, #tpu.memory_space<smem>>
      %1041 = vector.broadcast %1040 : f32 to vector<16x128xf32>
      %1042 = arith.mulf %1025, %1041 : vector<16x128xf32>
      %1043 = arith.addf %1014, %1042 : vector<16x128xf32>
      %c12_i32_579 = arith.constant 12 : i32
      %1044 = arith.addi %c12_i32_579, %arg14 : i32
      %c25_i32_580 = arith.constant 25 : i32
      %1045 = arith.muli %1044, %c25_i32_580 : i32
      %c20_i32_581 = arith.constant 20 : i32
      %1046 = arith.addi %1045, %c20_i32_581 : i32
      %c4_i32_582 = arith.constant 4 : i32
      %1047 = arith.addi %1046, %c4_i32_582 : i32
      %1048 = arith.index_cast %1047 : i32 to index
      %1049 = memref.load %arg6[%1048] : memref<450xf32, #tpu.memory_space<smem>>
      %1050 = vector.broadcast %1049 : f32 to vector<16x128xf32>
      %1051 = arith.mulf %1025, %1050 : vector<16x128xf32>
      %1052 = arith.addf %1023, %1051 : vector<16x128xf32>
      scf.yield %1034, %1043, %1052 : vector<16x128xf32>, vector<16x128xf32>, vector<16x128xf32>
    }
    %c6_i32_175 = arith.constant 6 : i32
    %c0_176 = arith.constant 0 : index
    %215 = memref.load %arg7[%c0_176] : memref<3xf32, #tpu.memory_space<smem>>
    %216 = vector.broadcast %215 : f32 to vector<16x128xf32>
    %217 = arith.addf %214#0, %216 : vector<16x128xf32>
    %cst_177 = arith.constant 0.000000e+00 : f32
    %218 = vector.broadcast %cst_177 : f32 to vector<16x128xf32>
    %219 = arith.maximumf %217, %218 : vector<16x128xf32>
    %c1_178 = arith.constant 1 : index
    %220 = memref.load %arg7[%c1_178] : memref<3xf32, #tpu.memory_space<smem>>
    %221 = vector.broadcast %220 : f32 to vector<16x128xf32>
    %222 = arith.addf %214#1, %221 : vector<16x128xf32>
    %cst_179 = arith.constant 0.000000e+00 : f32
    %223 = vector.broadcast %cst_179 : f32 to vector<16x128xf32>
    %224 = arith.maximumf %222, %223 : vector<16x128xf32>
    %c2_180 = arith.constant 2 : index
    %225 = memref.load %arg7[%c2_180] : memref<3xf32, #tpu.memory_space<smem>>
    %226 = vector.broadcast %225 : f32 to vector<16x128xf32>
    %227 = arith.addf %214#2, %226 : vector<16x128xf32>
    %cst_181 = arith.constant 0.000000e+00 : f32
    %228 = vector.broadcast %cst_181 : f32 to vector<16x128xf32>
    %229 = arith.maximumf %227, %228 : vector<16x128xf32>
    %c6_182 = arith.constant 6 : index
    %c8_183 = arith.constant 8 : index
    %c0_184 = arith.constant 0 : index
    %230 = vector.load %arg13[%c6_182, %c8_183, %c0_184] : memref<12x32x256xf32, #tpu.memory_space<vmem>>, vector<1x16x128xf32>
    %231 = vector.shape_cast %230 : vector<1x16x128xf32> to vector<16x128xf32>
    %232 = vector.shape_cast %219 : vector<16x128xf32> to vector<1x16x128xf32>
    tpu.vector_store %arg13[%c6_182, %c8_183, %c0_184], %232 {strides = array<i32>} : memref<12x32x256xf32, #tpu.memory_space<vmem>>, vector<1x16x128xf32>,
    %c7_185 = arith.constant 7 : index
    %c8_186 = arith.constant 8 : index
    %c0_187 = arith.constant 0 : index
    %233 = vector.load %arg13[%c7_185, %c8_186, %c0_187] : memref<12x32x256xf32, #tpu.memory_space<vmem>>, vector<1x16x128xf32>
    %234 = vector.shape_cast %233 : vector<1x16x128xf32> to vector<16x128xf32>
    %235 = vector.shape_cast %224 : vector<16x128xf32> to vector<1x16x128xf32>
    tpu.vector_store %arg13[%c7_185, %c8_186, %c0_187], %235 {strides = array<i32>} : memref<12x32x256xf32, #tpu.memory_space<vmem>>, vector<1x16x128xf32>,
    %c8_188 = arith.constant 8 : index
    %c8_189 = arith.constant 8 : index
    %c0_190 = arith.constant 0 : index
    %236 = vector.load %arg13[%c8_188, %c8_189, %c0_190] : memref<12x32x256xf32, #tpu.memory_space<vmem>>, vector<1x16x128xf32>
    %237 = vector.shape_cast %236 : vector<1x16x128xf32> to vector<16x128xf32>
    %238 = vector.shape_cast %229 : vector<16x128xf32> to vector<1x16x128xf32>
    tpu.vector_store %arg13[%c8_188, %c8_189, %c0_190], %238 {strides = array<i32>} : memref<12x32x256xf32, #tpu.memory_space<vmem>>, vector<1x16x128xf32>,
    %cst_191 = arith.constant 0.000000e+00 : f32
    %239 = vector.broadcast %cst_191 : f32 to vector<16x128xf32>
    %c0_i32_192 = arith.constant 0 : i32
    %c6_i32_193 = arith.constant 6 : i32
    %240 = arith.addi %c0_i32_192, %c6_i32_193 : i32
    %c1_i32_194 = arith.constant 1 : i32
    %241:3 = scf.for %arg14 = %c0_i32_192 to %240 step %c1_i32_194 iter_args(%arg15 = %239, %arg16 = %239, %arg17 = %239) -> (vector<16x128xf32>, vector<16x128xf32>, vector<16x128xf32>)  : i32 {
      %c3_i32_251 = arith.constant 3 : i32
      %317 = arith.addi %c3_i32_251, %arg14 : i32
      %c0_i32_252 = arith.constant 0 : i32
      %c0_i32_253 = arith.constant 0 : i32
      %318 = tpu.memref_slice %arg13[%317, %c0_i32_252, %c0_i32_253] : memref<12x32x256xf32, #tpu.memory_space<vmem>> -> memref<1x32x256xf32, #tpu.memory_space<vmem>>
      %319 = tpu.memref_squeeze %318 : memref<1x32x256xf32, #tpu.memory_space<vmem>> -> memref<32x256xf32, #tpu.memory_space<vmem>>
      %c5_254 = arith.constant 5 : index
      %c0_255 = arith.constant 0 : index
      %320 = vector.load %319[%c5_254, %c0_255] : memref<32x256xf32, #tpu.memory_space<vmem>>, vector<16x256xf32>
      %c3_i32_256 = arith.constant 3 : i32
      %321 = tpu.dynamic_rotate %320 by %c3_i32_256 dim 1 : vector<16x256xf32>, i32 -> vector<16x256xf32>
      %322 = vector.extract_strided_slice %321 {offsets = [0, 0], sizes = [16, 128], strides = [1, 1]} : vector<16x256xf32> to vector<16x128xf32>
      %c0_i32_257 = arith.constant 0 : i32
      %323 = arith.addi %c0_i32_257, %arg14 : i32
      %c49_i32 = arith.constant 49 : i32
      %324 = arith.muli %323, %c49_i32 : i32
      %c0_i32_258 = arith.constant 0 : i32
      %325 = arith.addi %324, %c0_i32_258 : i32
      %c0_i32_259 = arith.constant 0 : i32
      %326 = arith.addi %325, %c0_i32_259 : i32
      %327 = arith.index_cast %326 : i32 to index
      %328 = memref.load %arg8[%327] : memref<882xf32, #tpu.memory_space<smem>>
      %329 = vector.broadcast %328 : f32 to vector<16x128xf32>
      %330 = arith.mulf %322, %329 : vector<16x128xf32>
      %331 = arith.addf %arg15, %330 : vector<16x128xf32>
      %c6_i32_260 = arith.constant 6 : i32
      %332 = arith.addi %c6_i32_260, %arg14 : i32
      %c49_i32_261 = arith.constant 49 : i32
      %333 = arith.muli %332, %c49_i32_261 : i32
      %c0_i32_262 = arith.constant 0 : i32
      %334 = arith.addi %333, %c0_i32_262 : i32
      %c0_i32_263 = arith.constant 0 : i32
      %335 = arith.addi %334, %c0_i32_263 : i32
      %336 = arith.index_cast %335 : i32 to index
      %337 = memref.load %arg8[%336] : memref<882xf32, #tpu.memory_space<smem>>
      %338 = vector.broadcast %337 : f32 to vector<16x128xf32>
      %339 = arith.mulf %322, %338 : vector<16x128xf32>
      %340 = arith.addf %arg16, %339 : vector<16x128xf32>
      %c12_i32_264 = arith.constant 12 : i32
      %341 = arith.addi %c12_i32_264, %arg14 : i32
      %c49_i32_265 = arith.constant 49 : i32
      %342 = arith.muli %341, %c49_i32_265 : i32
      %c0_i32_266 = arith.constant 0 : i32
      %343 = arith.addi %342, %c0_i32_266 : i32
      %c0_i32_267 = arith.constant 0 : i32
      %344 = arith.addi %343, %c0_i32_267 : i32
      %345 = arith.index_cast %344 : i32 to index
      %346 = memref.load %arg8[%345] : memref<882xf32, #tpu.memory_space<smem>>
      %347 = vector.broadcast %346 : f32 to vector<16x128xf32>
      %348 = arith.mulf %322, %347 : vector<16x128xf32>
      %349 = arith.addf %arg17, %348 : vector<16x128xf32>
      %c2_i32 = arith.constant 2 : i32
      %350 = tpu.dynamic_rotate %320 by %c2_i32 dim 1 : vector<16x256xf32>, i32 -> vector<16x256xf32>
      %351 = vector.extract_strided_slice %350 {offsets = [0, 0], sizes = [16, 128], strides = [1, 1]} : vector<16x256xf32> to vector<16x128xf32>
      %c0_i32_268 = arith.constant 0 : i32
      %352 = arith.addi %c0_i32_268, %arg14 : i32
      %c49_i32_269 = arith.constant 49 : i32
      %353 = arith.muli %352, %c49_i32_269 : i32
      %c0_i32_270 = arith.constant 0 : i32
      %354 = arith.addi %353, %c0_i32_270 : i32
      %c1_i32_271 = arith.constant 1 : i32
      %355 = arith.addi %354, %c1_i32_271 : i32
      %356 = arith.index_cast %355 : i32 to index
      %357 = memref.load %arg8[%356] : memref<882xf32, #tpu.memory_space<smem>>
      %358 = vector.broadcast %357 : f32 to vector<16x128xf32>
      %359 = arith.mulf %351, %358 : vector<16x128xf32>
      %360 = arith.addf %331, %359 : vector<16x128xf32>
      %c6_i32_272 = arith.constant 6 : i32
      %361 = arith.addi %c6_i32_272, %arg14 : i32
      %c49_i32_273 = arith.constant 49 : i32
      %362 = arith.muli %361, %c49_i32_273 : i32
      %c0_i32_274 = arith.constant 0 : i32
      %363 = arith.addi %362, %c0_i32_274 : i32
      %c1_i32_275 = arith.constant 1 : i32
      %364 = arith.addi %363, %c1_i32_275 : i32
      %365 = arith.index_cast %364 : i32 to index
      %366 = memref.load %arg8[%365] : memref<882xf32, #tpu.memory_space<smem>>
      %367 = vector.broadcast %366 : f32 to vector<16x128xf32>
      %368 = arith.mulf %351, %367 : vector<16x128xf32>
      %369 = arith.addf %340, %368 : vector<16x128xf32>
      %c12_i32_276 = arith.constant 12 : i32
      %370 = arith.addi %c12_i32_276, %arg14 : i32
      %c49_i32_277 = arith.constant 49 : i32
      %371 = arith.muli %370, %c49_i32_277 : i32
      %c0_i32_278 = arith.constant 0 : i32
      %372 = arith.addi %371, %c0_i32_278 : i32
      %c1_i32_279 = arith.constant 1 : i32
      %373 = arith.addi %372, %c1_i32_279 : i32
      %374 = arith.index_cast %373 : i32 to index
      %375 = memref.load %arg8[%374] : memref<882xf32, #tpu.memory_space<smem>>
      %376 = vector.broadcast %375 : f32 to vector<16x128xf32>
      %377 = arith.mulf %351, %376 : vector<16x128xf32>
      %378 = arith.addf %349, %377 : vector<16x128xf32>
      %c1_i32_280 = arith.constant 1 : i32
      %379 = tpu.dynamic_rotate %320 by %c1_i32_280 dim 1 : vector<16x256xf32>, i32 -> vector<16x256xf32>
      %380 = vector.extract_strided_slice %379 {offsets = [0, 0], sizes = [16, 128], strides = [1, 1]} : vector<16x256xf32> to vector<16x128xf32>
      %c0_i32_281 = arith.constant 0 : i32
      %381 = arith.addi %c0_i32_281, %arg14 : i32
      %c49_i32_282 = arith.constant 49 : i32
      %382 = arith.muli %381, %c49_i32_282 : i32
      %c0_i32_283 = arith.constant 0 : i32
      %383 = arith.addi %382, %c0_i32_283 : i32
      %c2_i32_284 = arith.constant 2 : i32
      %384 = arith.addi %383, %c2_i32_284 : i32
      %385 = arith.index_cast %384 : i32 to index
      %386 = memref.load %arg8[%385] : memref<882xf32, #tpu.memory_space<smem>>
      %387 = vector.broadcast %386 : f32 to vector<16x128xf32>
      %388 = arith.mulf %380, %387 : vector<16x128xf32>
      %389 = arith.addf %360, %388 : vector<16x128xf32>
      %c6_i32_285 = arith.constant 6 : i32
      %390 = arith.addi %c6_i32_285, %arg14 : i32
      %c49_i32_286 = arith.constant 49 : i32
      %391 = arith.muli %390, %c49_i32_286 : i32
      %c0_i32_287 = arith.constant 0 : i32
      %392 = arith.addi %391, %c0_i32_287 : i32
      %c2_i32_288 = arith.constant 2 : i32
      %393 = arith.addi %392, %c2_i32_288 : i32
      %394 = arith.index_cast %393 : i32 to index
      %395 = memref.load %arg8[%394] : memref<882xf32, #tpu.memory_space<smem>>
      %396 = vector.broadcast %395 : f32 to vector<16x128xf32>
      %397 = arith.mulf %380, %396 : vector<16x128xf32>
      %398 = arith.addf %369, %397 : vector<16x128xf32>
      %c12_i32_289 = arith.constant 12 : i32
      %399 = arith.addi %c12_i32_289, %arg14 : i32
      %c49_i32_290 = arith.constant 49 : i32
      %400 = arith.muli %399, %c49_i32_290 : i32
      %c0_i32_291 = arith.constant 0 : i32
      %401 = arith.addi %400, %c0_i32_291 : i32
      %c2_i32_292 = arith.constant 2 : i32
      %402 = arith.addi %401, %c2_i32_292 : i32
      %403 = arith.index_cast %402 : i32 to index
      %404 = memref.load %arg8[%403] : memref<882xf32, #tpu.memory_space<smem>>
      %405 = vector.broadcast %404 : f32 to vector<16x128xf32>
      %406 = arith.mulf %380, %405 : vector<16x128xf32>
      %407 = arith.addf %378, %406 : vector<16x128xf32>
      %408 = vector.extract_strided_slice %320 {offsets = [0, 0], sizes = [16, 128], strides = [1, 1]} : vector<16x256xf32> to vector<16x128xf32>
      %c0_i32_293 = arith.constant 0 : i32
      %409 = arith.addi %c0_i32_293, %arg14 : i32
      %c49_i32_294 = arith.constant 49 : i32
      %410 = arith.muli %409, %c49_i32_294 : i32
      %c0_i32_295 = arith.constant 0 : i32
      %411 = arith.addi %410, %c0_i32_295 : i32
      %c3_i32_296 = arith.constant 3 : i32
      %412 = arith.addi %411, %c3_i32_296 : i32
      %413 = arith.index_cast %412 : i32 to index
      %414 = memref.load %arg8[%413] : memref<882xf32, #tpu.memory_space<smem>>
      %415 = vector.broadcast %414 : f32 to vector<16x128xf32>
      %416 = arith.mulf %408, %415 : vector<16x128xf32>
      %417 = arith.addf %389, %416 : vector<16x128xf32>
      %c6_i32_297 = arith.constant 6 : i32
      %418 = arith.addi %c6_i32_297, %arg14 : i32
      %c49_i32_298 = arith.constant 49 : i32
      %419 = arith.muli %418, %c49_i32_298 : i32
      %c0_i32_299 = arith.constant 0 : i32
      %420 = arith.addi %419, %c0_i32_299 : i32
      %c3_i32_300 = arith.constant 3 : i32
      %421 = arith.addi %420, %c3_i32_300 : i32
      %422 = arith.index_cast %421 : i32 to index
      %423 = memref.load %arg8[%422] : memref<882xf32, #tpu.memory_space<smem>>
      %424 = vector.broadcast %423 : f32 to vector<16x128xf32>
      %425 = arith.mulf %408, %424 : vector<16x128xf32>
      %426 = arith.addf %398, %425 : vector<16x128xf32>
      %c12_i32_301 = arith.constant 12 : i32
      %427 = arith.addi %c12_i32_301, %arg14 : i32
      %c49_i32_302 = arith.constant 49 : i32
      %428 = arith.muli %427, %c49_i32_302 : i32
      %c0_i32_303 = arith.constant 0 : i32
      %429 = arith.addi %428, %c0_i32_303 : i32
      %c3_i32_304 = arith.constant 3 : i32
      %430 = arith.addi %429, %c3_i32_304 : i32
      %431 = arith.index_cast %430 : i32 to index
      %432 = memref.load %arg8[%431] : memref<882xf32, #tpu.memory_space<smem>>
      %433 = vector.broadcast %432 : f32 to vector<16x128xf32>
      %434 = arith.mulf %408, %433 : vector<16x128xf32>
      %435 = arith.addf %407, %434 : vector<16x128xf32>
      %c255_i32 = arith.constant 255 : i32
      %436 = tpu.dynamic_rotate %320 by %c255_i32 dim 1 : vector<16x256xf32>, i32 -> vector<16x256xf32>
      %437 = vector.extract_strided_slice %436 {offsets = [0, 0], sizes = [16, 128], strides = [1, 1]} : vector<16x256xf32> to vector<16x128xf32>
      %c0_i32_305 = arith.constant 0 : i32
      %438 = arith.addi %c0_i32_305, %arg14 : i32
      %c49_i32_306 = arith.constant 49 : i32
      %439 = arith.muli %438, %c49_i32_306 : i32
      %c0_i32_307 = arith.constant 0 : i32
      %440 = arith.addi %439, %c0_i32_307 : i32
      %c4_i32 = arith.constant 4 : i32
      %441 = arith.addi %440, %c4_i32 : i32
      %442 = arith.index_cast %441 : i32 to index
      %443 = memref.load %arg8[%442] : memref<882xf32, #tpu.memory_space<smem>>
      %444 = vector.broadcast %443 : f32 to vector<16x128xf32>
      %445 = arith.mulf %437, %444 : vector<16x128xf32>
      %446 = arith.addf %417, %445 : vector<16x128xf32>
      %c6_i32_308 = arith.constant 6 : i32
      %447 = arith.addi %c6_i32_308, %arg14 : i32
      %c49_i32_309 = arith.constant 49 : i32
      %448 = arith.muli %447, %c49_i32_309 : i32
      %c0_i32_310 = arith.constant 0 : i32
      %449 = arith.addi %448, %c0_i32_310 : i32
      %c4_i32_311 = arith.constant 4 : i32
      %450 = arith.addi %449, %c4_i32_311 : i32
      %451 = arith.index_cast %450 : i32 to index
      %452 = memref.load %arg8[%451] : memref<882xf32, #tpu.memory_space<smem>>
      %453 = vector.broadcast %452 : f32 to vector<16x128xf32>
      %454 = arith.mulf %437, %453 : vector<16x128xf32>
      %455 = arith.addf %426, %454 : vector<16x128xf32>
      %c12_i32_312 = arith.constant 12 : i32
      %456 = arith.addi %c12_i32_312, %arg14 : i32
      %c49_i32_313 = arith.constant 49 : i32
      %457 = arith.muli %456, %c49_i32_313 : i32
      %c0_i32_314 = arith.constant 0 : i32
      %458 = arith.addi %457, %c0_i32_314 : i32
      %c4_i32_315 = arith.constant 4 : i32
      %459 = arith.addi %458, %c4_i32_315 : i32
      %460 = arith.index_cast %459 : i32 to index
      %461 = memref.load %arg8[%460] : memref<882xf32, #tpu.memory_space<smem>>
      %462 = vector.broadcast %461 : f32 to vector<16x128xf32>
      %463 = arith.mulf %437, %462 : vector<16x128xf32>
      %464 = arith.addf %435, %463 : vector<16x128xf32>
      %c254_i32 = arith.constant 254 : i32
      %465 = tpu.dynamic_rotate %320 by %c254_i32 dim 1 : vector<16x256xf32>, i32 -> vector<16x256xf32>
      %466 = vector.extract_strided_slice %465 {offsets = [0, 0], sizes = [16, 128], strides = [1, 1]} : vector<16x256xf32> to vector<16x128xf32>
      %c0_i32_316 = arith.constant 0 : i32
      %467 = arith.addi %c0_i32_316, %arg14 : i32
      %c49_i32_317 = arith.constant 49 : i32
      %468 = arith.muli %467, %c49_i32_317 : i32
      %c0_i32_318 = arith.constant 0 : i32
      %469 = arith.addi %468, %c0_i32_318 : i32
      %c5_i32 = arith.constant 5 : i32
      %470 = arith.addi %469, %c5_i32 : i32
      %471 = arith.index_cast %470 : i32 to index
      %472 = memref.load %arg8[%471] : memref<882xf32, #tpu.memory_space<smem>>
      %473 = vector.broadcast %472 : f32 to vector<16x128xf32>
      %474 = arith.mulf %466, %473 : vector<16x128xf32>
      %475 = arith.addf %446, %474 : vector<16x128xf32>
      %c6_i32_319 = arith.constant 6 : i32
      %476 = arith.addi %c6_i32_319, %arg14 : i32
      %c49_i32_320 = arith.constant 49 : i32
      %477 = arith.muli %476, %c49_i32_320 : i32
      %c0_i32_321 = arith.constant 0 : i32
      %478 = arith.addi %477, %c0_i32_321 : i32
      %c5_i32_322 = arith.constant 5 : i32
      %479 = arith.addi %478, %c5_i32_322 : i32
      %480 = arith.index_cast %479 : i32 to index
      %481 = memref.load %arg8[%480] : memref<882xf32, #tpu.memory_space<smem>>
      %482 = vector.broadcast %481 : f32 to vector<16x128xf32>
      %483 = arith.mulf %466, %482 : vector<16x128xf32>
      %484 = arith.addf %455, %483 : vector<16x128xf32>
      %c12_i32_323 = arith.constant 12 : i32
      %485 = arith.addi %c12_i32_323, %arg14 : i32
      %c49_i32_324 = arith.constant 49 : i32
      %486 = arith.muli %485, %c49_i32_324 : i32
      %c0_i32_325 = arith.constant 0 : i32
      %487 = arith.addi %486, %c0_i32_325 : i32
      %c5_i32_326 = arith.constant 5 : i32
      %488 = arith.addi %487, %c5_i32_326 : i32
      %489 = arith.index_cast %488 : i32 to index
      %490 = memref.load %arg8[%489] : memref<882xf32, #tpu.memory_space<smem>>
      %491 = vector.broadcast %490 : f32 to vector<16x128xf32>
      %492 = arith.mulf %466, %491 : vector<16x128xf32>
      %493 = arith.addf %464, %492 : vector<16x128xf32>
      %c253_i32 = arith.constant 253 : i32
      %494 = tpu.dynamic_rotate %320 by %c253_i32 dim 1 : vector<16x256xf32>, i32 -> vector<16x256xf32>
      %495 = vector.extract_strided_slice %494 {offsets = [0, 0], sizes = [16, 128], strides = [1, 1]} : vector<16x256xf32> to vector<16x128xf32>
      %c0_i32_327 = arith.constant 0 : i32
      %496 = arith.addi %c0_i32_327, %arg14 : i32
      %c49_i32_328 = arith.constant 49 : i32
      %497 = arith.muli %496, %c49_i32_328 : i32
      %c0_i32_329 = arith.constant 0 : i32
      %498 = arith.addi %497, %c0_i32_329 : i32
      %c6_i32_330 = arith.constant 6 : i32
      %499 = arith.addi %498, %c6_i32_330 : i32
      %500 = arith.index_cast %499 : i32 to index
      %501 = memref.load %arg8[%500] : memref<882xf32, #tpu.memory_space<smem>>
      %502 = vector.broadcast %501 : f32 to vector<16x128xf32>
      %503 = arith.mulf %495, %502 : vector<16x128xf32>
      %504 = arith.addf %475, %503 : vector<16x128xf32>
      %c6_i32_331 = arith.constant 6 : i32
      %505 = arith.addi %c6_i32_331, %arg14 : i32
      %c49_i32_332 = arith.constant 49 : i32
      %506 = arith.muli %505, %c49_i32_332 : i32
      %c0_i32_333 = arith.constant 0 : i32
      %507 = arith.addi %506, %c0_i32_333 : i32
      %c6_i32_334 = arith.constant 6 : i32
      %508 = arith.addi %507, %c6_i32_334 : i32
      %509 = arith.index_cast %508 : i32 to index
      %510 = memref.load %arg8[%509] : memref<882xf32, #tpu.memory_space<smem>>
      %511 = vector.broadcast %510 : f32 to vector<16x128xf32>
      %512 = arith.mulf %495, %511 : vector<16x128xf32>
      %513 = arith.addf %484, %512 : vector<16x128xf32>
      %c12_i32_335 = arith.constant 12 : i32
      %514 = arith.addi %c12_i32_335, %arg14 : i32
      %c49_i32_336 = arith.constant 49 : i32
      %515 = arith.muli %514, %c49_i32_336 : i32
      %c0_i32_337 = arith.constant 0 : i32
      %516 = arith.addi %515, %c0_i32_337 : i32
      %c6_i32_338 = arith.constant 6 : i32
      %517 = arith.addi %516, %c6_i32_338 : i32
      %518 = arith.index_cast %517 : i32 to index
      %519 = memref.load %arg8[%518] : memref<882xf32, #tpu.memory_space<smem>>
      %520 = vector.broadcast %519 : f32 to vector<16x128xf32>
      %521 = arith.mulf %495, %520 : vector<16x128xf32>
      %522 = arith.addf %493, %521 : vector<16x128xf32>
      %c0_i32_339 = arith.constant 0 : i32
      %c0_i32_340 = arith.constant 0 : i32
      %523 = tpu.memref_slice %arg13[%317, %c0_i32_339, %c0_i32_340] : memref<12x32x256xf32, #tpu.memory_space<vmem>> -> memref<1x32x256xf32, #tpu.memory_space<vmem>>
      %524 = tpu.memref_squeeze %523 : memref<1x32x256xf32, #tpu.memory_space<vmem>> -> memref<32x256xf32, #tpu.memory_space<vmem>>
      %c6_341 = arith.constant 6 : index
      %c0_342 = arith.constant 0 : index
      %525 = vector.load %524[%c6_341, %c0_342] : memref<32x256xf32, #tpu.memory_space<vmem>>, vector<16x256xf32>
      %c3_i32_343 = arith.constant 3 : i32
      %526 = tpu.dynamic_rotate %525 by %c3_i32_343 dim 1 : vector<16x256xf32>, i32 -> vector<16x256xf32>
      %527 = vector.extract_strided_slice %526 {offsets = [0, 0], sizes = [16, 128], strides = [1, 1]} : vector<16x256xf32> to vector<16x128xf32>
      %c0_i32_344 = arith.constant 0 : i32
      %528 = arith.addi %c0_i32_344, %arg14 : i32
      %c49_i32_345 = arith.constant 49 : i32
      %529 = arith.muli %528, %c49_i32_345 : i32
      %c7_i32 = arith.constant 7 : i32
      %530 = arith.addi %529, %c7_i32 : i32
      %c0_i32_346 = arith.constant 0 : i32
      %531 = arith.addi %530, %c0_i32_346 : i32
      %532 = arith.index_cast %531 : i32 to index
      %533 = memref.load %arg8[%532] : memref<882xf32, #tpu.memory_space<smem>>
      %534 = vector.broadcast %533 : f32 to vector<16x128xf32>
      %535 = arith.mulf %527, %534 : vector<16x128xf32>
      %536 = arith.addf %504, %535 : vector<16x128xf32>
      %c6_i32_347 = arith.constant 6 : i32
      %537 = arith.addi %c6_i32_347, %arg14 : i32
      %c49_i32_348 = arith.constant 49 : i32
      %538 = arith.muli %537, %c49_i32_348 : i32
      %c7_i32_349 = arith.constant 7 : i32
      %539 = arith.addi %538, %c7_i32_349 : i32
      %c0_i32_350 = arith.constant 0 : i32
      %540 = arith.addi %539, %c0_i32_350 : i32
      %541 = arith.index_cast %540 : i32 to index
      %542 = memref.load %arg8[%541] : memref<882xf32, #tpu.memory_space<smem>>
      %543 = vector.broadcast %542 : f32 to vector<16x128xf32>
      %544 = arith.mulf %527, %543 : vector<16x128xf32>
      %545 = arith.addf %513, %544 : vector<16x128xf32>
      %c12_i32_351 = arith.constant 12 : i32
      %546 = arith.addi %c12_i32_351, %arg14 : i32
      %c49_i32_352 = arith.constant 49 : i32
      %547 = arith.muli %546, %c49_i32_352 : i32
      %c7_i32_353 = arith.constant 7 : i32
      %548 = arith.addi %547, %c7_i32_353 : i32
      %c0_i32_354 = arith.constant 0 : i32
      %549 = arith.addi %548, %c0_i32_354 : i32
      %550 = arith.index_cast %549 : i32 to index
      %551 = memref.load %arg8[%550] : memref<882xf32, #tpu.memory_space<smem>>
      %552 = vector.broadcast %551 : f32 to vector<16x128xf32>
      %553 = arith.mulf %527, %552 : vector<16x128xf32>
      %554 = arith.addf %522, %553 : vector<16x128xf32>
      %c2_i32_355 = arith.constant 2 : i32
      %555 = tpu.dynamic_rotate %525 by %c2_i32_355 dim 1 : vector<16x256xf32>, i32 -> vector<16x256xf32>
      %556 = vector.extract_strided_slice %555 {offsets = [0, 0], sizes = [16, 128], strides = [1, 1]} : vector<16x256xf32> to vector<16x128xf32>
      %c0_i32_356 = arith.constant 0 : i32
      %557 = arith.addi %c0_i32_356, %arg14 : i32
      %c49_i32_357 = arith.constant 49 : i32
      %558 = arith.muli %557, %c49_i32_357 : i32
      %c7_i32_358 = arith.constant 7 : i32
      %559 = arith.addi %558, %c7_i32_358 : i32
      %c1_i32_359 = arith.constant 1 : i32
      %560 = arith.addi %559, %c1_i32_359 : i32
      %561 = arith.index_cast %560 : i32 to index
      %562 = memref.load %arg8[%561] : memref<882xf32, #tpu.memory_space<smem>>
      %563 = vector.broadcast %562 : f32 to vector<16x128xf32>
      %564 = arith.mulf %556, %563 : vector<16x128xf32>
      %565 = arith.addf %536, %564 : vector<16x128xf32>
      %c6_i32_360 = arith.constant 6 : i32
      %566 = arith.addi %c6_i32_360, %arg14 : i32
      %c49_i32_361 = arith.constant 49 : i32
      %567 = arith.muli %566, %c49_i32_361 : i32
      %c7_i32_362 = arith.constant 7 : i32
      %568 = arith.addi %567, %c7_i32_362 : i32
      %c1_i32_363 = arith.constant 1 : i32
      %569 = arith.addi %568, %c1_i32_363 : i32
      %570 = arith.index_cast %569 : i32 to index
      %571 = memref.load %arg8[%570] : memref<882xf32, #tpu.memory_space<smem>>
      %572 = vector.broadcast %571 : f32 to vector<16x128xf32>
      %573 = arith.mulf %556, %572 : vector<16x128xf32>
      %574 = arith.addf %545, %573 : vector<16x128xf32>
      %c12_i32_364 = arith.constant 12 : i32
      %575 = arith.addi %c12_i32_364, %arg14 : i32
      %c49_i32_365 = arith.constant 49 : i32
      %576 = arith.muli %575, %c49_i32_365 : i32
      %c7_i32_366 = arith.constant 7 : i32
      %577 = arith.addi %576, %c7_i32_366 : i32
      %c1_i32_367 = arith.constant 1 : i32
      %578 = arith.addi %577, %c1_i32_367 : i32
      %579 = arith.index_cast %578 : i32 to index
      %580 = memref.load %arg8[%579] : memref<882xf32, #tpu.memory_space<smem>>
      %581 = vector.broadcast %580 : f32 to vector<16x128xf32>
      %582 = arith.mulf %556, %581 : vector<16x128xf32>
      %583 = arith.addf %554, %582 : vector<16x128xf32>
      %c1_i32_368 = arith.constant 1 : i32
      %584 = tpu.dynamic_rotate %525 by %c1_i32_368 dim 1 : vector<16x256xf32>, i32 -> vector<16x256xf32>
      %585 = vector.extract_strided_slice %584 {offsets = [0, 0], sizes = [16, 128], strides = [1, 1]} : vector<16x256xf32> to vector<16x128xf32>
      %c0_i32_369 = arith.constant 0 : i32
      %586 = arith.addi %c0_i32_369, %arg14 : i32
      %c49_i32_370 = arith.constant 49 : i32
      %587 = arith.muli %586, %c49_i32_370 : i32
      %c7_i32_371 = arith.constant 7 : i32
      %588 = arith.addi %587, %c7_i32_371 : i32
      %c2_i32_372 = arith.constant 2 : i32
      %589 = arith.addi %588, %c2_i32_372 : i32
      %590 = arith.index_cast %589 : i32 to index
      %591 = memref.load %arg8[%590] : memref<882xf32, #tpu.memory_space<smem>>
      %592 = vector.broadcast %591 : f32 to vector<16x128xf32>
      %593 = arith.mulf %585, %592 : vector<16x128xf32>
      %594 = arith.addf %565, %593 : vector<16x128xf32>
      %c6_i32_373 = arith.constant 6 : i32
      %595 = arith.addi %c6_i32_373, %arg14 : i32
      %c49_i32_374 = arith.constant 49 : i32
      %596 = arith.muli %595, %c49_i32_374 : i32
      %c7_i32_375 = arith.constant 7 : i32
      %597 = arith.addi %596, %c7_i32_375 : i32
      %c2_i32_376 = arith.constant 2 : i32
      %598 = arith.addi %597, %c2_i32_376 : i32
      %599 = arith.index_cast %598 : i32 to index
      %600 = memref.load %arg8[%599] : memref<882xf32, #tpu.memory_space<smem>>
      %601 = vector.broadcast %600 : f32 to vector<16x128xf32>
      %602 = arith.mulf %585, %601 : vector<16x128xf32>
      %603 = arith.addf %574, %602 : vector<16x128xf32>
      %c12_i32_377 = arith.constant 12 : i32
      %604 = arith.addi %c12_i32_377, %arg14 : i32
      %c49_i32_378 = arith.constant 49 : i32
      %605 = arith.muli %604, %c49_i32_378 : i32
      %c7_i32_379 = arith.constant 7 : i32
      %606 = arith.addi %605, %c7_i32_379 : i32
      %c2_i32_380 = arith.constant 2 : i32
      %607 = arith.addi %606, %c2_i32_380 : i32
      %608 = arith.index_cast %607 : i32 to index
      %609 = memref.load %arg8[%608] : memref<882xf32, #tpu.memory_space<smem>>
      %610 = vector.broadcast %609 : f32 to vector<16x128xf32>
      %611 = arith.mulf %585, %610 : vector<16x128xf32>
      %612 = arith.addf %583, %611 : vector<16x128xf32>
      %613 = vector.extract_strided_slice %525 {offsets = [0, 0], sizes = [16, 128], strides = [1, 1]} : vector<16x256xf32> to vector<16x128xf32>
      %c0_i32_381 = arith.constant 0 : i32
      %614 = arith.addi %c0_i32_381, %arg14 : i32
      %c49_i32_382 = arith.constant 49 : i32
      %615 = arith.muli %614, %c49_i32_382 : i32
      %c7_i32_383 = arith.constant 7 : i32
      %616 = arith.addi %615, %c7_i32_383 : i32
      %c3_i32_384 = arith.constant 3 : i32
      %617 = arith.addi %616, %c3_i32_384 : i32
      %618 = arith.index_cast %617 : i32 to index
      %619 = memref.load %arg8[%618] : memref<882xf32, #tpu.memory_space<smem>>
      %620 = vector.broadcast %619 : f32 to vector<16x128xf32>
      %621 = arith.mulf %613, %620 : vector<16x128xf32>
      %622 = arith.addf %594, %621 : vector<16x128xf32>
      %c6_i32_385 = arith.constant 6 : i32
      %623 = arith.addi %c6_i32_385, %arg14 : i32
      %c49_i32_386 = arith.constant 49 : i32
      %624 = arith.muli %623, %c49_i32_386 : i32
      %c7_i32_387 = arith.constant 7 : i32
      %625 = arith.addi %624, %c7_i32_387 : i32
      %c3_i32_388 = arith.constant 3 : i32
      %626 = arith.addi %625, %c3_i32_388 : i32
      %627 = arith.index_cast %626 : i32 to index
      %628 = memref.load %arg8[%627] : memref<882xf32, #tpu.memory_space<smem>>
      %629 = vector.broadcast %628 : f32 to vector<16x128xf32>
      %630 = arith.mulf %613, %629 : vector<16x128xf32>
      %631 = arith.addf %603, %630 : vector<16x128xf32>
      %c12_i32_389 = arith.constant 12 : i32
      %632 = arith.addi %c12_i32_389, %arg14 : i32
      %c49_i32_390 = arith.constant 49 : i32
      %633 = arith.muli %632, %c49_i32_390 : i32
      %c7_i32_391 = arith.constant 7 : i32
      %634 = arith.addi %633, %c7_i32_391 : i32
      %c3_i32_392 = arith.constant 3 : i32
      %635 = arith.addi %634, %c3_i32_392 : i32
      %636 = arith.index_cast %635 : i32 to index
      %637 = memref.load %arg8[%636] : memref<882xf32, #tpu.memory_space<smem>>
      %638 = vector.broadcast %637 : f32 to vector<16x128xf32>
      %639 = arith.mulf %613, %638 : vector<16x128xf32>
      %640 = arith.addf %612, %639 : vector<16x128xf32>
      %c255_i32_393 = arith.constant 255 : i32
      %641 = tpu.dynamic_rotate %525 by %c255_i32_393 dim 1 : vector<16x256xf32>, i32 -> vector<16x256xf32>
      %642 = vector.extract_strided_slice %641 {offsets = [0, 0], sizes = [16, 128], strides = [1, 1]} : vector<16x256xf32> to vector<16x128xf32>
      %c0_i32_394 = arith.constant 0 : i32
      %643 = arith.addi %c0_i32_394, %arg14 : i32
      %c49_i32_395 = arith.constant 49 : i32
      %644 = arith.muli %643, %c49_i32_395 : i32
      %c7_i32_396 = arith.constant 7 : i32
      %645 = arith.addi %644, %c7_i32_396 : i32
      %c4_i32_397 = arith.constant 4 : i32
      %646 = arith.addi %645, %c4_i32_397 : i32
      %647 = arith.index_cast %646 : i32 to index
      %648 = memref.load %arg8[%647] : memref<882xf32, #tpu.memory_space<smem>>
      %649 = vector.broadcast %648 : f32 to vector<16x128xf32>
      %650 = arith.mulf %642, %649 : vector<16x128xf32>
      %651 = arith.addf %622, %650 : vector<16x128xf32>
      %c6_i32_398 = arith.constant 6 : i32
      %652 = arith.addi %c6_i32_398, %arg14 : i32
      %c49_i32_399 = arith.constant 49 : i32
      %653 = arith.muli %652, %c49_i32_399 : i32
      %c7_i32_400 = arith.constant 7 : i32
      %654 = arith.addi %653, %c7_i32_400 : i32
      %c4_i32_401 = arith.constant 4 : i32
      %655 = arith.addi %654, %c4_i32_401 : i32
      %656 = arith.index_cast %655 : i32 to index
      %657 = memref.load %arg8[%656] : memref<882xf32, #tpu.memory_space<smem>>
      %658 = vector.broadcast %657 : f32 to vector<16x128xf32>
      %659 = arith.mulf %642, %658 : vector<16x128xf32>
      %660 = arith.addf %631, %659 : vector<16x128xf32>
      %c12_i32_402 = arith.constant 12 : i32
      %661 = arith.addi %c12_i32_402, %arg14 : i32
      %c49_i32_403 = arith.constant 49 : i32
      %662 = arith.muli %661, %c49_i32_403 : i32
      %c7_i32_404 = arith.constant 7 : i32
      %663 = arith.addi %662, %c7_i32_404 : i32
      %c4_i32_405 = arith.constant 4 : i32
      %664 = arith.addi %663, %c4_i32_405 : i32
      %665 = arith.index_cast %664 : i32 to index
      %666 = memref.load %arg8[%665] : memref<882xf32, #tpu.memory_space<smem>>
      %667 = vector.broadcast %666 : f32 to vector<16x128xf32>
      %668 = arith.mulf %642, %667 : vector<16x128xf32>
      %669 = arith.addf %640, %668 : vector<16x128xf32>
      %c254_i32_406 = arith.constant 254 : i32
      %670 = tpu.dynamic_rotate %525 by %c254_i32_406 dim 1 : vector<16x256xf32>, i32 -> vector<16x256xf32>
      %671 = vector.extract_strided_slice %670 {offsets = [0, 0], sizes = [16, 128], strides = [1, 1]} : vector<16x256xf32> to vector<16x128xf32>
      %c0_i32_407 = arith.constant 0 : i32
      %672 = arith.addi %c0_i32_407, %arg14 : i32
      %c49_i32_408 = arith.constant 49 : i32
      %673 = arith.muli %672, %c49_i32_408 : i32
      %c7_i32_409 = arith.constant 7 : i32
      %674 = arith.addi %673, %c7_i32_409 : i32
      %c5_i32_410 = arith.constant 5 : i32
      %675 = arith.addi %674, %c5_i32_410 : i32
      %676 = arith.index_cast %675 : i32 to index
      %677 = memref.load %arg8[%676] : memref<882xf32, #tpu.memory_space<smem>>
      %678 = vector.broadcast %677 : f32 to vector<16x128xf32>
      %679 = arith.mulf %671, %678 : vector<16x128xf32>
      %680 = arith.addf %651, %679 : vector<16x128xf32>
      %c6_i32_411 = arith.constant 6 : i32
      %681 = arith.addi %c6_i32_411, %arg14 : i32
      %c49_i32_412 = arith.constant 49 : i32
      %682 = arith.muli %681, %c49_i32_412 : i32
      %c7_i32_413 = arith.constant 7 : i32
      %683 = arith.addi %682, %c7_i32_413 : i32
      %c5_i32_414 = arith.constant 5 : i32
      %684 = arith.addi %683, %c5_i32_414 : i32
      %685 = arith.index_cast %684 : i32 to index
      %686 = memref.load %arg8[%685] : memref<882xf32, #tpu.memory_space<smem>>
      %687 = vector.broadcast %686 : f32 to vector<16x128xf32>
      %688 = arith.mulf %671, %687 : vector<16x128xf32>
      %689 = arith.addf %660, %688 : vector<16x128xf32>
      %c12_i32_415 = arith.constant 12 : i32
      %690 = arith.addi %c12_i32_415, %arg14 : i32
      %c49_i32_416 = arith.constant 49 : i32
      %691 = arith.muli %690, %c49_i32_416 : i32
      %c7_i32_417 = arith.constant 7 : i32
      %692 = arith.addi %691, %c7_i32_417 : i32
      %c5_i32_418 = arith.constant 5 : i32
      %693 = arith.addi %692, %c5_i32_418 : i32
      %694 = arith.index_cast %693 : i32 to index
      %695 = memref.load %arg8[%694] : memref<882xf32, #tpu.memory_space<smem>>
      %696 = vector.broadcast %695 : f32 to vector<16x128xf32>
      %697 = arith.mulf %671, %696 : vector<16x128xf32>
      %698 = arith.addf %669, %697 : vector<16x128xf32>
      %c253_i32_419 = arith.constant 253 : i32
      %699 = tpu.dynamic_rotate %525 by %c253_i32_419 dim 1 : vector<16x256xf32>, i32 -> vector<16x256xf32>
      %700 = vector.extract_strided_slice %699 {offsets = [0, 0], sizes = [16, 128], strides = [1, 1]} : vector<16x256xf32> to vector<16x128xf32>
      %c0_i32_420 = arith.constant 0 : i32
      %701 = arith.addi %c0_i32_420, %arg14 : i32
      %c49_i32_421 = arith.constant 49 : i32
      %702 = arith.muli %701, %c49_i32_421 : i32
      %c7_i32_422 = arith.constant 7 : i32
      %703 = arith.addi %702, %c7_i32_422 : i32
      %c6_i32_423 = arith.constant 6 : i32
      %704 = arith.addi %703, %c6_i32_423 : i32
      %705 = arith.index_cast %704 : i32 to index
      %706 = memref.load %arg8[%705] : memref<882xf32, #tpu.memory_space<smem>>
      %707 = vector.broadcast %706 : f32 to vector<16x128xf32>
      %708 = arith.mulf %700, %707 : vector<16x128xf32>
      %709 = arith.addf %680, %708 : vector<16x128xf32>
      %c6_i32_424 = arith.constant 6 : i32
      %710 = arith.addi %c6_i32_424, %arg14 : i32
      %c49_i32_425 = arith.constant 49 : i32
      %711 = arith.muli %710, %c49_i32_425 : i32
      %c7_i32_426 = arith.constant 7 : i32
      %712 = arith.addi %711, %c7_i32_426 : i32
      %c6_i32_427 = arith.constant 6 : i32
      %713 = arith.addi %712, %c6_i32_427 : i32
      %714 = arith.index_cast %713 : i32 to index
      %715 = memref.load %arg8[%714] : memref<882xf32, #tpu.memory_space<smem>>
      %716 = vector.broadcast %715 : f32 to vector<16x128xf32>
      %717 = arith.mulf %700, %716 : vector<16x128xf32>
      %718 = arith.addf %689, %717 : vector<16x128xf32>
      %c12_i32_428 = arith.constant 12 : i32
      %719 = arith.addi %c12_i32_428, %arg14 : i32
      %c49_i32_429 = arith.constant 49 : i32
      %720 = arith.muli %719, %c49_i32_429 : i32
      %c7_i32_430 = arith.constant 7 : i32
      %721 = arith.addi %720, %c7_i32_430 : i32
      %c6_i32_431 = arith.constant 6 : i32
      %722 = arith.addi %721, %c6_i32_431 : i32
      %723 = arith.index_cast %722 : i32 to index
      %724 = memref.load %arg8[%723] : memref<882xf32, #tpu.memory_space<smem>>
      %725 = vector.broadcast %724 : f32 to vector<16x128xf32>
      %726 = arith.mulf %700, %725 : vector<16x128xf32>
      %727 = arith.addf %698, %726 : vector<16x128xf32>
      %c0_i32_432 = arith.constant 0 : i32
      %c0_i32_433 = arith.constant 0 : i32
      %728 = tpu.memref_slice %arg13[%317, %c0_i32_432, %c0_i32_433] : memref<12x32x256xf32, #tpu.memory_space<vmem>> -> memref<1x32x256xf32, #tpu.memory_space<vmem>>
      %729 = tpu.memref_squeeze %728 : memref<1x32x256xf32, #tpu.memory_space<vmem>> -> memref<32x256xf32, #tpu.memory_space<vmem>>
      %c7_434 = arith.constant 7 : index
      %c0_435 = arith.constant 0 : index
      %730 = vector.load %729[%c7_434, %c0_435] : memref<32x256xf32, #tpu.memory_space<vmem>>, vector<16x256xf32>
      %c3_i32_436 = arith.constant 3 : i32
      %731 = tpu.dynamic_rotate %730 by %c3_i32_436 dim 1 : vector<16x256xf32>, i32 -> vector<16x256xf32>
      %732 = vector.extract_strided_slice %731 {offsets = [0, 0], sizes = [16, 128], strides = [1, 1]} : vector<16x256xf32> to vector<16x128xf32>
      %c0_i32_437 = arith.constant 0 : i32
      %733 = arith.addi %c0_i32_437, %arg14 : i32
      %c49_i32_438 = arith.constant 49 : i32
      %734 = arith.muli %733, %c49_i32_438 : i32
      %c14_i32 = arith.constant 14 : i32
      %735 = arith.addi %734, %c14_i32 : i32
      %c0_i32_439 = arith.constant 0 : i32
      %736 = arith.addi %735, %c0_i32_439 : i32
      %737 = arith.index_cast %736 : i32 to index
      %738 = memref.load %arg8[%737] : memref<882xf32, #tpu.memory_space<smem>>
      %739 = vector.broadcast %738 : f32 to vector<16x128xf32>
      %740 = arith.mulf %732, %739 : vector<16x128xf32>
      %741 = arith.addf %709, %740 : vector<16x128xf32>
      %c6_i32_440 = arith.constant 6 : i32
      %742 = arith.addi %c6_i32_440, %arg14 : i32
      %c49_i32_441 = arith.constant 49 : i32
      %743 = arith.muli %742, %c49_i32_441 : i32
      %c14_i32_442 = arith.constant 14 : i32
      %744 = arith.addi %743, %c14_i32_442 : i32
      %c0_i32_443 = arith.constant 0 : i32
      %745 = arith.addi %744, %c0_i32_443 : i32
      %746 = arith.index_cast %745 : i32 to index
      %747 = memref.load %arg8[%746] : memref<882xf32, #tpu.memory_space<smem>>
      %748 = vector.broadcast %747 : f32 to vector<16x128xf32>
      %749 = arith.mulf %732, %748 : vector<16x128xf32>
      %750 = arith.addf %718, %749 : vector<16x128xf32>
      %c12_i32_444 = arith.constant 12 : i32
      %751 = arith.addi %c12_i32_444, %arg14 : i32
      %c49_i32_445 = arith.constant 49 : i32
      %752 = arith.muli %751, %c49_i32_445 : i32
      %c14_i32_446 = arith.constant 14 : i32
      %753 = arith.addi %752, %c14_i32_446 : i32
      %c0_i32_447 = arith.constant 0 : i32
      %754 = arith.addi %753, %c0_i32_447 : i32
      %755 = arith.index_cast %754 : i32 to index
      %756 = memref.load %arg8[%755] : memref<882xf32, #tpu.memory_space<smem>>
      %757 = vector.broadcast %756 : f32 to vector<16x128xf32>
      %758 = arith.mulf %732, %757 : vector<16x128xf32>
      %759 = arith.addf %727, %758 : vector<16x128xf32>
      %c2_i32_448 = arith.constant 2 : i32
      %760 = tpu.dynamic_rotate %730 by %c2_i32_448 dim 1 : vector<16x256xf32>, i32 -> vector<16x256xf32>
      %761 = vector.extract_strided_slice %760 {offsets = [0, 0], sizes = [16, 128], strides = [1, 1]} : vector<16x256xf32> to vector<16x128xf32>
      %c0_i32_449 = arith.constant 0 : i32
      %762 = arith.addi %c0_i32_449, %arg14 : i32
      %c49_i32_450 = arith.constant 49 : i32
      %763 = arith.muli %762, %c49_i32_450 : i32
      %c14_i32_451 = arith.constant 14 : i32
      %764 = arith.addi %763, %c14_i32_451 : i32
      %c1_i32_452 = arith.constant 1 : i32
      %765 = arith.addi %764, %c1_i32_452 : i32
      %766 = arith.index_cast %765 : i32 to index
      %767 = memref.load %arg8[%766] : memref<882xf32, #tpu.memory_space<smem>>
      %768 = vector.broadcast %767 : f32 to vector<16x128xf32>
      %769 = arith.mulf %761, %768 : vector<16x128xf32>
      %770 = arith.addf %741, %769 : vector<16x128xf32>
      %c6_i32_453 = arith.constant 6 : i32
      %771 = arith.addi %c6_i32_453, %arg14 : i32
      %c49_i32_454 = arith.constant 49 : i32
      %772 = arith.muli %771, %c49_i32_454 : i32
      %c14_i32_455 = arith.constant 14 : i32
      %773 = arith.addi %772, %c14_i32_455 : i32
      %c1_i32_456 = arith.constant 1 : i32
      %774 = arith.addi %773, %c1_i32_456 : i32
      %775 = arith.index_cast %774 : i32 to index
      %776 = memref.load %arg8[%775] : memref<882xf32, #tpu.memory_space<smem>>
      %777 = vector.broadcast %776 : f32 to vector<16x128xf32>
      %778 = arith.mulf %761, %777 : vector<16x128xf32>
      %779 = arith.addf %750, %778 : vector<16x128xf32>
      %c12_i32_457 = arith.constant 12 : i32
      %780 = arith.addi %c12_i32_457, %arg14 : i32
      %c49_i32_458 = arith.constant 49 : i32
      %781 = arith.muli %780, %c49_i32_458 : i32
      %c14_i32_459 = arith.constant 14 : i32
      %782 = arith.addi %781, %c14_i32_459 : i32
      %c1_i32_460 = arith.constant 1 : i32
      %783 = arith.addi %782, %c1_i32_460 : i32
      %784 = arith.index_cast %783 : i32 to index
      %785 = memref.load %arg8[%784] : memref<882xf32, #tpu.memory_space<smem>>
      %786 = vector.broadcast %785 : f32 to vector<16x128xf32>
      %787 = arith.mulf %761, %786 : vector<16x128xf32>
      %788 = arith.addf %759, %787 : vector<16x128xf32>
      %c1_i32_461 = arith.constant 1 : i32
      %789 = tpu.dynamic_rotate %730 by %c1_i32_461 dim 1 : vector<16x256xf32>, i32 -> vector<16x256xf32>
      %790 = vector.extract_strided_slice %789 {offsets = [0, 0], sizes = [16, 128], strides = [1, 1]} : vector<16x256xf32> to vector<16x128xf32>
      %c0_i32_462 = arith.constant 0 : i32
      %791 = arith.addi %c0_i32_462, %arg14 : i32
      %c49_i32_463 = arith.constant 49 : i32
      %792 = arith.muli %791, %c49_i32_463 : i32
      %c14_i32_464 = arith.constant 14 : i32
      %793 = arith.addi %792, %c14_i32_464 : i32
      %c2_i32_465 = arith.constant 2 : i32
      %794 = arith.addi %793, %c2_i32_465 : i32
      %795 = arith.index_cast %794 : i32 to index
      %796 = memref.load %arg8[%795] : memref<882xf32, #tpu.memory_space<smem>>
      %797 = vector.broadcast %796 : f32 to vector<16x128xf32>
      %798 = arith.mulf %790, %797 : vector<16x128xf32>
      %799 = arith.addf %770, %798 : vector<16x128xf32>
      %c6_i32_466 = arith.constant 6 : i32
      %800 = arith.addi %c6_i32_466, %arg14 : i32
      %c49_i32_467 = arith.constant 49 : i32
      %801 = arith.muli %800, %c49_i32_467 : i32
      %c14_i32_468 = arith.constant 14 : i32
      %802 = arith.addi %801, %c14_i32_468 : i32
      %c2_i32_469 = arith.constant 2 : i32
      %803 = arith.addi %802, %c2_i32_469 : i32
      %804 = arith.index_cast %803 : i32 to index
      %805 = memref.load %arg8[%804] : memref<882xf32, #tpu.memory_space<smem>>
      %806 = vector.broadcast %805 : f32 to vector<16x128xf32>
      %807 = arith.mulf %790, %806 : vector<16x128xf32>
      %808 = arith.addf %779, %807 : vector<16x128xf32>
      %c12_i32_470 = arith.constant 12 : i32
      %809 = arith.addi %c12_i32_470, %arg14 : i32
      %c49_i32_471 = arith.constant 49 : i32
      %810 = arith.muli %809, %c49_i32_471 : i32
      %c14_i32_472 = arith.constant 14 : i32
      %811 = arith.addi %810, %c14_i32_472 : i32
      %c2_i32_473 = arith.constant 2 : i32
      %812 = arith.addi %811, %c2_i32_473 : i32
      %813 = arith.index_cast %812 : i32 to index
      %814 = memref.load %arg8[%813] : memref<882xf32, #tpu.memory_space<smem>>
      %815 = vector.broadcast %814 : f32 to vector<16x128xf32>
      %816 = arith.mulf %790, %815 : vector<16x128xf32>
      %817 = arith.addf %788, %816 : vector<16x128xf32>
      %818 = vector.extract_strided_slice %730 {offsets = [0, 0], sizes = [16, 128], strides = [1, 1]} : vector<16x256xf32> to vector<16x128xf32>
      %c0_i32_474 = arith.constant 0 : i32
      %819 = arith.addi %c0_i32_474, %arg14 : i32
      %c49_i32_475 = arith.constant 49 : i32
      %820 = arith.muli %819, %c49_i32_475 : i32
      %c14_i32_476 = arith.constant 14 : i32
      %821 = arith.addi %820, %c14_i32_476 : i32
      %c3_i32_477 = arith.constant 3 : i32
      %822 = arith.addi %821, %c3_i32_477 : i32
      %823 = arith.index_cast %822 : i32 to index
      %824 = memref.load %arg8[%823] : memref<882xf32, #tpu.memory_space<smem>>
      %825 = vector.broadcast %824 : f32 to vector<16x128xf32>
      %826 = arith.mulf %818, %825 : vector<16x128xf32>
      %827 = arith.addf %799, %826 : vector<16x128xf32>
      %c6_i32_478 = arith.constant 6 : i32
      %828 = arith.addi %c6_i32_478, %arg14 : i32
      %c49_i32_479 = arith.constant 49 : i32
      %829 = arith.muli %828, %c49_i32_479 : i32
      %c14_i32_480 = arith.constant 14 : i32
      %830 = arith.addi %829, %c14_i32_480 : i32
      %c3_i32_481 = arith.constant 3 : i32
      %831 = arith.addi %830, %c3_i32_481 : i32
      %832 = arith.index_cast %831 : i32 to index
      %833 = memref.load %arg8[%832] : memref<882xf32, #tpu.memory_space<smem>>
      %834 = vector.broadcast %833 : f32 to vector<16x128xf32>
      %835 = arith.mulf %818, %834 : vector<16x128xf32>
      %836 = arith.addf %808, %835 : vector<16x128xf32>
      %c12_i32_482 = arith.constant 12 : i32
      %837 = arith.addi %c12_i32_482, %arg14 : i32
      %c49_i32_483 = arith.constant 49 : i32
      %838 = arith.muli %837, %c49_i32_483 : i32
      %c14_i32_484 = arith.constant 14 : i32
      %839 = arith.addi %838, %c14_i32_484 : i32
      %c3_i32_485 = arith.constant 3 : i32
      %840 = arith.addi %839, %c3_i32_485 : i32
      %841 = arith.index_cast %840 : i32 to index
      %842 = memref.load %arg8[%841] : memref<882xf32, #tpu.memory_space<smem>>
      %843 = vector.broadcast %842 : f32 to vector<16x128xf32>
      %844 = arith.mulf %818, %843 : vector<16x128xf32>
      %845 = arith.addf %817, %844 : vector<16x128xf32>
      %c255_i32_486 = arith.constant 255 : i32
      %846 = tpu.dynamic_rotate %730 by %c255_i32_486 dim 1 : vector<16x256xf32>, i32 -> vector<16x256xf32>
      %847 = vector.extract_strided_slice %846 {offsets = [0, 0], sizes = [16, 128], strides = [1, 1]} : vector<16x256xf32> to vector<16x128xf32>
      %c0_i32_487 = arith.constant 0 : i32
      %848 = arith.addi %c0_i32_487, %arg14 : i32
      %c49_i32_488 = arith.constant 49 : i32
      %849 = arith.muli %848, %c49_i32_488 : i32
      %c14_i32_489 = arith.constant 14 : i32
      %850 = arith.addi %849, %c14_i32_489 : i32
      %c4_i32_490 = arith.constant 4 : i32
      %851 = arith.addi %850, %c4_i32_490 : i32
      %852 = arith.index_cast %851 : i32 to index
      %853 = memref.load %arg8[%852] : memref<882xf32, #tpu.memory_space<smem>>
      %854 = vector.broadcast %853 : f32 to vector<16x128xf32>
      %855 = arith.mulf %847, %854 : vector<16x128xf32>
      %856 = arith.addf %827, %855 : vector<16x128xf32>
      %c6_i32_491 = arith.constant 6 : i32
      %857 = arith.addi %c6_i32_491, %arg14 : i32
      %c49_i32_492 = arith.constant 49 : i32
      %858 = arith.muli %857, %c49_i32_492 : i32
      %c14_i32_493 = arith.constant 14 : i32
      %859 = arith.addi %858, %c14_i32_493 : i32
      %c4_i32_494 = arith.constant 4 : i32
      %860 = arith.addi %859, %c4_i32_494 : i32
      %861 = arith.index_cast %860 : i32 to index
      %862 = memref.load %arg8[%861] : memref<882xf32, #tpu.memory_space<smem>>
      %863 = vector.broadcast %862 : f32 to vector<16x128xf32>
      %864 = arith.mulf %847, %863 : vector<16x128xf32>
      %865 = arith.addf %836, %864 : vector<16x128xf32>
      %c12_i32_495 = arith.constant 12 : i32
      %866 = arith.addi %c12_i32_495, %arg14 : i32
      %c49_i32_496 = arith.constant 49 : i32
      %867 = arith.muli %866, %c49_i32_496 : i32
      %c14_i32_497 = arith.constant 14 : i32
      %868 = arith.addi %867, %c14_i32_497 : i32
      %c4_i32_498 = arith.constant 4 : i32
      %869 = arith.addi %868, %c4_i32_498 : i32
      %870 = arith.index_cast %869 : i32 to index
      %871 = memref.load %arg8[%870] : memref<882xf32, #tpu.memory_space<smem>>
      %872 = vector.broadcast %871 : f32 to vector<16x128xf32>
      %873 = arith.mulf %847, %872 : vector<16x128xf32>
      %874 = arith.addf %845, %873 : vector<16x128xf32>
      %c254_i32_499 = arith.constant 254 : i32
      %875 = tpu.dynamic_rotate %730 by %c254_i32_499 dim 1 : vector<16x256xf32>, i32 -> vector<16x256xf32>
      %876 = vector.extract_strided_slice %875 {offsets = [0, 0], sizes = [16, 128], strides = [1, 1]} : vector<16x256xf32> to vector<16x128xf32>
      %c0_i32_500 = arith.constant 0 : i32
      %877 = arith.addi %c0_i32_500, %arg14 : i32
      %c49_i32_501 = arith.constant 49 : i32
      %878 = arith.muli %877, %c49_i32_501 : i32
      %c14_i32_502 = arith.constant 14 : i32
      %879 = arith.addi %878, %c14_i32_502 : i32
      %c5_i32_503 = arith.constant 5 : i32
      %880 = arith.addi %879, %c5_i32_503 : i32
      %881 = arith.index_cast %880 : i32 to index
      %882 = memref.load %arg8[%881] : memref<882xf32, #tpu.memory_space<smem>>
      %883 = vector.broadcast %882 : f32 to vector<16x128xf32>
      %884 = arith.mulf %876, %883 : vector<16x128xf32>
      %885 = arith.addf %856, %884 : vector<16x128xf32>
      %c6_i32_504 = arith.constant 6 : i32
      %886 = arith.addi %c6_i32_504, %arg14 : i32
      %c49_i32_505 = arith.constant 49 : i32
      %887 = arith.muli %886, %c49_i32_505 : i32
      %c14_i32_506 = arith.constant 14 : i32
      %888 = arith.addi %887, %c14_i32_506 : i32
      %c5_i32_507 = arith.constant 5 : i32
      %889 = arith.addi %888, %c5_i32_507 : i32
      %890 = arith.index_cast %889 : i32 to index
      %891 = memref.load %arg8[%890] : memref<882xf32, #tpu.memory_space<smem>>
      %892 = vector.broadcast %891 : f32 to vector<16x128xf32>
      %893 = arith.mulf %876, %892 : vector<16x128xf32>
      %894 = arith.addf %865, %893 : vector<16x128xf32>
      %c12_i32_508 = arith.constant 12 : i32
      %895 = arith.addi %c12_i32_508, %arg14 : i32
      %c49_i32_509 = arith.constant 49 : i32
      %896 = arith.muli %895, %c49_i32_509 : i32
      %c14_i32_510 = arith.constant 14 : i32
      %897 = arith.addi %896, %c14_i32_510 : i32
      %c5_i32_511 = arith.constant 5 : i32
      %898 = arith.addi %897, %c5_i32_511 : i32
      %899 = arith.index_cast %898 : i32 to index
      %900 = memref.load %arg8[%899] : memref<882xf32, #tpu.memory_space<smem>>
      %901 = vector.broadcast %900 : f32 to vector<16x128xf32>
      %902 = arith.mulf %876, %901 : vector<16x128xf32>
      %903 = arith.addf %874, %902 : vector<16x128xf32>
      %c253_i32_512 = arith.constant 253 : i32
      %904 = tpu.dynamic_rotate %730 by %c253_i32_512 dim 1 : vector<16x256xf32>, i32 -> vector<16x256xf32>
      %905 = vector.extract_strided_slice %904 {offsets = [0, 0], sizes = [16, 128], strides = [1, 1]} : vector<16x256xf32> to vector<16x128xf32>
      %c0_i32_513 = arith.constant 0 : i32
      %906 = arith.addi %c0_i32_513, %arg14 : i32
      %c49_i32_514 = arith.constant 49 : i32
      %907 = arith.muli %906, %c49_i32_514 : i32
      %c14_i32_515 = arith.constant 14 : i32
      %908 = arith.addi %907, %c14_i32_515 : i32
      %c6_i32_516 = arith.constant 6 : i32
      %909 = arith.addi %908, %c6_i32_516 : i32
      %910 = arith.index_cast %909 : i32 to index
      %911 = memref.load %arg8[%910] : memref<882xf32, #tpu.memory_space<smem>>
      %912 = vector.broadcast %911 : f32 to vector<16x128xf32>
      %913 = arith.mulf %905, %912 : vector<16x128xf32>
      %914 = arith.addf %885, %913 : vector<16x128xf32>
      %c6_i32_517 = arith.constant 6 : i32
      %915 = arith.addi %c6_i32_517, %arg14 : i32
      %c49_i32_518 = arith.constant 49 : i32
      %916 = arith.muli %915, %c49_i32_518 : i32
      %c14_i32_519 = arith.constant 14 : i32
      %917 = arith.addi %916, %c14_i32_519 : i32
      %c6_i32_520 = arith.constant 6 : i32
      %918 = arith.addi %917, %c6_i32_520 : i32
      %919 = arith.index_cast %918 : i32 to index
      %920 = memref.load %arg8[%919] : memref<882xf32, #tpu.memory_space<smem>>
      %921 = vector.broadcast %920 : f32 to vector<16x128xf32>
      %922 = arith.mulf %905, %921 : vector<16x128xf32>
      %923 = arith.addf %894, %922 : vector<16x128xf32>
      %c12_i32_521 = arith.constant 12 : i32
      %924 = arith.addi %c12_i32_521, %arg14 : i32
      %c49_i32_522 = arith.constant 49 : i32
      %925 = arith.muli %924, %c49_i32_522 : i32
      %c14_i32_523 = arith.constant 14 : i32
      %926 = arith.addi %925, %c14_i32_523 : i32
      %c6_i32_524 = arith.constant 6 : i32
      %927 = arith.addi %926, %c6_i32_524 : i32
      %928 = arith.index_cast %927 : i32 to index
      %929 = memref.load %arg8[%928] : memref<882xf32, #tpu.memory_space<smem>>
      %930 = vector.broadcast %929 : f32 to vector<16x128xf32>
      %931 = arith.mulf %905, %930 : vector<16x128xf32>
      %932 = arith.addf %903, %931 : vector<16x128xf32>
      %c0_i32_525 = arith.constant 0 : i32
      %c0_i32_526 = arith.constant 0 : i32
      %933 = tpu.memref_slice %arg13[%317, %c0_i32_525, %c0_i32_526] : memref<12x32x256xf32, #tpu.memory_space<vmem>> -> memref<1x32x256xf32, #tpu.memory_space<vmem>>
      %934 = tpu.memref_squeeze %933 : memref<1x32x256xf32, #tpu.memory_space<vmem>> -> memref<32x256xf32, #tpu.memory_space<vmem>>
      %c8_527 = arith.constant 8 : index
      %c0_528 = arith.constant 0 : index
      %935 = vector.load %934[%c8_527, %c0_528] : memref<32x256xf32, #tpu.memory_space<vmem>>, vector<16x256xf32>
      %c3_i32_529 = arith.constant 3 : i32
      %936 = tpu.dynamic_rotate %935 by %c3_i32_529 dim 1 : vector<16x256xf32>, i32 -> vector<16x256xf32>
      %937 = vector.extract_strided_slice %936 {offsets = [0, 0], sizes = [16, 128], strides = [1, 1]} : vector<16x256xf32> to vector<16x128xf32>
      %c0_i32_530 = arith.constant 0 : i32
      %938 = arith.addi %c0_i32_530, %arg14 : i32
      %c49_i32_531 = arith.constant 49 : i32
      %939 = arith.muli %938, %c49_i32_531 : i32
      %c21_i32 = arith.constant 21 : i32
      %940 = arith.addi %939, %c21_i32 : i32
      %c0_i32_532 = arith.constant 0 : i32
      %941 = arith.addi %940, %c0_i32_532 : i32
      %942 = arith.index_cast %941 : i32 to index
      %943 = memref.load %arg8[%942] : memref<882xf32, #tpu.memory_space<smem>>
      %944 = vector.broadcast %943 : f32 to vector<16x128xf32>
      %945 = arith.mulf %937, %944 : vector<16x128xf32>
      %946 = arith.addf %914, %945 : vector<16x128xf32>
      %c6_i32_533 = arith.constant 6 : i32
      %947 = arith.addi %c6_i32_533, %arg14 : i32
      %c49_i32_534 = arith.constant 49 : i32
      %948 = arith.muli %947, %c49_i32_534 : i32
      %c21_i32_535 = arith.constant 21 : i32
      %949 = arith.addi %948, %c21_i32_535 : i32
      %c0_i32_536 = arith.constant 0 : i32
      %950 = arith.addi %949, %c0_i32_536 : i32
      %951 = arith.index_cast %950 : i32 to index
      %952 = memref.load %arg8[%951] : memref<882xf32, #tpu.memory_space<smem>>
      %953 = vector.broadcast %952 : f32 to vector<16x128xf32>
      %954 = arith.mulf %937, %953 : vector<16x128xf32>
      %955 = arith.addf %923, %954 : vector<16x128xf32>
      %c12_i32_537 = arith.constant 12 : i32
      %956 = arith.addi %c12_i32_537, %arg14 : i32
      %c49_i32_538 = arith.constant 49 : i32
      %957 = arith.muli %956, %c49_i32_538 : i32
      %c21_i32_539 = arith.constant 21 : i32
      %958 = arith.addi %957, %c21_i32_539 : i32
      %c0_i32_540 = arith.constant 0 : i32
      %959 = arith.addi %958, %c0_i32_540 : i32
      %960 = arith.index_cast %959 : i32 to index
      %961 = memref.load %arg8[%960] : memref<882xf32, #tpu.memory_space<smem>>
      %962 = vector.broadcast %961 : f32 to vector<16x128xf32>
      %963 = arith.mulf %937, %962 : vector<16x128xf32>
      %964 = arith.addf %932, %963 : vector<16x128xf32>
      %c2_i32_541 = arith.constant 2 : i32
      %965 = tpu.dynamic_rotate %935 by %c2_i32_541 dim 1 : vector<16x256xf32>, i32 -> vector<16x256xf32>
      %966 = vector.extract_strided_slice %965 {offsets = [0, 0], sizes = [16, 128], strides = [1, 1]} : vector<16x256xf32> to vector<16x128xf32>
      %c0_i32_542 = arith.constant 0 : i32
      %967 = arith.addi %c0_i32_542, %arg14 : i32
      %c49_i32_543 = arith.constant 49 : i32
      %968 = arith.muli %967, %c49_i32_543 : i32
      %c21_i32_544 = arith.constant 21 : i32
      %969 = arith.addi %968, %c21_i32_544 : i32
      %c1_i32_545 = arith.constant 1 : i32
      %970 = arith.addi %969, %c1_i32_545 : i32
      %971 = arith.index_cast %970 : i32 to index
      %972 = memref.load %arg8[%971] : memref<882xf32, #tpu.memory_space<smem>>
      %973 = vector.broadcast %972 : f32 to vector<16x128xf32>
      %974 = arith.mulf %966, %973 : vector<16x128xf32>
      %975 = arith.addf %946, %974 : vector<16x128xf32>
      %c6_i32_546 = arith.constant 6 : i32
      %976 = arith.addi %c6_i32_546, %arg14 : i32
      %c49_i32_547 = arith.constant 49 : i32
      %977 = arith.muli %976, %c49_i32_547 : i32
      %c21_i32_548 = arith.constant 21 : i32
      %978 = arith.addi %977, %c21_i32_548 : i32
      %c1_i32_549 = arith.constant 1 : i32
      %979 = arith.addi %978, %c1_i32_549 : i32
      %980 = arith.index_cast %979 : i32 to index
      %981 = memref.load %arg8[%980] : memref<882xf32, #tpu.memory_space<smem>>
      %982 = vector.broadcast %981 : f32 to vector<16x128xf32>
      %983 = arith.mulf %966, %982 : vector<16x128xf32>
      %984 = arith.addf %955, %983 : vector<16x128xf32>
      %c12_i32_550 = arith.constant 12 : i32
      %985 = arith.addi %c12_i32_550, %arg14 : i32
      %c49_i32_551 = arith.constant 49 : i32
      %986 = arith.muli %985, %c49_i32_551 : i32
      %c21_i32_552 = arith.constant 21 : i32
      %987 = arith.addi %986, %c21_i32_552 : i32
      %c1_i32_553 = arith.constant 1 : i32
      %988 = arith.addi %987, %c1_i32_553 : i32
      %989 = arith.index_cast %988 : i32 to index
      %990 = memref.load %arg8[%989] : memref<882xf32, #tpu.memory_space<smem>>
      %991 = vector.broadcast %990 : f32 to vector<16x128xf32>
      %992 = arith.mulf %966, %991 : vector<16x128xf32>
      %993 = arith.addf %964, %992 : vector<16x128xf32>
      %c1_i32_554 = arith.constant 1 : i32
      %994 = tpu.dynamic_rotate %935 by %c1_i32_554 dim 1 : vector<16x256xf32>, i32 -> vector<16x256xf32>
      %995 = vector.extract_strided_slice %994 {offsets = [0, 0], sizes = [16, 128], strides = [1, 1]} : vector<16x256xf32> to vector<16x128xf32>
      %c0_i32_555 = arith.constant 0 : i32
      %996 = arith.addi %c0_i32_555, %arg14 : i32
      %c49_i32_556 = arith.constant 49 : i32
      %997 = arith.muli %996, %c49_i32_556 : i32
      %c21_i32_557 = arith.constant 21 : i32
      %998 = arith.addi %997, %c21_i32_557 : i32
      %c2_i32_558 = arith.constant 2 : i32
      %999 = arith.addi %998, %c2_i32_558 : i32
      %1000 = arith.index_cast %999 : i32 to index
      %1001 = memref.load %arg8[%1000] : memref<882xf32, #tpu.memory_space<smem>>
      %1002 = vector.broadcast %1001 : f32 to vector<16x128xf32>
      %1003 = arith.mulf %995, %1002 : vector<16x128xf32>
      %1004 = arith.addf %975, %1003 : vector<16x128xf32>
      %c6_i32_559 = arith.constant 6 : i32
      %1005 = arith.addi %c6_i32_559, %arg14 : i32
      %c49_i32_560 = arith.constant 49 : i32
      %1006 = arith.muli %1005, %c49_i32_560 : i32
      %c21_i32_561 = arith.constant 21 : i32
      %1007 = arith.addi %1006, %c21_i32_561 : i32
      %c2_i32_562 = arith.constant 2 : i32
      %1008 = arith.addi %1007, %c2_i32_562 : i32
      %1009 = arith.index_cast %1008 : i32 to index
      %1010 = memref.load %arg8[%1009] : memref<882xf32, #tpu.memory_space<smem>>
      %1011 = vector.broadcast %1010 : f32 to vector<16x128xf32>
      %1012 = arith.mulf %995, %1011 : vector<16x128xf32>
      %1013 = arith.addf %984, %1012 : vector<16x128xf32>
      %c12_i32_563 = arith.constant 12 : i32
      %1014 = arith.addi %c12_i32_563, %arg14 : i32
      %c49_i32_564 = arith.constant 49 : i32
      %1015 = arith.muli %1014, %c49_i32_564 : i32
      %c21_i32_565 = arith.constant 21 : i32
      %1016 = arith.addi %1015, %c21_i32_565 : i32
      %c2_i32_566 = arith.constant 2 : i32
      %1017 = arith.addi %1016, %c2_i32_566 : i32
      %1018 = arith.index_cast %1017 : i32 to index
      %1019 = memref.load %arg8[%1018] : memref<882xf32, #tpu.memory_space<smem>>
      %1020 = vector.broadcast %1019 : f32 to vector<16x128xf32>
      %1021 = arith.mulf %995, %1020 : vector<16x128xf32>
      %1022 = arith.addf %993, %1021 : vector<16x128xf32>
      %1023 = vector.extract_strided_slice %935 {offsets = [0, 0], sizes = [16, 128], strides = [1, 1]} : vector<16x256xf32> to vector<16x128xf32>
      %c0_i32_567 = arith.constant 0 : i32
      %1024 = arith.addi %c0_i32_567, %arg14 : i32
      %c49_i32_568 = arith.constant 49 : i32
      %1025 = arith.muli %1024, %c49_i32_568 : i32
      %c21_i32_569 = arith.constant 21 : i32
      %1026 = arith.addi %1025, %c21_i32_569 : i32
      %c3_i32_570 = arith.constant 3 : i32
      %1027 = arith.addi %1026, %c3_i32_570 : i32
      %1028 = arith.index_cast %1027 : i32 to index
      %1029 = memref.load %arg8[%1028] : memref<882xf32, #tpu.memory_space<smem>>
      %1030 = vector.broadcast %1029 : f32 to vector<16x128xf32>
      %1031 = arith.mulf %1023, %1030 : vector<16x128xf32>
      %1032 = arith.addf %1004, %1031 : vector<16x128xf32>
      %c6_i32_571 = arith.constant 6 : i32
      %1033 = arith.addi %c6_i32_571, %arg14 : i32
      %c49_i32_572 = arith.constant 49 : i32
      %1034 = arith.muli %1033, %c49_i32_572 : i32
      %c21_i32_573 = arith.constant 21 : i32
      %1035 = arith.addi %1034, %c21_i32_573 : i32
      %c3_i32_574 = arith.constant 3 : i32
      %1036 = arith.addi %1035, %c3_i32_574 : i32
      %1037 = arith.index_cast %1036 : i32 to index
      %1038 = memref.load %arg8[%1037] : memref<882xf32, #tpu.memory_space<smem>>
      %1039 = vector.broadcast %1038 : f32 to vector<16x128xf32>
      %1040 = arith.mulf %1023, %1039 : vector<16x128xf32>
      %1041 = arith.addf %1013, %1040 : vector<16x128xf32>
      %c12_i32_575 = arith.constant 12 : i32
      %1042 = arith.addi %c12_i32_575, %arg14 : i32
      %c49_i32_576 = arith.constant 49 : i32
      %1043 = arith.muli %1042, %c49_i32_576 : i32
      %c21_i32_577 = arith.constant 21 : i32
      %1044 = arith.addi %1043, %c21_i32_577 : i32
      %c3_i32_578 = arith.constant 3 : i32
      %1045 = arith.addi %1044, %c3_i32_578 : i32
      %1046 = arith.index_cast %1045 : i32 to index
      %1047 = memref.load %arg8[%1046] : memref<882xf32, #tpu.memory_space<smem>>
      %1048 = vector.broadcast %1047 : f32 to vector<16x128xf32>
      %1049 = arith.mulf %1023, %1048 : vector<16x128xf32>
      %1050 = arith.addf %1022, %1049 : vector<16x128xf32>
      %c255_i32_579 = arith.constant 255 : i32
      %1051 = tpu.dynamic_rotate %935 by %c255_i32_579 dim 1 : vector<16x256xf32>, i32 -> vector<16x256xf32>
      %1052 = vector.extract_strided_slice %1051 {offsets = [0, 0], sizes = [16, 128], strides = [1, 1]} : vector<16x256xf32> to vector<16x128xf32>
      %c0_i32_580 = arith.constant 0 : i32
      %1053 = arith.addi %c0_i32_580, %arg14 : i32
      %c49_i32_581 = arith.constant 49 : i32
      %1054 = arith.muli %1053, %c49_i32_581 : i32
      %c21_i32_582 = arith.constant 21 : i32
      %1055 = arith.addi %1054, %c21_i32_582 : i32
      %c4_i32_583 = arith.constant 4 : i32
      %1056 = arith.addi %1055, %c4_i32_583 : i32
      %1057 = arith.index_cast %1056 : i32 to index
      %1058 = memref.load %arg8[%1057] : memref<882xf32, #tpu.memory_space<smem>>
      %1059 = vector.broadcast %1058 : f32 to vector<16x128xf32>
      %1060 = arith.mulf %1052, %1059 : vector<16x128xf32>
      %1061 = arith.addf %1032, %1060 : vector<16x128xf32>
      %c6_i32_584 = arith.constant 6 : i32
      %1062 = arith.addi %c6_i32_584, %arg14 : i32
      %c49_i32_585 = arith.constant 49 : i32
      %1063 = arith.muli %1062, %c49_i32_585 : i32
      %c21_i32_586 = arith.constant 21 : i32
      %1064 = arith.addi %1063, %c21_i32_586 : i32
      %c4_i32_587 = arith.constant 4 : i32
      %1065 = arith.addi %1064, %c4_i32_587 : i32
      %1066 = arith.index_cast %1065 : i32 to index
      %1067 = memref.load %arg8[%1066] : memref<882xf32, #tpu.memory_space<smem>>
      %1068 = vector.broadcast %1067 : f32 to vector<16x128xf32>
      %1069 = arith.mulf %1052, %1068 : vector<16x128xf32>
      %1070 = arith.addf %1041, %1069 : vector<16x128xf32>
      %c12_i32_588 = arith.constant 12 : i32
      %1071 = arith.addi %c12_i32_588, %arg14 : i32
      %c49_i32_589 = arith.constant 49 : i32
      %1072 = arith.muli %1071, %c49_i32_589 : i32
      %c21_i32_590 = arith.constant 21 : i32
      %1073 = arith.addi %1072, %c21_i32_590 : i32
      %c4_i32_591 = arith.constant 4 : i32
      %1074 = arith.addi %1073, %c4_i32_591 : i32
      %1075 = arith.index_cast %1074 : i32 to index
      %1076 = memref.load %arg8[%1075] : memref<882xf32, #tpu.memory_space<smem>>
      %1077 = vector.broadcast %1076 : f32 to vector<16x128xf32>
      %1078 = arith.mulf %1052, %1077 : vector<16x128xf32>
      %1079 = arith.addf %1050, %1078 : vector<16x128xf32>
      %c254_i32_592 = arith.constant 254 : i32
      %1080 = tpu.dynamic_rotate %935 by %c254_i32_592 dim 1 : vector<16x256xf32>, i32 -> vector<16x256xf32>
      %1081 = vector.extract_strided_slice %1080 {offsets = [0, 0], sizes = [16, 128], strides = [1, 1]} : vector<16x256xf32> to vector<16x128xf32>
      %c0_i32_593 = arith.constant 0 : i32
      %1082 = arith.addi %c0_i32_593, %arg14 : i32
      %c49_i32_594 = arith.constant 49 : i32
      %1083 = arith.muli %1082, %c49_i32_594 : i32
      %c21_i32_595 = arith.constant 21 : i32
      %1084 = arith.addi %1083, %c21_i32_595 : i32
      %c5_i32_596 = arith.constant 5 : i32
      %1085 = arith.addi %1084, %c5_i32_596 : i32
      %1086 = arith.index_cast %1085 : i32 to index
      %1087 = memref.load %arg8[%1086] : memref<882xf32, #tpu.memory_space<smem>>
      %1088 = vector.broadcast %1087 : f32 to vector<16x128xf32>
      %1089 = arith.mulf %1081, %1088 : vector<16x128xf32>
      %1090 = arith.addf %1061, %1089 : vector<16x128xf32>
      %c6_i32_597 = arith.constant 6 : i32
      %1091 = arith.addi %c6_i32_597, %arg14 : i32
      %c49_i32_598 = arith.constant 49 : i32
      %1092 = arith.muli %1091, %c49_i32_598 : i32
      %c21_i32_599 = arith.constant 21 : i32
      %1093 = arith.addi %1092, %c21_i32_599 : i32
      %c5_i32_600 = arith.constant 5 : i32
      %1094 = arith.addi %1093, %c5_i32_600 : i32
      %1095 = arith.index_cast %1094 : i32 to index
      %1096 = memref.load %arg8[%1095] : memref<882xf32, #tpu.memory_space<smem>>
      %1097 = vector.broadcast %1096 : f32 to vector<16x128xf32>
      %1098 = arith.mulf %1081, %1097 : vector<16x128xf32>
      %1099 = arith.addf %1070, %1098 : vector<16x128xf32>
      %c12_i32_601 = arith.constant 12 : i32
      %1100 = arith.addi %c12_i32_601, %arg14 : i32
      %c49_i32_602 = arith.constant 49 : i32
      %1101 = arith.muli %1100, %c49_i32_602 : i32
      %c21_i32_603 = arith.constant 21 : i32
      %1102 = arith.addi %1101, %c21_i32_603 : i32
      %c5_i32_604 = arith.constant 5 : i32
      %1103 = arith.addi %1102, %c5_i32_604 : i32
      %1104 = arith.index_cast %1103 : i32 to index
      %1105 = memref.load %arg8[%1104] : memref<882xf32, #tpu.memory_space<smem>>
      %1106 = vector.broadcast %1105 : f32 to vector<16x128xf32>
      %1107 = arith.mulf %1081, %1106 : vector<16x128xf32>
      %1108 = arith.addf %1079, %1107 : vector<16x128xf32>
      %c253_i32_605 = arith.constant 253 : i32
      %1109 = tpu.dynamic_rotate %935 by %c253_i32_605 dim 1 : vector<16x256xf32>, i32 -> vector<16x256xf32>
      %1110 = vector.extract_strided_slice %1109 {offsets = [0, 0], sizes = [16, 128], strides = [1, 1]} : vector<16x256xf32> to vector<16x128xf32>
      %c0_i32_606 = arith.constant 0 : i32
      %1111 = arith.addi %c0_i32_606, %arg14 : i32
      %c49_i32_607 = arith.constant 49 : i32
      %1112 = arith.muli %1111, %c49_i32_607 : i32
      %c21_i32_608 = arith.constant 21 : i32
      %1113 = arith.addi %1112, %c21_i32_608 : i32
      %c6_i32_609 = arith.constant 6 : i32
      %1114 = arith.addi %1113, %c6_i32_609 : i32
      %1115 = arith.index_cast %1114 : i32 to index
      %1116 = memref.load %arg8[%1115] : memref<882xf32, #tpu.memory_space<smem>>
      %1117 = vector.broadcast %1116 : f32 to vector<16x128xf32>
      %1118 = arith.mulf %1110, %1117 : vector<16x128xf32>
      %1119 = arith.addf %1090, %1118 : vector<16x128xf32>
      %c6_i32_610 = arith.constant 6 : i32
      %1120 = arith.addi %c6_i32_610, %arg14 : i32
      %c49_i32_611 = arith.constant 49 : i32
      %1121 = arith.muli %1120, %c49_i32_611 : i32
      %c21_i32_612 = arith.constant 21 : i32
      %1122 = arith.addi %1121, %c21_i32_612 : i32
      %c6_i32_613 = arith.constant 6 : i32
      %1123 = arith.addi %1122, %c6_i32_613 : i32
      %1124 = arith.index_cast %1123 : i32 to index
      %1125 = memref.load %arg8[%1124] : memref<882xf32, #tpu.memory_space<smem>>
      %1126 = vector.broadcast %1125 : f32 to vector<16x128xf32>
      %1127 = arith.mulf %1110, %1126 : vector<16x128xf32>
      %1128 = arith.addf %1099, %1127 : vector<16x128xf32>
      %c12_i32_614 = arith.constant 12 : i32
      %1129 = arith.addi %c12_i32_614, %arg14 : i32
      %c49_i32_615 = arith.constant 49 : i32
      %1130 = arith.muli %1129, %c49_i32_615 : i32
      %c21_i32_616 = arith.constant 21 : i32
      %1131 = arith.addi %1130, %c21_i32_616 : i32
      %c6_i32_617 = arith.constant 6 : i32
      %1132 = arith.addi %1131, %c6_i32_617 : i32
      %1133 = arith.index_cast %1132 : i32 to index
      %1134 = memref.load %arg8[%1133] : memref<882xf32, #tpu.memory_space<smem>>
      %1135 = vector.broadcast %1134 : f32 to vector<16x128xf32>
      %1136 = arith.mulf %1110, %1135 : vector<16x128xf32>
      %1137 = arith.addf %1108, %1136 : vector<16x128xf32>
      %c0_i32_618 = arith.constant 0 : i32
      %c0_i32_619 = arith.constant 0 : i32
      %1138 = tpu.memref_slice %arg13[%317, %c0_i32_618, %c0_i32_619] : memref<12x32x256xf32, #tpu.memory_space<vmem>> -> memref<1x32x256xf32, #tpu.memory_space<vmem>>
      %1139 = tpu.memref_squeeze %1138 : memref<1x32x256xf32, #tpu.memory_space<vmem>> -> memref<32x256xf32, #tpu.memory_space<vmem>>
      %c9_620 = arith.constant 9 : index
      %c0_621 = arith.constant 0 : index
      %1140 = vector.load %1139[%c9_620, %c0_621] : memref<32x256xf32, #tpu.memory_space<vmem>>, vector<16x256xf32>
      %c3_i32_622 = arith.constant 3 : i32
      %1141 = tpu.dynamic_rotate %1140 by %c3_i32_622 dim 1 : vector<16x256xf32>, i32 -> vector<16x256xf32>
      %1142 = vector.extract_strided_slice %1141 {offsets = [0, 0], sizes = [16, 128], strides = [1, 1]} : vector<16x256xf32> to vector<16x128xf32>
      %c0_i32_623 = arith.constant 0 : i32
      %1143 = arith.addi %c0_i32_623, %arg14 : i32
      %c49_i32_624 = arith.constant 49 : i32
      %1144 = arith.muli %1143, %c49_i32_624 : i32
      %c28_i32 = arith.constant 28 : i32
      %1145 = arith.addi %1144, %c28_i32 : i32
      %c0_i32_625 = arith.constant 0 : i32
      %1146 = arith.addi %1145, %c0_i32_625 : i32
      %1147 = arith.index_cast %1146 : i32 to index
      %1148 = memref.load %arg8[%1147] : memref<882xf32, #tpu.memory_space<smem>>
      %1149 = vector.broadcast %1148 : f32 to vector<16x128xf32>
      %1150 = arith.mulf %1142, %1149 : vector<16x128xf32>
      %1151 = arith.addf %1119, %1150 : vector<16x128xf32>
      %c6_i32_626 = arith.constant 6 : i32
      %1152 = arith.addi %c6_i32_626, %arg14 : i32
      %c49_i32_627 = arith.constant 49 : i32
      %1153 = arith.muli %1152, %c49_i32_627 : i32
      %c28_i32_628 = arith.constant 28 : i32
      %1154 = arith.addi %1153, %c28_i32_628 : i32
      %c0_i32_629 = arith.constant 0 : i32
      %1155 = arith.addi %1154, %c0_i32_629 : i32
      %1156 = arith.index_cast %1155 : i32 to index
      %1157 = memref.load %arg8[%1156] : memref<882xf32, #tpu.memory_space<smem>>
      %1158 = vector.broadcast %1157 : f32 to vector<16x128xf32>
      %1159 = arith.mulf %1142, %1158 : vector<16x128xf32>
      %1160 = arith.addf %1128, %1159 : vector<16x128xf32>
      %c12_i32_630 = arith.constant 12 : i32
      %1161 = arith.addi %c12_i32_630, %arg14 : i32
      %c49_i32_631 = arith.constant 49 : i32
      %1162 = arith.muli %1161, %c49_i32_631 : i32
      %c28_i32_632 = arith.constant 28 : i32
      %1163 = arith.addi %1162, %c28_i32_632 : i32
      %c0_i32_633 = arith.constant 0 : i32
      %1164 = arith.addi %1163, %c0_i32_633 : i32
      %1165 = arith.index_cast %1164 : i32 to index
      %1166 = memref.load %arg8[%1165] : memref<882xf32, #tpu.memory_space<smem>>
      %1167 = vector.broadcast %1166 : f32 to vector<16x128xf32>
      %1168 = arith.mulf %1142, %1167 : vector<16x128xf32>
      %1169 = arith.addf %1137, %1168 : vector<16x128xf32>
      %c2_i32_634 = arith.constant 2 : i32
      %1170 = tpu.dynamic_rotate %1140 by %c2_i32_634 dim 1 : vector<16x256xf32>, i32 -> vector<16x256xf32>
      %1171 = vector.extract_strided_slice %1170 {offsets = [0, 0], sizes = [16, 128], strides = [1, 1]} : vector<16x256xf32> to vector<16x128xf32>
      %c0_i32_635 = arith.constant 0 : i32
      %1172 = arith.addi %c0_i32_635, %arg14 : i32
      %c49_i32_636 = arith.constant 49 : i32
      %1173 = arith.muli %1172, %c49_i32_636 : i32
      %c28_i32_637 = arith.constant 28 : i32
      %1174 = arith.addi %1173, %c28_i32_637 : i32
      %c1_i32_638 = arith.constant 1 : i32
      %1175 = arith.addi %1174, %c1_i32_638 : i32
      %1176 = arith.index_cast %1175 : i32 to index
      %1177 = memref.load %arg8[%1176] : memref<882xf32, #tpu.memory_space<smem>>
      %1178 = vector.broadcast %1177 : f32 to vector<16x128xf32>
      %1179 = arith.mulf %1171, %1178 : vector<16x128xf32>
      %1180 = arith.addf %1151, %1179 : vector<16x128xf32>
      %c6_i32_639 = arith.constant 6 : i32
      %1181 = arith.addi %c6_i32_639, %arg14 : i32
      %c49_i32_640 = arith.constant 49 : i32
      %1182 = arith.muli %1181, %c49_i32_640 : i32
      %c28_i32_641 = arith.constant 28 : i32
      %1183 = arith.addi %1182, %c28_i32_641 : i32
      %c1_i32_642 = arith.constant 1 : i32
      %1184 = arith.addi %1183, %c1_i32_642 : i32
      %1185 = arith.index_cast %1184 : i32 to index
      %1186 = memref.load %arg8[%1185] : memref<882xf32, #tpu.memory_space<smem>>
      %1187 = vector.broadcast %1186 : f32 to vector<16x128xf32>
      %1188 = arith.mulf %1171, %1187 : vector<16x128xf32>
      %1189 = arith.addf %1160, %1188 : vector<16x128xf32>
      %c12_i32_643 = arith.constant 12 : i32
      %1190 = arith.addi %c12_i32_643, %arg14 : i32
      %c49_i32_644 = arith.constant 49 : i32
      %1191 = arith.muli %1190, %c49_i32_644 : i32
      %c28_i32_645 = arith.constant 28 : i32
      %1192 = arith.addi %1191, %c28_i32_645 : i32
      %c1_i32_646 = arith.constant 1 : i32
      %1193 = arith.addi %1192, %c1_i32_646 : i32
      %1194 = arith.index_cast %1193 : i32 to index
      %1195 = memref.load %arg8[%1194] : memref<882xf32, #tpu.memory_space<smem>>
      %1196 = vector.broadcast %1195 : f32 to vector<16x128xf32>
      %1197 = arith.mulf %1171, %1196 : vector<16x128xf32>
      %1198 = arith.addf %1169, %1197 : vector<16x128xf32>
      %c1_i32_647 = arith.constant 1 : i32
      %1199 = tpu.dynamic_rotate %1140 by %c1_i32_647 dim 1 : vector<16x256xf32>, i32 -> vector<16x256xf32>
      %1200 = vector.extract_strided_slice %1199 {offsets = [0, 0], sizes = [16, 128], strides = [1, 1]} : vector<16x256xf32> to vector<16x128xf32>
      %c0_i32_648 = arith.constant 0 : i32
      %1201 = arith.addi %c0_i32_648, %arg14 : i32
      %c49_i32_649 = arith.constant 49 : i32
      %1202 = arith.muli %1201, %c49_i32_649 : i32
      %c28_i32_650 = arith.constant 28 : i32
      %1203 = arith.addi %1202, %c28_i32_650 : i32
      %c2_i32_651 = arith.constant 2 : i32
      %1204 = arith.addi %1203, %c2_i32_651 : i32
      %1205 = arith.index_cast %1204 : i32 to index
      %1206 = memref.load %arg8[%1205] : memref<882xf32, #tpu.memory_space<smem>>
      %1207 = vector.broadcast %1206 : f32 to vector<16x128xf32>
      %1208 = arith.mulf %1200, %1207 : vector<16x128xf32>
      %1209 = arith.addf %1180, %1208 : vector<16x128xf32>
      %c6_i32_652 = arith.constant 6 : i32
      %1210 = arith.addi %c6_i32_652, %arg14 : i32
      %c49_i32_653 = arith.constant 49 : i32
      %1211 = arith.muli %1210, %c49_i32_653 : i32
      %c28_i32_654 = arith.constant 28 : i32
      %1212 = arith.addi %1211, %c28_i32_654 : i32
      %c2_i32_655 = arith.constant 2 : i32
      %1213 = arith.addi %1212, %c2_i32_655 : i32
      %1214 = arith.index_cast %1213 : i32 to index
      %1215 = memref.load %arg8[%1214] : memref<882xf32, #tpu.memory_space<smem>>
      %1216 = vector.broadcast %1215 : f32 to vector<16x128xf32>
      %1217 = arith.mulf %1200, %1216 : vector<16x128xf32>
      %1218 = arith.addf %1189, %1217 : vector<16x128xf32>
      %c12_i32_656 = arith.constant 12 : i32
      %1219 = arith.addi %c12_i32_656, %arg14 : i32
      %c49_i32_657 = arith.constant 49 : i32
      %1220 = arith.muli %1219, %c49_i32_657 : i32
      %c28_i32_658 = arith.constant 28 : i32
      %1221 = arith.addi %1220, %c28_i32_658 : i32
      %c2_i32_659 = arith.constant 2 : i32
      %1222 = arith.addi %1221, %c2_i32_659 : i32
      %1223 = arith.index_cast %1222 : i32 to index
      %1224 = memref.load %arg8[%1223] : memref<882xf32, #tpu.memory_space<smem>>
      %1225 = vector.broadcast %1224 : f32 to vector<16x128xf32>
      %1226 = arith.mulf %1200, %1225 : vector<16x128xf32>
      %1227 = arith.addf %1198, %1226 : vector<16x128xf32>
      %1228 = vector.extract_strided_slice %1140 {offsets = [0, 0], sizes = [16, 128], strides = [1, 1]} : vector<16x256xf32> to vector<16x128xf32>
      %c0_i32_660 = arith.constant 0 : i32
      %1229 = arith.addi %c0_i32_660, %arg14 : i32
      %c49_i32_661 = arith.constant 49 : i32
      %1230 = arith.muli %1229, %c49_i32_661 : i32
      %c28_i32_662 = arith.constant 28 : i32
      %1231 = arith.addi %1230, %c28_i32_662 : i32
      %c3_i32_663 = arith.constant 3 : i32
      %1232 = arith.addi %1231, %c3_i32_663 : i32
      %1233 = arith.index_cast %1232 : i32 to index
      %1234 = memref.load %arg8[%1233] : memref<882xf32, #tpu.memory_space<smem>>
      %1235 = vector.broadcast %1234 : f32 to vector<16x128xf32>
      %1236 = arith.mulf %1228, %1235 : vector<16x128xf32>
      %1237 = arith.addf %1209, %1236 : vector<16x128xf32>
      %c6_i32_664 = arith.constant 6 : i32
      %1238 = arith.addi %c6_i32_664, %arg14 : i32
      %c49_i32_665 = arith.constant 49 : i32
      %1239 = arith.muli %1238, %c49_i32_665 : i32
      %c28_i32_666 = arith.constant 28 : i32
      %1240 = arith.addi %1239, %c28_i32_666 : i32
      %c3_i32_667 = arith.constant 3 : i32
      %1241 = arith.addi %1240, %c3_i32_667 : i32
      %1242 = arith.index_cast %1241 : i32 to index
      %1243 = memref.load %arg8[%1242] : memref<882xf32, #tpu.memory_space<smem>>
      %1244 = vector.broadcast %1243 : f32 to vector<16x128xf32>
      %1245 = arith.mulf %1228, %1244 : vector<16x128xf32>
      %1246 = arith.addf %1218, %1245 : vector<16x128xf32>
      %c12_i32_668 = arith.constant 12 : i32
      %1247 = arith.addi %c12_i32_668, %arg14 : i32
      %c49_i32_669 = arith.constant 49 : i32
      %1248 = arith.muli %1247, %c49_i32_669 : i32
      %c28_i32_670 = arith.constant 28 : i32
      %1249 = arith.addi %1248, %c28_i32_670 : i32
      %c3_i32_671 = arith.constant 3 : i32
      %1250 = arith.addi %1249, %c3_i32_671 : i32
      %1251 = arith.index_cast %1250 : i32 to index
      %1252 = memref.load %arg8[%1251] : memref<882xf32, #tpu.memory_space<smem>>
      %1253 = vector.broadcast %1252 : f32 to vector<16x128xf32>
      %1254 = arith.mulf %1228, %1253 : vector<16x128xf32>
      %1255 = arith.addf %1227, %1254 : vector<16x128xf32>
      %c255_i32_672 = arith.constant 255 : i32
      %1256 = tpu.dynamic_rotate %1140 by %c255_i32_672 dim 1 : vector<16x256xf32>, i32 -> vector<16x256xf32>
      %1257 = vector.extract_strided_slice %1256 {offsets = [0, 0], sizes = [16, 128], strides = [1, 1]} : vector<16x256xf32> to vector<16x128xf32>
      %c0_i32_673 = arith.constant 0 : i32
      %1258 = arith.addi %c0_i32_673, %arg14 : i32
      %c49_i32_674 = arith.constant 49 : i32
      %1259 = arith.muli %1258, %c49_i32_674 : i32
      %c28_i32_675 = arith.constant 28 : i32
      %1260 = arith.addi %1259, %c28_i32_675 : i32
      %c4_i32_676 = arith.constant 4 : i32
      %1261 = arith.addi %1260, %c4_i32_676 : i32
      %1262 = arith.index_cast %1261 : i32 to index
      %1263 = memref.load %arg8[%1262] : memref<882xf32, #tpu.memory_space<smem>>
      %1264 = vector.broadcast %1263 : f32 to vector<16x128xf32>
      %1265 = arith.mulf %1257, %1264 : vector<16x128xf32>
      %1266 = arith.addf %1237, %1265 : vector<16x128xf32>
      %c6_i32_677 = arith.constant 6 : i32
      %1267 = arith.addi %c6_i32_677, %arg14 : i32
      %c49_i32_678 = arith.constant 49 : i32
      %1268 = arith.muli %1267, %c49_i32_678 : i32
      %c28_i32_679 = arith.constant 28 : i32
      %1269 = arith.addi %1268, %c28_i32_679 : i32
      %c4_i32_680 = arith.constant 4 : i32
      %1270 = arith.addi %1269, %c4_i32_680 : i32
      %1271 = arith.index_cast %1270 : i32 to index
      %1272 = memref.load %arg8[%1271] : memref<882xf32, #tpu.memory_space<smem>>
      %1273 = vector.broadcast %1272 : f32 to vector<16x128xf32>
      %1274 = arith.mulf %1257, %1273 : vector<16x128xf32>
      %1275 = arith.addf %1246, %1274 : vector<16x128xf32>
      %c12_i32_681 = arith.constant 12 : i32
      %1276 = arith.addi %c12_i32_681, %arg14 : i32
      %c49_i32_682 = arith.constant 49 : i32
      %1277 = arith.muli %1276, %c49_i32_682 : i32
      %c28_i32_683 = arith.constant 28 : i32
      %1278 = arith.addi %1277, %c28_i32_683 : i32
      %c4_i32_684 = arith.constant 4 : i32
      %1279 = arith.addi %1278, %c4_i32_684 : i32
      %1280 = arith.index_cast %1279 : i32 to index
      %1281 = memref.load %arg8[%1280] : memref<882xf32, #tpu.memory_space<smem>>
      %1282 = vector.broadcast %1281 : f32 to vector<16x128xf32>
      %1283 = arith.mulf %1257, %1282 : vector<16x128xf32>
      %1284 = arith.addf %1255, %1283 : vector<16x128xf32>
      %c254_i32_685 = arith.constant 254 : i32
      %1285 = tpu.dynamic_rotate %1140 by %c254_i32_685 dim 1 : vector<16x256xf32>, i32 -> vector<16x256xf32>
      %1286 = vector.extract_strided_slice %1285 {offsets = [0, 0], sizes = [16, 128], strides = [1, 1]} : vector<16x256xf32> to vector<16x128xf32>
      %c0_i32_686 = arith.constant 0 : i32
      %1287 = arith.addi %c0_i32_686, %arg14 : i32
      %c49_i32_687 = arith.constant 49 : i32
      %1288 = arith.muli %1287, %c49_i32_687 : i32
      %c28_i32_688 = arith.constant 28 : i32
      %1289 = arith.addi %1288, %c28_i32_688 : i32
      %c5_i32_689 = arith.constant 5 : i32
      %1290 = arith.addi %1289, %c5_i32_689 : i32
      %1291 = arith.index_cast %1290 : i32 to index
      %1292 = memref.load %arg8[%1291] : memref<882xf32, #tpu.memory_space<smem>>
      %1293 = vector.broadcast %1292 : f32 to vector<16x128xf32>
      %1294 = arith.mulf %1286, %1293 : vector<16x128xf32>
      %1295 = arith.addf %1266, %1294 : vector<16x128xf32>
      %c6_i32_690 = arith.constant 6 : i32
      %1296 = arith.addi %c6_i32_690, %arg14 : i32
      %c49_i32_691 = arith.constant 49 : i32
      %1297 = arith.muli %1296, %c49_i32_691 : i32
      %c28_i32_692 = arith.constant 28 : i32
      %1298 = arith.addi %1297, %c28_i32_692 : i32
      %c5_i32_693 = arith.constant 5 : i32
      %1299 = arith.addi %1298, %c5_i32_693 : i32
      %1300 = arith.index_cast %1299 : i32 to index
      %1301 = memref.load %arg8[%1300] : memref<882xf32, #tpu.memory_space<smem>>
      %1302 = vector.broadcast %1301 : f32 to vector<16x128xf32>
      %1303 = arith.mulf %1286, %1302 : vector<16x128xf32>
      %1304 = arith.addf %1275, %1303 : vector<16x128xf32>
      %c12_i32_694 = arith.constant 12 : i32
      %1305 = arith.addi %c12_i32_694, %arg14 : i32
      %c49_i32_695 = arith.constant 49 : i32
      %1306 = arith.muli %1305, %c49_i32_695 : i32
      %c28_i32_696 = arith.constant 28 : i32
      %1307 = arith.addi %1306, %c28_i32_696 : i32
      %c5_i32_697 = arith.constant 5 : i32
      %1308 = arith.addi %1307, %c5_i32_697 : i32
      %1309 = arith.index_cast %1308 : i32 to index
      %1310 = memref.load %arg8[%1309] : memref<882xf32, #tpu.memory_space<smem>>
      %1311 = vector.broadcast %1310 : f32 to vector<16x128xf32>
      %1312 = arith.mulf %1286, %1311 : vector<16x128xf32>
      %1313 = arith.addf %1284, %1312 : vector<16x128xf32>
      %c253_i32_698 = arith.constant 253 : i32
      %1314 = tpu.dynamic_rotate %1140 by %c253_i32_698 dim 1 : vector<16x256xf32>, i32 -> vector<16x256xf32>
      %1315 = vector.extract_strided_slice %1314 {offsets = [0, 0], sizes = [16, 128], strides = [1, 1]} : vector<16x256xf32> to vector<16x128xf32>
      %c0_i32_699 = arith.constant 0 : i32
      %1316 = arith.addi %c0_i32_699, %arg14 : i32
      %c49_i32_700 = arith.constant 49 : i32
      %1317 = arith.muli %1316, %c49_i32_700 : i32
      %c28_i32_701 = arith.constant 28 : i32
      %1318 = arith.addi %1317, %c28_i32_701 : i32
      %c6_i32_702 = arith.constant 6 : i32
      %1319 = arith.addi %1318, %c6_i32_702 : i32
      %1320 = arith.index_cast %1319 : i32 to index
      %1321 = memref.load %arg8[%1320] : memref<882xf32, #tpu.memory_space<smem>>
      %1322 = vector.broadcast %1321 : f32 to vector<16x128xf32>
      %1323 = arith.mulf %1315, %1322 : vector<16x128xf32>
      %1324 = arith.addf %1295, %1323 : vector<16x128xf32>
      %c6_i32_703 = arith.constant 6 : i32
      %1325 = arith.addi %c6_i32_703, %arg14 : i32
      %c49_i32_704 = arith.constant 49 : i32
      %1326 = arith.muli %1325, %c49_i32_704 : i32
      %c28_i32_705 = arith.constant 28 : i32
      %1327 = arith.addi %1326, %c28_i32_705 : i32
      %c6_i32_706 = arith.constant 6 : i32
      %1328 = arith.addi %1327, %c6_i32_706 : i32
      %1329 = arith.index_cast %1328 : i32 to index
      %1330 = memref.load %arg8[%1329] : memref<882xf32, #tpu.memory_space<smem>>
      %1331 = vector.broadcast %1330 : f32 to vector<16x128xf32>
      %1332 = arith.mulf %1315, %1331 : vector<16x128xf32>
      %1333 = arith.addf %1304, %1332 : vector<16x128xf32>
      %c12_i32_707 = arith.constant 12 : i32
      %1334 = arith.addi %c12_i32_707, %arg14 : i32
      %c49_i32_708 = arith.constant 49 : i32
      %1335 = arith.muli %1334, %c49_i32_708 : i32
      %c28_i32_709 = arith.constant 28 : i32
      %1336 = arith.addi %1335, %c28_i32_709 : i32
      %c6_i32_710 = arith.constant 6 : i32
      %1337 = arith.addi %1336, %c6_i32_710 : i32
      %1338 = arith.index_cast %1337 : i32 to index
      %1339 = memref.load %arg8[%1338] : memref<882xf32, #tpu.memory_space<smem>>
      %1340 = vector.broadcast %1339 : f32 to vector<16x128xf32>
      %1341 = arith.mulf %1315, %1340 : vector<16x128xf32>
      %1342 = arith.addf %1313, %1341 : vector<16x128xf32>
      %c0_i32_711 = arith.constant 0 : i32
      %c0_i32_712 = arith.constant 0 : i32
      %1343 = tpu.memref_slice %arg13[%317, %c0_i32_711, %c0_i32_712] : memref<12x32x256xf32, #tpu.memory_space<vmem>> -> memref<1x32x256xf32, #tpu.memory_space<vmem>>
      %1344 = tpu.memref_squeeze %1343 : memref<1x32x256xf32, #tpu.memory_space<vmem>> -> memref<32x256xf32, #tpu.memory_space<vmem>>
      %c10_713 = arith.constant 10 : index
      %c0_714 = arith.constant 0 : index
      %1345 = vector.load %1344[%c10_713, %c0_714] : memref<32x256xf32, #tpu.memory_space<vmem>>, vector<16x256xf32>
      %c3_i32_715 = arith.constant 3 : i32
      %1346 = tpu.dynamic_rotate %1345 by %c3_i32_715 dim 1 : vector<16x256xf32>, i32 -> vector<16x256xf32>
      %1347 = vector.extract_strided_slice %1346 {offsets = [0, 0], sizes = [16, 128], strides = [1, 1]} : vector<16x256xf32> to vector<16x128xf32>
      %c0_i32_716 = arith.constant 0 : i32
      %1348 = arith.addi %c0_i32_716, %arg14 : i32
      %c49_i32_717 = arith.constant 49 : i32
      %1349 = arith.muli %1348, %c49_i32_717 : i32
      %c35_i32 = arith.constant 35 : i32
      %1350 = arith.addi %1349, %c35_i32 : i32
      %c0_i32_718 = arith.constant 0 : i32
      %1351 = arith.addi %1350, %c0_i32_718 : i32
      %1352 = arith.index_cast %1351 : i32 to index
      %1353 = memref.load %arg8[%1352] : memref<882xf32, #tpu.memory_space<smem>>
      %1354 = vector.broadcast %1353 : f32 to vector<16x128xf32>
      %1355 = arith.mulf %1347, %1354 : vector<16x128xf32>
      %1356 = arith.addf %1324, %1355 : vector<16x128xf32>
      %c6_i32_719 = arith.constant 6 : i32
      %1357 = arith.addi %c6_i32_719, %arg14 : i32
      %c49_i32_720 = arith.constant 49 : i32
      %1358 = arith.muli %1357, %c49_i32_720 : i32
      %c35_i32_721 = arith.constant 35 : i32
      %1359 = arith.addi %1358, %c35_i32_721 : i32
      %c0_i32_722 = arith.constant 0 : i32
      %1360 = arith.addi %1359, %c0_i32_722 : i32
      %1361 = arith.index_cast %1360 : i32 to index
      %1362 = memref.load %arg8[%1361] : memref<882xf32, #tpu.memory_space<smem>>
      %1363 = vector.broadcast %1362 : f32 to vector<16x128xf32>
      %1364 = arith.mulf %1347, %1363 : vector<16x128xf32>
      %1365 = arith.addf %1333, %1364 : vector<16x128xf32>
      %c12_i32_723 = arith.constant 12 : i32
      %1366 = arith.addi %c12_i32_723, %arg14 : i32
      %c49_i32_724 = arith.constant 49 : i32
      %1367 = arith.muli %1366, %c49_i32_724 : i32
      %c35_i32_725 = arith.constant 35 : i32
      %1368 = arith.addi %1367, %c35_i32_725 : i32
      %c0_i32_726 = arith.constant 0 : i32
      %1369 = arith.addi %1368, %c0_i32_726 : i32
      %1370 = arith.index_cast %1369 : i32 to index
      %1371 = memref.load %arg8[%1370] : memref<882xf32, #tpu.memory_space<smem>>
      %1372 = vector.broadcast %1371 : f32 to vector<16x128xf32>
      %1373 = arith.mulf %1347, %1372 : vector<16x128xf32>
      %1374 = arith.addf %1342, %1373 : vector<16x128xf32>
      %c2_i32_727 = arith.constant 2 : i32
      %1375 = tpu.dynamic_rotate %1345 by %c2_i32_727 dim 1 : vector<16x256xf32>, i32 -> vector<16x256xf32>
      %1376 = vector.extract_strided_slice %1375 {offsets = [0, 0], sizes = [16, 128], strides = [1, 1]} : vector<16x256xf32> to vector<16x128xf32>
      %c0_i32_728 = arith.constant 0 : i32
      %1377 = arith.addi %c0_i32_728, %arg14 : i32
      %c49_i32_729 = arith.constant 49 : i32
      %1378 = arith.muli %1377, %c49_i32_729 : i32
      %c35_i32_730 = arith.constant 35 : i32
      %1379 = arith.addi %1378, %c35_i32_730 : i32
      %c1_i32_731 = arith.constant 1 : i32
      %1380 = arith.addi %1379, %c1_i32_731 : i32
      %1381 = arith.index_cast %1380 : i32 to index
      %1382 = memref.load %arg8[%1381] : memref<882xf32, #tpu.memory_space<smem>>
      %1383 = vector.broadcast %1382 : f32 to vector<16x128xf32>
      %1384 = arith.mulf %1376, %1383 : vector<16x128xf32>
      %1385 = arith.addf %1356, %1384 : vector<16x128xf32>
      %c6_i32_732 = arith.constant 6 : i32
      %1386 = arith.addi %c6_i32_732, %arg14 : i32
      %c49_i32_733 = arith.constant 49 : i32
      %1387 = arith.muli %1386, %c49_i32_733 : i32
      %c35_i32_734 = arith.constant 35 : i32
      %1388 = arith.addi %1387, %c35_i32_734 : i32
      %c1_i32_735 = arith.constant 1 : i32
      %1389 = arith.addi %1388, %c1_i32_735 : i32
      %1390 = arith.index_cast %1389 : i32 to index
      %1391 = memref.load %arg8[%1390] : memref<882xf32, #tpu.memory_space<smem>>
      %1392 = vector.broadcast %1391 : f32 to vector<16x128xf32>
      %1393 = arith.mulf %1376, %1392 : vector<16x128xf32>
      %1394 = arith.addf %1365, %1393 : vector<16x128xf32>
      %c12_i32_736 = arith.constant 12 : i32
      %1395 = arith.addi %c12_i32_736, %arg14 : i32
      %c49_i32_737 = arith.constant 49 : i32
      %1396 = arith.muli %1395, %c49_i32_737 : i32
      %c35_i32_738 = arith.constant 35 : i32
      %1397 = arith.addi %1396, %c35_i32_738 : i32
      %c1_i32_739 = arith.constant 1 : i32
      %1398 = arith.addi %1397, %c1_i32_739 : i32
      %1399 = arith.index_cast %1398 : i32 to index
      %1400 = memref.load %arg8[%1399] : memref<882xf32, #tpu.memory_space<smem>>
      %1401 = vector.broadcast %1400 : f32 to vector<16x128xf32>
      %1402 = arith.mulf %1376, %1401 : vector<16x128xf32>
      %1403 = arith.addf %1374, %1402 : vector<16x128xf32>
      %c1_i32_740 = arith.constant 1 : i32
      %1404 = tpu.dynamic_rotate %1345 by %c1_i32_740 dim 1 : vector<16x256xf32>, i32 -> vector<16x256xf32>
      %1405 = vector.extract_strided_slice %1404 {offsets = [0, 0], sizes = [16, 128], strides = [1, 1]} : vector<16x256xf32> to vector<16x128xf32>
      %c0_i32_741 = arith.constant 0 : i32
      %1406 = arith.addi %c0_i32_741, %arg14 : i32
      %c49_i32_742 = arith.constant 49 : i32
      %1407 = arith.muli %1406, %c49_i32_742 : i32
      %c35_i32_743 = arith.constant 35 : i32
      %1408 = arith.addi %1407, %c35_i32_743 : i32
      %c2_i32_744 = arith.constant 2 : i32
      %1409 = arith.addi %1408, %c2_i32_744 : i32
      %1410 = arith.index_cast %1409 : i32 to index
      %1411 = memref.load %arg8[%1410] : memref<882xf32, #tpu.memory_space<smem>>
      %1412 = vector.broadcast %1411 : f32 to vector<16x128xf32>
      %1413 = arith.mulf %1405, %1412 : vector<16x128xf32>
      %1414 = arith.addf %1385, %1413 : vector<16x128xf32>
      %c6_i32_745 = arith.constant 6 : i32
      %1415 = arith.addi %c6_i32_745, %arg14 : i32
      %c49_i32_746 = arith.constant 49 : i32
      %1416 = arith.muli %1415, %c49_i32_746 : i32
      %c35_i32_747 = arith.constant 35 : i32
      %1417 = arith.addi %1416, %c35_i32_747 : i32
      %c2_i32_748 = arith.constant 2 : i32
      %1418 = arith.addi %1417, %c2_i32_748 : i32
      %1419 = arith.index_cast %1418 : i32 to index
      %1420 = memref.load %arg8[%1419] : memref<882xf32, #tpu.memory_space<smem>>
      %1421 = vector.broadcast %1420 : f32 to vector<16x128xf32>
      %1422 = arith.mulf %1405, %1421 : vector<16x128xf32>
      %1423 = arith.addf %1394, %1422 : vector<16x128xf32>
      %c12_i32_749 = arith.constant 12 : i32
      %1424 = arith.addi %c12_i32_749, %arg14 : i32
      %c49_i32_750 = arith.constant 49 : i32
      %1425 = arith.muli %1424, %c49_i32_750 : i32
      %c35_i32_751 = arith.constant 35 : i32
      %1426 = arith.addi %1425, %c35_i32_751 : i32
      %c2_i32_752 = arith.constant 2 : i32
      %1427 = arith.addi %1426, %c2_i32_752 : i32
      %1428 = arith.index_cast %1427 : i32 to index
      %1429 = memref.load %arg8[%1428] : memref<882xf32, #tpu.memory_space<smem>>
      %1430 = vector.broadcast %1429 : f32 to vector<16x128xf32>
      %1431 = arith.mulf %1405, %1430 : vector<16x128xf32>
      %1432 = arith.addf %1403, %1431 : vector<16x128xf32>
      %1433 = vector.extract_strided_slice %1345 {offsets = [0, 0], sizes = [16, 128], strides = [1, 1]} : vector<16x256xf32> to vector<16x128xf32>
      %c0_i32_753 = arith.constant 0 : i32
      %1434 = arith.addi %c0_i32_753, %arg14 : i32
      %c49_i32_754 = arith.constant 49 : i32
      %1435 = arith.muli %1434, %c49_i32_754 : i32
      %c35_i32_755 = arith.constant 35 : i32
      %1436 = arith.addi %1435, %c35_i32_755 : i32
      %c3_i32_756 = arith.constant 3 : i32
      %1437 = arith.addi %1436, %c3_i32_756 : i32
      %1438 = arith.index_cast %1437 : i32 to index
      %1439 = memref.load %arg8[%1438] : memref<882xf32, #tpu.memory_space<smem>>
      %1440 = vector.broadcast %1439 : f32 to vector<16x128xf32>
      %1441 = arith.mulf %1433, %1440 : vector<16x128xf32>
      %1442 = arith.addf %1414, %1441 : vector<16x128xf32>
      %c6_i32_757 = arith.constant 6 : i32
      %1443 = arith.addi %c6_i32_757, %arg14 : i32
      %c49_i32_758 = arith.constant 49 : i32
      %1444 = arith.muli %1443, %c49_i32_758 : i32
      %c35_i32_759 = arith.constant 35 : i32
      %1445 = arith.addi %1444, %c35_i32_759 : i32
      %c3_i32_760 = arith.constant 3 : i32
      %1446 = arith.addi %1445, %c3_i32_760 : i32
      %1447 = arith.index_cast %1446 : i32 to index
      %1448 = memref.load %arg8[%1447] : memref<882xf32, #tpu.memory_space<smem>>
      %1449 = vector.broadcast %1448 : f32 to vector<16x128xf32>
      %1450 = arith.mulf %1433, %1449 : vector<16x128xf32>
      %1451 = arith.addf %1423, %1450 : vector<16x128xf32>
      %c12_i32_761 = arith.constant 12 : i32
      %1452 = arith.addi %c12_i32_761, %arg14 : i32
      %c49_i32_762 = arith.constant 49 : i32
      %1453 = arith.muli %1452, %c49_i32_762 : i32
      %c35_i32_763 = arith.constant 35 : i32
      %1454 = arith.addi %1453, %c35_i32_763 : i32
      %c3_i32_764 = arith.constant 3 : i32
      %1455 = arith.addi %1454, %c3_i32_764 : i32
      %1456 = arith.index_cast %1455 : i32 to index
      %1457 = memref.load %arg8[%1456] : memref<882xf32, #tpu.memory_space<smem>>
      %1458 = vector.broadcast %1457 : f32 to vector<16x128xf32>
      %1459 = arith.mulf %1433, %1458 : vector<16x128xf32>
      %1460 = arith.addf %1432, %1459 : vector<16x128xf32>
      %c255_i32_765 = arith.constant 255 : i32
      %1461 = tpu.dynamic_rotate %1345 by %c255_i32_765 dim 1 : vector<16x256xf32>, i32 -> vector<16x256xf32>
      %1462 = vector.extract_strided_slice %1461 {offsets = [0, 0], sizes = [16, 128], strides = [1, 1]} : vector<16x256xf32> to vector<16x128xf32>
      %c0_i32_766 = arith.constant 0 : i32
      %1463 = arith.addi %c0_i32_766, %arg14 : i32
      %c49_i32_767 = arith.constant 49 : i32
      %1464 = arith.muli %1463, %c49_i32_767 : i32
      %c35_i32_768 = arith.constant 35 : i32
      %1465 = arith.addi %1464, %c35_i32_768 : i32
      %c4_i32_769 = arith.constant 4 : i32
      %1466 = arith.addi %1465, %c4_i32_769 : i32
      %1467 = arith.index_cast %1466 : i32 to index
      %1468 = memref.load %arg8[%1467] : memref<882xf32, #tpu.memory_space<smem>>
      %1469 = vector.broadcast %1468 : f32 to vector<16x128xf32>
      %1470 = arith.mulf %1462, %1469 : vector<16x128xf32>
      %1471 = arith.addf %1442, %1470 : vector<16x128xf32>
      %c6_i32_770 = arith.constant 6 : i32
      %1472 = arith.addi %c6_i32_770, %arg14 : i32
      %c49_i32_771 = arith.constant 49 : i32
      %1473 = arith.muli %1472, %c49_i32_771 : i32
      %c35_i32_772 = arith.constant 35 : i32
      %1474 = arith.addi %1473, %c35_i32_772 : i32
      %c4_i32_773 = arith.constant 4 : i32
      %1475 = arith.addi %1474, %c4_i32_773 : i32
      %1476 = arith.index_cast %1475 : i32 to index
      %1477 = memref.load %arg8[%1476] : memref<882xf32, #tpu.memory_space<smem>>
      %1478 = vector.broadcast %1477 : f32 to vector<16x128xf32>
      %1479 = arith.mulf %1462, %1478 : vector<16x128xf32>
      %1480 = arith.addf %1451, %1479 : vector<16x128xf32>
      %c12_i32_774 = arith.constant 12 : i32
      %1481 = arith.addi %c12_i32_774, %arg14 : i32
      %c49_i32_775 = arith.constant 49 : i32
      %1482 = arith.muli %1481, %c49_i32_775 : i32
      %c35_i32_776 = arith.constant 35 : i32
      %1483 = arith.addi %1482, %c35_i32_776 : i32
      %c4_i32_777 = arith.constant 4 : i32
      %1484 = arith.addi %1483, %c4_i32_777 : i32
      %1485 = arith.index_cast %1484 : i32 to index
      %1486 = memref.load %arg8[%1485] : memref<882xf32, #tpu.memory_space<smem>>
      %1487 = vector.broadcast %1486 : f32 to vector<16x128xf32>
      %1488 = arith.mulf %1462, %1487 : vector<16x128xf32>
      %1489 = arith.addf %1460, %1488 : vector<16x128xf32>
      %c254_i32_778 = arith.constant 254 : i32
      %1490 = tpu.dynamic_rotate %1345 by %c254_i32_778 dim 1 : vector<16x256xf32>, i32 -> vector<16x256xf32>
      %1491 = vector.extract_strided_slice %1490 {offsets = [0, 0], sizes = [16, 128], strides = [1, 1]} : vector<16x256xf32> to vector<16x128xf32>
      %c0_i32_779 = arith.constant 0 : i32
      %1492 = arith.addi %c0_i32_779, %arg14 : i32
      %c49_i32_780 = arith.constant 49 : i32
      %1493 = arith.muli %1492, %c49_i32_780 : i32
      %c35_i32_781 = arith.constant 35 : i32
      %1494 = arith.addi %1493, %c35_i32_781 : i32
      %c5_i32_782 = arith.constant 5 : i32
      %1495 = arith.addi %1494, %c5_i32_782 : i32
      %1496 = arith.index_cast %1495 : i32 to index
      %1497 = memref.load %arg8[%1496] : memref<882xf32, #tpu.memory_space<smem>>
      %1498 = vector.broadcast %1497 : f32 to vector<16x128xf32>
      %1499 = arith.mulf %1491, %1498 : vector<16x128xf32>
      %1500 = arith.addf %1471, %1499 : vector<16x128xf32>
      %c6_i32_783 = arith.constant 6 : i32
      %1501 = arith.addi %c6_i32_783, %arg14 : i32
      %c49_i32_784 = arith.constant 49 : i32
      %1502 = arith.muli %1501, %c49_i32_784 : i32
      %c35_i32_785 = arith.constant 35 : i32
      %1503 = arith.addi %1502, %c35_i32_785 : i32
      %c5_i32_786 = arith.constant 5 : i32
      %1504 = arith.addi %1503, %c5_i32_786 : i32
      %1505 = arith.index_cast %1504 : i32 to index
      %1506 = memref.load %arg8[%1505] : memref<882xf32, #tpu.memory_space<smem>>
      %1507 = vector.broadcast %1506 : f32 to vector<16x128xf32>
      %1508 = arith.mulf %1491, %1507 : vector<16x128xf32>
      %1509 = arith.addf %1480, %1508 : vector<16x128xf32>
      %c12_i32_787 = arith.constant 12 : i32
      %1510 = arith.addi %c12_i32_787, %arg14 : i32
      %c49_i32_788 = arith.constant 49 : i32
      %1511 = arith.muli %1510, %c49_i32_788 : i32
      %c35_i32_789 = arith.constant 35 : i32
      %1512 = arith.addi %1511, %c35_i32_789 : i32
      %c5_i32_790 = arith.constant 5 : i32
      %1513 = arith.addi %1512, %c5_i32_790 : i32
      %1514 = arith.index_cast %1513 : i32 to index
      %1515 = memref.load %arg8[%1514] : memref<882xf32, #tpu.memory_space<smem>>
      %1516 = vector.broadcast %1515 : f32 to vector<16x128xf32>
      %1517 = arith.mulf %1491, %1516 : vector<16x128xf32>
      %1518 = arith.addf %1489, %1517 : vector<16x128xf32>
      %c253_i32_791 = arith.constant 253 : i32
      %1519 = tpu.dynamic_rotate %1345 by %c253_i32_791 dim 1 : vector<16x256xf32>, i32 -> vector<16x256xf32>
      %1520 = vector.extract_strided_slice %1519 {offsets = [0, 0], sizes = [16, 128], strides = [1, 1]} : vector<16x256xf32> to vector<16x128xf32>
      %c0_i32_792 = arith.constant 0 : i32
      %1521 = arith.addi %c0_i32_792, %arg14 : i32
      %c49_i32_793 = arith.constant 49 : i32
      %1522 = arith.muli %1521, %c49_i32_793 : i32
      %c35_i32_794 = arith.constant 35 : i32
      %1523 = arith.addi %1522, %c35_i32_794 : i32
      %c6_i32_795 = arith.constant 6 : i32
      %1524 = arith.addi %1523, %c6_i32_795 : i32
      %1525 = arith.index_cast %1524 : i32 to index
      %1526 = memref.load %arg8[%1525] : memref<882xf32, #tpu.memory_space<smem>>
      %1527 = vector.broadcast %1526 : f32 to vector<16x128xf32>
      %1528 = arith.mulf %1520, %1527 : vector<16x128xf32>
      %1529 = arith.addf %1500, %1528 : vector<16x128xf32>
      %c6_i32_796 = arith.constant 6 : i32
      %1530 = arith.addi %c6_i32_796, %arg14 : i32
      %c49_i32_797 = arith.constant 49 : i32
      %1531 = arith.muli %1530, %c49_i32_797 : i32
      %c35_i32_798 = arith.constant 35 : i32
      %1532 = arith.addi %1531, %c35_i32_798 : i32
      %c6_i32_799 = arith.constant 6 : i32
      %1533 = arith.addi %1532, %c6_i32_799 : i32
      %1534 = arith.index_cast %1533 : i32 to index
      %1535 = memref.load %arg8[%1534] : memref<882xf32, #tpu.memory_space<smem>>
      %1536 = vector.broadcast %1535 : f32 to vector<16x128xf32>
      %1537 = arith.mulf %1520, %1536 : vector<16x128xf32>
      %1538 = arith.addf %1509, %1537 : vector<16x128xf32>
      %c12_i32_800 = arith.constant 12 : i32
      %1539 = arith.addi %c12_i32_800, %arg14 : i32
      %c49_i32_801 = arith.constant 49 : i32
      %1540 = arith.muli %1539, %c49_i32_801 : i32
      %c35_i32_802 = arith.constant 35 : i32
      %1541 = arith.addi %1540, %c35_i32_802 : i32
      %c6_i32_803 = arith.constant 6 : i32
      %1542 = arith.addi %1541, %c6_i32_803 : i32
      %1543 = arith.index_cast %1542 : i32 to index
      %1544 = memref.load %arg8[%1543] : memref<882xf32, #tpu.memory_space<smem>>
      %1545 = vector.broadcast %1544 : f32 to vector<16x128xf32>
      %1546 = arith.mulf %1520, %1545 : vector<16x128xf32>
      %1547 = arith.addf %1518, %1546 : vector<16x128xf32>
      %c0_i32_804 = arith.constant 0 : i32
      %c0_i32_805 = arith.constant 0 : i32
      %1548 = tpu.memref_slice %arg13[%317, %c0_i32_804, %c0_i32_805] : memref<12x32x256xf32, #tpu.memory_space<vmem>> -> memref<1x32x256xf32, #tpu.memory_space<vmem>>
      %1549 = tpu.memref_squeeze %1548 : memref<1x32x256xf32, #tpu.memory_space<vmem>> -> memref<32x256xf32, #tpu.memory_space<vmem>>
      %c11_806 = arith.constant 11 : index
      %c0_807 = arith.constant 0 : index
      %1550 = vector.load %1549[%c11_806, %c0_807] : memref<32x256xf32, #tpu.memory_space<vmem>>, vector<16x256xf32>
      %c3_i32_808 = arith.constant 3 : i32
      %1551 = tpu.dynamic_rotate %1550 by %c3_i32_808 dim 1 : vector<16x256xf32>, i32 -> vector<16x256xf32>
      %1552 = vector.extract_strided_slice %1551 {offsets = [0, 0], sizes = [16, 128], strides = [1, 1]} : vector<16x256xf32> to vector<16x128xf32>
      %c0_i32_809 = arith.constant 0 : i32
      %1553 = arith.addi %c0_i32_809, %arg14 : i32
      %c49_i32_810 = arith.constant 49 : i32
      %1554 = arith.muli %1553, %c49_i32_810 : i32
      %c42_i32 = arith.constant 42 : i32
      %1555 = arith.addi %1554, %c42_i32 : i32
      %c0_i32_811 = arith.constant 0 : i32
      %1556 = arith.addi %1555, %c0_i32_811 : i32
      %1557 = arith.index_cast %1556 : i32 to index
      %1558 = memref.load %arg8[%1557] : memref<882xf32, #tpu.memory_space<smem>>
      %1559 = vector.broadcast %1558 : f32 to vector<16x128xf32>
      %1560 = arith.mulf %1552, %1559 : vector<16x128xf32>
      %1561 = arith.addf %1529, %1560 : vector<16x128xf32>
      %c6_i32_812 = arith.constant 6 : i32
      %1562 = arith.addi %c6_i32_812, %arg14 : i32
      %c49_i32_813 = arith.constant 49 : i32
      %1563 = arith.muli %1562, %c49_i32_813 : i32
      %c42_i32_814 = arith.constant 42 : i32
      %1564 = arith.addi %1563, %c42_i32_814 : i32
      %c0_i32_815 = arith.constant 0 : i32
      %1565 = arith.addi %1564, %c0_i32_815 : i32
      %1566 = arith.index_cast %1565 : i32 to index
      %1567 = memref.load %arg8[%1566] : memref<882xf32, #tpu.memory_space<smem>>
      %1568 = vector.broadcast %1567 : f32 to vector<16x128xf32>
      %1569 = arith.mulf %1552, %1568 : vector<16x128xf32>
      %1570 = arith.addf %1538, %1569 : vector<16x128xf32>
      %c12_i32_816 = arith.constant 12 : i32
      %1571 = arith.addi %c12_i32_816, %arg14 : i32
      %c49_i32_817 = arith.constant 49 : i32
      %1572 = arith.muli %1571, %c49_i32_817 : i32
      %c42_i32_818 = arith.constant 42 : i32
      %1573 = arith.addi %1572, %c42_i32_818 : i32
      %c0_i32_819 = arith.constant 0 : i32
      %1574 = arith.addi %1573, %c0_i32_819 : i32
      %1575 = arith.index_cast %1574 : i32 to index
      %1576 = memref.load %arg8[%1575] : memref<882xf32, #tpu.memory_space<smem>>
      %1577 = vector.broadcast %1576 : f32 to vector<16x128xf32>
      %1578 = arith.mulf %1552, %1577 : vector<16x128xf32>
      %1579 = arith.addf %1547, %1578 : vector<16x128xf32>
      %c2_i32_820 = arith.constant 2 : i32
      %1580 = tpu.dynamic_rotate %1550 by %c2_i32_820 dim 1 : vector<16x256xf32>, i32 -> vector<16x256xf32>
      %1581 = vector.extract_strided_slice %1580 {offsets = [0, 0], sizes = [16, 128], strides = [1, 1]} : vector<16x256xf32> to vector<16x128xf32>
      %c0_i32_821 = arith.constant 0 : i32
      %1582 = arith.addi %c0_i32_821, %arg14 : i32
      %c49_i32_822 = arith.constant 49 : i32
      %1583 = arith.muli %1582, %c49_i32_822 : i32
      %c42_i32_823 = arith.constant 42 : i32
      %1584 = arith.addi %1583, %c42_i32_823 : i32
      %c1_i32_824 = arith.constant 1 : i32
      %1585 = arith.addi %1584, %c1_i32_824 : i32
      %1586 = arith.index_cast %1585 : i32 to index
      %1587 = memref.load %arg8[%1586] : memref<882xf32, #tpu.memory_space<smem>>
      %1588 = vector.broadcast %1587 : f32 to vector<16x128xf32>
      %1589 = arith.mulf %1581, %1588 : vector<16x128xf32>
      %1590 = arith.addf %1561, %1589 : vector<16x128xf32>
      %c6_i32_825 = arith.constant 6 : i32
      %1591 = arith.addi %c6_i32_825, %arg14 : i32
      %c49_i32_826 = arith.constant 49 : i32
      %1592 = arith.muli %1591, %c49_i32_826 : i32
      %c42_i32_827 = arith.constant 42 : i32
      %1593 = arith.addi %1592, %c42_i32_827 : i32
      %c1_i32_828 = arith.constant 1 : i32
      %1594 = arith.addi %1593, %c1_i32_828 : i32
      %1595 = arith.index_cast %1594 : i32 to index
      %1596 = memref.load %arg8[%1595] : memref<882xf32, #tpu.memory_space<smem>>
      %1597 = vector.broadcast %1596 : f32 to vector<16x128xf32>
      %1598 = arith.mulf %1581, %1597 : vector<16x128xf32>
      %1599 = arith.addf %1570, %1598 : vector<16x128xf32>
      %c12_i32_829 = arith.constant 12 : i32
      %1600 = arith.addi %c12_i32_829, %arg14 : i32
      %c49_i32_830 = arith.constant 49 : i32
      %1601 = arith.muli %1600, %c49_i32_830 : i32
      %c42_i32_831 = arith.constant 42 : i32
      %1602 = arith.addi %1601, %c42_i32_831 : i32
      %c1_i32_832 = arith.constant 1 : i32
      %1603 = arith.addi %1602, %c1_i32_832 : i32
      %1604 = arith.index_cast %1603 : i32 to index
      %1605 = memref.load %arg8[%1604] : memref<882xf32, #tpu.memory_space<smem>>
      %1606 = vector.broadcast %1605 : f32 to vector<16x128xf32>
      %1607 = arith.mulf %1581, %1606 : vector<16x128xf32>
      %1608 = arith.addf %1579, %1607 : vector<16x128xf32>
      %c1_i32_833 = arith.constant 1 : i32
      %1609 = tpu.dynamic_rotate %1550 by %c1_i32_833 dim 1 : vector<16x256xf32>, i32 -> vector<16x256xf32>
      %1610 = vector.extract_strided_slice %1609 {offsets = [0, 0], sizes = [16, 128], strides = [1, 1]} : vector<16x256xf32> to vector<16x128xf32>
      %c0_i32_834 = arith.constant 0 : i32
      %1611 = arith.addi %c0_i32_834, %arg14 : i32
      %c49_i32_835 = arith.constant 49 : i32
      %1612 = arith.muli %1611, %c49_i32_835 : i32
      %c42_i32_836 = arith.constant 42 : i32
      %1613 = arith.addi %1612, %c42_i32_836 : i32
      %c2_i32_837 = arith.constant 2 : i32
      %1614 = arith.addi %1613, %c2_i32_837 : i32
      %1615 = arith.index_cast %1614 : i32 to index
      %1616 = memref.load %arg8[%1615] : memref<882xf32, #tpu.memory_space<smem>>
      %1617 = vector.broadcast %1616 : f32 to vector<16x128xf32>
      %1618 = arith.mulf %1610, %1617 : vector<16x128xf32>
      %1619 = arith.addf %1590, %1618 : vector<16x128xf32>
      %c6_i32_838 = arith.constant 6 : i32
      %1620 = arith.addi %c6_i32_838, %arg14 : i32
      %c49_i32_839 = arith.constant 49 : i32
      %1621 = arith.muli %1620, %c49_i32_839 : i32
      %c42_i32_840 = arith.constant 42 : i32
      %1622 = arith.addi %1621, %c42_i32_840 : i32
      %c2_i32_841 = arith.constant 2 : i32
      %1623 = arith.addi %1622, %c2_i32_841 : i32
      %1624 = arith.index_cast %1623 : i32 to index
      %1625 = memref.load %arg8[%1624] : memref<882xf32, #tpu.memory_space<smem>>
      %1626 = vector.broadcast %1625 : f32 to vector<16x128xf32>
      %1627 = arith.mulf %1610, %1626 : vector<16x128xf32>
      %1628 = arith.addf %1599, %1627 : vector<16x128xf32>
      %c12_i32_842 = arith.constant 12 : i32
      %1629 = arith.addi %c12_i32_842, %arg14 : i32
      %c49_i32_843 = arith.constant 49 : i32
      %1630 = arith.muli %1629, %c49_i32_843 : i32
      %c42_i32_844 = arith.constant 42 : i32
      %1631 = arith.addi %1630, %c42_i32_844 : i32
      %c2_i32_845 = arith.constant 2 : i32
      %1632 = arith.addi %1631, %c2_i32_845 : i32
      %1633 = arith.index_cast %1632 : i32 to index
      %1634 = memref.load %arg8[%1633] : memref<882xf32, #tpu.memory_space<smem>>
      %1635 = vector.broadcast %1634 : f32 to vector<16x128xf32>
      %1636 = arith.mulf %1610, %1635 : vector<16x128xf32>
      %1637 = arith.addf %1608, %1636 : vector<16x128xf32>
      %1638 = vector.extract_strided_slice %1550 {offsets = [0, 0], sizes = [16, 128], strides = [1, 1]} : vector<16x256xf32> to vector<16x128xf32>
      %c0_i32_846 = arith.constant 0 : i32
      %1639 = arith.addi %c0_i32_846, %arg14 : i32
      %c49_i32_847 = arith.constant 49 : i32
      %1640 = arith.muli %1639, %c49_i32_847 : i32
      %c42_i32_848 = arith.constant 42 : i32
      %1641 = arith.addi %1640, %c42_i32_848 : i32
      %c3_i32_849 = arith.constant 3 : i32
      %1642 = arith.addi %1641, %c3_i32_849 : i32
      %1643 = arith.index_cast %1642 : i32 to index
      %1644 = memref.load %arg8[%1643] : memref<882xf32, #tpu.memory_space<smem>>
      %1645 = vector.broadcast %1644 : f32 to vector<16x128xf32>
      %1646 = arith.mulf %1638, %1645 : vector<16x128xf32>
      %1647 = arith.addf %1619, %1646 : vector<16x128xf32>
      %c6_i32_850 = arith.constant 6 : i32
      %1648 = arith.addi %c6_i32_850, %arg14 : i32
      %c49_i32_851 = arith.constant 49 : i32
      %1649 = arith.muli %1648, %c49_i32_851 : i32
      %c42_i32_852 = arith.constant 42 : i32
      %1650 = arith.addi %1649, %c42_i32_852 : i32
      %c3_i32_853 = arith.constant 3 : i32
      %1651 = arith.addi %1650, %c3_i32_853 : i32
      %1652 = arith.index_cast %1651 : i32 to index
      %1653 = memref.load %arg8[%1652] : memref<882xf32, #tpu.memory_space<smem>>
      %1654 = vector.broadcast %1653 : f32 to vector<16x128xf32>
      %1655 = arith.mulf %1638, %1654 : vector<16x128xf32>
      %1656 = arith.addf %1628, %1655 : vector<16x128xf32>
      %c12_i32_854 = arith.constant 12 : i32
      %1657 = arith.addi %c12_i32_854, %arg14 : i32
      %c49_i32_855 = arith.constant 49 : i32
      %1658 = arith.muli %1657, %c49_i32_855 : i32
      %c42_i32_856 = arith.constant 42 : i32
      %1659 = arith.addi %1658, %c42_i32_856 : i32
      %c3_i32_857 = arith.constant 3 : i32
      %1660 = arith.addi %1659, %c3_i32_857 : i32
      %1661 = arith.index_cast %1660 : i32 to index
      %1662 = memref.load %arg8[%1661] : memref<882xf32, #tpu.memory_space<smem>>
      %1663 = vector.broadcast %1662 : f32 to vector<16x128xf32>
      %1664 = arith.mulf %1638, %1663 : vector<16x128xf32>
      %1665 = arith.addf %1637, %1664 : vector<16x128xf32>
      %c255_i32_858 = arith.constant 255 : i32
      %1666 = tpu.dynamic_rotate %1550 by %c255_i32_858 dim 1 : vector<16x256xf32>, i32 -> vector<16x256xf32>
      %1667 = vector.extract_strided_slice %1666 {offsets = [0, 0], sizes = [16, 128], strides = [1, 1]} : vector<16x256xf32> to vector<16x128xf32>
      %c0_i32_859 = arith.constant 0 : i32
      %1668 = arith.addi %c0_i32_859, %arg14 : i32
      %c49_i32_860 = arith.constant 49 : i32
      %1669 = arith.muli %1668, %c49_i32_860 : i32
      %c42_i32_861 = arith.constant 42 : i32
      %1670 = arith.addi %1669, %c42_i32_861 : i32
      %c4_i32_862 = arith.constant 4 : i32
      %1671 = arith.addi %1670, %c4_i32_862 : i32
      %1672 = arith.index_cast %1671 : i32 to index
      %1673 = memref.load %arg8[%1672] : memref<882xf32, #tpu.memory_space<smem>>
      %1674 = vector.broadcast %1673 : f32 to vector<16x128xf32>
      %1675 = arith.mulf %1667, %1674 : vector<16x128xf32>
      %1676 = arith.addf %1647, %1675 : vector<16x128xf32>
      %c6_i32_863 = arith.constant 6 : i32
      %1677 = arith.addi %c6_i32_863, %arg14 : i32
      %c49_i32_864 = arith.constant 49 : i32
      %1678 = arith.muli %1677, %c49_i32_864 : i32
      %c42_i32_865 = arith.constant 42 : i32
      %1679 = arith.addi %1678, %c42_i32_865 : i32
      %c4_i32_866 = arith.constant 4 : i32
      %1680 = arith.addi %1679, %c4_i32_866 : i32
      %1681 = arith.index_cast %1680 : i32 to index
      %1682 = memref.load %arg8[%1681] : memref<882xf32, #tpu.memory_space<smem>>
      %1683 = vector.broadcast %1682 : f32 to vector<16x128xf32>
      %1684 = arith.mulf %1667, %1683 : vector<16x128xf32>
      %1685 = arith.addf %1656, %1684 : vector<16x128xf32>
      %c12_i32_867 = arith.constant 12 : i32
      %1686 = arith.addi %c12_i32_867, %arg14 : i32
      %c49_i32_868 = arith.constant 49 : i32
      %1687 = arith.muli %1686, %c49_i32_868 : i32
      %c42_i32_869 = arith.constant 42 : i32
      %1688 = arith.addi %1687, %c42_i32_869 : i32
      %c4_i32_870 = arith.constant 4 : i32
      %1689 = arith.addi %1688, %c4_i32_870 : i32
      %1690 = arith.index_cast %1689 : i32 to index
      %1691 = memref.load %arg8[%1690] : memref<882xf32, #tpu.memory_space<smem>>
      %1692 = vector.broadcast %1691 : f32 to vector<16x128xf32>
      %1693 = arith.mulf %1667, %1692 : vector<16x128xf32>
      %1694 = arith.addf %1665, %1693 : vector<16x128xf32>
      %c254_i32_871 = arith.constant 254 : i32
      %1695 = tpu.dynamic_rotate %1550 by %c254_i32_871 dim 1 : vector<16x256xf32>, i32 -> vector<16x256xf32>
      %1696 = vector.extract_strided_slice %1695 {offsets = [0, 0], sizes = [16, 128], strides = [1, 1]} : vector<16x256xf32> to vector<16x128xf32>
      %c0_i32_872 = arith.constant 0 : i32
      %1697 = arith.addi %c0_i32_872, %arg14 : i32
      %c49_i32_873 = arith.constant 49 : i32
      %1698 = arith.muli %1697, %c49_i32_873 : i32
      %c42_i32_874 = arith.constant 42 : i32
      %1699 = arith.addi %1698, %c42_i32_874 : i32
      %c5_i32_875 = arith.constant 5 : i32
      %1700 = arith.addi %1699, %c5_i32_875 : i32
      %1701 = arith.index_cast %1700 : i32 to index
      %1702 = memref.load %arg8[%1701] : memref<882xf32, #tpu.memory_space<smem>>
      %1703 = vector.broadcast %1702 : f32 to vector<16x128xf32>
      %1704 = arith.mulf %1696, %1703 : vector<16x128xf32>
      %1705 = arith.addf %1676, %1704 : vector<16x128xf32>
      %c6_i32_876 = arith.constant 6 : i32
      %1706 = arith.addi %c6_i32_876, %arg14 : i32
      %c49_i32_877 = arith.constant 49 : i32
      %1707 = arith.muli %1706, %c49_i32_877 : i32
      %c42_i32_878 = arith.constant 42 : i32
      %1708 = arith.addi %1707, %c42_i32_878 : i32
      %c5_i32_879 = arith.constant 5 : i32
      %1709 = arith.addi %1708, %c5_i32_879 : i32
      %1710 = arith.index_cast %1709 : i32 to index
      %1711 = memref.load %arg8[%1710] : memref<882xf32, #tpu.memory_space<smem>>
      %1712 = vector.broadcast %1711 : f32 to vector<16x128xf32>
      %1713 = arith.mulf %1696, %1712 : vector<16x128xf32>
      %1714 = arith.addf %1685, %1713 : vector<16x128xf32>
      %c12_i32_880 = arith.constant 12 : i32
      %1715 = arith.addi %c12_i32_880, %arg14 : i32
      %c49_i32_881 = arith.constant 49 : i32
      %1716 = arith.muli %1715, %c49_i32_881 : i32
      %c42_i32_882 = arith.constant 42 : i32
      %1717 = arith.addi %1716, %c42_i32_882 : i32
      %c5_i32_883 = arith.constant 5 : i32
      %1718 = arith.addi %1717, %c5_i32_883 : i32
      %1719 = arith.index_cast %1718 : i32 to index
      %1720 = memref.load %arg8[%1719] : memref<882xf32, #tpu.memory_space<smem>>
      %1721 = vector.broadcast %1720 : f32 to vector<16x128xf32>
      %1722 = arith.mulf %1696, %1721 : vector<16x128xf32>
      %1723 = arith.addf %1694, %1722 : vector<16x128xf32>
      %c253_i32_884 = arith.constant 253 : i32
      %1724 = tpu.dynamic_rotate %1550 by %c253_i32_884 dim 1 : vector<16x256xf32>, i32 -> vector<16x256xf32>
      %1725 = vector.extract_strided_slice %1724 {offsets = [0, 0], sizes = [16, 128], strides = [1, 1]} : vector<16x256xf32> to vector<16x128xf32>
      %c0_i32_885 = arith.constant 0 : i32
      %1726 = arith.addi %c0_i32_885, %arg14 : i32
      %c49_i32_886 = arith.constant 49 : i32
      %1727 = arith.muli %1726, %c49_i32_886 : i32
      %c42_i32_887 = arith.constant 42 : i32
      %1728 = arith.addi %1727, %c42_i32_887 : i32
      %c6_i32_888 = arith.constant 6 : i32
      %1729 = arith.addi %1728, %c6_i32_888 : i32
      %1730 = arith.index_cast %1729 : i32 to index
      %1731 = memref.load %arg8[%1730] : memref<882xf32, #tpu.memory_space<smem>>
      %1732 = vector.broadcast %1731 : f32 to vector<16x128xf32>
      %1733 = arith.mulf %1725, %1732 : vector<16x128xf32>
      %1734 = arith.addf %1705, %1733 : vector<16x128xf32>
      %c6_i32_889 = arith.constant 6 : i32
      %1735 = arith.addi %c6_i32_889, %arg14 : i32
      %c49_i32_890 = arith.constant 49 : i32
      %1736 = arith.muli %1735, %c49_i32_890 : i32
      %c42_i32_891 = arith.constant 42 : i32
      %1737 = arith.addi %1736, %c42_i32_891 : i32
      %c6_i32_892 = arith.constant 6 : i32
      %1738 = arith.addi %1737, %c6_i32_892 : i32
      %1739 = arith.index_cast %1738 : i32 to index
      %1740 = memref.load %arg8[%1739] : memref<882xf32, #tpu.memory_space<smem>>
      %1741 = vector.broadcast %1740 : f32 to vector<16x128xf32>
      %1742 = arith.mulf %1725, %1741 : vector<16x128xf32>
      %1743 = arith.addf %1714, %1742 : vector<16x128xf32>
      %c12_i32_893 = arith.constant 12 : i32
      %1744 = arith.addi %c12_i32_893, %arg14 : i32
      %c49_i32_894 = arith.constant 49 : i32
      %1745 = arith.muli %1744, %c49_i32_894 : i32
      %c42_i32_895 = arith.constant 42 : i32
      %1746 = arith.addi %1745, %c42_i32_895 : i32
      %c6_i32_896 = arith.constant 6 : i32
      %1747 = arith.addi %1746, %c6_i32_896 : i32
      %1748 = arith.index_cast %1747 : i32 to index
      %1749 = memref.load %arg8[%1748] : memref<882xf32, #tpu.memory_space<smem>>
      %1750 = vector.broadcast %1749 : f32 to vector<16x128xf32>
      %1751 = arith.mulf %1725, %1750 : vector<16x128xf32>
      %1752 = arith.addf %1723, %1751 : vector<16x128xf32>
      scf.yield %1734, %1743, %1752 : vector<16x128xf32>, vector<16x128xf32>, vector<16x128xf32>
    }
    %c6_i32_195 = arith.constant 6 : i32
    %c0_196 = arith.constant 0 : index
    %242 = memref.load %arg9[%c0_196] : memref<3xf32, #tpu.memory_space<smem>>
    %243 = vector.broadcast %242 : f32 to vector<16x128xf32>
    %244 = arith.addf %241#0, %243 : vector<16x128xf32>
    %cst_197 = arith.constant 0.000000e+00 : f32
    %245 = vector.broadcast %cst_197 : f32 to vector<16x128xf32>
    %246 = arith.maximumf %244, %245 : vector<16x128xf32>
    %c1_198 = arith.constant 1 : index
    %247 = memref.load %arg9[%c1_198] : memref<3xf32, #tpu.memory_space<smem>>
    %248 = vector.broadcast %247 : f32 to vector<16x128xf32>
    %249 = arith.addf %241#1, %248 : vector<16x128xf32>
    %cst_199 = arith.constant 0.000000e+00 : f32
    %250 = vector.broadcast %cst_199 : f32 to vector<16x128xf32>
    %251 = arith.maximumf %249, %250 : vector<16x128xf32>
    %c2_200 = arith.constant 2 : index
    %252 = memref.load %arg9[%c2_200] : memref<3xf32, #tpu.memory_space<smem>>
    %253 = vector.broadcast %252 : f32 to vector<16x128xf32>
    %254 = arith.addf %241#2, %253 : vector<16x128xf32>
    %cst_201 = arith.constant 0.000000e+00 : f32
    %255 = vector.broadcast %cst_201 : f32 to vector<16x128xf32>
    %256 = arith.maximumf %254, %255 : vector<16x128xf32>
    %c9_202 = arith.constant 9 : index
    %c8_203 = arith.constant 8 : index
    %c0_204 = arith.constant 0 : index
    %257 = vector.load %arg13[%c9_202, %c8_203, %c0_204] : memref<12x32x256xf32, #tpu.memory_space<vmem>>, vector<1x16x128xf32>
    %258 = vector.shape_cast %257 : vector<1x16x128xf32> to vector<16x128xf32>
    %259 = vector.shape_cast %246 : vector<16x128xf32> to vector<1x16x128xf32>
    tpu.vector_store %arg13[%c9_202, %c8_203, %c0_204], %259 {strides = array<i32>} : memref<12x32x256xf32, #tpu.memory_space<vmem>>, vector<1x16x128xf32>,
    %c10_205 = arith.constant 10 : index
    %c8_206 = arith.constant 8 : index
    %c0_207 = arith.constant 0 : index
    %260 = vector.load %arg13[%c10_205, %c8_206, %c0_207] : memref<12x32x256xf32, #tpu.memory_space<vmem>>, vector<1x16x128xf32>
    %261 = vector.shape_cast %260 : vector<1x16x128xf32> to vector<16x128xf32>
    %262 = vector.shape_cast %251 : vector<16x128xf32> to vector<1x16x128xf32>
    tpu.vector_store %arg13[%c10_205, %c8_206, %c0_207], %262 {strides = array<i32>} : memref<12x32x256xf32, #tpu.memory_space<vmem>>, vector<1x16x128xf32>,
    %c11_208 = arith.constant 11 : index
    %c8_209 = arith.constant 8 : index
    %c0_210 = arith.constant 0 : index
    %263 = vector.load %arg13[%c11_208, %c8_209, %c0_210] : memref<12x32x256xf32, #tpu.memory_space<vmem>>, vector<1x16x128xf32>
    %264 = vector.shape_cast %263 : vector<1x16x128xf32> to vector<16x128xf32>
    %265 = vector.shape_cast %256 : vector<16x128xf32> to vector<1x16x128xf32>
    tpu.vector_store %arg13[%c11_208, %c8_209, %c0_210], %265 {strides = array<i32>} : memref<12x32x256xf32, #tpu.memory_space<vmem>>, vector<1x16x128xf32>,
    %cst_211 = arith.constant 0.000000e+00 : f32
    %266 = vector.broadcast %cst_211 : f32 to vector<16x128xf32>
    %c0_i32_212 = arith.constant 0 : i32
    %c12_i32 = arith.constant 12 : i32
    %267 = arith.addi %c0_i32_212, %c12_i32 : i32
    %c1_i32_213 = arith.constant 1 : i32
    %268:3 = scf.for %arg14 = %c0_i32_212 to %267 step %c1_i32_213 iter_args(%arg15 = %266, %arg16 = %266, %arg17 = %266) -> (vector<16x128xf32>, vector<16x128xf32>, vector<16x128xf32>)  : i32 {
      %c0_i32_251 = arith.constant 0 : i32
      %317 = arith.addi %c0_i32_251, %arg14 : i32
      %c0_i32_252 = arith.constant 0 : i32
      %c0_i32_253 = arith.constant 0 : i32
      %318 = tpu.memref_slice %arg13[%317, %c0_i32_252, %c0_i32_253] : memref<12x32x256xf32, #tpu.memory_space<vmem>> -> memref<1x32x256xf32, #tpu.memory_space<vmem>>
      %319 = tpu.memref_squeeze %318 : memref<1x32x256xf32, #tpu.memory_space<vmem>> -> memref<32x256xf32, #tpu.memory_space<vmem>>
      %c7_254 = arith.constant 7 : index
      %c0_255 = arith.constant 0 : index
      %320 = vector.load %319[%c7_254, %c0_255] : memref<32x256xf32, #tpu.memory_space<vmem>>, vector<16x256xf32>
      %c1_i32_256 = arith.constant 1 : i32
      %321 = tpu.dynamic_rotate %320 by %c1_i32_256 dim 1 : vector<16x256xf32>, i32 -> vector<16x256xf32>
      %322 = vector.extract_strided_slice %321 {offsets = [0, 0], sizes = [16, 128], strides = [1, 1]} : vector<16x256xf32> to vector<16x128xf32>
      %c0_i32_257 = arith.constant 0 : i32
      %323 = arith.addi %c0_i32_257, %arg14 : i32
      %c9_i32 = arith.constant 9 : i32
      %324 = arith.muli %323, %c9_i32 : i32
      %c0_i32_258 = arith.constant 0 : i32
      %325 = arith.addi %324, %c0_i32_258 : i32
      %c0_i32_259 = arith.constant 0 : i32
      %326 = arith.addi %325, %c0_i32_259 : i32
      %327 = arith.index_cast %326 : i32 to index
      %328 = memref.load %arg10[%327] : memref<324xf32, #tpu.memory_space<smem>>
      %329 = vector.broadcast %328 : f32 to vector<16x128xf32>
      %330 = arith.mulf %322, %329 : vector<16x128xf32>
      %331 = arith.addf %arg15, %330 : vector<16x128xf32>
      %c12_i32_260 = arith.constant 12 : i32
      %332 = arith.addi %c12_i32_260, %arg14 : i32
      %c9_i32_261 = arith.constant 9 : i32
      %333 = arith.muli %332, %c9_i32_261 : i32
      %c0_i32_262 = arith.constant 0 : i32
      %334 = arith.addi %333, %c0_i32_262 : i32
      %c0_i32_263 = arith.constant 0 : i32
      %335 = arith.addi %334, %c0_i32_263 : i32
      %336 = arith.index_cast %335 : i32 to index
      %337 = memref.load %arg10[%336] : memref<324xf32, #tpu.memory_space<smem>>
      %338 = vector.broadcast %337 : f32 to vector<16x128xf32>
      %339 = arith.mulf %322, %338 : vector<16x128xf32>
      %340 = arith.addf %arg16, %339 : vector<16x128xf32>
      %c24_i32 = arith.constant 24 : i32
      %341 = arith.addi %c24_i32, %arg14 : i32
      %c9_i32_264 = arith.constant 9 : i32
      %342 = arith.muli %341, %c9_i32_264 : i32
      %c0_i32_265 = arith.constant 0 : i32
      %343 = arith.addi %342, %c0_i32_265 : i32
      %c0_i32_266 = arith.constant 0 : i32
      %344 = arith.addi %343, %c0_i32_266 : i32
      %345 = arith.index_cast %344 : i32 to index
      %346 = memref.load %arg10[%345] : memref<324xf32, #tpu.memory_space<smem>>
      %347 = vector.broadcast %346 : f32 to vector<16x128xf32>
      %348 = arith.mulf %322, %347 : vector<16x128xf32>
      %349 = arith.addf %arg17, %348 : vector<16x128xf32>
      %350 = vector.extract_strided_slice %320 {offsets = [0, 0], sizes = [16, 128], strides = [1, 1]} : vector<16x256xf32> to vector<16x128xf32>
      %c0_i32_267 = arith.constant 0 : i32
      %351 = arith.addi %c0_i32_267, %arg14 : i32
      %c9_i32_268 = arith.constant 9 : i32
      %352 = arith.muli %351, %c9_i32_268 : i32
      %c0_i32_269 = arith.constant 0 : i32
      %353 = arith.addi %352, %c0_i32_269 : i32
      %c1_i32_270 = arith.constant 1 : i32
      %354 = arith.addi %353, %c1_i32_270 : i32
      %355 = arith.index_cast %354 : i32 to index
      %356 = memref.load %arg10[%355] : memref<324xf32, #tpu.memory_space<smem>>
      %357 = vector.broadcast %356 : f32 to vector<16x128xf32>
      %358 = arith.mulf %350, %357 : vector<16x128xf32>
      %359 = arith.addf %331, %358 : vector<16x128xf32>
      %c12_i32_271 = arith.constant 12 : i32
      %360 = arith.addi %c12_i32_271, %arg14 : i32
      %c9_i32_272 = arith.constant 9 : i32
      %361 = arith.muli %360, %c9_i32_272 : i32
      %c0_i32_273 = arith.constant 0 : i32
      %362 = arith.addi %361, %c0_i32_273 : i32
      %c1_i32_274 = arith.constant 1 : i32
      %363 = arith.addi %362, %c1_i32_274 : i32
      %364 = arith.index_cast %363 : i32 to index
      %365 = memref.load %arg10[%364] : memref<324xf32, #tpu.memory_space<smem>>
      %366 = vector.broadcast %365 : f32 to vector<16x128xf32>
      %367 = arith.mulf %350, %366 : vector<16x128xf32>
      %368 = arith.addf %340, %367 : vector<16x128xf32>
      %c24_i32_275 = arith.constant 24 : i32
      %369 = arith.addi %c24_i32_275, %arg14 : i32
      %c9_i32_276 = arith.constant 9 : i32
      %370 = arith.muli %369, %c9_i32_276 : i32
      %c0_i32_277 = arith.constant 0 : i32
      %371 = arith.addi %370, %c0_i32_277 : i32
      %c1_i32_278 = arith.constant 1 : i32
      %372 = arith.addi %371, %c1_i32_278 : i32
      %373 = arith.index_cast %372 : i32 to index
      %374 = memref.load %arg10[%373] : memref<324xf32, #tpu.memory_space<smem>>
      %375 = vector.broadcast %374 : f32 to vector<16x128xf32>
      %376 = arith.mulf %350, %375 : vector<16x128xf32>
      %377 = arith.addf %349, %376 : vector<16x128xf32>
      %c255_i32 = arith.constant 255 : i32
      %378 = tpu.dynamic_rotate %320 by %c255_i32 dim 1 : vector<16x256xf32>, i32 -> vector<16x256xf32>
      %379 = vector.extract_strided_slice %378 {offsets = [0, 0], sizes = [16, 128], strides = [1, 1]} : vector<16x256xf32> to vector<16x128xf32>
      %c0_i32_279 = arith.constant 0 : i32
      %380 = arith.addi %c0_i32_279, %arg14 : i32
      %c9_i32_280 = arith.constant 9 : i32
      %381 = arith.muli %380, %c9_i32_280 : i32
      %c0_i32_281 = arith.constant 0 : i32
      %382 = arith.addi %381, %c0_i32_281 : i32
      %c2_i32 = arith.constant 2 : i32
      %383 = arith.addi %382, %c2_i32 : i32
      %384 = arith.index_cast %383 : i32 to index
      %385 = memref.load %arg10[%384] : memref<324xf32, #tpu.memory_space<smem>>
      %386 = vector.broadcast %385 : f32 to vector<16x128xf32>
      %387 = arith.mulf %379, %386 : vector<16x128xf32>
      %388 = arith.addf %359, %387 : vector<16x128xf32>
      %c12_i32_282 = arith.constant 12 : i32
      %389 = arith.addi %c12_i32_282, %arg14 : i32
      %c9_i32_283 = arith.constant 9 : i32
      %390 = arith.muli %389, %c9_i32_283 : i32
      %c0_i32_284 = arith.constant 0 : i32
      %391 = arith.addi %390, %c0_i32_284 : i32
      %c2_i32_285 = arith.constant 2 : i32
      %392 = arith.addi %391, %c2_i32_285 : i32
      %393 = arith.index_cast %392 : i32 to index
      %394 = memref.load %arg10[%393] : memref<324xf32, #tpu.memory_space<smem>>
      %395 = vector.broadcast %394 : f32 to vector<16x128xf32>
      %396 = arith.mulf %379, %395 : vector<16x128xf32>
      %397 = arith.addf %368, %396 : vector<16x128xf32>
      %c24_i32_286 = arith.constant 24 : i32
      %398 = arith.addi %c24_i32_286, %arg14 : i32
      %c9_i32_287 = arith.constant 9 : i32
      %399 = arith.muli %398, %c9_i32_287 : i32
      %c0_i32_288 = arith.constant 0 : i32
      %400 = arith.addi %399, %c0_i32_288 : i32
      %c2_i32_289 = arith.constant 2 : i32
      %401 = arith.addi %400, %c2_i32_289 : i32
      %402 = arith.index_cast %401 : i32 to index
      %403 = memref.load %arg10[%402] : memref<324xf32, #tpu.memory_space<smem>>
      %404 = vector.broadcast %403 : f32 to vector<16x128xf32>
      %405 = arith.mulf %379, %404 : vector<16x128xf32>
      %406 = arith.addf %377, %405 : vector<16x128xf32>
      %c0_i32_290 = arith.constant 0 : i32
      %c0_i32_291 = arith.constant 0 : i32
      %407 = tpu.memref_slice %arg13[%317, %c0_i32_290, %c0_i32_291] : memref<12x32x256xf32, #tpu.memory_space<vmem>> -> memref<1x32x256xf32, #tpu.memory_space<vmem>>
      %408 = tpu.memref_squeeze %407 : memref<1x32x256xf32, #tpu.memory_space<vmem>> -> memref<32x256xf32, #tpu.memory_space<vmem>>
      %c8_292 = arith.constant 8 : index
      %c0_293 = arith.constant 0 : index
      %409 = vector.load %408[%c8_292, %c0_293] : memref<32x256xf32, #tpu.memory_space<vmem>>, vector<16x256xf32>
      %c1_i32_294 = arith.constant 1 : i32
      %410 = tpu.dynamic_rotate %409 by %c1_i32_294 dim 1 : vector<16x256xf32>, i32 -> vector<16x256xf32>
      %411 = vector.extract_strided_slice %410 {offsets = [0, 0], sizes = [16, 128], strides = [1, 1]} : vector<16x256xf32> to vector<16x128xf32>
      %c0_i32_295 = arith.constant 0 : i32
      %412 = arith.addi %c0_i32_295, %arg14 : i32
      %c9_i32_296 = arith.constant 9 : i32
      %413 = arith.muli %412, %c9_i32_296 : i32
      %c3_i32_297 = arith.constant 3 : i32
      %414 = arith.addi %413, %c3_i32_297 : i32
      %c0_i32_298 = arith.constant 0 : i32
      %415 = arith.addi %414, %c0_i32_298 : i32
      %416 = arith.index_cast %415 : i32 to index
      %417 = memref.load %arg10[%416] : memref<324xf32, #tpu.memory_space<smem>>
      %418 = vector.broadcast %417 : f32 to vector<16x128xf32>
      %419 = arith.mulf %411, %418 : vector<16x128xf32>
      %420 = arith.addf %388, %419 : vector<16x128xf32>
      %c12_i32_299 = arith.constant 12 : i32
      %421 = arith.addi %c12_i32_299, %arg14 : i32
      %c9_i32_300 = arith.constant 9 : i32
      %422 = arith.muli %421, %c9_i32_300 : i32
      %c3_i32_301 = arith.constant 3 : i32
      %423 = arith.addi %422, %c3_i32_301 : i32
      %c0_i32_302 = arith.constant 0 : i32
      %424 = arith.addi %423, %c0_i32_302 : i32
      %425 = arith.index_cast %424 : i32 to index
      %426 = memref.load %arg10[%425] : memref<324xf32, #tpu.memory_space<smem>>
      %427 = vector.broadcast %426 : f32 to vector<16x128xf32>
      %428 = arith.mulf %411, %427 : vector<16x128xf32>
      %429 = arith.addf %397, %428 : vector<16x128xf32>
      %c24_i32_303 = arith.constant 24 : i32
      %430 = arith.addi %c24_i32_303, %arg14 : i32
      %c9_i32_304 = arith.constant 9 : i32
      %431 = arith.muli %430, %c9_i32_304 : i32
      %c3_i32_305 = arith.constant 3 : i32
      %432 = arith.addi %431, %c3_i32_305 : i32
      %c0_i32_306 = arith.constant 0 : i32
      %433 = arith.addi %432, %c0_i32_306 : i32
      %434 = arith.index_cast %433 : i32 to index
      %435 = memref.load %arg10[%434] : memref<324xf32, #tpu.memory_space<smem>>
      %436 = vector.broadcast %435 : f32 to vector<16x128xf32>
      %437 = arith.mulf %411, %436 : vector<16x128xf32>
      %438 = arith.addf %406, %437 : vector<16x128xf32>
      %439 = vector.extract_strided_slice %409 {offsets = [0, 0], sizes = [16, 128], strides = [1, 1]} : vector<16x256xf32> to vector<16x128xf32>
      %c0_i32_307 = arith.constant 0 : i32
      %440 = arith.addi %c0_i32_307, %arg14 : i32
      %c9_i32_308 = arith.constant 9 : i32
      %441 = arith.muli %440, %c9_i32_308 : i32
      %c3_i32_309 = arith.constant 3 : i32
      %442 = arith.addi %441, %c3_i32_309 : i32
      %c1_i32_310 = arith.constant 1 : i32
      %443 = arith.addi %442, %c1_i32_310 : i32
      %444 = arith.index_cast %443 : i32 to index
      %445 = memref.load %arg10[%444] : memref<324xf32, #tpu.memory_space<smem>>
      %446 = vector.broadcast %445 : f32 to vector<16x128xf32>
      %447 = arith.mulf %439, %446 : vector<16x128xf32>
      %448 = arith.addf %420, %447 : vector<16x128xf32>
      %c12_i32_311 = arith.constant 12 : i32
      %449 = arith.addi %c12_i32_311, %arg14 : i32
      %c9_i32_312 = arith.constant 9 : i32
      %450 = arith.muli %449, %c9_i32_312 : i32
      %c3_i32_313 = arith.constant 3 : i32
      %451 = arith.addi %450, %c3_i32_313 : i32
      %c1_i32_314 = arith.constant 1 : i32
      %452 = arith.addi %451, %c1_i32_314 : i32
      %453 = arith.index_cast %452 : i32 to index
      %454 = memref.load %arg10[%453] : memref<324xf32, #tpu.memory_space<smem>>
      %455 = vector.broadcast %454 : f32 to vector<16x128xf32>
      %456 = arith.mulf %439, %455 : vector<16x128xf32>
      %457 = arith.addf %429, %456 : vector<16x128xf32>
      %c24_i32_315 = arith.constant 24 : i32
      %458 = arith.addi %c24_i32_315, %arg14 : i32
      %c9_i32_316 = arith.constant 9 : i32
      %459 = arith.muli %458, %c9_i32_316 : i32
      %c3_i32_317 = arith.constant 3 : i32
      %460 = arith.addi %459, %c3_i32_317 : i32
      %c1_i32_318 = arith.constant 1 : i32
      %461 = arith.addi %460, %c1_i32_318 : i32
      %462 = arith.index_cast %461 : i32 to index
      %463 = memref.load %arg10[%462] : memref<324xf32, #tpu.memory_space<smem>>
      %464 = vector.broadcast %463 : f32 to vector<16x128xf32>
      %465 = arith.mulf %439, %464 : vector<16x128xf32>
      %466 = arith.addf %438, %465 : vector<16x128xf32>
      %c255_i32_319 = arith.constant 255 : i32
      %467 = tpu.dynamic_rotate %409 by %c255_i32_319 dim 1 : vector<16x256xf32>, i32 -> vector<16x256xf32>
      %468 = vector.extract_strided_slice %467 {offsets = [0, 0], sizes = [16, 128], strides = [1, 1]} : vector<16x256xf32> to vector<16x128xf32>
      %c0_i32_320 = arith.constant 0 : i32
      %469 = arith.addi %c0_i32_320, %arg14 : i32
      %c9_i32_321 = arith.constant 9 : i32
      %470 = arith.muli %469, %c9_i32_321 : i32
      %c3_i32_322 = arith.constant 3 : i32
      %471 = arith.addi %470, %c3_i32_322 : i32
      %c2_i32_323 = arith.constant 2 : i32
      %472 = arith.addi %471, %c2_i32_323 : i32
      %473 = arith.index_cast %472 : i32 to index
      %474 = memref.load %arg10[%473] : memref<324xf32, #tpu.memory_space<smem>>
      %475 = vector.broadcast %474 : f32 to vector<16x128xf32>
      %476 = arith.mulf %468, %475 : vector<16x128xf32>
      %477 = arith.addf %448, %476 : vector<16x128xf32>
      %c12_i32_324 = arith.constant 12 : i32
      %478 = arith.addi %c12_i32_324, %arg14 : i32
      %c9_i32_325 = arith.constant 9 : i32
      %479 = arith.muli %478, %c9_i32_325 : i32
      %c3_i32_326 = arith.constant 3 : i32
      %480 = arith.addi %479, %c3_i32_326 : i32
      %c2_i32_327 = arith.constant 2 : i32
      %481 = arith.addi %480, %c2_i32_327 : i32
      %482 = arith.index_cast %481 : i32 to index
      %483 = memref.load %arg10[%482] : memref<324xf32, #tpu.memory_space<smem>>
      %484 = vector.broadcast %483 : f32 to vector<16x128xf32>
      %485 = arith.mulf %468, %484 : vector<16x128xf32>
      %486 = arith.addf %457, %485 : vector<16x128xf32>
      %c24_i32_328 = arith.constant 24 : i32
      %487 = arith.addi %c24_i32_328, %arg14 : i32
      %c9_i32_329 = arith.constant 9 : i32
      %488 = arith.muli %487, %c9_i32_329 : i32
      %c3_i32_330 = arith.constant 3 : i32
      %489 = arith.addi %488, %c3_i32_330 : i32
      %c2_i32_331 = arith.constant 2 : i32
      %490 = arith.addi %489, %c2_i32_331 : i32
      %491 = arith.index_cast %490 : i32 to index
      %492 = memref.load %arg10[%491] : memref<324xf32, #tpu.memory_space<smem>>
      %493 = vector.broadcast %492 : f32 to vector<16x128xf32>
      %494 = arith.mulf %468, %493 : vector<16x128xf32>
      %495 = arith.addf %466, %494 : vector<16x128xf32>
      %c0_i32_332 = arith.constant 0 : i32
      %c0_i32_333 = arith.constant 0 : i32
      %496 = tpu.memref_slice %arg13[%317, %c0_i32_332, %c0_i32_333] : memref<12x32x256xf32, #tpu.memory_space<vmem>> -> memref<1x32x256xf32, #tpu.memory_space<vmem>>
      %497 = tpu.memref_squeeze %496 : memref<1x32x256xf32, #tpu.memory_space<vmem>> -> memref<32x256xf32, #tpu.memory_space<vmem>>
      %c9_334 = arith.constant 9 : index
      %c0_335 = arith.constant 0 : index
      %498 = vector.load %497[%c9_334, %c0_335] : memref<32x256xf32, #tpu.memory_space<vmem>>, vector<16x256xf32>
      %c1_i32_336 = arith.constant 1 : i32
      %499 = tpu.dynamic_rotate %498 by %c1_i32_336 dim 1 : vector<16x256xf32>, i32 -> vector<16x256xf32>
      %500 = vector.extract_strided_slice %499 {offsets = [0, 0], sizes = [16, 128], strides = [1, 1]} : vector<16x256xf32> to vector<16x128xf32>
      %c0_i32_337 = arith.constant 0 : i32
      %501 = arith.addi %c0_i32_337, %arg14 : i32
      %c9_i32_338 = arith.constant 9 : i32
      %502 = arith.muli %501, %c9_i32_338 : i32
      %c6_i32_339 = arith.constant 6 : i32
      %503 = arith.addi %502, %c6_i32_339 : i32
      %c0_i32_340 = arith.constant 0 : i32
      %504 = arith.addi %503, %c0_i32_340 : i32
      %505 = arith.index_cast %504 : i32 to index
      %506 = memref.load %arg10[%505] : memref<324xf32, #tpu.memory_space<smem>>
      %507 = vector.broadcast %506 : f32 to vector<16x128xf32>
      %508 = arith.mulf %500, %507 : vector<16x128xf32>
      %509 = arith.addf %477, %508 : vector<16x128xf32>
      %c12_i32_341 = arith.constant 12 : i32
      %510 = arith.addi %c12_i32_341, %arg14 : i32
      %c9_i32_342 = arith.constant 9 : i32
      %511 = arith.muli %510, %c9_i32_342 : i32
      %c6_i32_343 = arith.constant 6 : i32
      %512 = arith.addi %511, %c6_i32_343 : i32
      %c0_i32_344 = arith.constant 0 : i32
      %513 = arith.addi %512, %c0_i32_344 : i32
      %514 = arith.index_cast %513 : i32 to index
      %515 = memref.load %arg10[%514] : memref<324xf32, #tpu.memory_space<smem>>
      %516 = vector.broadcast %515 : f32 to vector<16x128xf32>
      %517 = arith.mulf %500, %516 : vector<16x128xf32>
      %518 = arith.addf %486, %517 : vector<16x128xf32>
      %c24_i32_345 = arith.constant 24 : i32
      %519 = arith.addi %c24_i32_345, %arg14 : i32
      %c9_i32_346 = arith.constant 9 : i32
      %520 = arith.muli %519, %c9_i32_346 : i32
      %c6_i32_347 = arith.constant 6 : i32
      %521 = arith.addi %520, %c6_i32_347 : i32
      %c0_i32_348 = arith.constant 0 : i32
      %522 = arith.addi %521, %c0_i32_348 : i32
      %523 = arith.index_cast %522 : i32 to index
      %524 = memref.load %arg10[%523] : memref<324xf32, #tpu.memory_space<smem>>
      %525 = vector.broadcast %524 : f32 to vector<16x128xf32>
      %526 = arith.mulf %500, %525 : vector<16x128xf32>
      %527 = arith.addf %495, %526 : vector<16x128xf32>
      %528 = vector.extract_strided_slice %498 {offsets = [0, 0], sizes = [16, 128], strides = [1, 1]} : vector<16x256xf32> to vector<16x128xf32>
      %c0_i32_349 = arith.constant 0 : i32
      %529 = arith.addi %c0_i32_349, %arg14 : i32
      %c9_i32_350 = arith.constant 9 : i32
      %530 = arith.muli %529, %c9_i32_350 : i32
      %c6_i32_351 = arith.constant 6 : i32
      %531 = arith.addi %530, %c6_i32_351 : i32
      %c1_i32_352 = arith.constant 1 : i32
      %532 = arith.addi %531, %c1_i32_352 : i32
      %533 = arith.index_cast %532 : i32 to index
      %534 = memref.load %arg10[%533] : memref<324xf32, #tpu.memory_space<smem>>
      %535 = vector.broadcast %534 : f32 to vector<16x128xf32>
      %536 = arith.mulf %528, %535 : vector<16x128xf32>
      %537 = arith.addf %509, %536 : vector<16x128xf32>
      %c12_i32_353 = arith.constant 12 : i32
      %538 = arith.addi %c12_i32_353, %arg14 : i32
      %c9_i32_354 = arith.constant 9 : i32
      %539 = arith.muli %538, %c9_i32_354 : i32
      %c6_i32_355 = arith.constant 6 : i32
      %540 = arith.addi %539, %c6_i32_355 : i32
      %c1_i32_356 = arith.constant 1 : i32
      %541 = arith.addi %540, %c1_i32_356 : i32
      %542 = arith.index_cast %541 : i32 to index
      %543 = memref.load %arg10[%542] : memref<324xf32, #tpu.memory_space<smem>>
      %544 = vector.broadcast %543 : f32 to vector<16x128xf32>
      %545 = arith.mulf %528, %544 : vector<16x128xf32>
      %546 = arith.addf %518, %545 : vector<16x128xf32>
      %c24_i32_357 = arith.constant 24 : i32
      %547 = arith.addi %c24_i32_357, %arg14 : i32
      %c9_i32_358 = arith.constant 9 : i32
      %548 = arith.muli %547, %c9_i32_358 : i32
      %c6_i32_359 = arith.constant 6 : i32
      %549 = arith.addi %548, %c6_i32_359 : i32
      %c1_i32_360 = arith.constant 1 : i32
      %550 = arith.addi %549, %c1_i32_360 : i32
      %551 = arith.index_cast %550 : i32 to index
      %552 = memref.load %arg10[%551] : memref<324xf32, #tpu.memory_space<smem>>
      %553 = vector.broadcast %552 : f32 to vector<16x128xf32>
      %554 = arith.mulf %528, %553 : vector<16x128xf32>
      %555 = arith.addf %527, %554 : vector<16x128xf32>
      %c255_i32_361 = arith.constant 255 : i32
      %556 = tpu.dynamic_rotate %498 by %c255_i32_361 dim 1 : vector<16x256xf32>, i32 -> vector<16x256xf32>
      %557 = vector.extract_strided_slice %556 {offsets = [0, 0], sizes = [16, 128], strides = [1, 1]} : vector<16x256xf32> to vector<16x128xf32>
      %c0_i32_362 = arith.constant 0 : i32
      %558 = arith.addi %c0_i32_362, %arg14 : i32
      %c9_i32_363 = arith.constant 9 : i32
      %559 = arith.muli %558, %c9_i32_363 : i32
      %c6_i32_364 = arith.constant 6 : i32
      %560 = arith.addi %559, %c6_i32_364 : i32
      %c2_i32_365 = arith.constant 2 : i32
      %561 = arith.addi %560, %c2_i32_365 : i32
      %562 = arith.index_cast %561 : i32 to index
      %563 = memref.load %arg10[%562] : memref<324xf32, #tpu.memory_space<smem>>
      %564 = vector.broadcast %563 : f32 to vector<16x128xf32>
      %565 = arith.mulf %557, %564 : vector<16x128xf32>
      %566 = arith.addf %537, %565 : vector<16x128xf32>
      %c12_i32_366 = arith.constant 12 : i32
      %567 = arith.addi %c12_i32_366, %arg14 : i32
      %c9_i32_367 = arith.constant 9 : i32
      %568 = arith.muli %567, %c9_i32_367 : i32
      %c6_i32_368 = arith.constant 6 : i32
      %569 = arith.addi %568, %c6_i32_368 : i32
      %c2_i32_369 = arith.constant 2 : i32
      %570 = arith.addi %569, %c2_i32_369 : i32
      %571 = arith.index_cast %570 : i32 to index
      %572 = memref.load %arg10[%571] : memref<324xf32, #tpu.memory_space<smem>>
      %573 = vector.broadcast %572 : f32 to vector<16x128xf32>
      %574 = arith.mulf %557, %573 : vector<16x128xf32>
      %575 = arith.addf %546, %574 : vector<16x128xf32>
      %c24_i32_370 = arith.constant 24 : i32
      %576 = arith.addi %c24_i32_370, %arg14 : i32
      %c9_i32_371 = arith.constant 9 : i32
      %577 = arith.muli %576, %c9_i32_371 : i32
      %c6_i32_372 = arith.constant 6 : i32
      %578 = arith.addi %577, %c6_i32_372 : i32
      %c2_i32_373 = arith.constant 2 : i32
      %579 = arith.addi %578, %c2_i32_373 : i32
      %580 = arith.index_cast %579 : i32 to index
      %581 = memref.load %arg10[%580] : memref<324xf32, #tpu.memory_space<smem>>
      %582 = vector.broadcast %581 : f32 to vector<16x128xf32>
      %583 = arith.mulf %557, %582 : vector<16x128xf32>
      %584 = arith.addf %555, %583 : vector<16x128xf32>
      scf.yield %566, %575, %584 : vector<16x128xf32>, vector<16x128xf32>, vector<16x128xf32>
    }
    %c12_i32_214 = arith.constant 12 : i32
    %c0_215 = arith.constant 0 : index
    %269 = memref.load %arg11[%c0_215] : memref<3xf32, #tpu.memory_space<smem>>
    %270 = vector.broadcast %269 : f32 to vector<16x128xf32>
    %271 = arith.addf %268#0, %270 : vector<16x128xf32>
    %cst_216 = arith.constant 0.000000e+00 : f32
    %272 = vector.broadcast %cst_216 : f32 to vector<16x128xf32>
    %273 = arith.maximumf %271, %272 : vector<16x128xf32>
    %c1_217 = arith.constant 1 : index
    %274 = memref.load %arg11[%c1_217] : memref<3xf32, #tpu.memory_space<smem>>
    %275 = vector.broadcast %274 : f32 to vector<16x128xf32>
    %276 = arith.addf %268#1, %275 : vector<16x128xf32>
    %cst_218 = arith.constant 0.000000e+00 : f32
    %277 = vector.broadcast %cst_218 : f32 to vector<16x128xf32>
    %278 = arith.maximumf %276, %277 : vector<16x128xf32>
    %c2_219 = arith.constant 2 : index
    %279 = memref.load %arg11[%c2_219] : memref<3xf32, #tpu.memory_space<smem>>
    %280 = vector.broadcast %279 : f32 to vector<16x128xf32>
    %281 = arith.addf %268#2, %280 : vector<16x128xf32>
    %cst_220 = arith.constant 0.000000e+00 : f32
    %282 = vector.broadcast %cst_220 : f32 to vector<16x128xf32>
    %283 = arith.maximumf %281, %282 : vector<16x128xf32>
    %c0_221 = arith.constant 0 : index
    %c0_222 = arith.constant 0 : index
    %c0_223 = arith.constant 0 : index
    %c0_224 = arith.constant 0 : index
    %284 = vector.load %arg1[%c0_221, %c0_222, %c0_223, %c0_224] : memref<1x3x16x128xf32, #tpu.memory_space<vmem>>, vector<1x1x16x128xf32>
    %285 = vector.shape_cast %284 : vector<1x1x16x128xf32> to vector<16x128xf32>
    %286 = arith.mulf %273, %285 : vector<16x128xf32>
    %287 = arith.subf %286, %273 : vector<16x128xf32>
    %cst_225 = arith.constant 1.000000e+00 : f32
    %288 = vector.broadcast %cst_225 : f32 to vector<16x128xf32>
    %289 = arith.addf %287, %288 : vector<16x128xf32>
    %cst_226 = arith.constant 0.000000e+00 : f32
    %290 = vector.broadcast %cst_226 : f32 to vector<16x128xf32>
    %291 = arith.maximumf %289, %290 : vector<16x128xf32>
    %c0_227 = arith.constant 0 : index
    %c0_228 = arith.constant 0 : index
    %c0_229 = arith.constant 0 : index
    %c0_230 = arith.constant 0 : index
    %292 = vector.load %arg12[%c0_227, %c0_228, %c0_229, %c0_230] : memref<1x3x16x128xf32, #tpu.memory_space<vmem>>, vector<1x1x16x128xf32>
    %293 = vector.shape_cast %292 : vector<1x1x16x128xf32> to vector<16x128xf32>
    %294 = vector.shape_cast %291 : vector<16x128xf32> to vector<1x1x16x128xf32>
    tpu.vector_store %arg12[%c0_227, %c0_228, %c0_229, %c0_230], %294 {strides = array<i32>} : memref<1x3x16x128xf32, #tpu.memory_space<vmem>>, vector<1x1x16x128xf32>,
    %c0_231 = arith.constant 0 : index
    %c1_232 = arith.constant 1 : index
    %c0_233 = arith.constant 0 : index
    %c0_234 = arith.constant 0 : index
    %295 = vector.load %arg1[%c0_231, %c1_232, %c0_233, %c0_234] : memref<1x3x16x128xf32, #tpu.memory_space<vmem>>, vector<1x1x16x128xf32>
    %296 = vector.shape_cast %295 : vector<1x1x16x128xf32> to vector<16x128xf32>
    %297 = arith.mulf %278, %296 : vector<16x128xf32>
    %298 = arith.subf %297, %278 : vector<16x128xf32>
    %cst_235 = arith.constant 1.000000e+00 : f32
    %299 = vector.broadcast %cst_235 : f32 to vector<16x128xf32>
    %300 = arith.addf %298, %299 : vector<16x128xf32>
    %cst_236 = arith.constant 0.000000e+00 : f32
    %301 = vector.broadcast %cst_236 : f32 to vector<16x128xf32>
    %302 = arith.maximumf %300, %301 : vector<16x128xf32>
    %c0_237 = arith.constant 0 : index
    %c1_238 = arith.constant 1 : index
    %c0_239 = arith.constant 0 : index
    %c0_240 = arith.constant 0 : index
    %303 = vector.load %arg12[%c0_237, %c1_238, %c0_239, %c0_240] : memref<1x3x16x128xf32, #tpu.memory_space<vmem>>, vector<1x1x16x128xf32>
    %304 = vector.shape_cast %303 : vector<1x1x16x128xf32> to vector<16x128xf32>
    %305 = vector.shape_cast %302 : vector<16x128xf32> to vector<1x1x16x128xf32>
    tpu.vector_store %arg12[%c0_237, %c1_238, %c0_239, %c0_240], %305 {strides = array<i32>} : memref<1x3x16x128xf32, #tpu.memory_space<vmem>>, vector<1x1x16x128xf32>,
    %c0_241 = arith.constant 0 : index
    %c2_242 = arith.constant 2 : index
    %c0_243 = arith.constant 0 : index
    %c0_244 = arith.constant 0 : index
    %306 = vector.load %arg1[%c0_241, %c2_242, %c0_243, %c0_244] : memref<1x3x16x128xf32, #tpu.memory_space<vmem>>, vector<1x1x16x128xf32>
    %307 = vector.shape_cast %306 : vector<1x1x16x128xf32> to vector<16x128xf32>
    %308 = arith.mulf %283, %307 : vector<16x128xf32>
    %309 = arith.subf %308, %283 : vector<16x128xf32>
    %cst_245 = arith.constant 1.000000e+00 : f32
    %310 = vector.broadcast %cst_245 : f32 to vector<16x128xf32>
    %311 = arith.addf %309, %310 : vector<16x128xf32>
    %cst_246 = arith.constant 0.000000e+00 : f32
    %312 = vector.broadcast %cst_246 : f32 to vector<16x128xf32>
    %313 = arith.maximumf %311, %312 : vector<16x128xf32>
    %c0_247 = arith.constant 0 : index
    %c2_248 = arith.constant 2 : index
    %c0_249 = arith.constant 0 : index
    %c0_250 = arith.constant 0 : index
    %314 = vector.load %arg12[%c0_247, %c2_248, %c0_249, %c0_250] : memref<1x3x16x128xf32, #tpu.memory_space<vmem>>, vector<1x1x16x128xf32>
    %315 = vector.shape_cast %314 : vector<1x1x16x128xf32> to vector<16x128xf32>
    %316 = vector.shape_cast %313 : vector<16x128xf32> to vector<1x1x16x128xf32>
    tpu.vector_store %arg12[%c0_247, %c2_248, %c0_249, %c0_250], %316 {strides = array<i32>} : memref<1x3x16x128xf32, #tpu.memory_space<vmem>>, vector<1x1x16x128xf32>,
    return
  }
  func.func @transform_0(%arg0: i32) -> (i32, i32, i32, i32) {
    %c0_i32 = arith.constant 0 : i32
    %c0_i32_0 = arith.constant 0 : i32
    %c0_i32_1 = arith.constant 0 : i32
    %c0_i32_2 = arith.constant 0 : i32
    return %arg0, %c0_i32, %c0_i32_0, %c0_i32_1 : i32, i32, i32, i32
  }
  func.func @transform_1(%arg0: i32) -> i32 {
    %c0_i32 = arith.constant 0 : i32
    %c0_i32_0 = arith.constant 0 : i32
    return %c0_i32 : i32
  }
  func.func @transform_2(%arg0: i32) -> i32 {
    %c0_i32 = arith.constant 0 : i32
    %c0_i32_0 = arith.constant 0 : i32
    return %c0_i32 : i32
  }
  func.func @transform_3(%arg0: i32) -> i32 {
    %c0_i32 = arith.constant 0 : i32
    %c0_i32_0 = arith.constant 0 : i32
    return %c0_i32 : i32
  }
  func.func @transform_4(%arg0: i32) -> i32 {
    %c0_i32 = arith.constant 0 : i32
    %c0_i32_0 = arith.constant 0 : i32
    return %c0_i32 : i32
  }
  func.func @transform_5(%arg0: i32) -> i32 {
    %c0_i32 = arith.constant 0 : i32
    %c0_i32_0 = arith.constant 0 : i32
    return %c0_i32 : i32
  }
  func.func @transform_6(%arg0: i32) -> i32 {
    %c0_i32 = arith.constant 0 : i32
    %c0_i32_0 = arith.constant 0 : i32
    return %c0_i32 : i32
  }
  func.func @transform_7(%arg0: i32) -> i32 {
    %c0_i32 = arith.constant 0 : i32
    %c0_i32_0 = arith.constant 0 : i32
    return %c0_i32 : i32
  }
  func.func @transform_8(%arg0: i32) -> i32 {
    %c0_i32 = arith.constant 0 : i32
    %c0_i32_0 = arith.constant 0 : i32
    return %c0_i32 : i32
  }
  func.func @transform_9(%arg0: i32) -> i32 {
    %c0_i32 = arith.constant 0 : i32
    %c0_i32_0 = arith.constant 0 : i32
    return %c0_i32 : i32
  }
  func.func @transform_10(%arg0: i32) -> i32 {
    %c0_i32 = arith.constant 0 : i32
    %c0_i32_0 = arith.constant 0 : i32
    return %c0_i32 : i32
  }
  func.func @transform_11(%arg0: i32) -> (i32, i32, i32, i32) {
    %c0_i32 = arith.constant 0 : i32
    %c0_i32_0 = arith.constant 0 : i32
    %c0_i32_1 = arith.constant 0 : i32
    %c0_i32_2 = arith.constant 0 : i32
    return %arg0, %c0_i32, %c0_i32_0, %c0_i32_1 : i32, i32, i32, i32
  }
}

</mosaic_0001>

<llo_original>
// kernel: tpu_custom_call.1
$region0: #{tpu_custom_call.1}
  #allocation0 [shape = 'u32[]', space=smem, size = 0x4, offset = 0x4, fixed_abs, tag = 'smem constant byte address 0x4 - core index']
  #allocation1 [shape = 'u32[144,128]{1,0:T(1,128)}', space=vmem, size = 0x12000, scoped, tag = 'internal scratch']
  #allocation2 [shape = 'f32[12,32,256]{2,1,0:T(8,128)}', space=vmem, size = 0x60000, scoped, tag = 'scratch operand']
  %s0 = inlined_call_operand.hbm [shape: f32[2,3,16,128], index: 0, kind: input, shape index: {}]
  %s1 = inlined_call_operand.hbm [shape: f32[9], index: 1, kind: input, shape index: {}]
  %s2 = inlined_call_operand.hbm [shape: f32[3], index: 2, kind: input, shape index: {}]
  %s3 = inlined_call_operand.hbm [shape: f32[81], index: 3, kind: input, shape index: {}]
  %s4 = inlined_call_operand.hbm [shape: f32[3], index: 4, kind: input, shape index: {}]
  %s5 = inlined_call_operand.vmem [shape: f32[450], index: 5, kind: input, shape index: {}]
  %s6 = inlined_call_operand.hbm [shape: f32[3], index: 6, kind: input, shape index: {}]
  %s7 = inlined_call_operand.vmem [shape: f32[882], index: 7, kind: input, shape index: {}]
  %s8 = inlined_call_operand.hbm [shape: f32[3], index: 8, kind: input, shape index: {}]
  %s9 = inlined_call_operand.vmem [shape: f32[324], index: 9, kind: input, shape index: {}]
  %s10 = inlined_call_operand.vmem [shape: f32[3], index: 10, kind: input, shape index: {}]
  %s11 = inlined_call_operand.hbm [shape: f32[2,3,16,128], index: 11, kind: output, shape index: {}]
  %s12 = sld [smem:[#allocation0]]
  $region149: #{tpu_custom_call.1} parent=0
    _
  %s14 = ssub.s32 1, %s12
  %s15 = scalar_select 0, %s14, %s12
  $region1: #{tpu_custom_call.1} parent=0
    #allocation3 [shape = 'u8[49152]{0}', space=vmem, size = 0xc000, scoped, tag = 'input window, operand 0']
    #allocation4 [shape = 's32[2]{0}', space=sflag, size = 0x8, scoped, tag = 'scoped memory for tpu_custom_call.1']
    #allocation5 [shape = 's32[2]{0}', space=sflag, size = 0x8, scoped, tag = 'scoped memory for tpu_custom_call.1']
    #allocation6 [shape = 's32[2]{0}', space=sflag, size = 0x8, scoped, tag = 'scoped memory for tpu_custom_call.1']
    #allocation7 [shape = 's32[2]{0}', space=sflag, size = 0x8, scoped, tag = 'scoped memory for tpu_custom_call.1']
    #allocation8 [shape = 'u8[512]{0}', space=smem, size = 0x200, scoped, tag = 'input window, operand 1, single buffered']
    #allocation9 [shape = 'u8[512]{0}', space=smem, size = 0x200, scoped, tag = 'input window, operand 2, single buffered']
    #allocation10 [shape = 's32[1]{0}', space=sflag, size = 0x4, scoped, tag = 'scoped memory for tpu_custom_call.1']
    #allocation11 [shape = 'u8[512]{0}', space=smem, size = 0x200, scoped, tag = 'input window, operand 3, single buffered']
    #allocation12 [shape = 'u8[512]{0}', space=smem, size = 0x200, scoped, tag = 'input window, operand 4, single buffered']
    #allocation13 [shape = 's32[1]{0}', space=sflag, size = 0x4, scoped, tag = 'scoped memory for tpu_custom_call.1']
    #allocation14 [shape = 'u8[2048]{0}', space=smem, size = 0x800, scoped, tag = 'input window, operand 5, single buffered']
    #allocation15 [shape = 'u8[512]{0}', space=smem, size = 0x200, scoped, tag = 'input window, operand 6, single buffered']
    #allocation16 [shape = 'u8[3584]{0}', space=smem, size = 0xe00, scoped, tag = 'input window, operand 7, single buffered']
    #allocation17 [shape = 's32[1]{0}', space=sflag, size = 0x4, scoped, tag = 'scoped memory for tpu_custom_call.1']
    #allocation18 [shape = 'u8[512]{0}', space=smem, size = 0x200, scoped, tag = 'input window, operand 8, single buffered']
    #allocation19 [shape = 's32[1]{0}', space=sflag, size = 0x4, scoped, tag = 'scoped memory for tpu_custom_call.1']
    #allocation20 [shape = 'u8[1536]{0}', space=smem, size = 0x600, scoped, tag = 'input window, operand 9, single buffered']
    #allocation21 [shape = 'u8[512]{0}', space=smem, size = 0x200, scoped, tag = 'input window, operand 10, single buffered']
    #allocation22 [shape = 's32[1]{0}', space=sflag, size = 0x4, scoped, tag = 'scoped memory for tpu_custom_call.1']
    #allocation23 [shape = 'u8[49152]{0}', space=vmem, size = 0xc000, scoped, tag = 'output window, operand 0']
    %16 = vsyncpa [#allocation4], 0
    %s17 = scalar_lea.sflag [#allocation4], 1
    %18 = vsyncpa %s17, 0
    %19 = vsyncpa [#allocation6], 0
    %20 = vsyncpa [#allocation10], 0
    %21 = vsyncpa [#allocation13], 0
    %22 = vsyncpa [#allocation7], 0
    %23 = vsyncpa [#allocation17], 0
    %24 = vsyncpa [#allocation19], 0
    %25 = vsyncpa [#allocation22], 0
    %26 = vsyncpa [#allocation5], 0
    %s27 = scalar_lea.sflag [#allocation5], 1
    %28 = vsyncpa %s27, 0
    loop: start=0, step=1, limit=4
    $region2: #{tpu_custom_call.1} parent=1 // loop_pre_header
      _
    $region3: #{tpu_custom_call.1} parent=1 // loop_header
      %s30 = sphi 0, %s34
      %p31 = scmp.ge.s32.totalorder %s30, 4
      %s40 = sphi 0, %s42
      %s43 = sphi 0, %s40
      %s44 = sphi 0, %s43
      %s60 = sphi 0, %s44
      %s64 = sphi 0, %s64
      %s66 = sphi 0, %s64
      %s67 = sphi 0, %s66
      %s81 = sphi 0, %s67
      %s85 = sphi 0, %s85
      %s87 = sphi 0, %s85
      %s88 = sphi 0, %s87
      %s102 = sphi 0, %s88
      %s106 = sphi 0, %s106
      %s108 = sphi 0, %s106
      %s109 = sphi 0, %s108
      %s123 = sphi 0, %s109
      %s127 = sphi 0, %s127
      %s129 = sphi 0, %s127
      %s130 = sphi 0, %s129
      %s144 = sphi 0, %s130
      %s148 = sphi 0, %s148
      %s150 = sphi 0, %s148
      %s151 = sphi 0, %s150
      %s165 = sphi 0, %s151
      %s169 = sphi 0, %s169
      %s171 = sphi 0, %s169
      %s172 = sphi 0, %s171
      %s186 = sphi 0, %s172
      %s190 = sphi 0, %s190
      %s192 = sphi 0, %s190
      %s193 = sphi 0, %s192
      %s207 = sphi 0, %s193
      %s211 = sphi 0, %s211
      %s213 = sphi 0, %s211
      %s214 = sphi 0, %s213
      %s228 = sphi 0, %s214
      %s232 = sphi 0, %s232
      %s234 = sphi 0, %s232
      %s235 = sphi 0, %s234
      %s249 = sphi 0, %s235
      %s253 = sphi 0, %s253
      %s255 = sphi 0, %s253
      %s256 = sphi 0, %s255
      %s270 = sphi 0, %s256
      %s276 = sphi 0, %s278
      %s279 = sphi 0, %s276
      %s280 = sphi 0, %s279
      %s296 = sphi 0, %s280
    $region4: #{tpu_custom_call.1} parent=1 // loop_header_branch
      %33 = sbr.rel (%p31) target = $region8
    $region5: #{tpu_custom_call.1} parent=1 // loop_body
      %s35 = ssub.s32 %s30, 1
      %s36 = ssub.s32 %s30, 2
      %s37 = sadd.s32 %s30, 1
      %s38 = ssub.s32 %s30, %s37
      %p39 = scmp.eq.s32.totalorder %s38, 0
      %s41 = sadd.s32 %s40, 1
      %s42 = scalar_select %p39, %s40, %s41
      %p45 = pneg %p39
      %p46 = scmp.eq.s32.totalorder %s30, 1
      %p47 = por %p45, %p46
      %p48 = scmp.ne.s32.totalorder %s40, %s43
      %p49 = scmp.eq.s32.totalorder %s30, 0
      %p50 = por %p48, %p49
      %p51 = scmp.ne.s32.totalorder %s40, %s43
      %p52 = scmp.eq.s32.totalorder %s35, 1
      %p53 = por %p51, %p52
      %p54 = scmp.ne.s32.totalorder %s43, %s44
      %p55 = scmp.eq.s32.totalorder %s35, 0
      %p56 = por %p54, %p55
      %p57 = scmp.ne.s32.totalorder %s43, %s44
      %p58 = scmp.eq.s32.totalorder %s36, 1
      %p59 = por %p57, %p58
      %p61 = scmp.ne.s32.totalorder %s44, %s60
      %p62 = scmp.eq.s32.totalorder %s36, 0
      %p63 = por %p61, %p62
      %s65 = sadd.s32 %s64, 1
      %p68 = scmp.eq.s32.totalorder %s30, 1
      %p69 = scmp.ne.s32.totalorder %s64, %s66
      %p70 = scmp.eq.s32.totalorder %s30, 0
      %p71 = por %p69, %p70
      %p72 = scmp.ne.s32.totalorder %s64, %s66
      %p73 = scmp.eq.s32.totalorder %s35, 1
      %p74 = por %p72, %p73
      %p75 = scmp.ne.s32.totalorder %s66, %s67
      %p76 = scmp.eq.s32.totalorder %s35, 0
      %p77 = por %p75, %p76
      %p78 = scmp.ne.s32.totalorder %s66, %s67
      %p79 = scmp.eq.s32.totalorder %s36, 1
      %p80 = por %p78, %p79
      %p82 = scmp.ne.s32.totalorder %s67, %s81
      %p83 = scmp.eq.s32.totalorder %s36, 0
      %p84 = por %p82, %p83
      %s86 = sadd.s32 %s85, 1
      %p89 = scmp.eq.s32.totalorder %s30, 1
      %p90 = scmp.ne.s32.totalorder %s85, %s87
      %p91 = scmp.eq.s32.totalorder %s30, 0
      %p92 = por %p90, %p91
      %p93 = scmp.ne.s32.totalorder %s85, %s87
      %p94 = scmp.eq.s32.totalorder %s35, 1
      %p95 = por %p93, %p94
      %p96 = scmp.ne.s32.totalorder %s87, %s88
      %p97 = scmp.eq.s32.totalorder %s35, 0
      %p98 = por %p96, %p97
      %p99 = scmp.ne.s32.totalorder %s87, %s88
      %p100 = scmp.eq.s32.totalorder %s36, 1
      %p101 = por %p99, %p100
      %p103 = scmp.ne.s32.totalorder %s88, %s102
      %p104 = scmp.eq.s32.totalorder %s36, 0
      %p105 = por %p103, %p104
      %s107 = sadd.s32 %s106, 1
      %p110 = scmp.eq.s32.totalorder %s30, 1
      %p111 = scmp.ne.s32.totalorder %s106, %s108
      %p112 = scmp.eq.s32.totalorder %s30, 0
      %p113 = por %p111, %p112
      %p114 = scmp.ne.s32.totalorder %s106, %s108
      %p115 = scmp.eq.s32.totalorder %s35, 1
      %p116 = por %p114, %p115
      %p117 = scmp.ne.s32.totalorder %s108, %s109
      %p118 = scmp.eq.s32.totalorder %s35, 0
      %p119 = por %p117, %p118
      %p120 = scmp.ne.s32.totalorder %s108, %s109
      %p121 = scmp.eq.s32.totalorder %s36, 1
      %p122 = por %p120, %p121
      %p124 = scmp.ne.s32.totalorder %s109, %s123
      %p125 = scmp.eq.s32.totalorder %s36, 0
      %p126 = por %p124, %p125
      %s128 = sadd.s32 %s127, 1
      %p131 = scmp.eq.s32.totalorder %s30, 1
      %p132 = scmp.ne.s32.totalorder %s127, %s129
      %p133 = scmp.eq.s32.totalorder %s30, 0
      %p134 = por %p132, %p133
      %p135 = scmp.ne.s32.totalorder %s127, %s129
      %p136 = scmp.eq.s32.totalorder %s35, 1
      %p137 = por %p135, %p136
      %p138 = scmp.ne.s32.totalorder %s129, %s130
      %p139 = scmp.eq.s32.totalorder %s35, 0
      %p140 = por %p138, %p139
      %p141 = scmp.ne.s32.totalorder %s129, %s130
      %p142 = scmp.eq.s32.totalorder %s36, 1
      %p143 = por %p141, %p142
      %p145 = scmp.ne.s32.totalorder %s130, %s144
      %p146 = scmp.eq.s32.totalorder %s36, 0
      %p147 = por %p145, %p146
      %s149 = sadd.s32 %s148, 1
      %p152 = scmp.eq.s32.totalorder %s30, 1
      %p153 = scmp.ne.s32.totalorder %s148, %s150
      %p154 = scmp.eq.s32.totalorder %s30, 0
      %p155 = por %p153, %p154
      %p156 = scmp.ne.s32.totalorder %s148, %s150
      %p157 = scmp.eq.s32.totalorder %s35, 1
      %p158 = por %p156, %p157
      %p159 = scmp.ne.s32.totalorder %s150, %s151
      %p160 = scmp.eq.s32.totalorder %s35, 0
      %p161 = por %p159, %p160
      %p162 = scmp.ne.s32.totalorder %s150, %s151
      %p163 = scmp.eq.s32.totalorder %s36, 1
      %p164 = por %p162, %p163
      %p166 = scmp.ne.s32.totalorder %s151, %s165
      %p167 = scmp.eq.s32.totalorder %s36, 0
      %p168 = por %p166, %p167
      %s170 = sadd.s32 %s169, 1
      %p173 = scmp.eq.s32.totalorder %s30, 1
      %p174 = scmp.ne.s32.totalorder %s169, %s171
      %p175 = scmp.eq.s32.totalorder %s30, 0
      %p176 = por %p174, %p175
      %p177 = scmp.ne.s32.totalorder %s169, %s171
      %p178 = scmp.eq.s32.totalorder %s35, 1
      %p179 = por %p177, %p178
      %p180 = scmp.ne.s32.totalorder %s171, %s172
      %p181 = scmp.eq.s32.totalorder %s35, 0
      %p182 = por %p180, %p181
      %p183 = scmp.ne.s32.totalorder %s171, %s172
      %p184 = scmp.eq.s32.totalorder %s36, 1
      %p185 = por %p183, %p184
      %p187 = scmp.ne.s32.totalorder %s172, %s186
      %p188 = scmp.eq.s32.totalorder %s36, 0
      %p189 = por %p187, %p188
      %s191 = sadd.s32 %s190, 1
      %p194 = scmp.eq.s32.totalorder %s30, 1
      %p195 = scmp.ne.s32.totalorder %s190, %s192
      %p196 = scmp.eq.s32.totalorder %s30, 0
      %p197 = por %p195, %p196
      %p198 = scmp.ne.s32.totalorder %s190, %s192
      %p199 = scmp.eq.s32.totalorder %s35, 1
      %p200 = por %p198, %p199
      %p201 = scmp.ne.s32.totalorder %s192, %s193
      %p202 = scmp.eq.s32.totalorder %s35, 0
      %p203 = por %p201, %p202
      %p204 = scmp.ne.s32.totalorder %s192, %s193
      %p205 = scmp.eq.s32.totalorder %s36, 1
      %p206 = por %p204, %p205
      %p208 = scmp.ne.s32.totalorder %s193, %s207
      %p209 = scmp.eq.s32.totalorder %s36, 0
      %p210 = por %p208, %p209
      %s212 = sadd.s32 %s211, 1
      %p215 = scmp.eq.s32.totalorder %s30, 1
      %p216 = scmp.ne.s32.totalorder %s211, %s213
      %p217 = scmp.eq.s32.totalorder %s30, 0
      %p218 = por %p216, %p217
      %p219 = scmp.ne.s32.totalorder %s211, %s213
      %p220 = scmp.eq.s32.totalorder %s35, 1
      %p221 = por %p219, %p220
      %p222 = scmp.ne.s32.totalorder %s213, %s214
      %p223 = scmp.eq.s32.totalorder %s35, 0
      %p224 = por %p222, %p223
      %p225 = scmp.ne.s32.totalorder %s213, %s214
      %p226 = scmp.eq.s32.totalorder %s36, 1
      %p227 = por %p225, %p226
      %p229 = scmp.ne.s32.totalorder %s214, %s228
      %p230 = scmp.eq.s32.totalorder %s36, 0
      %p231 = por %p229, %p230
      %s233 = sadd.s32 %s232, 1
      %p236 = scmp.eq.s32.totalorder %s30, 1
      %p237 = scmp.ne.s32.totalorder %s232, %s234
      %p238 = scmp.eq.s32.totalorder %s30, 0
      %p239 = por %p237, %p238
      %p240 = scmp.ne.s32.totalorder %s232, %s234
      %p241 = scmp.eq.s32.totalorder %s35, 1
      %p242 = por %p240, %p241
      %p243 = scmp.ne.s32.totalorder %s234, %s235
      %p244 = scmp.eq.s32.totalorder %s35, 0
      %p245 = por %p243, %p244
      %p246 = scmp.ne.s32.totalorder %s234, %s235
      %p247 = scmp.eq.s32.totalorder %s36, 1
      %p248 = por %p246, %p247
      %p250 = scmp.ne.s32.totalorder %s235, %s249
      %p251 = scmp.eq.s32.totalorder %s36, 0
      %p252 = por %p250, %p251
      %s254 = sadd.s32 %s253, 1
      %p257 = scmp.eq.s32.totalorder %s30, 1
      %p258 = scmp.ne.s32.totalorder %s253, %s255
      %p259 = scmp.eq.s32.totalorder %s30, 0
      %p260 = por %p258, %p259
      %p261 = scmp.ne.s32.totalorder %s253, %s255
      %p262 = scmp.eq.s32.totalorder %s35, 1
      %p263 = por %p261, %p262
      %p264 = scmp.ne.s32.totalorder %s255, %s256
      %p265 = scmp.eq.s32.totalorder %s35, 0
      %p266 = por %p264, %p265
      %p267 = scmp.ne.s32.totalorder %s255, %s256
      %p268 = scmp.eq.s32.totalorder %s36, 1
      %p269 = por %p267, %p268
      %p271 = scmp.ne.s32.totalorder %s256, %s270
      %p272 = scmp.eq.s32.totalorder %s36, 0
      %p273 = por %p271, %p272
      %s274 = ssub.s32 %s30, %s37
      %p275 = scmp.eq.s32.totalorder %s274, 0
      %s277 = sadd.s32 %s276, 1
      %s278 = scalar_select %p275, %s276, %s277
      %p281 = pneg %p275
      %p282 = scmp.eq.s32.totalorder %s30, 1
      %p283 = por %p281, %p282
      %p284 = scmp.ne.s32.totalorder %s276, %s279
      %p285 = scmp.eq.s32.totalorder %s30, 0
      %p286 = por %p284, %p285
      %p287 = scmp.ne.s32.totalorder %s276, %s279
      %p288 = scmp.eq.s32.totalorder %s35, 1
      %p289 = por %p287, %p288
      %p290 = scmp.ne.s32.totalorder %s279, %s280
      %p291 = scmp.eq.s32.totalorder %s35, 0
      %p292 = por %p290, %p291
      %p293 = scmp.ne.s32.totalorder %s279, %s280
      %p294 = scmp.eq.s32.totalorder %s36, 1
      %p295 = por %p293, %p294
      %p297 = scmp.ne.s32.totalorder %s280, %s296
      %p298 = scmp.eq.s32.totalorder %s36, 0
      %p299 = por %p297, %p298
      %p300 = scmp.le.s32.totalorder 1, %s30
      %p301 = scmp.lt.s32.totalorder %s30, 3
      %p302 = pnand %p300, %p301
      %p303 = pneg %p302
      // Predicated region
      $region9: #{tpu_custom_call.1} parent=5 // pred_check
        _
      $region10: #{tpu_custom_call.1} parent=5 // pred_check_branch
        %305 = sbr.rel (%p302) target = $region12
      $region11: #{tpu_custom_call.1} parent=5 // pred_region
        %s306 = ssub.s32 %s30, 1
        // Predicated region
        $region13: #{tpu_custom_call.1} parent=11 // pred_check
          %p307 = pneg %p77
        $region14: #{tpu_custom_call.1} parent=11 // pred_check_branch
          %309 = sbr.rel (%p307) target = $region16
        $region15: #{tpu_custom_call.1} parent=11 // pred_region
          %s311 = ssub.s32 16, 16
          %312 = vsyncadd [#allocation6], %s311
          %315 = dma.hbm_to_smem %s1, 16, [#allocation8], [#allocation6]
        $region16: #{tpu_custom_call.1} parent=11 // pred_fallthru
          _
        // Predicated region
        $region17: #{tpu_custom_call.1} parent=11 // pred_check
          %p316 = pneg %p98
        $region18: #{tpu_custom_call.1} parent=11 // pred_check_branch
          %318 = sbr.rel (%p316) target = $region20
        $region19: #{tpu_custom_call.1} parent=11 // pred_region
          %s320 = ssub.s32 16, 16
          %321 = vsyncadd [#allocation10], %s320
          %324 = dma.hbm_to_smem %s2, 16, [#allocation9], [#allocation10]
        $region20: #{tpu_custom_call.1} parent=11 // pred_fallthru
          _
        // Predicated region
        $region21: #{tpu_custom_call.1} parent=11 // pred_check
          %p325 = pneg %p119
        $region22: #{tpu_custom_call.1} parent=11 // pred_check_branch
          %327 = sbr.rel (%p325) target = $region24
        $region23: #{tpu_custom_call.1} parent=11 // pred_region
          %s329 = ssub.s32 16, 16
          %330 = vsyncadd [#allocation10], %s329
          %333 = dma.hbm_to_smem %s3, 16, [#allocation11], [#allocation10]
        $region24: #{tpu_custom_call.1} parent=11 // pred_fallthru
          _
        // Predicated region
        $region25: #{tpu_custom_call.1} parent=11 // pred_check
          %p334 = pneg %p140
        $region26: #{tpu_custom_call.1} parent=11 // pred_check_branch
          %336 = sbr.rel (%p334) target = $region28
        $region27: #{tpu_custom_call.1} parent=11 // pred_region
          %s338 = ssub.s32 16, 16
          %339 = vsyncadd [#allocation13], %s338
          %342 = dma.hbm_to_smem %s4, 16, [#allocation12], [#allocation13]
        $region28: #{tpu_custom_call.1} parent=11 // pred_fallthru
          _
        // Predicated region
        $region29: #{tpu_custom_call.1} parent=11 // pred_check
          %p343 = pneg %p161
        $region30: #{tpu_custom_call.1} parent=11 // pred_check_branch
          %345 = sbr.rel (%p343) target = $region32
        $region31: #{tpu_custom_call.1} parent=11 // pred_region
          %s347 = ssub.s32 64, 64
          %348 = vsyncadd [#allocation7], %s347
          %s350 = sshll.u32 %s5, 4
          %s351 = int_to_ptr.vmem [resolvable:$true] %s350
          %353 = dma.vmem_to_smem %s351, 64, [#allocation14], [#allocation7]
        $region32: #{tpu_custom_call.1} parent=11 // pred_fallthru
          _
        // Predicated region
        $region33: #{tpu_custom_call.1} parent=11 // pred_check
          %p354 = pneg %p182
        $region34: #{tpu_custom_call.1} parent=11 // pred_check_branch
          %356 = sbr.rel (%p354) target = $region36
        $region35: #{tpu_custom_call.1} parent=11 // pred_region
          %s358 = ssub.s32 16, 16
          %359 = vsyncadd [#allocation13], %s358
          %362 = dma.hbm_to_smem %s6, 16, [#allocation15], [#allocation13]
        $region36: #{tpu_custom_call.1} parent=11 // pred_fallthru
          _
        // Predicated region
        $region37: #{tpu_custom_call.1} parent=11 // pred_check
          %p363 = pneg %p203
        $region38: #{tpu_custom_call.1} parent=11 // pred_check_branch
          %365 = sbr.rel (%p363) target = $region40
        $region39: #{tpu_custom_call.1} parent=11 // pred_region
          %s367 = ssub.s32 112, 112
          %368 = vsyncadd [#allocation17], %s367
          %s370 = sshll.u32 %s7, 4
          %s371 = int_to_ptr.vmem [resolvable:$true] %s370
          %373 = dma.vmem_to_smem %s371, 112, [#allocation16], [#allocation17]
        $region40: #{tpu_custom_call.1} parent=11 // pred_fallthru
          _
        // Predicated region
        $region41: #{tpu_custom_call.1} parent=11 // pred_check
          %p374 = pneg %p224
        $region42: #{tpu_custom_call.1} parent=11 // pred_check_branch
          %376 = sbr.rel (%p374) target = $region44
        $region43: #{tpu_custom_call.1} parent=11 // pred_region
          %s378 = ssub.s32 16, 16
          %379 = vsyncadd [#allocation19], %s378
          %382 = dma.hbm_to_smem %s8, 16, [#allocation18], [#allocation19]
        $region44: #{tpu_custom_call.1} parent=11 // pred_fallthru
          _
        // Predicated region
        $region45: #{tpu_custom_call.1} parent=11 // pred_check
          %p383 = pneg %p245
        $region46: #{tpu_custom_call.1} parent=11 // pred_check_branch
          %385 = sbr.rel (%p383) target = $region48
        $region47: #{tpu_custom_call.1} parent=11 // pred_region
          %s387 = ssub.s32 48, 48
          %388 = vsyncadd [#allocation17], %s387
          %s390 = sshll.u32 %s9, 4
          %s391 = int_to_ptr.vmem [resolvable:$true] %s390
          %393 = dma.vmem_to_smem %s391, 48, [#allocation20], [#allocation17]
        $region48: #{tpu_custom_call.1} parent=11 // pred_fallthru
          _
        // Predicated region
        $region49: #{tpu_custom_call.1} parent=11 // pred_check
          %p394 = pneg %p266
        $region50: #{tpu_custom_call.1} parent=11 // pred_check_branch
          %396 = sbr.rel (%p394) target = $region52
        $region51: #{tpu_custom_call.1} parent=11 // pred_region
          %s398 = ssub.s32 16, 16
          %399 = vsyncadd [#allocation22], %s398
          %s401 = sshll.u32 %s10, 4
          %s402 = int_to_ptr.vmem [resolvable:$true] %s401
          %404 = dma.vmem_to_smem %s402, 16, [#allocation21], [#allocation22]
        $region52: #{tpu_custom_call.1} parent=11 // pred_fallthru
          _
      $region12: #{tpu_custom_call.1} parent=5 // pred_fallthru
        _
      %p405 = scmp.lt.s32.totalorder %s30, 2
      // Predicated region
      $region53: #{tpu_custom_call.1} parent=5 // pred_check
        %p406 = pneg %p405
      $region54: #{tpu_custom_call.1} parent=5 // pred_check_branch
        %408 = sbr.rel (%p406) target = $region56
      $region55: #{tpu_custom_call.1} parent=5 // pred_region
        // Predicated region
        $region57: #{tpu_custom_call.1} parent=55 // pred_check
          %p409 = pneg %p50
        $region58: #{tpu_custom_call.1} parent=55 // pred_check_branch
          %411 = sbr.rel (%p409) target = $region60
        $region59: #{tpu_custom_call.1} parent=55 // pred_region
          %s412 = sand.u32 %s40, 1
          %s413 = scalar_lea.sflag [#allocation4], %s412
          %s414 = sand.u32 %s40, 1
          %s415 = smul.addr %s414, 48
          %s416 = scalar_lea.vmem [#allocation3], %s415
          %s418 = ssub.s32 768, 768
          %419 = vsyncadd %s413, %s418
          %s420 = smul.addr %s30, 6
          %s421 = smul.addr %s420, 128
          %s422 = scalar_lea.hbm %s0, %s421
          %s423 = sshll.u32 %s416, 4
          %s424 = int_to_ptr.vmem [resolvable:$true] %s423
          %429 = dma.hbm_to_vmem [thread:$0]  %s422, 768, %s424, %s413, 128, 128, 8
        $region60: #{tpu_custom_call.1} parent=55 // pred_fallthru
          _
      $region56: #{tpu_custom_call.1} parent=5 // pred_fallthru
        _
      %p430 = scmp.le.s32.totalorder 1, %s30
      %p431 = scmp.lt.s32.totalorder %s30, 3
      %p432 = pnand %p430, %p431
      %p433 = pneg %p432
      // Predicated region
      $region61: #{tpu_custom_call.1} parent=5 // pred_check
        _
      $region62: #{tpu_custom_call.1} parent=5 // pred_check_branch
        %435 = sbr.rel (%p432) target = $region64
      $region63: #{tpu_custom_call.1} parent=5 // pred_region
        %s436 = ssub.s32 %s30, 1
        %s437 = sand.u32 %s43, 1
        %s438 = scalar_lea.sflag [#allocation4], %s437
        %s439 = sand.u32 %s43, 1
        %s440 = smul.addr %s439, 48
        %s441 = scalar_lea.vmem [#allocation3], %s440
        // Predicated region
        $region65: #{tpu_custom_call.1} parent=63 // pred_check
          %p442 = pneg %p56
        $region66: #{tpu_custom_call.1} parent=63 // pred_check_branch
          %444 = sbr.rel (%p442) target = $region68
        $region67: #{tpu_custom_call.1} parent=63 // pred_region
          %445 = dma.done %s438, 768
        $region68: #{tpu_custom_call.1} parent=63 // pred_fallthru
          _
        // Predicated region
        $region69: #{tpu_custom_call.1} parent=63 // pred_check
          %p446 = pneg %p77
        $region70: #{tpu_custom_call.1} parent=63 // pred_check_branch
          %448 = sbr.rel (%p446) target = $region72
        $region71: #{tpu_custom_call.1} parent=63 // pred_region
          %449 = dma.done [#allocation6], 16
        $region72: #{tpu_custom_call.1} parent=63 // pred_fallthru
          _
        // Predicated region
        $region73: #{tpu_custom_call.1} parent=63 // pred_check
          %p450 = pneg %p98
        $region74: #{tpu_custom_call.1} parent=63 // pred_check_branch
          %452 = sbr.rel (%p450) target = $region76
        $region75: #{tpu_custom_call.1} parent=63 // pred_region
          %453 = dma.done [#allocation10], 16
        $region76: #{tpu_custom_call.1} parent=63 // pred_fallthru
          _
        // Predicated region
        $region77: #{tpu_custom_call.1} parent=63 // pred_check
          %p454 = pneg %p119
        $region78: #{tpu_custom_call.1} parent=63 // pred_check_branch
          %456 = sbr.rel (%p454) target = $region80
        $region79: #{tpu_custom_call.1} parent=63 // pred_region
          %457 = dma.done [#allocation10], 16
        $region80: #{tpu_custom_call.1} parent=63 // pred_fallthru
          _
        // Predicated region
        $region81: #{tpu_custom_call.1} parent=63 // pred_check
          %p458 = pneg %p140
        $region82: #{tpu_custom_call.1} parent=63 // pred_check_branch
          %460 = sbr.rel (%p458) target = $region84
        $region83: #{tpu_custom_call.1} parent=63 // pred_region
          %461 = dma.done [#allocation13], 16
        $region84: #{tpu_custom_call.1} parent=63 // pred_fallthru
          _
        // Predicated region
        $region85: #{tpu_custom_call.1} parent=63 // pred_check
          %p462 = pneg %p161
        $region86: #{tpu_custom_call.1} parent=63 // pred_check_branch
          %464 = sbr.rel (%p462) target = $region88
        $region87: #{tpu_custom_call.1} parent=63 // pred_region
          %465 = dma.done [#allocation7], 64
        $region88: #{tpu_custom_call.1} parent=63 // pred_fallthru
          _
        // Predicated region
        $region89: #{tpu_custom_call.1} parent=63 // pred_check
          %p466 = pneg %p182
        $region90: #{tpu_custom_call.1} parent=63 // pred_check_branch
          %468 = sbr.rel (%p466) target = $region92
        $region91: #{tpu_custom_call.1} parent=63 // pred_region
          %469 = dma.done [#allocation13], 16
        $region92: #{tpu_custom_call.1} parent=63 // pred_fallthru
          _
        // Predicated region
        $region93: #{tpu_custom_call.1} parent=63 // pred_check
          %p470 = pneg %p203
        $region94: #{tpu_custom_call.1} parent=63 // pred_check_branch
          %472 = sbr.rel (%p470) target = $region96
        $region95: #{tpu_custom_call.1} parent=63 // pred_region
          %473 = dma.done [#allocation17], 112
        $region96: #{tpu_custom_call.1} parent=63 // pred_fallthru
          _
        // Predicated region
        $region97: #{tpu_custom_call.1} parent=63 // pred_check
          %p474 = pneg %p224
        $region98: #{tpu_custom_call.1} parent=63 // pred_check_branch
          %476 = sbr.rel (%p474) target = $region100
        $region99: #{tpu_custom_call.1} parent=63 // pred_region
          %477 = dma.done [#allocation19], 16
        $region100: #{tpu_custom_call.1} parent=63 // pred_fallthru
          _
        // Predicated region
        $region101: #{tpu_custom_call.1} parent=63 // pred_check
          %p478 = pneg %p245
        $region102: #{tpu_custom_call.1} parent=63 // pred_check_branch
          %480 = sbr.rel (%p478) target = $region104
        $region103: #{tpu_custom_call.1} parent=63 // pred_region
          %481 = dma.done [#allocation17], 48
        $region104: #{tpu_custom_call.1} parent=63 // pred_fallthru
          _
        // Predicated region
        $region105: #{tpu_custom_call.1} parent=63 // pred_check
          %p482 = pneg %p266
        $region106: #{tpu_custom_call.1} parent=63 // pred_check_branch
          %484 = sbr.rel (%p482) target = $region108
        $region107: #{tpu_custom_call.1} parent=63 // pred_region
          %485 = dma.done [#allocation22], 16
        $region108: #{tpu_custom_call.1} parent=63 // pred_fallthru
          _
        %486 = sfence
        %s487 = sand.u32 %s43, 1
        %s488 = scalar_lea.sflag [#allocation4], %s487
        %s489 = sand.u32 %s43, 1
        %s490 = smul.addr %s489, 48
        %s491 = scalar_lea.vmem [#allocation3], %s490
        %p492 = pneg %p56
        %p493 = pneg %p53
        %p494 = pneg %p77
        %p495 = pneg %p74
        %p496 = pneg %p98
        %p497 = pneg %p95
        %p498 = pneg %p119
        %p499 = pneg %p116
        %p500 = pneg %p140
        %p501 = pneg %p137
        %p502 = pneg %p161
        %p503 = pneg %p158
        %p504 = pneg %p182
        %p505 = pneg %p179
        %p506 = pneg %p203
        %p507 = pneg %p200
        %p508 = pneg %p224
        %p509 = pneg %p221
        %p510 = pneg %p245
        %p511 = pneg %p242
        %p512 = pneg %p266
        %p513 = pneg %p263
        %p514 = pneg %p292
        %p515 = pneg %p289
        %s516 = sand.u32 %s279, 1
        %s517 = scalar_lea.sflag [#allocation5], %s516
        %s518 = sand.u32 %s279, 1
        %s519 = smul.addr %s518, 48
        %s520 = scalar_lea.vmem [#allocation23], %s519
        %521 = vst [vmem:[#allocation2] sm:$0xff] 0.0
        %522 = vst [vmem:[#allocation2 + $0x8] sm:$0xff] 0.0
        %523 = vst [vmem:[#allocation2 + $0x30] sm:$0xff] 0.0
        %524 = vst [vmem:[#allocation2 + $0x38] sm:$0xff] 0.0
        %525 = vst [vmem:[#allocation2 + $0x18] sm:$0xff] 0.0
        %526 = vst [vmem:[#allocation2 + $0x28] sm:$0xff] 0.0
        %s527 = scalar_lea.vmem [#allocation2], 64
        %528 = vst [vmem:[%s527] sm:$0xff] 0.0
        %529 = vst [vmem:[%s527 + $0x8] sm:$0xff] 0.0
        %530 = vst [vmem:[%s527 + $0x30] sm:$0xff] 0.0
        %531 = vst [vmem:[%s527 + $0x38] sm:$0xff] 0.0
        %532 = vst [vmem:[%s527 + $0x18] sm:$0xff] 0.0
        %533 = vst [vmem:[%s527 + $0x28] sm:$0xff] 0.0
        %s534 = scalar_lea.vmem [#allocation2], 128
        %535 = vst [vmem:[%s534] sm:$0xff] 0.0
        %536 = vst [vmem:[%s534 + $0x8] sm:$0xff] 0.0
        %537 = vst [vmem:[%s534 + $0x30] sm:$0xff] 0.0
        %538 = vst [vmem:[%s534 + $0x38] sm:$0xff] 0.0
        %539 = vst [vmem:[%s534 + $0x18] sm:$0xff] 0.0
        %540 = vst [vmem:[%s534 + $0x28] sm:$0xff] 0.0
        %s541 = scalar_lea.vmem [#allocation2], 192
        %542 = vst [vmem:[%s541] sm:$0xff] 0.0
        %543 = vst [vmem:[%s541 + $0x8] sm:$0xff] 0.0
        %544 = vst [vmem:[%s541 + $0x30] sm:$0xff] 0.0
        %545 = vst [vmem:[%s541 + $0x38] sm:$0xff] 0.0
        %546 = vst [vmem:[%s541 + $0x18] sm:$0xff] 0.0
        %547 = vst [vmem:[%s541 + $0x28] sm:$0xff] 0.0
        %s548 = scalar_lea.vmem [#allocation2], 256
        %549 = vst [vmem:[%s548] sm:$0xff] 0.0
        %550 = vst [vmem:[%s548 + $0x8] sm:$0xff] 0.0
        %551 = vst [vmem:[%s548 + $0x30] sm:$0xff] 0.0
        %552 = vst [vmem:[%s548 + $0x38] sm:$0xff] 0.0
        %553 = vst [vmem:[%s548 + $0x18] sm:$0xff] 0.0
        %554 = vst [vmem:[%s548 + $0x28] sm:$0xff] 0.0
        %s555 = scalar_lea.vmem [#allocation2], 320
        %556 = vst [vmem:[%s555] sm:$0xff] 0.0
        %557 = vst [vmem:[%s555 + $0x8] sm:$0xff] 0.0
        %558 = vst [vmem:[%s555 + $0x30] sm:$0xff] 0.0
        %559 = vst [vmem:[%s555 + $0x38] sm:$0xff] 0.0
        %560 = vst [vmem:[%s555 + $0x18] sm:$0xff] 0.0
        %561 = vst [vmem:[%s555 + $0x28] sm:$0xff] 0.0
        %s562 = scalar_lea.vmem [#allocation2], 384
        %563 = vst [vmem:[%s562] sm:$0xff] 0.0
        %564 = vst [vmem:[%s562 + $0x8] sm:$0xff] 0.0
        %565 = vst [vmem:[%s562 + $0x30] sm:$0xff] 0.0
        %566 = vst [vmem:[%s562 + $0x38] sm:$0xff] 0.0
        %567 = vst [vmem:[%s562 + $0x18] sm:$0xff] 0.0
        %568 = vst [vmem:[%s562 + $0x28] sm:$0xff] 0.0
        %s569 = scalar_lea.vmem [#allocation2], 448
        %570 = vst [vmem:[%s569] sm:$0xff] 0.0
        %571 = vst [vmem:[%s569 + $0x8] sm:$0xff] 0.0
        %572 = vst [vmem:[%s569 + $0x30] sm:$0xff] 0.0
        %573 = vst [vmem:[%s569 + $0x38] sm:$0xff] 0.0
        %574 = vst [vmem:[%s569 + $0x18] sm:$0xff] 0.0
        %575 = vst [vmem:[%s569 + $0x28] sm:$0xff] 0.0
        %s576 = scalar_lea.vmem [#allocation2], 512
        %577 = vst [vmem:[%s576] sm:$0xff] 0.0
        %578 = vst [vmem:[%s576 + $0x8] sm:$0xff] 0.0
        %579 = vst [vmem:[%s576 + $0x30] sm:$0xff] 0.0
        %580 = vst [vmem:[%s576 + $0x38] sm:$0xff] 0.0
        %581 = vst [vmem:[%s576 + $0x18] sm:$0xff] 0.0
        %582 = vst [vmem:[%s576 + $0x28] sm:$0xff] 0.0
        %s583 = scalar_lea.vmem [#allocation2], 576
        %584 = vst [vmem:[%s583] sm:$0xff] 0.0
        %585 = vst [vmem:[%s583 + $0x8] sm:$0xff] 0.0
        %586 = vst [vmem:[%s583 + $0x30] sm:$0xff] 0.0
        %587 = vst [vmem:[%s583 + $0x38] sm:$0xff] 0.0
        %588 = vst [vmem:[%s583 + $0x18] sm:$0xff] 0.0
        %589 = vst [vmem:[%s583 + $0x28] sm:$0xff] 0.0
        %s590 = scalar_lea.vmem [#allocation2], 640
        %591 = vst [vmem:[%s590] sm:$0xff] 0.0
        %592 = vst [vmem:[%s590 + $0x8] sm:$0xff] 0.0
        %593 = vst [vmem:[%s590 + $0x30] sm:$0xff] 0.0
        %594 = vst [vmem:[%s590 + $0x38] sm:$0xff] 0.0
        %595 = vst [vmem:[%s590 + $0x18] sm:$0xff] 0.0
        %596 = vst [vmem:[%s590 + $0x28] sm:$0xff] 0.0
        %s597 = scalar_lea.vmem [#allocation2], 704
        %598 = vst [vmem:[%s597] sm:$0xff] 0.0
        %599 = vst [vmem:[%s597 + $0x8] sm:$0xff] 0.0
        %600 = vst [vmem:[%s597 + $0x30] sm:$0xff] 0.0
        %601 = vst [vmem:[%s597 + $0x38] sm:$0xff] 0.0
        %602 = vst [vmem:[%s597 + $0x18] sm:$0xff] 0.0
        %603 = vst [vmem:[%s597 + $0x28] sm:$0xff] 0.0
        %v604 = vld [vmem:[%s441] sm:$0xff]
        %v605 = vld [vmem:[%s441 + $0x8] sm:$0xff]
        %s606 = sld [smem:[#allocation8]]
        %v607 = vstv %s606
        %v608 = vmul.f32 %v604, %v607
        %v609 = vmul.f32 %v605, %v607
        %s610 = scalar_lea.vmem %s441, 16 [#allocation3]
        %v611 = vld [vmem:[%s610] sm:$0xff]
        %v612 = vld [vmem:[%s610 + $0x8] sm:$0xff]
        %s613 = sld [smem:[#allocation8 + $0x1]]
        %v614 = vstv %s613
        %v615 = vmul.f32 %v611, %v614
        %v616 = vmul.f32 %v612, %v614
        %v617 = vadd.f32 %v608, %v615
        %v618 = vadd.f32 %v609, %v616
        %s619 = scalar_lea.vmem %s441, 32 [#allocation3]
        %v620 = vld [vmem:[%s619] sm:$0xff]
        %v621 = vld [vmem:[%s619 + $0x8] sm:$0xff]
        %s622 = sld [smem:[#allocation8 + $0x2]]
        %v623 = vstv %s622
        %v624 = vmul.f32 %v620, %v623
        %v625 = vmul.f32 %v621, %v623
        %v626 = vadd.f32 %v617, %v624
        %v627 = vadd.f32 %v618, %v625
        %s628 = sld [smem:[#allocation9]]
        %v629 = vstv %s628
        %v630 = vadd.f32 %v626, %v629
        %v631 = vadd.f32 %v627, %v629
        %v632 = vmax.f32 %v630, 0.0
        %v633 = vmax.f32 %v631, 0.0
        %s634 = sld [smem:[#allocation8 + $0x3]]
        %v635 = vstv %s634
        %v636 = vmul.f32 %v604, %v635
        %v637 = vmul.f32 %v605, %v635
        %s638 = sld [smem:[#allocation8 + $0x4]]
        %v639 = vstv %s638
        %v640 = vmul.f32 %v611, %v639
        %v641 = vmul.f32 %v612, %v639
        %v642 = vadd.f32 %v636, %v640
        %v643 = vadd.f32 %v637, %v641
        %s644 = sld [smem:[#allocation8 + $0x5]]
        %v645 = vstv %s644
        %v646 = vmul.f32 %v620, %v645
        %v647 = vmul.f32 %v621, %v645
        %v648 = vadd.f32 %v642, %v646
        %v649 = vadd.f32 %v643, %v647
        %s650 = sld [smem:[#allocation9 + $0x1]]
        %v651 = vstv %s650
        %v652 = vadd.f32 %v648, %v651
        %v653 = vadd.f32 %v649, %v651
        %v654 = vmax.f32 %v652, 0.0
        %v655 = vmax.f32 %v653, 0.0
        %s656 = sld [smem:[#allocation8 + $0x6]]
        %v657 = vstv %s656
        %v658 = vmul.f32 %v604, %v657
        %v659 = vmul.f32 %v605, %v657
        %s660 = sld [smem:[#allocation8 + $0x7]]
        %v661 = vstv %s660
        %v662 = vmul.f32 %v611, %v661
        %v663 = vmul.f32 %v612, %v661
        %v664 = vadd.f32 %v658, %v662
        %v665 = vadd.f32 %v659, %v663
        %s666 = sld [smem:[#allocation8 + $0x8]]
        %v667 = vstv %s666
        %v668 = vmul.f32 %v620, %v667
        %v669 = vmul.f32 %v621, %v667
        %v670 = vadd.f32 %v664, %v668
        %v671 = vadd.f32 %v665, %v669
        %s672 = sld [smem:[#allocation9 + $0x2]]
        %v673 = vstv %s672
        %v674 = vadd.f32 %v670, %v673
        %v675 = vadd.f32 %v671, %v673
        %v676 = vmax.f32 %v674, 0.0
        %v677 = vmax.f32 %v675, 0.0
        %678 = vst [vmem:[#allocation2 + $0x10] sm:$0xff] %v632
        %679 = vst [vmem:[#allocation2 + $0x20] sm:$0xff] %v633
        %680 = vst [vmem:[%s527 + $0x10] sm:$0xff] %v654
        %681 = vst [vmem:[%s527 + $0x20] sm:$0xff] %v655
        %682 = vst [vmem:[%s534 + $0x10] sm:$0xff] %v676
        %683 = vst [vmem:[%s534 + $0x20] sm:$0xff] %v677
        loop: start=0, step=1, limit=3
        $region109: #{tpu_custom_call.1} parent=63 // loop_pre_header
          _
        $region110: #{tpu_custom_call.1} parent=63 // loop_header
          %s685 = sphi 0, %s689
          %p686 = scmp.ge.s32.totalorder %s685, 3
          %v690 = vphi 0.0, %v1060
          %v691 = vphi 0.0, %v1061
          %v692 = vphi 0.0, %v1067
          %v693 = vphi 0.0, %v1068
          %v694 = vphi 0.0, %v1074
          %v695 = vphi 0.0, %v1075
        $region111: #{tpu_custom_call.1} parent=63 // loop_header_branch
          %688 = sbr.rel (%p686) target = $region115
        $region112: #{tpu_custom_call.1} parent=63 // loop_body
          %s696 = smul.u32 %s685, 8
          %s697 = smul.addr %s696, 8
          %s698 = scalar_lea.vmem [#allocation2], %s697
          %v699 = vld [vmem:[%s698] sm:$0x80]
          %v700 = vld [vmem:[%s698 + $0x8] sm:$0x80]
          %v701 = vld [vmem:[%s698 + $0x10] sm:$0xff]
          %v702 = vld [vmem:[%s698 + $0x18] sm:$0xff]
          %v703 = vld [vmem:[%s698 + $0x20] sm:$0x7f]
          %v704 = vld [vmem:[%s698 + $0x28] sm:$0x7f]
          %vm711 = vcmask 1040384
          %v712 = vrot.slane %v699, 7
          %v713 = vrot.slane %v701, 7
          %v714 = vsel %vm711, %v712, %v713
          %v715 = vrot.slane %v700, 7
          %v716 = vrot.slane %v702, 7
          %v717 = vsel %vm711, %v715, %v716
          %v718 = vrot.slane %v703, 7
          %v719 = vsel %vm711, %v713, %v718
          %v720 = vrot.slane %v704, 7
          %v721 = vsel %vm711, %v716, %v720
          %726 = vrot.lane.b32.xlu0 %v714, 1
          %v727 = vpop.permute.xlu0 %726
          %728 = vrot.lane.b32.xlu0 %v719, 1
          %v729 = vpop.permute.xlu0 %728
          %730 = vrot.lane.b32.xlu0 %v717, 1
          %v731 = vpop.permute.xlu0 %730
          %732 = vrot.lane.b32.xlu0 %v721, 1
          %v733 = vpop.permute.xlu0 %732
          %v734 = vlaneseq
          %v735 = vand.u32 %v734, 127
          %vm736 = vcmp.lt.s32.totalorder %v735, 1
          %v737 = vsel %vm736, %v731, %v727
          %v738 = vsel %vm736, %v733, %v729
          %s739 = smul.u32 %s685, 9
          %s740 = sld [smem:[#allocation11 + %s739]]
          %v741 = vstv %s740
          %v742 = vmul.f32 %v737, %v741
          %v743 = vmul.f32 %v738, %v741
          %v744 = vadd.f32 %v690, %v742
          %v745 = vadd.f32 %v691, %v743
          %s746 = sadd.s32 %s685, 3
          %s747 = smul.u32 %s746, 9
          %s748 = sld [smem:[#allocation11 + %s747]]
          %v749 = vstv %s748
          %v750 = vmul.f32 %v737, %v749
          %v751 = vmul.f32 %v738, %v749
          %v752 = vadd.f32 %v692, %v750
          %v753 = vadd.f32 %v693, %v751
          %s754 = sadd.s32 %s685, 6
          %s755 = smul.u32 %s754, 9
          %s756 = sld [smem:[#allocation11 + %s755]]
          %v757 = vstv %s756
          %v758 = vmul.f32 %v737, %v757
          %v759 = vmul.f32 %v738, %v757
          %v760 = vadd.f32 %v694, %v758
          %v761 = vadd.f32 %v695, %v759
          %s762 = sadd.s32 %s739, 1
          %s763 = sld [smem:[#allocation11 + %s762]]
          %v764 = vstv %s763
          %v765 = vmul.f32 %v699, %v764
          %v766 = vmul.f32 %v701, %v764
          %v767 = vmul.f32 %v703, %v764
          %v771 = vrot.slane %v765, 7
          %v772 = vrot.slane %v766, 7
          %v773 = vsel %vm711, %v771, %v772
          %v774 = vrot.slane %v767, 7
          %v775 = vsel %vm711, %v772, %v774
          %v778 = vadd.f32 %v744, %v773
          %v779 = vadd.f32 %v745, %v775
          %s780 = sadd.s32 %s747, 1
          %s781 = sld [smem:[#allocation11 + %s780]]
          %v782 = vstv %s781
          %v783 = vmul.f32 %v699, %v782
          %v784 = vmul.f32 %v701, %v782
          %v785 = vmul.f32 %v703, %v782
          %v789 = vrot.slane %v783, 7
          %v790 = vrot.slane %v784, 7
          %v791 = vsel %vm711, %v789, %v790
          %v792 = vrot.slane %v785, 7
          %v793 = vsel %vm711, %v790, %v792
          %v796 = vadd.f32 %v752, %v791
          %v797 = vadd.f32 %v753, %v793
          %s798 = sadd.s32 %s755, 1
          %s799 = sld [smem:[#allocation11 + %s798]]
          %v800 = vstv %s799
          %v801 = vmul.f32 %v699, %v800
          %v802 = vmul.f32 %v701, %v800
          %v803 = vmul.f32 %v703, %v800
          %v807 = vrot.slane %v801, 7
          %v808 = vrot.slane %v802, 7
          %v809 = vsel %vm711, %v807, %v808
          %v810 = vrot.slane %v803, 7
          %v811 = vsel %vm711, %v808, %v810
          %v814 = vadd.f32 %v760, %v809
          %v815 = vadd.f32 %v761, %v811
          %816 = vrot.lane.b32.xlu0 %v714, 127
          %v817 = vpop.permute.xlu0 %816
          %818 = vrot.lane.b32.xlu0 %v719, 127
          %v819 = vpop.permute.xlu0 %818
          %820 = vrot.lane.b32.xlu0 %v717, 127
          %v821 = vpop.permute.xlu0 %820
          %822 = vrot.lane.b32.xlu0 %v721, 127
          %v823 = vpop.permute.xlu0 %822
          %vm824 = vcmp.lt.s32.totalorder %v735, 127
          %v825 = vsel %vm824, %v817, %v821
          %v826 = vsel %vm824, %v819, %v823
          %s827 = sadd.s32 %s739, 2
          %s828 = sld [smem:[#allocation11 + %s827]]
          %v829 = vstv %s828
          %v830 = vmul.f32 %v825, %v829
          %v831 = vmul.f32 %v826, %v829
          %v832 = vadd.f32 %v778, %v830
          %v833 = vadd.f32 %v779, %v831
          %s834 = sadd.s32 %s747, 2
          %s835 = sld [smem:[#allocation11 + %s834]]
          %v836 = vstv %s835
          %v837 = vmul.f32 %v825, %v836
          %v838 = vmul.f32 %v826, %v836
          %v839 = vadd.f32 %v796, %v837
          %v840 = vadd.f32 %v797, %v838
          %s841 = sadd.s32 %s755, 2
          %s842 = sld [smem:[#allocation11 + %s841]]
          %v843 = vstv %s842
          %v844 = vmul.f32 %v825, %v843
          %v845 = vmul.f32 %v826, %v843
          %v846 = vadd.f32 %v814, %v844
          %v847 = vadd.f32 %v815, %v845
          %v848 = vld [vmem:[%s698 + $0x20] sm:$0xff]
          %v849 = vld [vmem:[%s698 + $0x28] sm:$0xff]
          %850 = vrot.lane.b32.xlu0 %v701, 1
          %v851 = vpop.permute.xlu0 %850
          %852 = vrot.lane.b32.xlu0 %v848, 1
          %v853 = vpop.permute.xlu0 %852
          %854 = vrot.lane.b32.xlu0 %v702, 1
          %v855 = vpop.permute.xlu0 %854
          %856 = vrot.lane.b32.xlu0 %v849, 1
          %v857 = vpop.permute.xlu0 %856
          %v858 = vsel %vm736, %v855, %v851
          %v859 = vsel %vm736, %v857, %v853
          %s860 = sadd.s32 %s739, 3
          %s861 = sld [smem:[#allocation11 + %s860]]
          %v862 = vstv %s861
          %v863 = vmul.f32 %v858, %v862
          %v864 = vmul.f32 %v859, %v862
          %v865 = vadd.f32 %v832, %v863
          %v866 = vadd.f32 %v833, %v864
          %s867 = sadd.s32 %s747, 3
          %s868 = sld [smem:[#allocation11 + %s867]]
          %v869 = vstv %s868
          %v870 = vmul.f32 %v858, %v869
          %v871 = vmul.f32 %v859, %v869
          %v872 = vadd.f32 %v839, %v870
          %v873 = vadd.f32 %v840, %v871
          %s874 = sadd.s32 %s755, 3
          %s875 = sld [smem:[#allocation11 + %s874]]
          %v876 = vstv %s875
          %v877 = vmul.f32 %v858, %v876
          %v878 = vmul.f32 %v859, %v876
          %v879 = vadd.f32 %v846, %v877
          %v880 = vadd.f32 %v847, %v878
          %s881 = sadd.s32 %s739, 4
          %s882 = sld [smem:[#allocation11 + %s881]]
          %v883 = vstv %s882
          %v884 = vmul.f32 %v701, %v883
          %v885 = vmul.f32 %v848, %v883
          %v886 = vadd.f32 %v865, %v884
          %v887 = vadd.f32 %v866, %v885
          %s888 = sadd.s32 %s747, 4
          %s889 = sld [smem:[#allocation11 + %s888]]
          %v890 = vstv %s889
          %v891 = vmul.f32 %v701, %v890
          %v892 = vmul.f32 %v848, %v890
          %v893 = vadd.f32 %v872, %v891
          %v894 = vadd.f32 %v873, %v892
          %s895 = sadd.s32 %s755, 4
          %s896 = sld [smem:[#allocation11 + %s895]]
          %v897 = vstv %s896
          %v898 = vmul.f32 %v701, %v897
          %v899 = vmul.f32 %v848, %v897
          %v900 = vadd.f32 %v879, %v898
          %v901 = vadd.f32 %v880, %v899
          %902 = vrot.lane.b32.xlu0 %v701, 127
          %v903 = vpop.permute.xlu0 %902
          %904 = vrot.lane.b32.xlu0 %v848, 127
          %v905 = vpop.permute.xlu0 %904
          %906 = vrot.lane.b32.xlu0 %v702, 127
          %v907 = vpop.permute.xlu0 %906
          %908 = vrot.lane.b32.xlu0 %v849, 127
          %v909 = vpop.permute.xlu0 %908
          %v910 = vsel %vm824, %v903, %v907
          %v911 = vsel %vm824, %v905, %v909
          %s912 = sadd.s32 %s739, 5
          %s913 = sld [smem:[#allocation11 + %s912]]
          %v914 = vstv %s913
          %v915 = vmul.f32 %v910, %v914
          %v916 = vmul.f32 %v911, %v914
          %v917 = vadd.f32 %v886, %v915
          %v918 = vadd.f32 %v887, %v916
          %s919 = sadd.s32 %s747, 5
          %s920 = sld [smem:[#allocation11 + %s919]]
          %v921 = vstv %s920
          %v922 = vmul.f32 %v910, %v921
          %v923 = vmul.f32 %v911, %v921
          %v924 = vadd.f32 %v893, %v922
          %v925 = vadd.f32 %v894, %v923
          %s926 = sadd.s32 %s755, 5
          %s927 = sld [smem:[#allocation11 + %s926]]
          %v928 = vstv %s927
          %v929 = vmul.f32 %v910, %v928
          %v930 = vmul.f32 %v911, %v928
          %v931 = vadd.f32 %v900, %v929
          %v932 = vadd.f32 %v901, %v930
          %v933 = vld [vmem:[%s698 + $0x10] sm:$0xfe]
          %v934 = vld [vmem:[%s698 + $0x18] sm:$0xfe]
          %v935 = vld [vmem:[%s698 + $0x20] sm:$0xff]
          %v936 = vld [vmem:[%s698 + $0x28] sm:$0xff]
          %v937 = vld [vmem:[%s698 + $0x30] sm:$0x1]
          %v938 = vld [vmem:[%s698 + $0x38] sm:$0x1]
          %vm945 = vcmask 1046528
          %v946 = vrot.slane %v933, 1
          %v947 = vrot.slane %v935, 1
          %v948 = vsel %vm945, %v946, %v947
          %v949 = vrot.slane %v934, 1
          %v950 = vrot.slane %v936, 1
          %v951 = vsel %vm945, %v949, %v950
          %v952 = vrot.slane %v937, 1
          %v953 = vsel %vm945, %v947, %v952
          %v954 = vrot.slane %v938, 1
          %v955 = vsel %vm945, %v950, %v954
          %960 = vrot.lane.b32.xlu0 %v948, 1
          %v961 = vpop.permute.xlu0 %960
          %962 = vrot.lane.b32.xlu0 %v953, 1
          %v963 = vpop.permute.xlu0 %962
          %964 = vrot.lane.b32.xlu0 %v951, 1
          %v965 = vpop.permute.xlu0 %964
          %966 = vrot.lane.b32.xlu0 %v955, 1
          %v967 = vpop.permute.xlu0 %966
          %v968 = vsel %vm736, %v965, %v961
          %v969 = vsel %vm736, %v967, %v963
          %s970 = sadd.s32 %s739, 6
          %s971 = sld [smem:[#allocation11 + %s970]]
          %v972 = vstv %s971
          %v973 = vmul.f32 %v968, %v972
          %v974 = vmul.f32 %v969, %v972
          %v975 = vadd.f32 %v917, %v973
          %v976 = vadd.f32 %v918, %v974
          %s977 = sadd.s32 %s747, 6
          %s978 = sld [smem:[#allocation11 + %s977]]
          %v979 = vstv %s978
          %v980 = vmul.f32 %v968, %v979
          %v981 = vmul.f32 %v969, %v979
          %v982 = vadd.f32 %v924, %v980
          %v983 = vadd.f32 %v925, %v981
          %s984 = sadd.s32 %s755, 6
          %s985 = sld [smem:[#allocation11 + %s984]]
          %v986 = vstv %s985
          %v987 = vmul.f32 %v968, %v986
          %v988 = vmul.f32 %v969, %v986
          %v989 = vadd.f32 %v931, %v987
          %v990 = vadd.f32 %v932, %v988
          %s991 = sadd.s32 %s739, 7
          %s992 = sld [smem:[#allocation11 + %s991]]
          %v993 = vstv %s992
          %v994 = vmul.f32 %v933, %v993
          %v995 = vmul.f32 %v935, %v993
          %v996 = vmul.f32 %v937, %v993
          %v1000 = vrot.slane %v994, 1
          %v1001 = vrot.slane %v995, 1
          %v1002 = vsel %vm945, %v1000, %v1001
          %v1003 = vrot.slane %v996, 1
          %v1004 = vsel %vm945, %v1001, %v1003
          %v1007 = vadd.f32 %v975, %v1002
          %v1008 = vadd.f32 %v976, %v1004
          %s1009 = sadd.s32 %s747, 7
          %s1010 = sld [smem:[#allocation11 + %s1009]]
          %v1011 = vstv %s1010
          %v1012 = vmul.f32 %v933, %v1011
          %v1013 = vmul.f32 %v935, %v1011
          %v1014 = vmul.f32 %v937, %v1011
          %v1018 = vrot.slane %v1012, 1
          %v1019 = vrot.slane %v1013, 1
          %v1020 = vsel %vm945, %v1018, %v1019
          %v1021 = vrot.slane %v1014, 1
          %v1022 = vsel %vm945, %v1019, %v1021
          %v1025 = vadd.f32 %v982, %v1020
          %v1026 = vadd.f32 %v983, %v1022
          %s1027 = sadd.s32 %s755, 7
          %s1028 = sld [smem:[#allocation11 + %s1027]]
          %v1029 = vstv %s1028
          %v1030 = vmul.f32 %v933, %v1029
          %v1031 = vmul.f32 %v935, %v1029
          %v1032 = vmul.f32 %v937, %v1029
          %v1036 = vrot.slane %v1030, 1
          %v1037 = vrot.slane %v1031, 1
          %v1038 = vsel %vm945, %v1036, %v1037
          %v1039 = vrot.slane %v1032, 1
          %v1040 = vsel %vm945, %v1037, %v1039
          %v1043 = vadd.f32 %v989, %v1038
          %v1044 = vadd.f32 %v990, %v1040
          %1045 = vrot.lane.b32.xlu0 %v948, 127
          %v1046 = vpop.permute.xlu0 %1045
          %1047 = vrot.lane.b32.xlu0 %v953, 127
          %v1048 = vpop.permute.xlu0 %1047
          %1049 = vrot.lane.b32.xlu0 %v951, 127
          %v1050 = vpop.permute.xlu0 %1049
          %1051 = vrot.lane.b32.xlu0 %v955, 127
          %v1052 = vpop.permute.xlu0 %1051
          %v1053 = vsel %vm824, %v1046, %v1050
          %v1054 = vsel %vm824, %v1048, %v1052
          %s1055 = sadd.s32 %s739, 8
          %s1056 = sld [smem:[#allocation11 + %s1055]]
          %v1057 = vstv %s1056
          %v1058 = vmul.f32 %v1053, %v1057
          %v1059 = vmul.f32 %v1054, %v1057
          %v1060 = vadd.f32 %v1007, %v1058
          %v1061 = vadd.f32 %v1008, %v1059
          %s1062 = sadd.s32 %s747, 8
          %s1063 = sld [smem:[#allocation11 + %s1062]]
          %v1064 = vstv %s1063
          %v1065 = vmul.f32 %v1053, %v1064
          %v1066 = vmul.f32 %v1054, %v1064
          %v1067 = vadd.f32 %v1025, %v1065
          %v1068 = vadd.f32 %v1026, %v1066
          %s1069 = sadd.s32 %s755, 8
          %s1070 = sld [smem:[#allocation11 + %s1069]]
          %v1071 = vstv %s1070
          %v1072 = vmul.f32 %v1053, %v1071
          %v1073 = vmul.f32 %v1054, %v1071
          %v1074 = vadd.f32 %v1043, %v1072
          %v1075 = vadd.f32 %v1044, %v1073
        $region113: #{tpu_custom_call.1} parent=63 // loop_footer
          %s689 = sadd.s32 1, %s685
        $region114: #{tpu_custom_call.1} parent=63 // loop_footer_branch
          %684 = sbr.rel target = $region110
        $region115: #{tpu_custom_call.1} parent=63 // loop_exit
          _
        %s1076 = sld [smem:[#allocation12]]
        %v1077 = vstv %s1076
        %v1078 = vadd.f32 %v690, %v1077
        %v1079 = vadd.f32 %v691, %v1077
        %v1080 = vmax.f32 %v1078, 0.0
        %v1081 = vmax.f32 %v1079, 0.0
        %s1082 = sld [smem:[#allocation12 + $0x1]]
        %v1083 = vstv %s1082
        %v1084 = vadd.f32 %v692, %v1083
        %v1085 = vadd.f32 %v693, %v1083
        %v1086 = vmax.f32 %v1084, 0.0
        %v1087 = vmax.f32 %v1085, 0.0
        %s1088 = sld [smem:[#allocation12 + $0x2]]
        %v1089 = vstv %s1088
        %v1090 = vadd.f32 %v694, %v1089
        %v1091 = vadd.f32 %v695, %v1089
        %v1092 = vmax.f32 %v1090, 0.0
        %v1093 = vmax.f32 %v1091, 0.0
        %1094 = vst [vmem:[%s541 + $0x10] sm:$0xff] %v1080
        %1095 = vst [vmem:[%s541 + $0x20] sm:$0xff] %v1081
        %1096 = vst [vmem:[%s548 + $0x10] sm:$0xff] %v1086
        %1097 = vst [vmem:[%s548 + $0x20] sm:$0xff] %v1087
        %1098 = vst [vmem:[%s555 + $0x10] sm:$0xff] %v1092
        %1099 = vst [vmem:[%s555 + $0x20] sm:$0xff] %v1093
        loop: start=0, step=1, limit=6
        $region116: #{tpu_custom_call.1} parent=63 // loop_pre_header
          _
        $region117: #{tpu_custom_call.1} parent=63 // loop_header
          %s1101 = sphi 0, %s1105
          %p1102 = scmp.ge.s32.totalorder %s1101, 6
          %v1106 = vphi 0.0, %v2066
          %v1107 = vphi 0.0, %v2067
          %v1108 = vphi 0.0, %v2073
          %v1109 = vphi 0.0, %v2074
          %v1110 = vphi 0.0, %v2080
          %v1111 = vphi 0.0, %v2081
        $region118: #{tpu_custom_call.1} parent=63 // loop_header_branch
          %1104 = sbr.rel (%p1102) target = $region122
        $region119: #{tpu_custom_call.1} parent=63 // loop_body
          %s1112 = smul.u32 %s1101, 8
          %s1113 = smul.addr %s1112, 8
          %s1114 = scalar_lea.vmem [#allocation2], %s1113
          %v1115 = vld [vmem:[%s1114] sm:$0xc0]
          %v1116 = vld [vmem:[%s1114 + $0x8] sm:$0xc0]
          %v1117 = vld [vmem:[%s1114 + $0x10] sm:$0xff]
          %v1118 = vld [vmem:[%s1114 + $0x18] sm:$0xff]
          %v1119 = vld [vmem:[%s1114 + $0x20] sm:$0x3f]
          %v1120 = vld [vmem:[%s1114 + $0x28] sm:$0x3f]
          %vm1127 = vcmask 1041408
          %v1128 = vrot.slane %v1115, 6
          %v1129 = vrot.slane %v1117, 6
          %v1130 = vsel %vm1127, %v1128, %v1129
          %v1131 = vrot.slane %v1116, 6
          %v1132 = vrot.slane %v1118, 6
          %v1133 = vsel %vm1127, %v1131, %v1132
          %v1134 = vrot.slane %v1119, 6
          %v1135 = vsel %vm1127, %v1129, %v1134
          %v1136 = vrot.slane %v1120, 6
          %v1137 = vsel %vm1127, %v1132, %v1136
          %1142 = vrot.lane.b32.xlu0 %v1130, 2
          %v1143 = vpop.permute.xlu0 %1142
          %1144 = vrot.lane.b32.xlu0 %v1135, 2
          %v1145 = vpop.permute.xlu0 %1144
          %1146 = vrot.lane.b32.xlu0 %v1133, 2
          %v1147 = vpop.permute.xlu0 %1146
          %1148 = vrot.lane.b32.xlu0 %v1137, 2
          %v1149 = vpop.permute.xlu0 %1148
          %v1150 = vlaneseq
          %v1151 = vand.u32 %v1150, 127
          %vm1152 = vcmp.lt.s32.totalorder %v1151, 2
          %v1153 = vsel %vm1152, %v1147, %v1143
          %v1154 = vsel %vm1152, %v1149, %v1145
          %s1155 = smul.u32 %s1101, 25
          %s1156 = sld [smem:[#allocation14 + %s1155]]
          %v1157 = vstv %s1156
          %v1158 = vmul.f32 %v1153, %v1157
          %v1159 = vmul.f32 %v1154, %v1157
          %v1160 = vadd.f32 %v1106, %v1158
          %v1161 = vadd.f32 %v1107, %v1159
          %s1162 = sadd.s32 %s1101, 6
          %s1163 = smul.u32 %s1162, 25
          %s1164 = sld [smem:[#allocation14 + %s1163]]
          %v1165 = vstv %s1164
          %v1166 = vmul.f32 %v1153, %v1165
          %v1167 = vmul.f32 %v1154, %v1165
          %v1168 = vadd.f32 %v1108, %v1166
          %v1169 = vadd.f32 %v1109, %v1167
          %s1170 = sadd.s32 %s1101, 12
          %s1171 = smul.u32 %s1170, 25
          %s1172 = sld [smem:[#allocation14 + %s1171]]
          %v1173 = vstv %s1172
          %v1174 = vmul.f32 %v1153, %v1173
          %v1175 = vmul.f32 %v1154, %v1173
          %v1176 = vadd.f32 %v1110, %v1174
          %v1177 = vadd.f32 %v1111, %v1175
          %1178 = vrot.lane.b32.xlu0 %v1130, 1
          %v1179 = vpop.permute.xlu0 %1178
          %1180 = vrot.lane.b32.xlu0 %v1135, 1
          %v1181 = vpop.permute.xlu0 %1180
          %1182 = vrot.lane.b32.xlu0 %v1133, 1
          %v1183 = vpop.permute.xlu0 %1182
          %1184 = vrot.lane.b32.xlu0 %v1137, 1
          %v1185 = vpop.permute.xlu0 %1184
          %vm1186 = vcmp.lt.s32.totalorder %v1151, 1
          %v1187 = vsel %vm1186, %v1183, %v1179
          %v1188 = vsel %vm1186, %v1185, %v1181
          %s1189 = sadd.s32 %s1155, 1
          %s1190 = sld [smem:[#allocation14 + %s1189]]
          %v1191 = vstv %s1190
          %v1192 = vmul.f32 %v1187, %v1191
          %v1193 = vmul.f32 %v1188, %v1191
          %v1194 = vadd.f32 %v1160, %v1192
          %v1195 = vadd.f32 %v1161, %v1193
          %s1196 = sadd.s32 %s1163, 1
          %s1197 = sld [smem:[#allocation14 + %s1196]]
          %v1198 = vstv %s1197
          %v1199 = vmul.f32 %v1187, %v1198
          %v1200 = vmul.f32 %v1188, %v1198
          %v1201 = vadd.f32 %v1168, %v1199
          %v1202 = vadd.f32 %v1169, %v1200
          %s1203 = sadd.s32 %s1171, 1
          %s1204 = sld [smem:[#allocation14 + %s1203]]
          %v1205 = vstv %s1204
          %v1206 = vmul.f32 %v1187, %v1205
          %v1207 = vmul.f32 %v1188, %v1205
          %v1208 = vadd.f32 %v1176, %v1206
          %v1209 = vadd.f32 %v1177, %v1207
          %s1210 = sadd.s32 %s1155, 2
          %s1211 = sld [smem:[#allocation14 + %s1210]]
          %v1212 = vstv %s1211
          %v1213 = vmul.f32 %v1115, %v1212
          %v1214 = vmul.f32 %v1117, %v1212
          %v1215 = vmul.f32 %v1119, %v1212
          %v1219 = vrot.slane %v1213, 6
          %v1220 = vrot.slane %v1214, 6
          %v1221 = vsel %vm1127, %v1219, %v1220
          %v1222 = vrot.slane %v1215, 6
          %v1223 = vsel %vm1127, %v1220, %v1222
          %v1226 = vadd.f32 %v1194, %v1221
          %v1227 = vadd.f32 %v1195, %v1223
          %s1228 = sadd.s32 %s1163, 2
          %s1229 = sld [smem:[#allocation14 + %s1228]]
          %v1230 = vstv %s1229
          %v1231 = vmul.f32 %v1115, %v1230
          %v1232 = vmul.f32 %v1117, %v1230
          %v1233 = vmul.f32 %v1119, %v1230
          %v1237 = vrot.slane %v1231, 6
          %v1238 = vrot.slane %v1232, 6
          %v1239 = vsel %vm1127, %v1237, %v1238
          %v1240 = vrot.slane %v1233, 6
          %v1241 = vsel %vm1127, %v1238, %v1240
          %v1244 = vadd.f32 %v1201, %v1239
          %v1245 = vadd.f32 %v1202, %v1241
          %s1246 = sadd.s32 %s1171, 2
          %s1247 = sld [smem:[#allocation14 + %s1246]]
          %v1248 = vstv %s1247
          %v1249 = vmul.f32 %v1115, %v1248
          %v1250 = vmul.f32 %v1117, %v1248
          %v1251 = vmul.f32 %v1119, %v1248
          %v1255 = vrot.slane %v1249, 6
          %v1256 = vrot.slane %v1250, 6
          %v1257 = vsel %vm1127, %v1255, %v1256
          %v1258 = vrot.slane %v1251, 6
          %v1259 = vsel %vm1127, %v1256, %v1258
          %v1262 = vadd.f32 %v1208, %v1257
          %v1263 = vadd.f32 %v1209, %v1259
          %1264 = vrot.lane.b32.xlu0 %v1130, 127
          %v1265 = vpop.permute.xlu0 %1264
          %1266 = vrot.lane.b32.xlu0 %v1135, 127
          %v1267 = vpop.permute.xlu0 %1266
          %1268 = vrot.lane.b32.xlu0 %v1133, 127
          %v1269 = vpop.permute.xlu0 %1268
          %1270 = vrot.lane.b32.xlu0 %v1137, 127
          %v1271 = vpop.permute.xlu0 %1270
          %vm1272 = vcmp.lt.s32.totalorder %v1151, 127
          %v1273 = vsel %vm1272, %v1265, %v1269
          %v1274 = vsel %vm1272, %v1267, %v1271
          %s1275 = sadd.s32 %s1155, 3
          %s1276 = sld [smem:[#allocation14 + %s1275]]
          %v1277 = vstv %s1276
          %v1278 = vmul.f32 %v1273, %v1277
          %v1279 = vmul.f32 %v1274, %v1277
          %v1280 = vadd.f32 %v1226, %v1278
          %v1281 = vadd.f32 %v1227, %v1279
          %s1282 = sadd.s32 %s1163, 3
          %s1283 = sld [smem:[#allocation14 + %s1282]]
          %v1284 = vstv %s1283
          %v1285 = vmul.f32 %v1273, %v1284
          %v1286 = vmul.f32 %v1274, %v1284
          %v1287 = vadd.f32 %v1244, %v1285
          %v1288 = vadd.f32 %v1245, %v1286
          %s1289 = sadd.s32 %s1171, 3
          %s1290 = sld [smem:[#allocation14 + %s1289]]
          %v1291 = vstv %s1290
          %v1292 = vmul.f32 %v1273, %v1291
          %v1293 = vmul.f32 %v1274, %v1291
          %v1294 = vadd.f32 %v1262, %v1292
          %v1295 = vadd.f32 %v1263, %v1293
          %1296 = vrot.lane.b32.xlu0 %v1130, 126
          %v1297 = vpop.permute.xlu0 %1296
          %1298 = vrot.lane.b32.xlu0 %v1135, 126
          %v1299 = vpop.permute.xlu0 %1298
          %1300 = vrot.lane.b32.xlu0 %v1133, 126
          %v1301 = vpop.permute.xlu0 %1300
          %1302 = vrot.lane.b32.xlu0 %v1137, 126
          %v1303 = vpop.permute.xlu0 %1302
          %vm1304 = vcmp.lt.s32.totalorder %v1151, 126
          %v1305 = vsel %vm1304, %v1297, %v1301
          %v1306 = vsel %vm1304, %v1299, %v1303
          %s1307 = sadd.s32 %s1155, 4
          %s1308 = sld [smem:[#allocation14 + %s1307]]
          %v1309 = vstv %s1308
          %v1310 = vmul.f32 %v1305, %v1309
          %v1311 = vmul.f32 %v1306, %v1309
          %v1312 = vadd.f32 %v1280, %v1310
          %v1313 = vadd.f32 %v1281, %v1311
          %s1314 = sadd.s32 %s1163, 4
          %s1315 = sld [smem:[#allocation14 + %s1314]]
          %v1316 = vstv %s1315
          %v1317 = vmul.f32 %v1305, %v1316
          %v1318 = vmul.f32 %v1306, %v1316
          %v1319 = vadd.f32 %v1287, %v1317
          %v1320 = vadd.f32 %v1288, %v1318
          %s1321 = sadd.s32 %s1171, 4
          %s1322 = sld [smem:[#allocation14 + %s1321]]
          %v1323 = vstv %s1322
          %v1324 = vmul.f32 %v1305, %v1323
          %v1325 = vmul.f32 %v1306, %v1323
          %v1326 = vadd.f32 %v1294, %v1324
          %v1327 = vadd.f32 %v1295, %v1325
          %v1328 = vld [vmem:[%s1114] sm:$0x80]
          %v1329 = vld [vmem:[%s1114 + $0x8] sm:$0x80]
          %v1330 = vld [vmem:[%s1114 + $0x20] sm:$0x7f]
          %v1331 = vld [vmem:[%s1114 + $0x28] sm:$0x7f]
          %vm1336 = vcmask 1040384
          %v1337 = vrot.slane %v1328, 7
          %v1338 = vrot.slane %v1117, 7
          %v1339 = vsel %vm1336, %v1337, %v1338
          %v1340 = vrot.slane %v1329, 7
          %v1341 = vrot.slane %v1118, 7
          %v1342 = vsel %vm1336, %v1340, %v1341
          %v1343 = vrot.slane %v1330, 7
          %v1344 = vsel %vm1336, %v1338, %v1343
          %v1345 = vrot.slane %v1331, 7
          %v1346 = vsel %vm1336, %v1341, %v1345
          %1351 = vrot.lane.b32.xlu0 %v1339, 2
          %v1352 = vpop.permute.xlu0 %1351
          %1353 = vrot.lane.b32.xlu0 %v1344, 2
          %v1354 = vpop.permute.xlu0 %1353
          %1355 = vrot.lane.b32.xlu0 %v1342, 2
          %v1356 = vpop.permute.xlu0 %1355
          %1357 = vrot.lane.b32.xlu0 %v1346, 2
          %v1358 = vpop.permute.xlu0 %1357
          %v1359 = vsel %vm1152, %v1356, %v1352
          %v1360 = vsel %vm1152, %v1358, %v1354
          %s1361 = sadd.s32 %s1155, 5
          %s1362 = sld [smem:[#allocation14 + %s1361]]
          %v1363 = vstv %s1362
          %v1364 = vmul.f32 %v1359, %v1363
          %v1365 = vmul.f32 %v1360, %v1363
          %v1366 = vadd.f32 %v1312, %v1364
          %v1367 = vadd.f32 %v1313, %v1365
          %s1368 = sadd.s32 %s1163, 5
          %s1369 = sld [smem:[#allocation14 + %s1368]]
          %v1370 = vstv %s1369
          %v1371 = vmul.f32 %v1359, %v1370
          %v1372 = vmul.f32 %v1360, %v1370
          %v1373 = vadd.f32 %v1319, %v1371
          %v1374 = vadd.f32 %v1320, %v1372
          %s1375 = sadd.s32 %s1171, 5
          %s1376 = sld [smem:[#allocation14 + %s1375]]
          %v1377 = vstv %s1376
          %v1378 = vmul.f32 %v1359, %v1377
          %v1379 = vmul.f32 %v1360, %v1377
          %v1380 = vadd.f32 %v1326, %v1378
          %v1381 = vadd.f32 %v1327, %v1379
          %1382 = vrot.lane.b32.xlu0 %v1339, 1
          %v1383 = vpop.permute.xlu0 %1382
          %1384 = vrot.lane.b32.xlu0 %v1344, 1
          %v1385 = vpop.permute.xlu0 %1384
          %1386 = vrot.lane.b32.xlu0 %v1342, 1
          %v1387 = vpop.permute.xlu0 %1386
          %1388 = vrot.lane.b32.xlu0 %v1346, 1
          %v1389 = vpop.permute.xlu0 %1388
          %v1390 = vsel %vm1186, %v1387, %v1383
          %v1391 = vsel %vm1186, %v1389, %v1385
          %s1392 = sadd.s32 %s1155, 6
          %s1393 = sld [smem:[#allocation14 + %s1392]]
          %v1394 = vstv %s1393
          %v1395 = vmul.f32 %v1390, %v1394
          %v1396 = vmul.f32 %v1391, %v1394
          %v1397 = vadd.f32 %v1366, %v1395
          %v1398 = vadd.f32 %v1367, %v1396
          %s1399 = sadd.s32 %s1163, 6
          %s1400 = sld [smem:[#allocation14 + %s1399]]
          %v1401 = vstv %s1400
          %v1402 = vmul.f32 %v1390, %v1401
          %v1403 = vmul.f32 %v1391, %v1401
          %v1404 = vadd.f32 %v1373, %v1402
          %v1405 = vadd.f32 %v1374, %v1403
          %s1406 = sadd.s32 %s1171, 6
          %s1407 = sld [smem:[#allocation14 + %s1406]]
          %v1408 = vstv %s1407
          %v1409 = vmul.f32 %v1390, %v1408
          %v1410 = vmul.f32 %v1391, %v1408
          %v1411 = vadd.f32 %v1380, %v1409
          %v1412 = vadd.f32 %v1381, %v1410
          %s1413 = sadd.s32 %s1155, 7
          %s1414 = sld [smem:[#allocation14 + %s1413]]
          %v1415 = vstv %s1414
          %v1416 = vmul.f32 %v1328, %v1415
          %v1417 = vmul.f32 %v1117, %v1415
          %v1418 = vmul.f32 %v1330, %v1415
          %v1422 = vrot.slane %v1416, 7
          %v1423 = vrot.slane %v1417, 7
          %v1424 = vsel %vm1336, %v1422, %v1423
          %v1425 = vrot.slane %v1418, 7
          %v1426 = vsel %vm1336, %v1423, %v1425
          %v1429 = vadd.f32 %v1397, %v1424
          %v1430 = vadd.f32 %v1398, %v1426
          %s1431 = sadd.s32 %s1163, 7
          %s1432 = sld [smem:[#allocation14 + %s1431]]
          %v1433 = vstv %s1432
          %v1434 = vmul.f32 %v1328, %v1433
          %v1435 = vmul.f32 %v1117, %v1433
          %v1436 = vmul.f32 %v1330, %v1433
          %v1440 = vrot.slane %v1434, 7
          %v1441 = vrot.slane %v1435, 7
          %v1442 = vsel %vm1336, %v1440, %v1441
          %v1443 = vrot.slane %v1436, 7
          %v1444 = vsel %vm1336, %v1441, %v1443
          %v1447 = vadd.f32 %v1404, %v1442
          %v1448 = vadd.f32 %v1405, %v1444
          %s1449 = sadd.s32 %s1171, 7
          %s1450 = sld [smem:[#allocation14 + %s1449]]
          %v1451 = vstv %s1450
          %v1452 = vmul.f32 %v1328, %v1451
          %v1453 = vmul.f32 %v1117, %v1451
          %v1454 = vmul.f32 %v1330, %v1451
          %v1458 = vrot.slane %v1452, 7
          %v1459 = vrot.slane %v1453, 7
          %v1460 = vsel %vm1336, %v1458, %v1459
          %v1461 = vrot.slane %v1454, 7
          %v1462 = vsel %vm1336, %v1459, %v1461
          %v1465 = vadd.f32 %v1411, %v1460
          %v1466 = vadd.f32 %v1412, %v1462
          %1467 = vrot.lane.b32.xlu0 %v1339, 127
          %v1468 = vpop.permute.xlu0 %1467
          %1469 = vrot.lane.b32.xlu0 %v1344, 127
          %v1470 = vpop.permute.xlu0 %1469
          %1471 = vrot.lane.b32.xlu0 %v1342, 127
          %v1472 = vpop.permute.xlu0 %1471
          %1473 = vrot.lane.b32.xlu0 %v1346, 127
          %v1474 = vpop.permute.xlu0 %1473
          %v1475 = vsel %vm1272, %v1468, %v1472
          %v1476 = vsel %vm1272, %v1470, %v1474
          %s1477 = sadd.s32 %s1155, 8
          %s1478 = sld [smem:[#allocation14 + %s1477]]
          %v1479 = vstv %s1478
          %v1480 = vmul.f32 %v1475, %v1479
          %v1481 = vmul.f32 %v1476, %v1479
          %v1482 = vadd.f32 %v1429, %v1480
          %v1483 = vadd.f32 %v1430, %v1481
          %s1484 = sadd.s32 %s1163, 8
          %s1485 = sld [smem:[#allocation14 + %s1484]]
          %v1486 = vstv %s1485
          %v1487 = vmul.f32 %v1475, %v1486
          %v1488 = vmul.f32 %v1476, %v1486
          %v1489 = vadd.f32 %v1447, %v1487
          %v1490 = vadd.f32 %v1448, %v1488
          %s1491 = sadd.s32 %s1171, 8
          %s1492 = sld [smem:[#allocation14 + %s1491]]
          %v1493 = vstv %s1492
          %v1494 = vmul.f32 %v1475, %v1493
          %v1495 = vmul.f32 %v1476, %v1493
          %v1496 = vadd.f32 %v1465, %v1494
          %v1497 = vadd.f32 %v1466, %v1495
          %1498 = vrot.lane.b32.xlu0 %v1339, 126
          %v1499 = vpop.permute.xlu0 %1498
          %1500 = vrot.lane.b32.xlu0 %v1344, 126
          %v1501 = vpop.permute.xlu0 %1500
          %1502 = vrot.lane.b32.xlu0 %v1342, 126
          %v1503 = vpop.permute.xlu0 %1502
          %1504 = vrot.lane.b32.xlu0 %v1346, 126
          %v1505 = vpop.permute.xlu0 %1504
          %v1506 = vsel %vm1304, %v1499, %v1503
          %v1507 = vsel %vm1304, %v1501, %v1505
          %s1508 = sadd.s32 %s1155, 9
          %s1509 = sld [smem:[#allocation14 + %s1508]]
          %v1510 = vstv %s1509
          %v1511 = vmul.f32 %v1506, %v1510
          %v1512 = vmul.f32 %v1507, %v1510
          %v1513 = vadd.f32 %v1482, %v1511
          %v1514 = vadd.f32 %v1483, %v1512
          %s1515 = sadd.s32 %s1163, 9
          %s1516 = sld [smem:[#allocation14 + %s1515]]
          %v1517 = vstv %s1516
          %v1518 = vmul.f32 %v1506, %v1517
          %v1519 = vmul.f32 %v1507, %v1517
          %v1520 = vadd.f32 %v1489, %v1518
          %v1521 = vadd.f32 %v1490, %v1519
          %s1522 = sadd.s32 %s1171, 9
          %s1523 = sld [smem:[#allocation14 + %s1522]]
          %v1524 = vstv %s1523
          %v1525 = vmul.f32 %v1506, %v1524
          %v1526 = vmul.f32 %v1507, %v1524
          %v1527 = vadd.f32 %v1496, %v1525
          %v1528 = vadd.f32 %v1497, %v1526
          %v1529 = vld [vmem:[%s1114 + $0x20] sm:$0xff]
          %v1530 = vld [vmem:[%s1114 + $0x28] sm:$0xff]
          %1531 = vrot.lane.b32.xlu0 %v1117, 2
          %v1532 = vpop.permute.xlu0 %1531
          %1533 = vrot.lane.b32.xlu0 %v1529, 2
          %v1534 = vpop.permute.xlu0 %1533
          %1535 = vrot.lane.b32.xlu0 %v1118, 2
          %v1536 = vpop.permute.xlu0 %1535
          %1537 = vrot.lane.b32.xlu0 %v1530, 2
          %v1538 = vpop.permute.xlu0 %1537
          %v1539 = vsel %vm1152, %v1536, %v1532
          %v1540 = vsel %vm1152, %v1538, %v1534
          %s1541 = sadd.s32 %s1155, 10
          %s1542 = sld [smem:[#allocation14 + %s1541]]
          %v1543 = vstv %s1542
          %v1544 = vmul.f32 %v1539, %v1543
          %v1545 = vmul.f32 %v1540, %v1543
          %v1546 = vadd.f32 %v1513, %v1544
          %v1547 = vadd.f32 %v1514, %v1545
          %s1548 = sadd.s32 %s1163, 10
          %s1549 = sld [smem:[#allocation14 + %s1548]]
          %v1550 = vstv %s1549
          %v1551 = vmul.f32 %v1539, %v1550
          %v1552 = vmul.f32 %v1540, %v1550
          %v1553 = vadd.f32 %v1520, %v1551
          %v1554 = vadd.f32 %v1521, %v1552
          %s1555 = sadd.s32 %s1171, 10
          %s1556 = sld [smem:[#allocation14 + %s1555]]
          %v1557 = vstv %s1556
          %v1558 = vmul.f32 %v1539, %v1557
          %v1559 = vmul.f32 %v1540, %v1557
          %v1560 = vadd.f32 %v1527, %v1558
          %v1561 = vadd.f32 %v1528, %v1559
          %1562 = vrot.lane.b32.xlu0 %v1117, 1
          %v1563 = vpop.permute.xlu0 %1562
          %1564 = vrot.lane.b32.xlu0 %v1529, 1
          %v1565 = vpop.permute.xlu0 %1564
          %1566 = vrot.lane.b32.xlu0 %v1118, 1
          %v1567 = vpop.permute.xlu0 %1566
          %1568 = vrot.lane.b32.xlu0 %v1530, 1
          %v1569 = vpop.permute.xlu0 %1568
          %v1570 = vsel %vm1186, %v1567, %v1563
          %v1571 = vsel %vm1186, %v1569, %v1565
          %s1572 = sadd.s32 %s1155, 11
          %s1573 = sld [smem:[#allocation14 + %s1572]]
          %v1574 = vstv %s1573
          %v1575 = vmul.f32 %v1570, %v1574
          %v1576 = vmul.f32 %v1571, %v1574
          %v1577 = vadd.f32 %v1546, %v1575
          %v1578 = vadd.f32 %v1547, %v1576
          %s1579 = sadd.s32 %s1163, 11
          %s1580 = sld [smem:[#allocation14 + %s1579]]
          %v1581 = vstv %s1580
          %v1582 = vmul.f32 %v1570, %v1581
          %v1583 = vmul.f32 %v1571, %v1581
          %v1584 = vadd.f32 %v1553, %v1582
          %v1585 = vadd.f32 %v1554, %v1583
          %s1586 = sadd.s32 %s1171, 11
          %s1587 = sld [smem:[#allocation14 + %s1586]]
          %v1588 = vstv %s1587
          %v1589 = vmul.f32 %v1570, %v1588
          %v1590 = vmul.f32 %v1571, %v1588
          %v1591 = vadd.f32 %v1560, %v1589
          %v1592 = vadd.f32 %v1561, %v1590
          %s1593 = sadd.s32 %s1155, 12
          %s1594 = sld [smem:[#allocation14 + %s1593]]
          %v1595 = vstv %s1594
          %v1596 = vmul.f32 %v1117, %v1595
          %v1597 = vmul.f32 %v1529, %v1595
          %v1598 = vadd.f32 %v1577, %v1596
          %v1599 = vadd.f32 %v1578, %v1597
          %s1600 = sadd.s32 %s1163, 12
          %s1601 = sld [smem:[#allocation14 + %s1600]]
          %v1602 = vstv %s1601
          %v1603 = vmul.f32 %v1117, %v1602
          %v1604 = vmul.f32 %v1529, %v1602
          %v1605 = vadd.f32 %v1584, %v1603
          %v1606 = vadd.f32 %v1585, %v1604
          %s1607 = sadd.s32 %s1171, 12
          %s1608 = sld [smem:[#allocation14 + %s1607]]
          %v1609 = vstv %s1608
          %v1610 = vmul.f32 %v1117, %v1609
          %v1611 = vmul.f32 %v1529, %v1609
          %v1612 = vadd.f32 %v1591, %v1610
          %v1613 = vadd.f32 %v1592, %v1611
          %1614 = vrot.lane.b32.xlu0 %v1117, 127
          %v1615 = vpop.permute.xlu0 %1614
          %1616 = vrot.lane.b32.xlu0 %v1529, 127
          %v1617 = vpop.permute.xlu0 %1616
          %1618 = vrot.lane.b32.xlu0 %v1118, 127
          %v1619 = vpop.permute.xlu0 %1618
          %1620 = vrot.lane.b32.xlu0 %v1530, 127
          %v1621 = vpop.permute.xlu0 %1620
          %v1622 = vsel %vm1272, %v1615, %v1619
          %v1623 = vsel %vm1272, %v1617, %v1621
          %s1624 = sadd.s32 %s1155, 13
          %s1625 = sld [smem:[#allocation14 + %s1624]]
          %v1626 = vstv %s1625
          %v1627 = vmul.f32 %v1622, %v1626
          %v1628 = vmul.f32 %v1623, %v1626
          %v1629 = vadd.f32 %v1598, %v1627
          %v1630 = vadd.f32 %v1599, %v1628
          %s1631 = sadd.s32 %s1163, 13
          %s1632 = sld [smem:[#allocation14 + %s1631]]
          %v1633 = vstv %s1632
          %v1634 = vmul.f32 %v1622, %v1633
          %v1635 = vmul.f32 %v1623, %v1633
          %v1636 = vadd.f32 %v1605, %v1634
          %v1637 = vadd.f32 %v1606, %v1635
          %s1638 = sadd.s32 %s1171, 13
          %s1639 = sld [smem:[#allocation14 + %s1638]]
          %v1640 = vstv %s1639
          %v1641 = vmul.f32 %v1622, %v1640
          %v1642 = vmul.f32 %v1623, %v1640
          %v1643 = vadd.f32 %v1612, %v1641
          %v1644 = vadd.f32 %v1613, %v1642
          %1645 = vrot.lane.b32.xlu0 %v1117, 126
          %v1646 = vpop.permute.xlu0 %1645
          %1647 = vrot.lane.b32.xlu0 %v1529, 126
          %v1648 = vpop.permute.xlu0 %1647
          %1649 = vrot.lane.b32.xlu0 %v1118, 126
          %v1650 = vpop.permute.xlu0 %1649
          %1651 = vrot.lane.b32.xlu0 %v1530, 126
          %v1652 = vpop.permute.xlu0 %1651
          %v1653 = vsel %vm1304, %v1646, %v1650
          %v1654 = vsel %vm1304, %v1648, %v1652
          %s1655 = sadd.s32 %s1155, 14
          %s1656 = sld [smem:[#allocation14 + %s1655]]
          %v1657 = vstv %s1656
          %v1658 = vmul.f32 %v1653, %v1657
          %v1659 = vmul.f32 %v1654, %v1657
          %v1660 = vadd.f32 %v1629, %v1658
          %v1661 = vadd.f32 %v1630, %v1659
          %s1662 = sadd.s32 %s1163, 14
          %s1663 = sld [smem:[#allocation14 + %s1662]]
          %v1664 = vstv %s1663
          %v1665 = vmul.f32 %v1653, %v1664
          %v1666 = vmul.f32 %v1654, %v1664
          %v1667 = vadd.f32 %v1636, %v1665
          %v1668 = vadd.f32 %v1637, %v1666
          %s1669 = sadd.s32 %s1171, 14
          %s1670 = sld [smem:[#allocation14 + %s1669]]
          %v1671 = vstv %s1670
          %v1672 = vmul.f32 %v1653, %v1671
          %v1673 = vmul.f32 %v1654, %v1671
          %v1674 = vadd.f32 %v1643, %v1672
          %v1675 = vadd.f32 %v1644, %v1673
          %v1676 = vld [vmem:[%s1114 + $0x10] sm:$0xfe]
          %v1677 = vld [vmem:[%s1114 + $0x18] sm:$0xfe]
          %v1678 = vld [vmem:[%s1114 + $0x20] sm:$0xff]
          %v1679 = vld [vmem:[%s1114 + $0x28] sm:$0xff]
          %v1680 = vld [vmem:[%s1114 + $0x30] sm:$0x1]
          %v1681 = vld [vmem:[%s1114 + $0x38] sm:$0x1]
          %vm1688 = vcmask 1046528
          %v1689 = vrot.slane %v1676, 1
          %v1690 = vrot.slane %v1678, 1
          %v1691 = vsel %vm1688, %v1689, %v1690
          %v1692 = vrot.slane %v1677, 1
          %v1693 = vrot.slane %v1679, 1
          %v1694 = vsel %vm1688, %v1692, %v1693
          %v1695 = vrot.slane %v1680, 1
          %v1696 = vsel %vm1688, %v1690, %v1695
          %v1697 = vrot.slane %v1681, 1
          %v1698 = vsel %vm1688, %v1693, %v1697
          %1703 = vrot.lane.b32.xlu0 %v1691, 2
          %v1704 = vpop.permute.xlu0 %1703
          %1705 = vrot.lane.b32.xlu0 %v1696, 2
          %v1706 = vpop.permute.xlu0 %1705
          %1707 = vrot.lane.b32.xlu0 %v1694, 2
          %v1708 = vpop.permute.xlu0 %1707
          %1709 = vrot.lane.b32.xlu0 %v1698, 2
          %v1710 = vpop.permute.xlu0 %1709
          %v1711 = vsel %vm1152, %v1708, %v1704
          %v1712 = vsel %vm1152, %v1710, %v1706
          %s1713 = sadd.s32 %s1155, 15
          %s1714 = sld [smem:[#allocation14 + %s1713]]
          %v1715 = vstv %s1714
          %v1716 = vmul.f32 %v1711, %v1715
          %v1717 = vmul.f32 %v1712, %v1715
          %v1718 = vadd.f32 %v1660, %v1716
          %v1719 = vadd.f32 %v1661, %v1717
          %s1720 = sadd.s32 %s1163, 15
          %s1721 = sld [smem:[#allocation14 + %s1720]]
          %v1722 = vstv %s1721
          %v1723 = vmul.f32 %v1711, %v1722
          %v1724 = vmul.f32 %v1712, %v1722
          %v1725 = vadd.f32 %v1667, %v1723
          %v1726 = vadd.f32 %v1668, %v1724
          %s1727 = sadd.s32 %s1171, 15
          %s1728 = sld [smem:[#allocation14 + %s1727]]
          %v1729 = vstv %s1728
          %v1730 = vmul.f32 %v1711, %v1729
          %v1731 = vmul.f32 %v1712, %v1729
          %v1732 = vadd.f32 %v1674, %v1730
          %v1733 = vadd.f32 %v1675, %v1731
          %1734 = vrot.lane.b32.xlu0 %v1691, 1
          %v1735 = vpop.permute.xlu0 %1734
          %1736 = vrot.lane.b32.xlu0 %v1696, 1
          %v1737 = vpop.permute.xlu0 %1736
          %1738 = vrot.lane.b32.xlu0 %v1694, 1
          %v1739 = vpop.permute.xlu0 %1738
          %1740 = vrot.lane.b32.xlu0 %v1698, 1
          %v1741 = vpop.permute.xlu0 %1740
          %v1742 = vsel %vm1186, %v1739, %v1735
          %v1743 = vsel %vm1186, %v1741, %v1737
          %s1744 = sadd.s32 %s1155, 16
          %s1745 = sld [smem:[#allocation14 + %s1744]]
          %v1746 = vstv %s1745
          %v1747 = vmul.f32 %v1742, %v1746
          %v1748 = vmul.f32 %v1743, %v1746
          %v1749 = vadd.f32 %v1718, %v1747
          %v1750 = vadd.f32 %v1719, %v1748
          %s1751 = sadd.s32 %s1163, 16
          %s1752 = sld [smem:[#allocation14 + %s1751]]
          %v1753 = vstv %s1752
          %v1754 = vmul.f32 %v1742, %v1753
          %v1755 = vmul.f32 %v1743, %v1753
          %v1756 = vadd.f32 %v1725, %v1754
          %v1757 = vadd.f32 %v1726, %v1755
          %s1758 = sadd.s32 %s1171, 16
          %s1759 = sld [smem:[#allocation14 + %s1758]]
          %v1760 = vstv %s1759
          %v1761 = vmul.f32 %v1742, %v1760
          %v1762 = vmul.f32 %v1743, %v1760
          %v1763 = vadd.f32 %v1732, %v1761
          %v1764 = vadd.f32 %v1733, %v1762
          %s1765 = sadd.s32 %s1155, 17
          %s1766 = sld [smem:[#allocation14 + %s1765]]
          %v1767 = vstv %s1766
          %v1768 = vmul.f32 %v1676, %v1767
          %v1769 = vmul.f32 %v1678, %v1767
          %v1770 = vmul.f32 %v1680, %v1767
          %v1774 = vrot.slane %v1768, 1
          %v1775 = vrot.slane %v1769, 1
          %v1776 = vsel %vm1688, %v1774, %v1775
          %v1777 = vrot.slane %v1770, 1
          %v1778 = vsel %vm1688, %v1775, %v1777
          %v1781 = vadd.f32 %v1749, %v1776
          %v1782 = vadd.f32 %v1750, %v1778
          %s1783 = sadd.s32 %s1163, 17
          %s1784 = sld [smem:[#allocation14 + %s1783]]
          %v1785 = vstv %s1784
          %v1786 = vmul.f32 %v1676, %v1785
          %v1787 = vmul.f32 %v1678, %v1785
          %v1788 = vmul.f32 %v1680, %v1785
          %v1792 = vrot.slane %v1786, 1
          %v1793 = vrot.slane %v1787, 1
          %v1794 = vsel %vm1688, %v1792, %v1793
          %v1795 = vrot.slane %v1788, 1
          %v1796 = vsel %vm1688, %v1793, %v1795
          %v1799 = vadd.f32 %v1756, %v1794
          %v1800 = vadd.f32 %v1757, %v1796
          %s1801 = sadd.s32 %s1171, 17
          %s1802 = sld [smem:[#allocation14 + %s1801]]
          %v1803 = vstv %s1802
          %v1804 = vmul.f32 %v1676, %v1803
          %v1805 = vmul.f32 %v1678, %v1803
          %v1806 = vmul.f32 %v1680, %v1803
          %v1810 = vrot.slane %v1804, 1
          %v1811 = vrot.slane %v1805, 1
          %v1812 = vsel %vm1688, %v1810, %v1811
          %v1813 = vrot.slane %v1806, 1
          %v1814 = vsel %vm1688, %v1811, %v1813
          %v1817 = vadd.f32 %v1763, %v1812
          %v1818 = vadd.f32 %v1764, %v1814
          %1819 = vrot.lane.b32.xlu0 %v1691, 127
          %v1820 = vpop.permute.xlu0 %1819
          %1821 = vrot.lane.b32.xlu0 %v1696, 127
          %v1822 = vpop.permute.xlu0 %1821
          %1823 = vrot.lane.b32.xlu0 %v1694, 127
          %v1824 = vpop.permute.xlu0 %1823
          %1825 = vrot.lane.b32.xlu0 %v1698, 127
          %v1826 = vpop.permute.xlu0 %1825
          %v1827 = vsel %vm1272, %v1820, %v1824
          %v1828 = vsel %vm1272, %v1822, %v1826
          %s1829 = sadd.s32 %s1155, 18
          %s1830 = sld [smem:[#allocation14 + %s1829]]
          %v1831 = vstv %s1830
          %v1832 = vmul.f32 %v1827, %v1831
          %v1833 = vmul.f32 %v1828, %v1831
          %v1834 = vadd.f32 %v1781, %v1832
          %v1835 = vadd.f32 %v1782, %v1833
          %s1836 = sadd.s32 %s1163, 18
          %s1837 = sld [smem:[#allocation14 + %s1836]]
          %v1838 = vstv %s1837
          %v1839 = vmul.f32 %v1827, %v1838
          %v1840 = vmul.f32 %v1828, %v1838
          %v1841 = vadd.f32 %v1799, %v1839
          %v1842 = vadd.f32 %v1800, %v1840
          %s1843 = sadd.s32 %s1171, 18
          %s1844 = sld [smem:[#allocation14 + %s1843]]
          %v1845 = vstv %s1844
          %v1846 = vmul.f32 %v1827, %v1845
          %v1847 = vmul.f32 %v1828, %v1845
          %v1848 = vadd.f32 %v1817, %v1846
          %v1849 = vadd.f32 %v1818, %v1847
          %1850 = vrot.lane.b32.xlu0 %v1691, 126
          %v1851 = vpop.permute.xlu0 %1850
          %1852 = vrot.lane.b32.xlu0 %v1696, 126
          %v1853 = vpop.permute.xlu0 %1852
          %1854 = vrot.lane.b32.xlu0 %v1694, 126
          %v1855 = vpop.permute.xlu0 %1854
          %1856 = vrot.lane.b32.xlu0 %v1698, 126
          %v1857 = vpop.permute.xlu0 %1856
          %v1858 = vsel %vm1304, %v1851, %v1855
          %v1859 = vsel %vm1304, %v1853, %v1857
          %s1860 = sadd.s32 %s1155, 19
          %s1861 = sld [smem:[#allocation14 + %s1860]]
          %v1862 = vstv %s1861
          %v1863 = vmul.f32 %v1858, %v1862
          %v1864 = vmul.f32 %v1859, %v1862
          %v1865 = vadd.f32 %v1834, %v1863
          %v1866 = vadd.f32 %v1835, %v1864
          %s1867 = sadd.s32 %s1163, 19
          %s1868 = sld [smem:[#allocation14 + %s1867]]
          %v1869 = vstv %s1868
          %v1870 = vmul.f32 %v1858, %v1869
          %v1871 = vmul.f32 %v1859, %v1869
          %v1872 = vadd.f32 %v1841, %v1870
          %v1873 = vadd.f32 %v1842, %v1871
          %s1874 = sadd.s32 %s1171, 19
          %s1875 = sld [smem:[#allocation14 + %s1874]]
          %v1876 = vstv %s1875
          %v1877 = vmul.f32 %v1858, %v1876
          %v1878 = vmul.f32 %v1859, %v1876
          %v1879 = vadd.f32 %v1848, %v1877
          %v1880 = vadd.f32 %v1849, %v1878
          %v1881 = vld [vmem:[%s1114 + $0x10] sm:$0xfc]
          %v1882 = vld [vmem:[%s1114 + $0x18] sm:$0xfc]
          %v1883 = vld [vmem:[%s1114 + $0x30] sm:$0x3]
          %v1884 = vld [vmem:[%s1114 + $0x38] sm:$0x3]
          %vm1889 = vcmask 1045504
          %v1890 = vrot.slane %v1881, 2
          %v1891 = vrot.slane %v1678, 2
          %v1892 = vsel %vm1889, %v1890, %v1891
          %v1893 = vrot.slane %v1882, 2
          %v1894 = vrot.slane %v1679, 2
          %v1895 = vsel %vm1889, %v1893, %v1894
          %v1896 = vrot.slane %v1883, 2
          %v1897 = vsel %vm1889, %v1891, %v1896
          %v1898 = vrot.slane %v1884, 2
          %v1899 = vsel %vm1889, %v1894, %v1898
          %1904 = vrot.lane.b32.xlu0 %v1892, 2
          %v1905 = vpop.permute.xlu0 %1904
          %1906 = vrot.lane.b32.xlu0 %v1897, 2
          %v1907 = vpop.permute.xlu0 %1906
          %1908 = vrot.lane.b32.xlu0 %v1895, 2
          %v1909 = vpop.permute.xlu0 %1908
          %1910 = vrot.lane.b32.xlu0 %v1899, 2
          %v1911 = vpop.permute.xlu0 %1910
          %v1912 = vsel %vm1152, %v1909, %v1905
          %v1913 = vsel %vm1152, %v1911, %v1907
          %s1914 = sadd.s32 %s1155, 20
          %s1915 = sld [smem:[#allocation14 + %s1914]]
          %v1916 = vstv %s1915
          %v1917 = vmul.f32 %v1912, %v1916
          %v1918 = vmul.f32 %v1913, %v1916
          %v1919 = vadd.f32 %v1865, %v1917
          %v1920 = vadd.f32 %v1866, %v1918
          %s1921 = sadd.s32 %s1163, 20
          %s1922 = sld [smem:[#allocation14 + %s1921]]
          %v1923 = vstv %s1922
          %v1924 = vmul.f32 %v1912, %v1923
          %v1925 = vmul.f32 %v1913, %v1923
          %v1926 = vadd.f32 %v1872, %v1924
          %v1927 = vadd.f32 %v1873, %v1925
          %s1928 = sadd.s32 %s1171, 20
          %s1929 = sld [smem:[#allocation14 + %s1928]]
          %v1930 = vstv %s1929
          %v1931 = vmul.f32 %v1912, %v1930
          %v1932 = vmul.f32 %v1913, %v1930
          %v1933 = vadd.f32 %v1879, %v1931
          %v1934 = vadd.f32 %v1880, %v1932
          %1935 = vrot.lane.b32.xlu0 %v1892, 1
          %v1936 = vpop.permute.xlu0 %1935
          %1937 = vrot.lane.b32.xlu0 %v1897, 1
          %v1938 = vpop.permute.xlu0 %1937
          %1939 = vrot.lane.b32.xlu0 %v1895, 1
          %v1940 = vpop.permute.xlu0 %1939
          %1941 = vrot.lane.b32.xlu0 %v1899, 1
          %v1942 = vpop.permute.xlu0 %1941
          %v1943 = vsel %vm1186, %v1940, %v1936
          %v1944 = vsel %vm1186, %v1942, %v1938
          %s1945 = sadd.s32 %s1155, 21
          %s1946 = sld [smem:[#allocation14 + %s1945]]
          %v1947 = vstv %s1946
          %v1948 = vmul.f32 %v1943, %v1947
          %v1949 = vmul.f32 %v1944, %v1947
          %v1950 = vadd.f32 %v1919, %v1948
          %v1951 = vadd.f32 %v1920, %v1949
          %s1952 = sadd.s32 %s1163, 21
          %s1953 = sld [smem:[#allocation14 + %s1952]]
          %v1954 = vstv %s1953
          %v1955 = vmul.f32 %v1943, %v1954
          %v1956 = vmul.f32 %v1944, %v1954
          %v1957 = vadd.f32 %v1926, %v1955
          %v1958 = vadd.f32 %v1927, %v1956
          %s1959 = sadd.s32 %s1171, 21
          %s1960 = sld [smem:[#allocation14 + %s1959]]
          %v1961 = vstv %s1960
          %v1962 = vmul.f32 %v1943, %v1961
          %v1963 = vmul.f32 %v1944, %v1961
          %v1964 = vadd.f32 %v1933, %v1962
          %v1965 = vadd.f32 %v1934, %v1963
          %s1966 = sadd.s32 %s1155, 22
          %s1967 = sld [smem:[#allocation14 + %s1966]]
          %v1968 = vstv %s1967
          %v1969 = vmul.f32 %v1881, %v1968
          %v1970 = vmul.f32 %v1678, %v1968
          %v1971 = vmul.f32 %v1883, %v1968
          %v1975 = vrot.slane %v1969, 2
          %v1976 = vrot.slane %v1970, 2
          %v1977 = vsel %vm1889, %v1975, %v1976
          %v1978 = vrot.slane %v1971, 2
          %v1979 = vsel %vm1889, %v1976, %v1978
          %v1982 = vadd.f32 %v1950, %v1977
          %v1983 = vadd.f32 %v1951, %v1979
          %s1984 = sadd.s32 %s1163, 22
          %s1985 = sld [smem:[#allocation14 + %s1984]]
          %v1986 = vstv %s1985
          %v1987 = vmul.f32 %v1881, %v1986
          %v1988 = vmul.f32 %v1678, %v1986
          %v1989 = vmul.f32 %v1883, %v1986
          %v1993 = vrot.slane %v1987, 2
          %v1994 = vrot.slane %v1988, 2
          %v1995 = vsel %vm1889, %v1993, %v1994
          %v1996 = vrot.slane %v1989, 2
          %v1997 = vsel %vm1889, %v1994, %v1996
          %v2000 = vadd.f32 %v1957, %v1995
          %v2001 = vadd.f32 %v1958, %v1997
          %s2002 = sadd.s32 %s1171, 22
          %s2003 = sld [smem:[#allocation14 + %s2002]]
          %v2004 = vstv %s2003
          %v2005 = vmul.f32 %v1881, %v2004
          %v2006 = vmul.f32 %v1678, %v2004
          %v2007 = vmul.f32 %v1883, %v2004
          %v2011 = vrot.slane %v2005, 2
          %v2012 = vrot.slane %v2006, 2
          %v2013 = vsel %vm1889, %v2011, %v2012
          %v2014 = vrot.slane %v2007, 2
          %v2015 = vsel %vm1889, %v2012, %v2014
          %v2018 = vadd.f32 %v1964, %v2013
          %v2019 = vadd.f32 %v1965, %v2015
          %2020 = vrot.lane.b32.xlu0 %v1892, 127
          %v2021 = vpop.permute.xlu0 %2020
          %2022 = vrot.lane.b32.xlu0 %v1897, 127
          %v2023 = vpop.permute.xlu0 %2022
          %2024 = vrot.lane.b32.xlu0 %v1895, 127
          %v2025 = vpop.permute.xlu0 %2024
          %2026 = vrot.lane.b32.xlu0 %v1899, 127
          %v2027 = vpop.permute.xlu0 %2026
          %v2028 = vsel %vm1272, %v2021, %v2025
          %v2029 = vsel %vm1272, %v2023, %v2027
          %s2030 = sadd.s32 %s1155, 23
          %s2031 = sld [smem:[#allocation14 + %s2030]]
          %v2032 = vstv %s2031
          %v2033 = vmul.f32 %v2028, %v2032
          %v2034 = vmul.f32 %v2029, %v2032
          %v2035 = vadd.f32 %v1982, %v2033
          %v2036 = vadd.f32 %v1983, %v2034
          %s2037 = sadd.s32 %s1163, 23
          %s2038 = sld [smem:[#allocation14 + %s2037]]
          %v2039 = vstv %s2038
          %v2040 = vmul.f32 %v2028, %v2039
          %v2041 = vmul.f32 %v2029, %v2039
          %v2042 = vadd.f32 %v2000, %v2040
          %v2043 = vadd.f32 %v2001, %v2041
          %s2044 = sadd.s32 %s1171, 23
          %s2045 = sld [smem:[#allocation14 + %s2044]]
          %v2046 = vstv %s2045
          %v2047 = vmul.f32 %v2028, %v2046
          %v2048 = vmul.f32 %v2029, %v2046
          %v2049 = vadd.f32 %v2018, %v2047
          %v2050 = vadd.f32 %v2019, %v2048
          %2051 = vrot.lane.b32.xlu0 %v1892, 126
          %v2052 = vpop.permute.xlu0 %2051
          %2053 = vrot.lane.b32.xlu0 %v1897, 126
          %v2054 = vpop.permute.xlu0 %2053
          %2055 = vrot.lane.b32.xlu0 %v1895, 126
          %v2056 = vpop.permute.xlu0 %2055
          %2057 = vrot.lane.b32.xlu0 %v1899, 126
          %v2058 = vpop.permute.xlu0 %2057
          %v2059 = vsel %vm1304, %v2052, %v2056
          %v2060 = vsel %vm1304, %v2054, %v2058
          %s2061 = sadd.s32 %s1155, 24
          %s2062 = sld [smem:[#allocation14 + %s2061]]
          %v2063 = vstv %s2062
          %v2064 = vmul.f32 %v2059, %v2063
          %v2065 = vmul.f32 %v2060, %v2063
          %v2066 = vadd.f32 %v2035, %v2064
          %v2067 = vadd.f32 %v2036, %v2065
          %s2068 = sadd.s32 %s1163, 24
          %s2069 = sld [smem:[#allocation14 + %s2068]]
          %v2070 = vstv %s2069
          %v2071 = vmul.f32 %v2059, %v2070
          %v2072 = vmul.f32 %v2060, %v2070
          %v2073 = vadd.f32 %v2042, %v2071
          %v2074 = vadd.f32 %v2043, %v2072
          %s2075 = sadd.s32 %s1171, 24
          %s2076 = sld [smem:[#allocation14 + %s2075]]
          %v2077 = vstv %s2076
          %v2078 = vmul.f32 %v2059, %v2077
          %v2079 = vmul.f32 %v2060, %v2077
          %v2080 = vadd.f32 %v2049, %v2078
          %v2081 = vadd.f32 %v2050, %v2079
        $region120: #{tpu_custom_call.1} parent=63 // loop_footer
          %s1105 = sadd.s32 1, %s1101
        $region121: #{tpu_custom_call.1} parent=63 // loop_footer_branch
          %1100 = sbr.rel target = $region117
        $region122: #{tpu_custom_call.1} parent=63 // loop_exit
          _
        %s2082 = sld [smem:[#allocation15]]
        %v2083 = vstv %s2082
        %v2084 = vadd.f32 %v1106, %v2083
        %v2085 = vadd.f32 %v1107, %v2083
        %v2086 = vmax.f32 %v2084, 0.0
        %v2087 = vmax.f32 %v2085, 0.0
        %s2088 = sld [smem:[#allocation15 + $0x1]]
        %v2089 = vstv %s2088
        %v2090 = vadd.f32 %v1108, %v2089
        %v2091 = vadd.f32 %v1109, %v2089
        %v2092 = vmax.f32 %v2090, 0.0
        %v2093 = vmax.f32 %v2091, 0.0
        %s2094 = sld [smem:[#allocation15 + $0x2]]
        %v2095 = vstv %s2094
        %v2096 = vadd.f32 %v1110, %v2095
        %v2097 = vadd.f32 %v1111, %v2095
        %v2098 = vmax.f32 %v2096, 0.0
        %v2099 = vmax.f32 %v2097, 0.0
        %2100 = vst [vmem:[%s562 + $0x10] sm:$0xff] %v2086
        %2101 = vst [vmem:[%s562 + $0x20] sm:$0xff] %v2087
        %2102 = vst [vmem:[%s569 + $0x10] sm:$0xff] %v2092
        %2103 = vst [vmem:[%s569 + $0x20] sm:$0xff] %v2093
        %2104 = vst [vmem:[%s576 + $0x10] sm:$0xff] %v2098
        %2105 = vst [vmem:[%s576 + $0x20] sm:$0xff] %v2099
        loop: start=0, step=1, limit=6
        $region123: #{tpu_custom_call.1} parent=63 // loop_pre_header
          _
        $region124: #{tpu_custom_call.1} parent=63 // loop_header
          %s2107 = sphi 0, %s2111
          %p2108 = scmp.ge.s32.totalorder %s2107, 6
          %v2112 = vphi 0.0, %v3911
          %v2113 = vphi 0.0, %v3912
          %v2114 = vphi 0.0, %v3918
          %v2115 = vphi 0.0, %v3919
          %v2116 = vphi 0.0, %v3925
          %v2117 = vphi 0.0, %v3926
        $region125: #{tpu_custom_call.1} parent=63 // loop_header_branch
          %2110 = sbr.rel (%p2108) target = $region129
        $region126: #{tpu_custom_call.1} parent=63 // loop_body
          %s2118 = sadd.s32 %s2107, 3
          %s2119 = smul.u32 %s2118, 8
          %s2120 = smul.addr %s2119, 8
          %s2121 = scalar_lea.vmem [#allocation2], %s2120
          %v2122 = vld [vmem:[%s2121] sm:$0xe0]
          %v2123 = vld [vmem:[%s2121 + $0x8] sm:$0xe0]
          %v2124 = vld [vmem:[%s2121 + $0x10] sm:$0xff]
          %v2125 = vld [vmem:[%s2121 + $0x18] sm:$0xff]
          %v2126 = vld [vmem:[%s2121 + $0x20] sm:$0x1f]
          %v2127 = vld [vmem:[%s2121 + $0x28] sm:$0x1f]
          %vm2134 = vcmask 1042432
          %v2135 = vrot.slane %v2122, 5
          %v2136 = vrot.slane %v2124, 5
          %v2137 = vsel %vm2134, %v2135, %v2136
          %v2138 = vrot.slane %v2123, 5
          %v2139 = vrot.slane %v2125, 5
          %v2140 = vsel %vm2134, %v2138, %v2139
          %v2141 = vrot.slane %v2126, 5
          %v2142 = vsel %vm2134, %v2136, %v2141
          %v2143 = vrot.slane %v2127, 5
          %v2144 = vsel %vm2134, %v2139, %v2143
          %2149 = vrot.lane.b32.xlu0 %v2137, 3
          %v2150 = vpop.permute.xlu0 %2149
          %2151 = vrot.lane.b32.xlu0 %v2142, 3
          %v2152 = vpop.permute.xlu0 %2151
          %2153 = vrot.lane.b32.xlu0 %v2140, 3
          %v2154 = vpop.permute.xlu0 %2153
          %2155 = vrot.lane.b32.xlu0 %v2144, 3
          %v2156 = vpop.permute.xlu0 %2155
          %v2157 = vlaneseq
          %v2158 = vand.u32 %v2157, 127
          %vm2159 = vcmp.lt.s32.totalorder %v2158, 3
          %v2160 = vsel %vm2159, %v2154, %v2150
          %v2161 = vsel %vm2159, %v2156, %v2152
          %s2162 = smul.u32 %s2107, 49
          %s2163 = sld [smem:[#allocation16 + %s2162]]
          %v2164 = vstv %s2163
          %v2165 = vmul.f32 %v2160, %v2164
          %v2166 = vmul.f32 %v2161, %v2164
          %v2167 = vadd.f32 %v2112, %v2165
          %v2168 = vadd.f32 %v2113, %v2166
          %s2169 = sadd.s32 %s2107, 6
          %s2170 = smul.u32 %s2169, 49
          %s2171 = sld [smem:[#allocation16 + %s2170]]
          %v2172 = vstv %s2171
          %v2173 = vmul.f32 %v2160, %v2172
          %v2174 = vmul.f32 %v2161, %v2172
          %v2175 = vadd.f32 %v2114, %v2173
          %v2176 = vadd.f32 %v2115, %v2174
          %s2177 = sadd.s32 %s2107, 12
          %s2178 = smul.u32 %s2177, 49
          %s2179 = sld [smem:[#allocation16 + %s2178]]
          %v2180 = vstv %s2179
          %v2181 = vmul.f32 %v2160, %v2180
          %v2182 = vmul.f32 %v2161, %v2180
          %v2183 = vadd.f32 %v2116, %v2181
          %v2184 = vadd.f32 %v2117, %v2182
          %2185 = vrot.lane.b32.xlu0 %v2137, 2
          %v2186 = vpop.permute.xlu0 %2185
          %2187 = vrot.lane.b32.xlu0 %v2142, 2
          %v2188 = vpop.permute.xlu0 %2187
          %2189 = vrot.lane.b32.xlu0 %v2140, 2
          %v2190 = vpop.permute.xlu0 %2189
          %2191 = vrot.lane.b32.xlu0 %v2144, 2
          %v2192 = vpop.permute.xlu0 %2191
          %vm2193 = vcmp.lt.s32.totalorder %v2158, 2
          %v2194 = vsel %vm2193, %v2190, %v2186
          %v2195 = vsel %vm2193, %v2192, %v2188
          %s2196 = sadd.s32 %s2162, 1
          %s2197 = sld [smem:[#allocation16 + %s2196]]
          %v2198 = vstv %s2197
          %v2199 = vmul.f32 %v2194, %v2198
          %v2200 = vmul.f32 %v2195, %v2198
          %v2201 = vadd.f32 %v2167, %v2199
          %v2202 = vadd.f32 %v2168, %v2200
          %s2203 = sadd.s32 %s2170, 1
          %s2204 = sld [smem:[#allocation16 + %s2203]]
          %v2205 = vstv %s2204
          %v2206 = vmul.f32 %v2194, %v2205
          %v2207 = vmul.f32 %v2195, %v2205
          %v2208 = vadd.f32 %v2175, %v2206
          %v2209 = vadd.f32 %v2176, %v2207
          %s2210 = sadd.s32 %s2178, 1
          %s2211 = sld [smem:[#allocation16 + %s2210]]
          %v2212 = vstv %s2211
          %v2213 = vmul.f32 %v2194, %v2212
          %v2214 = vmul.f32 %v2195, %v2212
          %v2215 = vadd.f32 %v2183, %v2213
          %v2216 = vadd.f32 %v2184, %v2214
          %2217 = vrot.lane.b32.xlu0 %v2137, 1
          %v2218 = vpop.permute.xlu0 %2217
          %2219 = vrot.lane.b32.xlu0 %v2142, 1
          %v2220 = vpop.permute.xlu0 %2219
          %2221 = vrot.lane.b32.xlu0 %v2140, 1
          %v2222 = vpop.permute.xlu0 %2221
          %2223 = vrot.lane.b32.xlu0 %v2144, 1
          %v2224 = vpop.permute.xlu0 %2223
          %vm2225 = vcmp.lt.s32.totalorder %v2158, 1
          %v2226 = vsel %vm2225, %v2222, %v2218
          %v2227 = vsel %vm2225, %v2224, %v2220
          %s2228 = sadd.s32 %s2162, 2
          %s2229 = sld [smem:[#allocation16 + %s2228]]
          %v2230 = vstv %s2229
          %v2231 = vmul.f32 %v2226, %v2230
          %v2232 = vmul.f32 %v2227, %v2230
          %v2233 = vadd.f32 %v2201, %v2231
          %v2234 = vadd.f32 %v2202, %v2232
          %s2235 = sadd.s32 %s2170, 2
          %s2236 = sld [smem:[#allocation16 + %s2235]]
          %v2237 = vstv %s2236
          %v2238 = vmul.f32 %v2226, %v2237
          %v2239 = vmul.f32 %v2227, %v2237
          %v2240 = vadd.f32 %v2208, %v2238
          %v2241 = vadd.f32 %v2209, %v2239
          %s2242 = sadd.s32 %s2178, 2
          %s2243 = sld [smem:[#allocation16 + %s2242]]
          %v2244 = vstv %s2243
          %v2245 = vmul.f32 %v2226, %v2244
          %v2246 = vmul.f32 %v2227, %v2244
          %v2247 = vadd.f32 %v2215, %v2245
          %v2248 = vadd.f32 %v2216, %v2246
          %s2249 = sadd.s32 %s2162, 3
          %s2250 = sld [smem:[#allocation16 + %s2249]]
          %v2251 = vstv %s2250
          %v2252 = vmul.f32 %v2122, %v2251
          %v2253 = vmul.f32 %v2124, %v2251
          %v2254 = vmul.f32 %v2126, %v2251
          %v2258 = vrot.slane %v2252, 5
          %v2259 = vrot.slane %v2253, 5
          %v2260 = vsel %vm2134, %v2258, %v2259
          %v2261 = vrot.slane %v2254, 5
          %v2262 = vsel %vm2134, %v2259, %v2261
          %v2265 = vadd.f32 %v2233, %v2260
          %v2266 = vadd.f32 %v2234, %v2262
          %s2267 = sadd.s32 %s2170, 3
          %s2268 = sld [smem:[#allocation16 + %s2267]]
          %v2269 = vstv %s2268
          %v2270 = vmul.f32 %v2122, %v2269
          %v2271 = vmul.f32 %v2124, %v2269
          %v2272 = vmul.f32 %v2126, %v2269
          %v2276 = vrot.slane %v2270, 5
          %v2277 = vrot.slane %v2271, 5
          %v2278 = vsel %vm2134, %v2276, %v2277
          %v2279 = vrot.slane %v2272, 5
          %v2280 = vsel %vm2134, %v2277, %v2279
          %v2283 = vadd.f32 %v2240, %v2278
          %v2284 = vadd.f32 %v2241, %v2280
          %s2285 = sadd.s32 %s2178, 3
          %s2286 = sld [smem:[#allocation16 + %s2285]]
          %v2287 = vstv %s2286
          %v2288 = vmul.f32 %v2122, %v2287
          %v2289 = vmul.f32 %v2124, %v2287
          %v2290 = vmul.f32 %v2126, %v2287
          %v2294 = vrot.slane %v2288, 5
          %v2295 = vrot.slane %v2289, 5
          %v2296 = vsel %vm2134, %v2294, %v2295
          %v2297 = vrot.slane %v2290, 5
          %v2298 = vsel %vm2134, %v2295, %v2297
          %v2301 = vadd.f32 %v2247, %v2296
          %v2302 = vadd.f32 %v2248, %v2298
          %2303 = vrot.lane.b32.xlu0 %v2137, 127
          %v2304 = vpop.permute.xlu0 %2303
          %2305 = vrot.lane.b32.xlu0 %v2142, 127
          %v2306 = vpop.permute.xlu0 %2305
          %2307 = vrot.lane.b32.xlu0 %v2140, 127
          %v2308 = vpop.permute.xlu0 %2307
          %2309 = vrot.lane.b32.xlu0 %v2144, 127
          %v2310 = vpop.permute.xlu0 %2309
          %vm2311 = vcmp.lt.s32.totalorder %v2158, 127
          %v2312 = vsel %vm2311, %v2304, %v2308
          %v2313 = vsel %vm2311, %v2306, %v2310
          %s2314 = sadd.s32 %s2162, 4
          %s2315 = sld [smem:[#allocation16 + %s2314]]
          %v2316 = vstv %s2315
          %v2317 = vmul.f32 %v2312, %v2316
          %v2318 = vmul.f32 %v2313, %v2316
          %v2319 = vadd.f32 %v2265, %v2317
          %v2320 = vadd.f32 %v2266, %v2318
          %s2321 = sadd.s32 %s2170, 4
          %s2322 = sld [smem:[#allocation16 + %s2321]]
          %v2323 = vstv %s2322
          %v2324 = vmul.f32 %v2312, %v2323
          %v2325 = vmul.f32 %v2313, %v2323
          %v2326 = vadd.f32 %v2283, %v2324
          %v2327 = vadd.f32 %v2284, %v2325
          %s2328 = sadd.s32 %s2178, 4
          %s2329 = sld [smem:[#allocation16 + %s2328]]
          %v2330 = vstv %s2329
          %v2331 = vmul.f32 %v2312, %v2330
          %v2332 = vmul.f32 %v2313, %v2330
          %v2333 = vadd.f32 %v2301, %v2331
          %v2334 = vadd.f32 %v2302, %v2332
          %2335 = vrot.lane.b32.xlu0 %v2137, 126
          %v2336 = vpop.permute.xlu0 %2335
          %2337 = vrot.lane.b32.xlu0 %v2142, 126
          %v2338 = vpop.permute.xlu0 %2337
          %2339 = vrot.lane.b32.xlu0 %v2140, 126
          %v2340 = vpop.permute.xlu0 %2339
          %2341 = vrot.lane.b32.xlu0 %v2144, 126
          %v2342 = vpop.permute.xlu0 %2341
          %vm2343 = vcmp.lt.s32.totalorder %v2158, 126
          %v2344 = vsel %vm2343, %v2336, %v2340
          %v2345 = vsel %vm2343, %v2338, %v2342
          %s2346 = sadd.s32 %s2162, 5
          %s2347 = sld [smem:[#allocation16 + %s2346]]
          %v2348 = vstv %s2347
          %v2349 = vmul.f32 %v2344, %v2348
          %v2350 = vmul.f32 %v2345, %v2348
          %v2351 = vadd.f32 %v2319, %v2349
          %v2352 = vadd.f32 %v2320, %v2350
          %s2353 = sadd.s32 %s2170, 5
          %s2354 = sld [smem:[#allocation16 + %s2353]]
          %v2355 = vstv %s2354
          %v2356 = vmul.f32 %v2344, %v2355
          %v2357 = vmul.f32 %v2345, %v2355
          %v2358 = vadd.f32 %v2326, %v2356
          %v2359 = vadd.f32 %v2327, %v2357
          %s2360 = sadd.s32 %s2178, 5
          %s2361 = sld [smem:[#allocation16 + %s2360]]
          %v2362 = vstv %s2361
          %v2363 = vmul.f32 %v2344, %v2362
          %v2364 = vmul.f32 %v2345, %v2362
          %v2365 = vadd.f32 %v2333, %v2363
          %v2366 = vadd.f32 %v2334, %v2364
          %2367 = vrot.lane.b32.xlu0 %v2137, 125
          %v2368 = vpop.permute.xlu0 %2367
          %2369 = vrot.lane.b32.xlu0 %v2142, 125
          %v2370 = vpop.permute.xlu0 %2369
          %2371 = vrot.lane.b32.xlu0 %v2140, 125
          %v2372 = vpop.permute.xlu0 %2371
          %2373 = vrot.lane.b32.xlu0 %v2144, 125
          %v2374 = vpop.permute.xlu0 %2373
          %vm2375 = vcmp.lt.s32.totalorder %v2158, 125
          %v2376 = vsel %vm2375, %v2368, %v2372
          %v2377 = vsel %vm2375, %v2370, %v2374
          %s2378 = sadd.s32 %s2162, 6
          %s2379 = sld [smem:[#allocation16 + %s2378]]
          %v2380 = vstv %s2379
          %v2381 = vmul.f32 %v2376, %v2380
          %v2382 = vmul.f32 %v2377, %v2380
          %v2383 = vadd.f32 %v2351, %v2381
          %v2384 = vadd.f32 %v2352, %v2382
          %s2385 = sadd.s32 %s2170, 6
          %s2386 = sld [smem:[#allocation16 + %s2385]]
          %v2387 = vstv %s2386
          %v2388 = vmul.f32 %v2376, %v2387
          %v2389 = vmul.f32 %v2377, %v2387
          %v2390 = vadd.f32 %v2358, %v2388
          %v2391 = vadd.f32 %v2359, %v2389
          %s2392 = sadd.s32 %s2178, 6
          %s2393 = sld [smem:[#allocation16 + %s2392]]
          %v2394 = vstv %s2393
          %v2395 = vmul.f32 %v2376, %v2394
          %v2396 = vmul.f32 %v2377, %v2394
          %v2397 = vadd.f32 %v2365, %v2395
          %v2398 = vadd.f32 %v2366, %v2396
          %v2399 = vld [vmem:[%s2121] sm:$0xc0]
          %v2400 = vld [vmem:[%s2121 + $0x8] sm:$0xc0]
          %v2401 = vld [vmem:[%s2121 + $0x20] sm:$0x3f]
          %v2402 = vld [vmem:[%s2121 + $0x28] sm:$0x3f]
          %vm2407 = vcmask 1041408
          %v2408 = vrot.slane %v2399, 6
          %v2409 = vrot.slane %v2124, 6
          %v2410 = vsel %vm2407, %v2408, %v2409
          %v2411 = vrot.slane %v2400, 6
          %v2412 = vrot.slane %v2125, 6
          %v2413 = vsel %vm2407, %v2411, %v2412
          %v2414 = vrot.slane %v2401, 6
          %v2415 = vsel %vm2407, %v2409, %v2414
          %v2416 = vrot.slane %v2402, 6
          %v2417 = vsel %vm2407, %v2412, %v2416
          %2422 = vrot.lane.b32.xlu0 %v2410, 3
          %v2423 = vpop.permute.xlu0 %2422
          %2424 = vrot.lane.b32.xlu0 %v2415, 3
          %v2425 = vpop.permute.xlu0 %2424
          %2426 = vrot.lane.b32.xlu0 %v2413, 3
          %v2427 = vpop.permute.xlu0 %2426
          %2428 = vrot.lane.b32.xlu0 %v2417, 3
          %v2429 = vpop.permute.xlu0 %2428
          %v2430 = vsel %vm2159, %v2427, %v2423
          %v2431 = vsel %vm2159, %v2429, %v2425
          %s2432 = sadd.s32 %s2162, 7
          %s2433 = sld [smem:[#allocation16 + %s2432]]
          %v2434 = vstv %s2433
          %v2435 = vmul.f32 %v2430, %v2434
          %v2436 = vmul.f32 %v2431, %v2434
          %v2437 = vadd.f32 %v2383, %v2435
          %v2438 = vadd.f32 %v2384, %v2436
          %s2439 = sadd.s32 %s2170, 7
          %s2440 = sld [smem:[#allocation16 + %s2439]]
          %v2441 = vstv %s2440
          %v2442 = vmul.f32 %v2430, %v2441
          %v2443 = vmul.f32 %v2431, %v2441
          %v2444 = vadd.f32 %v2390, %v2442
          %v2445 = vadd.f32 %v2391, %v2443
          %s2446 = sadd.s32 %s2178, 7
          %s2447 = sld [smem:[#allocation16 + %s2446]]
          %v2448 = vstv %s2447
          %v2449 = vmul.f32 %v2430, %v2448
          %v2450 = vmul.f32 %v2431, %v2448
          %v2451 = vadd.f32 %v2397, %v2449
          %v2452 = vadd.f32 %v2398, %v2450
          %2453 = vrot.lane.b32.xlu0 %v2410, 2
          %v2454 = vpop.permute.xlu0 %2453
          %2455 = vrot.lane.b32.xlu0 %v2415, 2
          %v2456 = vpop.permute.xlu0 %2455
          %2457 = vrot.lane.b32.xlu0 %v2413, 2
          %v2458 = vpop.permute.xlu0 %2457
          %2459 = vrot.lane.b32.xlu0 %v2417, 2
          %v2460 = vpop.permute.xlu0 %2459
          %v2461 = vsel %vm2193, %v2458, %v2454
          %v2462 = vsel %vm2193, %v2460, %v2456
          %s2463 = sadd.s32 %s2162, 8
          %s2464 = sld [smem:[#allocation16 + %s2463]]
          %v2465 = vstv %s2464
          %v2466 = vmul.f32 %v2461, %v2465
          %v2467 = vmul.f32 %v2462, %v2465
          %v2468 = vadd.f32 %v2437, %v2466
          %v2469 = vadd.f32 %v2438, %v2467
          %s2470 = sadd.s32 %s2170, 8
          %s2471 = sld [smem:[#allocation16 + %s2470]]
          %v2472 = vstv %s2471
          %v2473 = vmul.f32 %v2461, %v2472
          %v2474 = vmul.f32 %v2462, %v2472
          %v2475 = vadd.f32 %v2444, %v2473
          %v2476 = vadd.f32 %v2445, %v2474
          %s2477 = sadd.s32 %s2178, 8
          %s2478 = sld [smem:[#allocation16 + %s2477]]
          %v2479 = vstv %s2478
          %v2480 = vmul.f32 %v2461, %v2479
          %v2481 = vmul.f32 %v2462, %v2479
          %v2482 = vadd.f32 %v2451, %v2480
          %v2483 = vadd.f32 %v2452, %v2481
          %2484 = vrot.lane.b32.xlu0 %v2410, 1
          %v2485 = vpop.permute.xlu0 %2484
          %2486 = vrot.lane.b32.xlu0 %v2415, 1
          %v2487 = vpop.permute.xlu0 %2486
          %2488 = vrot.lane.b32.xlu0 %v2413, 1
          %v2489 = vpop.permute.xlu0 %2488
          %2490 = vrot.lane.b32.xlu0 %v2417, 1
          %v2491 = vpop.permute.xlu0 %2490
          %v2492 = vsel %vm2225, %v2489, %v2485
          %v2493 = vsel %vm2225, %v2491, %v2487
          %s2494 = sadd.s32 %s2162, 9
          %s2495 = sld [smem:[#allocation16 + %s2494]]
          %v2496 = vstv %s2495
          %v2497 = vmul.f32 %v2492, %v2496
          %v2498 = vmul.f32 %v2493, %v2496
          %v2499 = vadd.f32 %v2468, %v2497
          %v2500 = vadd.f32 %v2469, %v2498
          %s2501 = sadd.s32 %s2170, 9
          %s2502 = sld [smem:[#allocation16 + %s2501]]
          %v2503 = vstv %s2502
          %v2504 = vmul.f32 %v2492, %v2503
          %v2505 = vmul.f32 %v2493, %v2503
          %v2506 = vadd.f32 %v2475, %v2504
          %v2507 = vadd.f32 %v2476, %v2505
          %s2508 = sadd.s32 %s2178, 9
          %s2509 = sld [smem:[#allocation16 + %s2508]]
          %v2510 = vstv %s2509
          %v2511 = vmul.f32 %v2492, %v2510
          %v2512 = vmul.f32 %v2493, %v2510
          %v2513 = vadd.f32 %v2482, %v2511
          %v2514 = vadd.f32 %v2483, %v2512
          %s2515 = sadd.s32 %s2162, 10
          %s2516 = sld [smem:[#allocation16 + %s2515]]
          %v2517 = vstv %s2516
          %v2518 = vmul.f32 %v2399, %v2517
          %v2519 = vmul.f32 %v2124, %v2517
          %v2520 = vmul.f32 %v2401, %v2517
          %v2524 = vrot.slane %v2518, 6
          %v2525 = vrot.slane %v2519, 6
          %v2526 = vsel %vm2407, %v2524, %v2525
          %v2527 = vrot.slane %v2520, 6
          %v2528 = vsel %vm2407, %v2525, %v2527
          %v2531 = vadd.f32 %v2499, %v2526
          %v2532 = vadd.f32 %v2500, %v2528
          %s2533 = sadd.s32 %s2170, 10
          %s2534 = sld [smem:[#allocation16 + %s2533]]
          %v2535 = vstv %s2534
          %v2536 = vmul.f32 %v2399, %v2535
          %v2537 = vmul.f32 %v2124, %v2535
          %v2538 = vmul.f32 %v2401, %v2535
          %v2542 = vrot.slane %v2536, 6
          %v2543 = vrot.slane %v2537, 6
          %v2544 = vsel %vm2407, %v2542, %v2543
          %v2545 = vrot.slane %v2538, 6
          %v2546 = vsel %vm2407, %v2543, %v2545
          %v2549 = vadd.f32 %v2506, %v2544
          %v2550 = vadd.f32 %v2507, %v2546
          %s2551 = sadd.s32 %s2178, 10
          %s2552 = sld [smem:[#allocation16 + %s2551]]
          %v2553 = vstv %s2552
          %v2554 = vmul.f32 %v2399, %v2553
          %v2555 = vmul.f32 %v2124, %v2553
          %v2556 = vmul.f32 %v2401, %v2553
          %v2560 = vrot.slane %v2554, 6
          %v2561 = vrot.slane %v2555, 6
          %v2562 = vsel %vm2407, %v2560, %v2561
          %v2563 = vrot.slane %v2556, 6
          %v2564 = vsel %vm2407, %v2561, %v2563
          %v2567 = vadd.f32 %v2513, %v2562
          %v2568 = vadd.f32 %v2514, %v2564
          %2569 = vrot.lane.b32.xlu0 %v2410, 127
          %v2570 = vpop.permute.xlu0 %2569
          %2571 = vrot.lane.b32.xlu0 %v2415, 127
          %v2572 = vpop.permute.xlu0 %2571
          %2573 = vrot.lane.b32.xlu0 %v2413, 127
          %v2574 = vpop.permute.xlu0 %2573
          %2575 = vrot.lane.b32.xlu0 %v2417, 127
          %v2576 = vpop.permute.xlu0 %2575
          %v2577 = vsel %vm2311, %v2570, %v2574
          %v2578 = vsel %vm2311, %v2572, %v2576
          %s2579 = sadd.s32 %s2162, 11
          %s2580 = sld [smem:[#allocation16 + %s2579]]
          %v2581 = vstv %s2580
          %v2582 = vmul.f32 %v2577, %v2581
          %v2583 = vmul.f32 %v2578, %v2581
          %v2584 = vadd.f32 %v2531, %v2582
          %v2585 = vadd.f32 %v2532, %v2583
          %s2586 = sadd.s32 %s2170, 11
          %s2587 = sld [smem:[#allocation16 + %s2586]]
          %v2588 = vstv %s2587
          %v2589 = vmul.f32 %v2577, %v2588
          %v2590 = vmul.f32 %v2578, %v2588
          %v2591 = vadd.f32 %v2549, %v2589
          %v2592 = vadd.f32 %v2550, %v2590
          %s2593 = sadd.s32 %s2178, 11
          %s2594 = sld [smem:[#allocation16 + %s2593]]
          %v2595 = vstv %s2594
          %v2596 = vmul.f32 %v2577, %v2595
          %v2597 = vmul.f32 %v2578, %v2595
          %v2598 = vadd.f32 %v2567, %v2596
          %v2599 = vadd.f32 %v2568, %v2597
          %2600 = vrot.lane.b32.xlu0 %v2410, 126
          %v2601 = vpop.permute.xlu0 %2600
          %2602 = vrot.lane.b32.xlu0 %v2415, 126
          %v2603 = vpop.permute.xlu0 %2602
          %2604 = vrot.lane.b32.xlu0 %v2413, 126
          %v2605 = vpop.permute.xlu0 %2604
          %2606 = vrot.lane.b32.xlu0 %v2417, 126
          %v2607 = vpop.permute.xlu0 %2606
          %v2608 = vsel %vm2343, %v2601, %v2605
          %v2609 = vsel %vm2343, %v2603, %v2607
          %s2610 = sadd.s32 %s2162, 12
          %s2611 = sld [smem:[#allocation16 + %s2610]]
          %v2612 = vstv %s2611
          %v2613 = vmul.f32 %v2608, %v2612
          %v2614 = vmul.f32 %v2609, %v2612
          %v2615 = vadd.f32 %v2584, %v2613
          %v2616 = vadd.f32 %v2585, %v2614
          %s2617 = sadd.s32 %s2170, 12
          %s2618 = sld [smem:[#allocation16 + %s2617]]
          %v2619 = vstv %s2618
          %v2620 = vmul.f32 %v2608, %v2619
          %v2621 = vmul.f32 %v2609, %v2619
          %v2622 = vadd.f32 %v2591, %v2620
          %v2623 = vadd.f32 %v2592, %v2621
          %s2624 = sadd.s32 %s2178, 12
          %s2625 = sld [smem:[#allocation16 + %s2624]]
          %v2626 = vstv %s2625
          %v2627 = vmul.f32 %v2608, %v2626
          %v2628 = vmul.f32 %v2609, %v2626
          %v2629 = vadd.f32 %v2598, %v2627
          %v2630 = vadd.f32 %v2599, %v2628
          %2631 = vrot.lane.b32.xlu0 %v2410, 125
          %v2632 = vpop.permute.xlu0 %2631
          %2633 = vrot.lane.b32.xlu0 %v2415, 125
          %v2634 = vpop.permute.xlu0 %2633
          %2635 = vrot.lane.b32.xlu0 %v2413, 125
          %v2636 = vpop.permute.xlu0 %2635
          %2637 = vrot.lane.b32.xlu0 %v2417, 125
          %v2638 = vpop.permute.xlu0 %2637
          %v2639 = vsel %vm2375, %v2632, %v2636
          %v2640 = vsel %vm2375, %v2634, %v2638
          %s2641 = sadd.s32 %s2162, 13
          %s2642 = sld [smem:[#allocation16 + %s2641]]
          %v2643 = vstv %s2642
          %v2644 = vmul.f32 %v2639, %v2643
          %v2645 = vmul.f32 %v2640, %v2643
          %v2646 = vadd.f32 %v2615, %v2644
          %v2647 = vadd.f32 %v2616, %v2645
          %s2648 = sadd.s32 %s2170, 13
          %s2649 = sld [smem:[#allocation16 + %s2648]]
          %v2650 = vstv %s2649
          %v2651 = vmul.f32 %v2639, %v2650
          %v2652 = vmul.f32 %v2640, %v2650
          %v2653 = vadd.f32 %v2622, %v2651
          %v2654 = vadd.f32 %v2623, %v2652
          %s2655 = sadd.s32 %s2178, 13
          %s2656 = sld [smem:[#allocation16 + %s2655]]
          %v2657 = vstv %s2656
          %v2658 = vmul.f32 %v2639, %v2657
          %v2659 = vmul.f32 %v2640, %v2657
          %v2660 = vadd.f32 %v2629, %v2658
          %v2661 = vadd.f32 %v2630, %v2659
          %v2662 = vld [vmem:[%s2121] sm:$0x80]
          %v2663 = vld [vmem:[%s2121 + $0x8] sm:$0x80]
          %v2664 = vld [vmem:[%s2121 + $0x20] sm:$0x7f]
          %v2665 = vld [vmem:[%s2121 + $0x28] sm:$0x7f]
          %vm2670 = vcmask 1040384
          %v2671 = vrot.slane %v2662, 7
          %v2672 = vrot.slane %v2124, 7
          %v2673 = vsel %vm2670, %v2671, %v2672
          %v2674 = vrot.slane %v2663, 7
          %v2675 = vrot.slane %v2125, 7
          %v2676 = vsel %vm2670, %v2674, %v2675
          %v2677 = vrot.slane %v2664, 7
          %v2678 = vsel %vm2670, %v2672, %v2677
          %v2679 = vrot.slane %v2665, 7
          %v2680 = vsel %vm2670, %v2675, %v2679
          %2685 = vrot.lane.b32.xlu0 %v2673, 3
          %v2686 = vpop.permute.xlu0 %2685
          %2687 = vrot.lane.b32.xlu0 %v2678, 3
          %v2688 = vpop.permute.xlu0 %2687
          %2689 = vrot.lane.b32.xlu0 %v2676, 3
          %v2690 = vpop.permute.xlu0 %2689
          %2691 = vrot.lane.b32.xlu0 %v2680, 3
          %v2692 = vpop.permute.xlu0 %2691
          %v2693 = vsel %vm2159, %v2690, %v2686
          %v2694 = vsel %vm2159, %v2692, %v2688
          %s2695 = sadd.s32 %s2162, 14
          %s2696 = sld [smem:[#allocation16 + %s2695]]
          %v2697 = vstv %s2696
          %v2698 = vmul.f32 %v2693, %v2697
          %v2699 = vmul.f32 %v2694, %v2697
          %v2700 = vadd.f32 %v2646, %v2698
          %v2701 = vadd.f32 %v2647, %v2699
          %s2702 = sadd.s32 %s2170, 14
          %s2703 = sld [smem:[#allocation16 + %s2702]]
          %v2704 = vstv %s2703
          %v2705 = vmul.f32 %v2693, %v2704
          %v2706 = vmul.f32 %v2694, %v2704
          %v2707 = vadd.f32 %v2653, %v2705
          %v2708 = vadd.f32 %v2654, %v2706
          %s2709 = sadd.s32 %s2178, 14
          %s2710 = sld [smem:[#allocation16 + %s2709]]
          %v2711 = vstv %s2710
          %v2712 = vmul.f32 %v2693, %v2711
          %v2713 = vmul.f32 %v2694, %v2711
          %v2714 = vadd.f32 %v2660, %v2712
          %v2715 = vadd.f32 %v2661, %v2713
          %2716 = vrot.lane.b32.xlu0 %v2673, 2
          %v2717 = vpop.permute.xlu0 %2716
          %2718 = vrot.lane.b32.xlu0 %v2678, 2
          %v2719 = vpop.permute.xlu0 %2718
          %2720 = vrot.lane.b32.xlu0 %v2676, 2
          %v2721 = vpop.permute.xlu0 %2720
          %2722 = vrot.lane.b32.xlu0 %v2680, 2
          %v2723 = vpop.permute.xlu0 %2722
          %v2724 = vsel %vm2193, %v2721, %v2717
          %v2725 = vsel %vm2193, %v2723, %v2719
          %s2726 = sadd.s32 %s2162, 15
          %s2727 = sld [smem:[#allocation16 + %s2726]]
          %v2728 = vstv %s2727
          %v2729 = vmul.f32 %v2724, %v2728
          %v2730 = vmul.f32 %v2725, %v2728
          %v2731 = vadd.f32 %v2700, %v2729
          %v2732 = vadd.f32 %v2701, %v2730
          %s2733 = sadd.s32 %s2170, 15
          %s2734 = sld [smem:[#allocation16 + %s2733]]
          %v2735 = vstv %s2734
          %v2736 = vmul.f32 %v2724, %v2735
          %v2737 = vmul.f32 %v2725, %v2735
          %v2738 = vadd.f32 %v2707, %v2736
          %v2739 = vadd.f32 %v2708, %v2737
          %s2740 = sadd.s32 %s2178, 15
          %s2741 = sld [smem:[#allocation16 + %s2740]]
          %v2742 = vstv %s2741
          %v2743 = vmul.f32 %v2724, %v2742
          %v2744 = vmul.f32 %v2725, %v2742
          %v2745 = vadd.f32 %v2714, %v2743
          %v2746 = vadd.f32 %v2715, %v2744
          %2747 = vrot.lane.b32.xlu0 %v2673, 1
          %v2748 = vpop.permute.xlu0 %2747
          %2749 = vrot.lane.b32.xlu0 %v2678, 1
          %v2750 = vpop.permute.xlu0 %2749
          %2751 = vrot.lane.b32.xlu0 %v2676, 1
          %v2752 = vpop.permute.xlu0 %2751
          %2753 = vrot.lane.b32.xlu0 %v2680, 1
          %v2754 = vpop.permute.xlu0 %2753
          %v2755 = vsel %vm2225, %v2752, %v2748
          %v2756 = vsel %vm2225, %v2754, %v2750
          %s2757 = sadd.s32 %s2162, 16
          %s2758 = sld [smem:[#allocation16 + %s2757]]
          %v2759 = vstv %s2758
          %v2760 = vmul.f32 %v2755, %v2759
          %v2761 = vmul.f32 %v2756, %v2759
          %v2762 = vadd.f32 %v2731, %v2760
          %v2763 = vadd.f32 %v2732, %v2761
          %s2764 = sadd.s32 %s2170, 16
          %s2765 = sld [smem:[#allocation16 + %s2764]]
          %v2766 = vstv %s2765
          %v2767 = vmul.f32 %v2755, %v2766
          %v2768 = vmul.f32 %v2756, %v2766
          %v2769 = vadd.f32 %v2738, %v2767
          %v2770 = vadd.f32 %v2739, %v2768
          %s2771 = sadd.s32 %s2178, 16
          %s2772 = sld [smem:[#allocation16 + %s2771]]
          %v2773 = vstv %s2772
          %v2774 = vmul.f32 %v2755, %v2773
          %v2775 = vmul.f32 %v2756, %v2773
          %v2776 = vadd.f32 %v2745, %v2774
          %v2777 = vadd.f32 %v2746, %v2775
          %s2778 = sadd.s32 %s2162, 17
          %s2779 = sld [smem:[#allocation16 + %s2778]]
          %v2780 = vstv %s2779
          %v2781 = vmul.f32 %v2662, %v2780
          %v2782 = vmul.f32 %v2124, %v2780
          %v2783 = vmul.f32 %v2664, %v2780
          %v2787 = vrot.slane %v2781, 7
          %v2788 = vrot.slane %v2782, 7
          %v2789 = vsel %vm2670, %v2787, %v2788
          %v2790 = vrot.slane %v2783, 7
          %v2791 = vsel %vm2670, %v2788, %v2790
          %v2794 = vadd.f32 %v2762, %v2789
          %v2795 = vadd.f32 %v2763, %v2791
          %s2796 = sadd.s32 %s2170, 17
          %s2797 = sld [smem:[#allocation16 + %s2796]]
          %v2798 = vstv %s2797
          %v2799 = vmul.f32 %v2662, %v2798
          %v2800 = vmul.f32 %v2124, %v2798
          %v2801 = vmul.f32 %v2664, %v2798
          %v2805 = vrot.slane %v2799, 7
          %v2806 = vrot.slane %v2800, 7
          %v2807 = vsel %vm2670, %v2805, %v2806
          %v2808 = vrot.slane %v2801, 7
          %v2809 = vsel %vm2670, %v2806, %v2808
          %v2812 = vadd.f32 %v2769, %v2807
          %v2813 = vadd.f32 %v2770, %v2809
          %s2814 = sadd.s32 %s2178, 17
          %s2815 = sld [smem:[#allocation16 + %s2814]]
          %v2816 = vstv %s2815
          %v2817 = vmul.f32 %v2662, %v2816
          %v2818 = vmul.f32 %v2124, %v2816
          %v2819 = vmul.f32 %v2664, %v2816
          %v2823 = vrot.slane %v2817, 7
          %v2824 = vrot.slane %v2818, 7
          %v2825 = vsel %vm2670, %v2823, %v2824
          %v2826 = vrot.slane %v2819, 7
          %v2827 = vsel %vm2670, %v2824, %v2826
          %v2830 = vadd.f32 %v2776, %v2825
          %v2831 = vadd.f32 %v2777, %v2827
          %2832 = vrot.lane.b32.xlu0 %v2673, 127
          %v2833 = vpop.permute.xlu0 %2832
          %2834 = vrot.lane.b32.xlu0 %v2678, 127
          %v2835 = vpop.permute.xlu0 %2834
          %2836 = vrot.lane.b32.xlu0 %v2676, 127
          %v2837 = vpop.permute.xlu0 %2836
          %2838 = vrot.lane.b32.xlu0 %v2680, 127
          %v2839 = vpop.permute.xlu0 %2838
          %v2840 = vsel %vm2311, %v2833, %v2837
          %v2841 = vsel %vm2311, %v2835, %v2839
          %s2842 = sadd.s32 %s2162, 18
          %s2843 = sld [smem:[#allocation16 + %s2842]]
          %v2844 = vstv %s2843
          %v2845 = vmul.f32 %v2840, %v2844
          %v2846 = vmul.f32 %v2841, %v2844
          %v2847 = vadd.f32 %v2794, %v2845
          %v2848 = vadd.f32 %v2795, %v2846
          %s2849 = sadd.s32 %s2170, 18
          %s2850 = sld [smem:[#allocation16 + %s2849]]
          %v2851 = vstv %s2850
          %v2852 = vmul.f32 %v2840, %v2851
          %v2853 = vmul.f32 %v2841, %v2851
          %v2854 = vadd.f32 %v2812, %v2852
          %v2855 = vadd.f32 %v2813, %v2853
          %s2856 = sadd.s32 %s2178, 18
          %s2857 = sld [smem:[#allocation16 + %s2856]]
          %v2858 = vstv %s2857
          %v2859 = vmul.f32 %v2840, %v2858
          %v2860 = vmul.f32 %v2841, %v2858
          %v2861 = vadd.f32 %v2830, %v2859
          %v2862 = vadd.f32 %v2831, %v2860
          %2863 = vrot.lane.b32.xlu0 %v2673, 126
          %v2864 = vpop.permute.xlu0 %2863
          %2865 = vrot.lane.b32.xlu0 %v2678, 126
          %v2866 = vpop.permute.xlu0 %2865
          %2867 = vrot.lane.b32.xlu0 %v2676, 126
          %v2868 = vpop.permute.xlu0 %2867
          %2869 = vrot.lane.b32.xlu0 %v2680, 126
          %v2870 = vpop.permute.xlu0 %2869
          %v2871 = vsel %vm2343, %v2864, %v2868
          %v2872 = vsel %vm2343, %v2866, %v2870
          %s2873 = sadd.s32 %s2162, 19
          %s2874 = sld [smem:[#allocation16 + %s2873]]
          %v2875 = vstv %s2874
          %v2876 = vmul.f32 %v2871, %v2875
          %v2877 = vmul.f32 %v2872, %v2875
          %v2878 = vadd.f32 %v2847, %v2876
          %v2879 = vadd.f32 %v2848, %v2877
          %s2880 = sadd.s32 %s2170, 19
          %s2881 = sld [smem:[#allocation16 + %s2880]]
          %v2882 = vstv %s2881
          %v2883 = vmul.f32 %v2871, %v2882
          %v2884 = vmul.f32 %v2872, %v2882
          %v2885 = vadd.f32 %v2854, %v2883
          %v2886 = vadd.f32 %v2855, %v2884
          %s2887 = sadd.s32 %s2178, 19
          %s2888 = sld [smem:[#allocation16 + %s2887]]
          %v2889 = vstv %s2888
          %v2890 = vmul.f32 %v2871, %v2889
          %v2891 = vmul.f32 %v2872, %v2889
          %v2892 = vadd.f32 %v2861, %v2890
          %v2893 = vadd.f32 %v2862, %v2891
          %2894 = vrot.lane.b32.xlu0 %v2673, 125
          %v2895 = vpop.permute.xlu0 %2894
          %2896 = vrot.lane.b32.xlu0 %v2678, 125
          %v2897 = vpop.permute.xlu0 %2896
          %2898 = vrot.lane.b32.xlu0 %v2676, 125
          %v2899 = vpop.permute.xlu0 %2898
          %2900 = vrot.lane.b32.xlu0 %v2680, 125
          %v2901 = vpop.permute.xlu0 %2900
          %v2902 = vsel %vm2375, %v2895, %v2899
          %v2903 = vsel %vm2375, %v2897, %v2901
          %s2904 = sadd.s32 %s2162, 20
          %s2905 = sld [smem:[#allocation16 + %s2904]]
          %v2906 = vstv %s2905
          %v2907 = vmul.f32 %v2902, %v2906
          %v2908 = vmul.f32 %v2903, %v2906
          %v2909 = vadd.f32 %v2878, %v2907
          %v2910 = vadd.f32 %v2879, %v2908
          %s2911 = sadd.s32 %s2170, 20
          %s2912 = sld [smem:[#allocation16 + %s2911]]
          %v2913 = vstv %s2912
          %v2914 = vmul.f32 %v2902, %v2913
          %v2915 = vmul.f32 %v2903, %v2913
          %v2916 = vadd.f32 %v2885, %v2914
          %v2917 = vadd.f32 %v2886, %v2915
          %s2918 = sadd.s32 %s2178, 20
          %s2919 = sld [smem:[#allocation16 + %s2918]]
          %v2920 = vstv %s2919
          %v2921 = vmul.f32 %v2902, %v2920
          %v2922 = vmul.f32 %v2903, %v2920
          %v2923 = vadd.f32 %v2892, %v2921
          %v2924 = vadd.f32 %v2893, %v2922
          %v2925 = vld [vmem:[%s2121 + $0x20] sm:$0xff]
          %v2926 = vld [vmem:[%s2121 + $0x28] sm:$0xff]
          %2927 = vrot.lane.b32.xlu0 %v2124, 3
          %v2928 = vpop.permute.xlu0 %2927
          %2929 = vrot.lane.b32.xlu0 %v2925, 3
          %v2930 = vpop.permute.xlu0 %2929
          %2931 = vrot.lane.b32.xlu0 %v2125, 3
          %v2932 = vpop.permute.xlu0 %2931
          %2933 = vrot.lane.b32.xlu0 %v2926, 3
          %v2934 = vpop.permute.xlu0 %2933
          %v2935 = vsel %vm2159, %v2932, %v2928
          %v2936 = vsel %vm2159, %v2934, %v2930
          %s2937 = sadd.s32 %s2162, 21
          %s2938 = sld [smem:[#allocation16 + %s2937]]
          %v2939 = vstv %s2938
          %v2940 = vmul.f32 %v2935, %v2939
          %v2941 = vmul.f32 %v2936, %v2939
          %v2942 = vadd.f32 %v2909, %v2940
          %v2943 = vadd.f32 %v2910, %v2941
          %s2944 = sadd.s32 %s2170, 21
          %s2945 = sld [smem:[#allocation16 + %s2944]]
          %v2946 = vstv %s2945
          %v2947 = vmul.f32 %v2935, %v2946
          %v2948 = vmul.f32 %v2936, %v2946
          %v2949 = vadd.f32 %v2916, %v2947
          %v2950 = vadd.f32 %v2917, %v2948
          %s2951 = sadd.s32 %s2178, 21
          %s2952 = sld [smem:[#allocation16 + %s2951]]
          %v2953 = vstv %s2952
          %v2954 = vmul.f32 %v2935, %v2953
          %v2955 = vmul.f32 %v2936, %v2953
          %v2956 = vadd.f32 %v2923, %v2954
          %v2957 = vadd.f32 %v2924, %v2955
          %2958 = vrot.lane.b32.xlu0 %v2124, 2
          %v2959 = vpop.permute.xlu0 %2958
          %2960 = vrot.lane.b32.xlu0 %v2925, 2
          %v2961 = vpop.permute.xlu0 %2960
          %2962 = vrot.lane.b32.xlu0 %v2125, 2
          %v2963 = vpop.permute.xlu0 %2962
          %2964 = vrot.lane.b32.xlu0 %v2926, 2
          %v2965 = vpop.permute.xlu0 %2964
          %v2966 = vsel %vm2193, %v2963, %v2959
          %v2967 = vsel %vm2193, %v2965, %v2961
          %s2968 = sadd.s32 %s2162, 22
          %s2969 = sld [smem:[#allocation16 + %s2968]]
          %v2970 = vstv %s2969
          %v2971 = vmul.f32 %v2966, %v2970
          %v2972 = vmul.f32 %v2967, %v2970
          %v2973 = vadd.f32 %v2942, %v2971
          %v2974 = vadd.f32 %v2943, %v2972
          %s2975 = sadd.s32 %s2170, 22
          %s2976 = sld [smem:[#allocation16 + %s2975]]
          %v2977 = vstv %s2976
          %v2978 = vmul.f32 %v2966, %v2977
          %v2979 = vmul.f32 %v2967, %v2977
          %v2980 = vadd.f32 %v2949, %v2978
          %v2981 = vadd.f32 %v2950, %v2979
          %s2982 = sadd.s32 %s2178, 22
          %s2983 = sld [smem:[#allocation16 + %s2982]]
          %v2984 = vstv %s2983
          %v2985 = vmul.f32 %v2966, %v2984
          %v2986 = vmul.f32 %v2967, %v2984
          %v2987 = vadd.f32 %v2956, %v2985
          %v2988 = vadd.f32 %v2957, %v2986
          %2989 = vrot.lane.b32.xlu0 %v2124, 1
          %v2990 = vpop.permute.xlu0 %2989
          %2991 = vrot.lane.b32.xlu0 %v2925, 1
          %v2992 = vpop.permute.xlu0 %2991
          %2993 = vrot.lane.b32.xlu0 %v2125, 1
          %v2994 = vpop.permute.xlu0 %2993
          %2995 = vrot.lane.b32.xlu0 %v2926, 1
          %v2996 = vpop.permute.xlu0 %2995
          %v2997 = vsel %vm2225, %v2994, %v2990
          %v2998 = vsel %vm2225, %v2996, %v2992
          %s2999 = sadd.s32 %s2162, 23
          %s3000 = sld [smem:[#allocation16 + %s2999]]
          %v3001 = vstv %s3000
          %v3002 = vmul.f32 %v2997, %v3001
          %v3003 = vmul.f32 %v2998, %v3001
          %v3004 = vadd.f32 %v2973, %v3002
          %v3005 = vadd.f32 %v2974, %v3003
          %s3006 = sadd.s32 %s2170, 23
          %s3007 = sld [smem:[#allocation16 + %s3006]]
          %v3008 = vstv %s3007
          %v3009 = vmul.f32 %v2997, %v3008
          %v3010 = vmul.f32 %v2998, %v3008
          %v3011 = vadd.f32 %v2980, %v3009
          %v3012 = vadd.f32 %v2981, %v3010
          %s3013 = sadd.s32 %s2178, 23
          %s3014 = sld [smem:[#allocation16 + %s3013]]
          %v3015 = vstv %s3014
          %v3016 = vmul.f32 %v2997, %v3015
          %v3017 = vmul.f32 %v2998, %v3015
          %v3018 = vadd.f32 %v2987, %v3016
          %v3019 = vadd.f32 %v2988, %v3017
          %s3020 = sadd.s32 %s2162, 24
          %s3021 = sld [smem:[#allocation16 + %s3020]]
          %v3022 = vstv %s3021
          %v3023 = vmul.f32 %v2124, %v3022
          %v3024 = vmul.f32 %v2925, %v3022
          %v3025 = vadd.f32 %v3004, %v3023
          %v3026 = vadd.f32 %v3005, %v3024
          %s3027 = sadd.s32 %s2170, 24
          %s3028 = sld [smem:[#allocation16 + %s3027]]
          %v3029 = vstv %s3028
          %v3030 = vmul.f32 %v2124, %v3029
          %v3031 = vmul.f32 %v2925, %v3029
          %v3032 = vadd.f32 %v3011, %v3030
          %v3033 = vadd.f32 %v3012, %v3031
          %s3034 = sadd.s32 %s2178, 24
          %s3035 = sld [smem:[#allocation16 + %s3034]]
          %v3036 = vstv %s3035
          %v3037 = vmul.f32 %v2124, %v3036
          %v3038 = vmul.f32 %v2925, %v3036
          %v3039 = vadd.f32 %v3018, %v3037
          %v3040 = vadd.f32 %v3019, %v3038
          %3041 = vrot.lane.b32.xlu0 %v2124, 127
          %v3042 = vpop.permute.xlu0 %3041
          %3043 = vrot.lane.b32.xlu0 %v2925, 127
          %v3044 = vpop.permute.xlu0 %3043
          %3045 = vrot.lane.b32.xlu0 %v2125, 127
          %v3046 = vpop.permute.xlu0 %3045
          %3047 = vrot.lane.b32.xlu0 %v2926, 127
          %v3048 = vpop.permute.xlu0 %3047
          %v3049 = vsel %vm2311, %v3042, %v3046
          %v3050 = vsel %vm2311, %v3044, %v3048
          %s3051 = sadd.s32 %s2162, 25
          %s3052 = sld [smem:[#allocation16 + %s3051]]
          %v3053 = vstv %s3052
          %v3054 = vmul.f32 %v3049, %v3053
          %v3055 = vmul.f32 %v3050, %v3053
          %v3056 = vadd.f32 %v3025, %v3054
          %v3057 = vadd.f32 %v3026, %v3055
          %s3058 = sadd.s32 %s2170, 25
          %s3059 = sld [smem:[#allocation16 + %s3058]]
          %v3060 = vstv %s3059
          %v3061 = vmul.f32 %v3049, %v3060
          %v3062 = vmul.f32 %v3050, %v3060
          %v3063 = vadd.f32 %v3032, %v3061
          %v3064 = vadd.f32 %v3033, %v3062
          %s3065 = sadd.s32 %s2178, 25
          %s3066 = sld [smem:[#allocation16 + %s3065]]
          %v3067 = vstv %s3066
          %v3068 = vmul.f32 %v3049, %v3067
          %v3069 = vmul.f32 %v3050, %v3067
          %v3070 = vadd.f32 %v3039, %v3068
          %v3071 = vadd.f32 %v3040, %v3069
          %3072 = vrot.lane.b32.xlu0 %v2124, 126
          %v3073 = vpop.permute.xlu0 %3072
          %3074 = vrot.lane.b32.xlu0 %v2925, 126
          %v3075 = vpop.permute.xlu0 %3074
          %3076 = vrot.lane.b32.xlu0 %v2125, 126
          %v3077 = vpop.permute.xlu0 %3076
          %3078 = vrot.lane.b32.xlu0 %v2926, 126
          %v3079 = vpop.permute.xlu0 %3078
          %v3080 = vsel %vm2343, %v3073, %v3077
          %v3081 = vsel %vm2343, %v3075, %v3079
          %s3082 = sadd.s32 %s2162, 26
          %s3083 = sld [smem:[#allocation16 + %s3082]]
          %v3084 = vstv %s3083
          %v3085 = vmul.f32 %v3080, %v3084
          %v3086 = vmul.f32 %v3081, %v3084
          %v3087 = vadd.f32 %v3056, %v3085
          %v3088 = vadd.f32 %v3057, %v3086
          %s3089 = sadd.s32 %s2170, 26
          %s3090 = sld [smem:[#allocation16 + %s3089]]
          %v3091 = vstv %s3090
          %v3092 = vmul.f32 %v3080, %v3091
          %v3093 = vmul.f32 %v3081, %v3091
          %v3094 = vadd.f32 %v3063, %v3092
          %v3095 = vadd.f32 %v3064, %v3093
          %s3096 = sadd.s32 %s2178, 26
          %s3097 = sld [smem:[#allocation16 + %s3096]]
          %v3098 = vstv %s3097
          %v3099 = vmul.f32 %v3080, %v3098
          %v3100 = vmul.f32 %v3081, %v3098
          %v3101 = vadd.f32 %v3070, %v3099
          %v3102 = vadd.f32 %v3071, %v3100
          %3103 = vrot.lane.b32.xlu0 %v2124, 125
          %v3104 = vpop.permute.xlu0 %3103
          %3105 = vrot.lane.b32.xlu0 %v2925, 125
          %v3106 = vpop.permute.xlu0 %3105
          %3107 = vrot.lane.b32.xlu0 %v2125, 125
          %v3108 = vpop.permute.xlu0 %3107
          %3109 = vrot.lane.b32.xlu0 %v2926, 125
          %v3110 = vpop.permute.xlu0 %3109
          %v3111 = vsel %vm2375, %v3104, %v3108
          %v3112 = vsel %vm2375, %v3106, %v3110
          %s3113 = sadd.s32 %s2162, 27
          %s3114 = sld [smem:[#allocation16 + %s3113]]
          %v3115 = vstv %s3114
          %v3116 = vmul.f32 %v3111, %v3115
          %v3117 = vmul.f32 %v3112, %v3115
          %v3118 = vadd.f32 %v3087, %v3116
          %v3119 = vadd.f32 %v3088, %v3117
          %s3120 = sadd.s32 %s2170, 27
          %s3121 = sld [smem:[#allocation16 + %s3120]]
          %v3122 = vstv %s3121
          %v3123 = vmul.f32 %v3111, %v3122
          %v3124 = vmul.f32 %v3112, %v3122
          %v3125 = vadd.f32 %v3094, %v3123
          %v3126 = vadd.f32 %v3095, %v3124
          %s3127 = sadd.s32 %s2178, 27
          %s3128 = sld [smem:[#allocation16 + %s3127]]
          %v3129 = vstv %s3128
          %v3130 = vmul.f32 %v3111, %v3129
          %v3131 = vmul.f32 %v3112, %v3129
          %v3132 = vadd.f32 %v3101, %v3130
          %v3133 = vadd.f32 %v3102, %v3131
          %v3134 = vld [vmem:[%s2121 + $0x10] sm:$0xfe]
          %v3135 = vld [vmem:[%s2121 + $0x18] sm:$0xfe]
          %v3136 = vld [vmem:[%s2121 + $0x20] sm:$0xff]
          %v3137 = vld [vmem:[%s2121 + $0x28] sm:$0xff]
          %v3138 = vld [vmem:[%s2121 + $0x30] sm:$0x1]
          %v3139 = vld [vmem:[%s2121 + $0x38] sm:$0x1]
          %vm3146 = vcmask 1046528
          %v3147 = vrot.slane %v3134, 1
          %v3148 = vrot.slane %v3136, 1
          %v3149 = vsel %vm3146, %v3147, %v3148
          %v3150 = vrot.slane %v3135, 1
          %v3151 = vrot.slane %v3137, 1
          %v3152 = vsel %vm3146, %v3150, %v3151
          %v3153 = vrot.slane %v3138, 1
          %v3154 = vsel %vm3146, %v3148, %v3153
          %v3155 = vrot.slane %v3139, 1
          %v3156 = vsel %vm3146, %v3151, %v3155
          %3161 = vrot.lane.b32.xlu0 %v3149, 3
          %v3162 = vpop.permute.xlu0 %3161
          %3163 = vrot.lane.b32.xlu0 %v3154, 3
          %v3164 = vpop.permute.xlu0 %3163
          %3165 = vrot.lane.b32.xlu0 %v3152, 3
          %v3166 = vpop.permute.xlu0 %3165
          %3167 = vrot.lane.b32.xlu0 %v3156, 3
          %v3168 = vpop.permute.xlu0 %3167
          %v3169 = vsel %vm2159, %v3166, %v3162
          %v3170 = vsel %vm2159, %v3168, %v3164
          %s3171 = sadd.s32 %s2162, 28
          %s3172 = sld [smem:[#allocation16 + %s3171]]
          %v3173 = vstv %s3172
          %v3174 = vmul.f32 %v3169, %v3173
          %v3175 = vmul.f32 %v3170, %v3173
          %v3176 = vadd.f32 %v3118, %v3174
          %v3177 = vadd.f32 %v3119, %v3175
          %s3178 = sadd.s32 %s2170, 28
          %s3179 = sld [smem:[#allocation16 + %s3178]]
          %v3180 = vstv %s3179
          %v3181 = vmul.f32 %v3169, %v3180
          %v3182 = vmul.f32 %v3170, %v3180
          %v3183 = vadd.f32 %v3125, %v3181
          %v3184 = vadd.f32 %v3126, %v3182
          %s3185 = sadd.s32 %s2178, 28
          %s3186 = sld [smem:[#allocation16 + %s3185]]
          %v3187 = vstv %s3186
          %v3188 = vmul.f32 %v3169, %v3187
          %v3189 = vmul.f32 %v3170, %v3187
          %v3190 = vadd.f32 %v3132, %v3188
          %v3191 = vadd.f32 %v3133, %v3189
          %3192 = vrot.lane.b32.xlu0 %v3149, 2
          %v3193 = vpop.permute.xlu0 %3192
          %3194 = vrot.lane.b32.xlu0 %v3154, 2
          %v3195 = vpop.permute.xlu0 %3194
          %3196 = vrot.lane.b32.xlu0 %v3152, 2
          %v3197 = vpop.permute.xlu0 %3196
          %3198 = vrot.lane.b32.xlu0 %v3156, 2
          %v3199 = vpop.permute.xlu0 %3198
          %v3200 = vsel %vm2193, %v3197, %v3193
          %v3201 = vsel %vm2193, %v3199, %v3195
          %s3202 = sadd.s32 %s2162, 29
          %s3203 = sld [smem:[#allocation16 + %s3202]]
          %v3204 = vstv %s3203
          %v3205 = vmul.f32 %v3200, %v3204
          %v3206 = vmul.f32 %v3201, %v3204
          %v3207 = vadd.f32 %v3176, %v3205
          %v3208 = vadd.f32 %v3177, %v3206
          %s3209 = sadd.s32 %s2170, 29
          %s3210 = sld [smem:[#allocation16 + %s3209]]
          %v3211 = vstv %s3210
          %v3212 = vmul.f32 %v3200, %v3211
          %v3213 = vmul.f32 %v3201, %v3211
          %v3214 = vadd.f32 %v3183, %v3212
          %v3215 = vadd.f32 %v3184, %v3213
          %s3216 = sadd.s32 %s2178, 29
          %s3217 = sld [smem:[#allocation16 + %s3216]]
          %v3218 = vstv %s3217
          %v3219 = vmul.f32 %v3200, %v3218
          %v3220 = vmul.f32 %v3201, %v3218
          %v3221 = vadd.f32 %v3190, %v3219
          %v3222 = vadd.f32 %v3191, %v3220
          %3223 = vrot.lane.b32.xlu0 %v3149, 1
          %v3224 = vpop.permute.xlu0 %3223
          %3225 = vrot.lane.b32.xlu0 %v3154, 1
          %v3226 = vpop.permute.xlu0 %3225
          %3227 = vrot.lane.b32.xlu0 %v3152, 1
          %v3228 = vpop.permute.xlu0 %3227
          %3229 = vrot.lane.b32.xlu0 %v3156, 1
          %v3230 = vpop.permute.xlu0 %3229
          %v3231 = vsel %vm2225, %v3228, %v3224
          %v3232 = vsel %vm2225, %v3230, %v3226
          %s3233 = sadd.s32 %s2162, 30
          %s3234 = sld [smem:[#allocation16 + %s3233]]
          %v3235 = vstv %s3234
          %v3236 = vmul.f32 %v3231, %v3235
          %v3237 = vmul.f32 %v3232, %v3235
          %v3238 = vadd.f32 %v3207, %v3236
          %v3239 = vadd.f32 %v3208, %v3237
          %s3240 = sadd.s32 %s2170, 30
          %s3241 = sld [smem:[#allocation16 + %s3240]]
          %v3242 = vstv %s3241
          %v3243 = vmul.f32 %v3231, %v3242
          %v3244 = vmul.f32 %v3232, %v3242
          %v3245 = vadd.f32 %v3214, %v3243
          %v3246 = vadd.f32 %v3215, %v3244
          %s3247 = sadd.s32 %s2178, 30
          %s3248 = sld [smem:[#allocation16 + %s3247]]
          %v3249 = vstv %s3248
          %v3250 = vmul.f32 %v3231, %v3249
          %v3251 = vmul.f32 %v3232, %v3249
          %v3252 = vadd.f32 %v3221, %v3250
          %v3253 = vadd.f32 %v3222, %v3251
          %s3254 = sadd.s32 %s2162, 31
          %s3255 = sld [smem:[#allocation16 + %s3254]]
          %v3256 = vstv %s3255
          %v3257 = vmul.f32 %v3134, %v3256
          %v3258 = vmul.f32 %v3136, %v3256
          %v3259 = vmul.f32 %v3138, %v3256
          %v3263 = vrot.slane %v3257, 1
          %v3264 = vrot.slane %v3258, 1
          %v3265 = vsel %vm3146, %v3263, %v3264
          %v3266 = vrot.slane %v3259, 1
          %v3267 = vsel %vm3146, %v3264, %v3266
          %v3270 = vadd.f32 %v3238, %v3265
          %v3271 = vadd.f32 %v3239, %v3267
          %s3272 = sadd.s32 %s2170, 31
          %s3273 = sld [smem:[#allocation16 + %s3272]]
          %v3274 = vstv %s3273
          %v3275 = vmul.f32 %v3134, %v3274
          %v3276 = vmul.f32 %v3136, %v3274
          %v3277 = vmul.f32 %v3138, %v3274
          %v3281 = vrot.slane %v3275, 1
          %v3282 = vrot.slane %v3276, 1
          %v3283 = vsel %vm3146, %v3281, %v3282
          %v3284 = vrot.slane %v3277, 1
          %v3285 = vsel %vm3146, %v3282, %v3284
          %v3288 = vadd.f32 %v3245, %v3283
          %v3289 = vadd.f32 %v3246, %v3285
          %s3290 = sadd.s32 %s2178, 31
          %s3291 = sld [smem:[#allocation16 + %s3290]]
          %v3292 = vstv %s3291
          %v3293 = vmul.f32 %v3134, %v3292
          %v3294 = vmul.f32 %v3136, %v3292
          %v3295 = vmul.f32 %v3138, %v3292
          %v3299 = vrot.slane %v3293, 1
          %v3300 = vrot.slane %v3294, 1
          %v3301 = vsel %vm3146, %v3299, %v3300
          %v3302 = vrot.slane %v3295, 1
          %v3303 = vsel %vm3146, %v3300, %v3302
          %v3306 = vadd.f32 %v3252, %v3301
          %v3307 = vadd.f32 %v3253, %v3303
          %3308 = vrot.lane.b32.xlu0 %v3149, 127
          %v3309 = vpop.permute.xlu0 %3308
          %3310 = vrot.lane.b32.xlu0 %v3154, 127
          %v3311 = vpop.permute.xlu0 %3310
          %3312 = vrot.lane.b32.xlu0 %v3152, 127
          %v3313 = vpop.permute.xlu0 %3312
          %3314 = vrot.lane.b32.xlu0 %v3156, 127
          %v3315 = vpop.permute.xlu0 %3314
          %v3316 = vsel %vm2311, %v3309, %v3313
          %v3317 = vsel %vm2311, %v3311, %v3315
          %s3318 = sadd.s32 %s2162, 32
          %s3319 = sld [smem:[#allocation16 + %s3318]]
          %v3320 = vstv %s3319
          %v3321 = vmul.f32 %v3316, %v3320
          %v3322 = vmul.f32 %v3317, %v3320
          %v3323 = vadd.f32 %v3270, %v3321
          %v3324 = vadd.f32 %v3271, %v3322
          %s3325 = sadd.s32 %s2170, 32
          %s3326 = sld [smem:[#allocation16 + %s3325]]
          %v3327 = vstv %s3326
          %v3328 = vmul.f32 %v3316, %v3327
          %v3329 = vmul.f32 %v3317, %v3327
          %v3330 = vadd.f32 %v3288, %v3328
          %v3331 = vadd.f32 %v3289, %v3329
          %s3332 = sadd.s32 %s2178, 32
          %s3333 = sld [smem:[#allocation16 + %s3332]]
          %v3334 = vstv %s3333
          %v3335 = vmul.f32 %v3316, %v3334
          %v3336 = vmul.f32 %v3317, %v3334
          %v3337 = vadd.f32 %v3306, %v3335
          %v3338 = vadd.f32 %v3307, %v3336
          %3339 = vrot.lane.b32.xlu0 %v3149, 126
          %v3340 = vpop.permute.xlu0 %3339
          %3341 = vrot.lane.b32.xlu0 %v3154, 126
          %v3342 = vpop.permute.xlu0 %3341
          %3343 = vrot.lane.b32.xlu0 %v3152, 126
          %v3344 = vpop.permute.xlu0 %3343
          %3345 = vrot.lane.b32.xlu0 %v3156, 126
          %v3346 = vpop.permute.xlu0 %3345
          %v3347 = vsel %vm2343, %v3340, %v3344
          %v3348 = vsel %vm2343, %v3342, %v3346
          %s3349 = sadd.s32 %s2162, 33
          %s3350 = sld [smem:[#allocation16 + %s3349]]
          %v3351 = vstv %s3350
          %v3352 = vmul.f32 %v3347, %v3351
          %v3353 = vmul.f32 %v3348, %v3351
          %v3354 = vadd.f32 %v3323, %v3352
          %v3355 = vadd.f32 %v3324, %v3353
          %s3356 = sadd.s32 %s2170, 33
          %s3357 = sld [smem:[#allocation16 + %s3356]]
          %v3358 = vstv %s3357
          %v3359 = vmul.f32 %v3347, %v3358
          %v3360 = vmul.f32 %v3348, %v3358
          %v3361 = vadd.f32 %v3330, %v3359
          %v3362 = vadd.f32 %v3331, %v3360
          %s3363 = sadd.s32 %s2178, 33
          %s3364 = sld [smem:[#allocation16 + %s3363]]
          %v3365 = vstv %s3364
          %v3366 = vmul.f32 %v3347, %v3365
          %v3367 = vmul.f32 %v3348, %v3365
          %v3368 = vadd.f32 %v3337, %v3366
          %v3369 = vadd.f32 %v3338, %v3367
          %3370 = vrot.lane.b32.xlu0 %v3149, 125
          %v3371 = vpop.permute.xlu0 %3370
          %3372 = vrot.lane.b32.xlu0 %v3154, 125
          %v3373 = vpop.permute.xlu0 %3372
          %3374 = vrot.lane.b32.xlu0 %v3152, 125
          %v3375 = vpop.permute.xlu0 %3374
          %3376 = vrot.lane.b32.xlu0 %v3156, 125
          %v3377 = vpop.permute.xlu0 %3376
          %v3378 = vsel %vm2375, %v3371, %v3375
          %v3379 = vsel %vm2375, %v3373, %v3377
          %s3380 = sadd.s32 %s2162, 34
          %s3381 = sld [smem:[#allocation16 + %s3380]]
          %v3382 = vstv %s3381
          %v3383 = vmul.f32 %v3378, %v3382
          %v3384 = vmul.f32 %v3379, %v3382
          %v3385 = vadd.f32 %v3354, %v3383
          %v3386 = vadd.f32 %v3355, %v3384
          %s3387 = sadd.s32 %s2170, 34
          %s3388 = sld [smem:[#allocation16 + %s3387]]
          %v3389 = vstv %s3388
          %v3390 = vmul.f32 %v3378, %v3389
          %v3391 = vmul.f32 %v3379, %v3389
          %v3392 = vadd.f32 %v3361, %v3390
          %v3393 = vadd.f32 %v3362, %v3391
          %s3394 = sadd.s32 %s2178, 34
          %s3395 = sld [smem:[#allocation16 + %s3394]]
          %v3396 = vstv %s3395
          %v3397 = vmul.f32 %v3378, %v3396
          %v3398 = vmul.f32 %v3379, %v3396
          %v3399 = vadd.f32 %v3368, %v3397
          %v3400 = vadd.f32 %v3369, %v3398
          %v3401 = vld [vmem:[%s2121 + $0x10] sm:$0xfc]
          %v3402 = vld [vmem:[%s2121 + $0x18] sm:$0xfc]
          %v3403 = vld [vmem:[%s2121 + $0x30] sm:$0x3]
          %v3404 = vld [vmem:[%s2121 + $0x38] sm:$0x3]
          %vm3409 = vcmask 1045504
          %v3410 = vrot.slane %v3401, 2
          %v3411 = vrot.slane %v3136, 2
          %v3412 = vsel %vm3409, %v3410, %v3411
          %v3413 = vrot.slane %v3402, 2
          %v3414 = vrot.slane %v3137, 2
          %v3415 = vsel %vm3409, %v3413, %v3414
          %v3416 = vrot.slane %v3403, 2
          %v3417 = vsel %vm3409, %v3411, %v3416
          %v3418 = vrot.slane %v3404, 2
          %v3419 = vsel %vm3409, %v3414, %v3418
          %3424 = vrot.lane.b32.xlu0 %v3412, 3
          %v3425 = vpop.permute.xlu0 %3424
          %3426 = vrot.lane.b32.xlu0 %v3417, 3
          %v3427 = vpop.permute.xlu0 %3426
          %3428 = vrot.lane.b32.xlu0 %v3415, 3
          %v3429 = vpop.permute.xlu0 %3428
          %3430 = vrot.lane.b32.xlu0 %v3419, 3
          %v3431 = vpop.permute.xlu0 %3430
          %v3432 = vsel %vm2159, %v3429, %v3425
          %v3433 = vsel %vm2159, %v3431, %v3427
          %s3434 = sadd.s32 %s2162, 35
          %s3435 = sld [smem:[#allocation16 + %s3434]]
          %v3436 = vstv %s3435
          %v3437 = vmul.f32 %v3432, %v3436
          %v3438 = vmul.f32 %v3433, %v3436
          %v3439 = vadd.f32 %v3385, %v3437
          %v3440 = vadd.f32 %v3386, %v3438
          %s3441 = sadd.s32 %s2170, 35
          %s3442 = sld [smem:[#allocation16 + %s3441]]
          %v3443 = vstv %s3442
          %v3444 = vmul.f32 %v3432, %v3443
          %v3445 = vmul.f32 %v3433, %v3443
          %v3446 = vadd.f32 %v3392, %v3444
          %v3447 = vadd.f32 %v3393, %v3445
          %s3448 = sadd.s32 %s2178, 35
          %s3449 = sld [smem:[#allocation16 + %s3448]]
          %v3450 = vstv %s3449
          %v3451 = vmul.f32 %v3432, %v3450
          %v3452 = vmul.f32 %v3433, %v3450
          %v3453 = vadd.f32 %v3399, %v3451
          %v3454 = vadd.f32 %v3400, %v3452
          %3455 = vrot.lane.b32.xlu0 %v3412, 2
          %v3456 = vpop.permute.xlu0 %3455
          %3457 = vrot.lane.b32.xlu0 %v3417, 2
          %v3458 = vpop.permute.xlu0 %3457
          %3459 = vrot.lane.b32.xlu0 %v3415, 2
          %v3460 = vpop.permute.xlu0 %3459
          %3461 = vrot.lane.b32.xlu0 %v3419, 2
          %v3462 = vpop.permute.xlu0 %3461
          %v3463 = vsel %vm2193, %v3460, %v3456
          %v3464 = vsel %vm2193, %v3462, %v3458
          %s3465 = sadd.s32 %s2162, 36
          %s3466 = sld [smem:[#allocation16 + %s3465]]
          %v3467 = vstv %s3466
          %v3468 = vmul.f32 %v3463, %v3467
          %v3469 = vmul.f32 %v3464, %v3467
          %v3470 = vadd.f32 %v3439, %v3468
          %v3471 = vadd.f32 %v3440, %v3469
          %s3472 = sadd.s32 %s2170, 36
          %s3473 = sld [smem:[#allocation16 + %s3472]]
          %v3474 = vstv %s3473
          %v3475 = vmul.f32 %v3463, %v3474
          %v3476 = vmul.f32 %v3464, %v3474
          %v3477 = vadd.f32 %v3446, %v3475
          %v3478 = vadd.f32 %v3447, %v3476
          %s3479 = sadd.s32 %s2178, 36
          %s3480 = sld [smem:[#allocation16 + %s3479]]
          %v3481 = vstv %s3480
          %v3482 = vmul.f32 %v3463, %v3481
          %v3483 = vmul.f32 %v3464, %v3481
          %v3484 = vadd.f32 %v3453, %v3482
          %v3485 = vadd.f32 %v3454, %v3483
          %3486 = vrot.lane.b32.xlu0 %v3412, 1
          %v3487 = vpop.permute.xlu0 %3486
          %3488 = vrot.lane.b32.xlu0 %v3417, 1
          %v3489 = vpop.permute.xlu0 %3488
          %3490 = vrot.lane.b32.xlu0 %v3415, 1
          %v3491 = vpop.permute.xlu0 %3490
          %3492 = vrot.lane.b32.xlu0 %v3419, 1
          %v3493 = vpop.permute.xlu0 %3492
          %v3494 = vsel %vm2225, %v3491, %v3487
          %v3495 = vsel %vm2225, %v3493, %v3489
          %s3496 = sadd.s32 %s2162, 37
          %s3497 = sld [smem:[#allocation16 + %s3496]]
          %v3498 = vstv %s3497
          %v3499 = vmul.f32 %v3494, %v3498
          %v3500 = vmul.f32 %v3495, %v3498
          %v3501 = vadd.f32 %v3470, %v3499
          %v3502 = vadd.f32 %v3471, %v3500
          %s3503 = sadd.s32 %s2170, 37
          %s3504 = sld [smem:[#allocation16 + %s3503]]
          %v3505 = vstv %s3504
          %v3506 = vmul.f32 %v3494, %v3505
          %v3507 = vmul.f32 %v3495, %v3505
          %v3508 = vadd.f32 %v3477, %v3506
          %v3509 = vadd.f32 %v3478, %v3507
          %s3510 = sadd.s32 %s2178, 37
          %s3511 = sld [smem:[#allocation16 + %s3510]]
          %v3512 = vstv %s3511
          %v3513 = vmul.f32 %v3494, %v3512
          %v3514 = vmul.f32 %v3495, %v3512
          %v3515 = vadd.f32 %v3484, %v3513
          %v3516 = vadd.f32 %v3485, %v3514
          %s3517 = sadd.s32 %s2162, 38
          %s3518 = sld [smem:[#allocation16 + %s3517]]
          %v3519 = vstv %s3518
          %v3520 = vmul.f32 %v3401, %v3519
          %v3521 = vmul.f32 %v3136, %v3519
          %v3522 = vmul.f32 %v3403, %v3519
          %v3526 = vrot.slane %v3520, 2
          %v3527 = vrot.slane %v3521, 2
          %v3528 = vsel %vm3409, %v3526, %v3527
          %v3529 = vrot.slane %v3522, 2
          %v3530 = vsel %vm3409, %v3527, %v3529
          %v3533 = vadd.f32 %v3501, %v3528
          %v3534 = vadd.f32 %v3502, %v3530
          %s3535 = sadd.s32 %s2170, 38
          %s3536 = sld [smem:[#allocation16 + %s3535]]
          %v3537 = vstv %s3536
          %v3538 = vmul.f32 %v3401, %v3537
          %v3539 = vmul.f32 %v3136, %v3537
          %v3540 = vmul.f32 %v3403, %v3537
          %v3544 = vrot.slane %v3538, 2
          %v3545 = vrot.slane %v3539, 2
          %v3546 = vsel %vm3409, %v3544, %v3545
          %v3547 = vrot.slane %v3540, 2
          %v3548 = vsel %vm3409, %v3545, %v3547
          %v3551 = vadd.f32 %v3508, %v3546
          %v3552 = vadd.f32 %v3509, %v3548
          %s3553 = sadd.s32 %s2178, 38
          %s3554 = sld [smem:[#allocation16 + %s3553]]
          %v3555 = vstv %s3554
          %v3556 = vmul.f32 %v3401, %v3555
          %v3557 = vmul.f32 %v3136, %v3555
          %v3558 = vmul.f32 %v3403, %v3555
          %v3562 = vrot.slane %v3556, 2
          %v3563 = vrot.slane %v3557, 2
          %v3564 = vsel %vm3409, %v3562, %v3563
          %v3565 = vrot.slane %v3558, 2
          %v3566 = vsel %vm3409, %v3563, %v3565
          %v3569 = vadd.f32 %v3515, %v3564
          %v3570 = vadd.f32 %v3516, %v3566
          %3571 = vrot.lane.b32.xlu0 %v3412, 127
          %v3572 = vpop.permute.xlu0 %3571
          %3573 = vrot.lane.b32.xlu0 %v3417, 127
          %v3574 = vpop.permute.xlu0 %3573
          %3575 = vrot.lane.b32.xlu0 %v3415, 127
          %v3576 = vpop.permute.xlu0 %3575
          %3577 = vrot.lane.b32.xlu0 %v3419, 127
          %v3578 = vpop.permute.xlu0 %3577
          %v3579 = vsel %vm2311, %v3572, %v3576
          %v3580 = vsel %vm2311, %v3574, %v3578
          %s3581 = sadd.s32 %s2162, 39
          %s3582 = sld [smem:[#allocation16 + %s3581]]
          %v3583 = vstv %s3582
          %v3584 = vmul.f32 %v3579, %v3583
          %v3585 = vmul.f32 %v3580, %v3583
          %v3586 = vadd.f32 %v3533, %v3584
          %v3587 = vadd.f32 %v3534, %v3585
          %s3588 = sadd.s32 %s2170, 39
          %s3589 = sld [smem:[#allocation16 + %s3588]]
          %v3590 = vstv %s3589
          %v3591 = vmul.f32 %v3579, %v3590
          %v3592 = vmul.f32 %v3580, %v3590
          %v3593 = vadd.f32 %v3551, %v3591
          %v3594 = vadd.f32 %v3552, %v3592
          %s3595 = sadd.s32 %s2178, 39
          %s3596 = sld [smem:[#allocation16 + %s3595]]
          %v3597 = vstv %s3596
          %v3598 = vmul.f32 %v3579, %v3597
          %v3599 = vmul.f32 %v3580, %v3597
          %v3600 = vadd.f32 %v3569, %v3598
          %v3601 = vadd.f32 %v3570, %v3599
          %3602 = vrot.lane.b32.xlu0 %v3412, 126
          %v3603 = vpop.permute.xlu0 %3602
          %3604 = vrot.lane.b32.xlu0 %v3417, 126
          %v3605 = vpop.permute.xlu0 %3604
          %3606 = vrot.lane.b32.xlu0 %v3415, 126
          %v3607 = vpop.permute.xlu0 %3606
          %3608 = vrot.lane.b32.xlu0 %v3419, 126
          %v3609 = vpop.permute.xlu0 %3608
          %v3610 = vsel %vm2343, %v3603, %v3607
          %v3611 = vsel %vm2343, %v3605, %v3609
          %s3612 = sadd.s32 %s2162, 40
          %s3613 = sld [smem:[#allocation16 + %s3612]]
          %v3614 = vstv %s3613
          %v3615 = vmul.f32 %v3610, %v3614
          %v3616 = vmul.f32 %v3611, %v3614
          %v3617 = vadd.f32 %v3586, %v3615
          %v3618 = vadd.f32 %v3587, %v3616
          %s3619 = sadd.s32 %s2170, 40
          %s3620 = sld [smem:[#allocation16 + %s3619]]
          %v3621 = vstv %s3620
          %v3622 = vmul.f32 %v3610, %v3621
          %v3623 = vmul.f32 %v3611, %v3621
          %v3624 = vadd.f32 %v3593, %v3622
          %v3625 = vadd.f32 %v3594, %v3623
          %s3626 = sadd.s32 %s2178, 40
          %s3627 = sld [smem:[#allocation16 + %s3626]]
          %v3628 = vstv %s3627
          %v3629 = vmul.f32 %v3610, %v3628
          %v3630 = vmul.f32 %v3611, %v3628
          %v3631 = vadd.f32 %v3600, %v3629
          %v3632 = vadd.f32 %v3601, %v3630
          %3633 = vrot.lane.b32.xlu0 %v3412, 125
          %v3634 = vpop.permute.xlu0 %3633
          %3635 = vrot.lane.b32.xlu0 %v3417, 125
          %v3636 = vpop.permute.xlu0 %3635
          %3637 = vrot.lane.b32.xlu0 %v3415, 125
          %v3638 = vpop.permute.xlu0 %3637
          %3639 = vrot.lane.b32.xlu0 %v3419, 125
          %v3640 = vpop.permute.xlu0 %3639
          %v3641 = vsel %vm2375, %v3634, %v3638
          %v3642 = vsel %vm2375, %v3636, %v3640
          %s3643 = sadd.s32 %s2162, 41
          %s3644 = sld [smem:[#allocation16 + %s3643]]
          %v3645 = vstv %s3644
          %v3646 = vmul.f32 %v3641, %v3645
          %v3647 = vmul.f32 %v3642, %v3645
          %v3648 = vadd.f32 %v3617, %v3646
          %v3649 = vadd.f32 %v3618, %v3647
          %s3650 = sadd.s32 %s2170, 41
          %s3651 = sld [smem:[#allocation16 + %s3650]]
          %v3652 = vstv %s3651
          %v3653 = vmul.f32 %v3641, %v3652
          %v3654 = vmul.f32 %v3642, %v3652
          %v3655 = vadd.f32 %v3624, %v3653
          %v3656 = vadd.f32 %v3625, %v3654
          %s3657 = sadd.s32 %s2178, 41
          %s3658 = sld [smem:[#allocation16 + %s3657]]
          %v3659 = vstv %s3658
          %v3660 = vmul.f32 %v3641, %v3659
          %v3661 = vmul.f32 %v3642, %v3659
          %v3662 = vadd.f32 %v3631, %v3660
          %v3663 = vadd.f32 %v3632, %v3661
          %v3664 = vld [vmem:[%s2121 + $0x10] sm:$0xf8]
          %v3665 = vld [vmem:[%s2121 + $0x18] sm:$0xf8]
          %v3666 = vld [vmem:[%s2121 + $0x30] sm:$0x7]
          %v3667 = vld [vmem:[%s2121 + $0x38] sm:$0x7]
          %vm3672 = vcmask 1044480
          %v3673 = vrot.slane %v3664, 3
          %v3674 = vrot.slane %v3136, 3
          %v3675 = vsel %vm3672, %v3673, %v3674
          %v3676 = vrot.slane %v3665, 3
          %v3677 = vrot.slane %v3137, 3
          %v3678 = vsel %vm3672, %v3676, %v3677
          %v3679 = vrot.slane %v3666, 3
          %v3680 = vsel %vm3672, %v3674, %v3679
          %v3681 = vrot.slane %v3667, 3
          %v3682 = vsel %vm3672, %v3677, %v3681
          %3687 = vrot.lane.b32.xlu0 %v3675, 3
          %v3688 = vpop.permute.xlu0 %3687
          %3689 = vrot.lane.b32.xlu0 %v3680, 3
          %v3690 = vpop.permute.xlu0 %3689
          %3691 = vrot.lane.b32.xlu0 %v3678, 3
          %v3692 = vpop.permute.xlu0 %3691
          %3693 = vrot.lane.b32.xlu0 %v3682, 3
          %v3694 = vpop.permute.xlu0 %3693
          %v3695 = vsel %vm2159, %v3692, %v3688
          %v3696 = vsel %vm2159, %v3694, %v3690
          %s3697 = sadd.s32 %s2162, 42
          %s3698 = sld [smem:[#allocation16 + %s3697]]
          %v3699 = vstv %s3698
          %v3700 = vmul.f32 %v3695, %v3699
          %v3701 = vmul.f32 %v3696, %v3699
          %v3702 = vadd.f32 %v3648, %v3700
          %v3703 = vadd.f32 %v3649, %v3701
          %s3704 = sadd.s32 %s2170, 42
          %s3705 = sld [smem:[#allocation16 + %s3704]]
          %v3706 = vstv %s3705
          %v3707 = vmul.f32 %v3695, %v3706
          %v3708 = vmul.f32 %v3696, %v3706
          %v3709 = vadd.f32 %v3655, %v3707
          %v3710 = vadd.f32 %v3656, %v3708
          %s3711 = sadd.s32 %s2178, 42
          %s3712 = sld [smem:[#allocation16 + %s3711]]
          %v3713 = vstv %s3712
          %v3714 = vmul.f32 %v3695, %v3713
          %v3715 = vmul.f32 %v3696, %v3713
          %v3716 = vadd.f32 %v3662, %v3714
          %v3717 = vadd.f32 %v3663, %v3715
          %3718 = vrot.lane.b32.xlu0 %v3675, 2
          %v3719 = vpop.permute.xlu0 %3718
          %3720 = vrot.lane.b32.xlu0 %v3680, 2
          %v3721 = vpop.permute.xlu0 %3720
          %3722 = vrot.lane.b32.xlu0 %v3678, 2
          %v3723 = vpop.permute.xlu0 %3722
          %3724 = vrot.lane.b32.xlu0 %v3682, 2
          %v3725 = vpop.permute.xlu0 %3724
          %v3726 = vsel %vm2193, %v3723, %v3719
          %v3727 = vsel %vm2193, %v3725, %v3721
          %s3728 = sadd.s32 %s2162, 43
          %s3729 = sld [smem:[#allocation16 + %s3728]]
          %v3730 = vstv %s3729
          %v3731 = vmul.f32 %v3726, %v3730
          %v3732 = vmul.f32 %v3727, %v3730
          %v3733 = vadd.f32 %v3702, %v3731
          %v3734 = vadd.f32 %v3703, %v3732
          %s3735 = sadd.s32 %s2170, 43
          %s3736 = sld [smem:[#allocation16 + %s3735]]
          %v3737 = vstv %s3736
          %v3738 = vmul.f32 %v3726, %v3737
          %v3739 = vmul.f32 %v3727, %v3737
          %v3740 = vadd.f32 %v3709, %v3738
          %v3741 = vadd.f32 %v3710, %v3739
          %s3742 = sadd.s32 %s2178, 43
          %s3743 = sld [smem:[#allocation16 + %s3742]]
          %v3744 = vstv %s3743
          %v3745 = vmul.f32 %v3726, %v3744
          %v3746 = vmul.f32 %v3727, %v3744
          %v3747 = vadd.f32 %v3716, %v3745
          %v3748 = vadd.f32 %v3717, %v3746
          %3749 = vrot.lane.b32.xlu0 %v3675, 1
          %v3750 = vpop.permute.xlu0 %3749
          %3751 = vrot.lane.b32.xlu0 %v3680, 1
          %v3752 = vpop.permute.xlu0 %3751
          %3753 = vrot.lane.b32.xlu0 %v3678, 1
          %v3754 = vpop.permute.xlu0 %3753
          %3755 = vrot.lane.b32.xlu0 %v3682, 1
          %v3756 = vpop.permute.xlu0 %3755
          %v3757 = vsel %vm2225, %v3754, %v3750
          %v3758 = vsel %vm2225, %v3756, %v3752
          %s3759 = sadd.s32 %s2162, 44
          %s3760 = sld [smem:[#allocation16 + %s3759]]
          %v3761 = vstv %s3760
          %v3762 = vmul.f32 %v3757, %v3761
          %v3763 = vmul.f32 %v3758, %v3761
          %v3764 = vadd.f32 %v3733, %v3762
          %v3765 = vadd.f32 %v3734, %v3763
          %s3766 = sadd.s32 %s2170, 44
          %s3767 = sld [smem:[#allocation16 + %s3766]]
          %v3768 = vstv %s3767
          %v3769 = vmul.f32 %v3757, %v3768
          %v3770 = vmul.f32 %v3758, %v3768
          %v3771 = vadd.f32 %v3740, %v3769
          %v3772 = vadd.f32 %v3741, %v3770
          %s3773 = sadd.s32 %s2178, 44
          %s3774 = sld [smem:[#allocation16 + %s3773]]
          %v3775 = vstv %s3774
          %v3776 = vmul.f32 %v3757, %v3775
          %v3777 = vmul.f32 %v3758, %v3775
          %v3778 = vadd.f32 %v3747, %v3776
          %v3779 = vadd.f32 %v3748, %v3777
          %s3780 = sadd.s32 %s2162, 45
          %s3781 = sld [smem:[#allocation16 + %s3780]]
          %v3782 = vstv %s3781
          %v3783 = vmul.f32 %v3664, %v3782
          %v3784 = vmul.f32 %v3136, %v3782
          %v3785 = vmul.f32 %v3666, %v3782
          %v3789 = vrot.slane %v3783, 3
          %v3790 = vrot.slane %v3784, 3
          %v3791 = vsel %vm3672, %v3789, %v3790
          %v3792 = vrot.slane %v3785, 3
          %v3793 = vsel %vm3672, %v3790, %v3792
          %v3796 = vadd.f32 %v3764, %v3791
          %v3797 = vadd.f32 %v3765, %v3793
          %s3798 = sadd.s32 %s2170, 45
          %s3799 = sld [smem:[#allocation16 + %s3798]]
          %v3800 = vstv %s3799
          %v3801 = vmul.f32 %v3664, %v3800
          %v3802 = vmul.f32 %v3136, %v3800
          %v3803 = vmul.f32 %v3666, %v3800
          %v3807 = vrot.slane %v3801, 3
          %v3808 = vrot.slane %v3802, 3
          %v3809 = vsel %vm3672, %v3807, %v3808
          %v3810 = vrot.slane %v3803, 3
          %v3811 = vsel %vm3672, %v3808, %v3810
          %v3814 = vadd.f32 %v3771, %v3809
          %v3815 = vadd.f32 %v3772, %v3811
          %s3816 = sadd.s32 %s2178, 45
          %s3817 = sld [smem:[#allocation16 + %s3816]]
          %v3818 = vstv %s3817
          %v3819 = vmul.f32 %v3664, %v3818
          %v3820 = vmul.f32 %v3136, %v3818
          %v3821 = vmul.f32 %v3666, %v3818
          %v3825 = vrot.slane %v3819, 3
          %v3826 = vrot.slane %v3820, 3
          %v3827 = vsel %vm3672, %v3825, %v3826
          %v3828 = vrot.slane %v3821, 3
          %v3829 = vsel %vm3672, %v3826, %v3828
          %v3832 = vadd.f32 %v3778, %v3827
          %v3833 = vadd.f32 %v3779, %v3829
          %3834 = vrot.lane.b32.xlu0 %v3675, 127
          %v3835 = vpop.permute.xlu0 %3834
          %3836 = vrot.lane.b32.xlu0 %v3680, 127
          %v3837 = vpop.permute.xlu0 %3836
          %3838 = vrot.lane.b32.xlu0 %v3678, 127
          %v3839 = vpop.permute.xlu0 %3838
          %3840 = vrot.lane.b32.xlu0 %v3682, 127
          %v3841 = vpop.permute.xlu0 %3840
          %v3842 = vsel %vm2311, %v3835, %v3839
          %v3843 = vsel %vm2311, %v3837, %v3841
          %s3844 = sadd.s32 %s2162, 46
          %s3845 = sld [smem:[#allocation16 + %s3844]]
          %v3846 = vstv %s3845
          %v3847 = vmul.f32 %v3842, %v3846
          %v3848 = vmul.f32 %v3843, %v3846
          %v3849 = vadd.f32 %v3796, %v3847
          %v3850 = vadd.f32 %v3797, %v3848
          %s3851 = sadd.s32 %s2170, 46
          %s3852 = sld [smem:[#allocation16 + %s3851]]
          %v3853 = vstv %s3852
          %v3854 = vmul.f32 %v3842, %v3853
          %v3855 = vmul.f32 %v3843, %v3853
          %v3856 = vadd.f32 %v3814, %v3854
          %v3857 = vadd.f32 %v3815, %v3855
          %s3858 = sadd.s32 %s2178, 46
          %s3859 = sld [smem:[#allocation16 + %s3858]]
          %v3860 = vstv %s3859
          %v3861 = vmul.f32 %v3842, %v3860
          %v3862 = vmul.f32 %v3843, %v3860
          %v3863 = vadd.f32 %v3832, %v3861
          %v3864 = vadd.f32 %v3833, %v3862
          %3865 = vrot.lane.b32.xlu0 %v3675, 126
          %v3866 = vpop.permute.xlu0 %3865
          %3867 = vrot.lane.b32.xlu0 %v3680, 126
          %v3868 = vpop.permute.xlu0 %3867
          %3869 = vrot.lane.b32.xlu0 %v3678, 126
          %v3870 = vpop.permute.xlu0 %3869
          %3871 = vrot.lane.b32.xlu0 %v3682, 126
          %v3872 = vpop.permute.xlu0 %3871
          %v3873 = vsel %vm2343, %v3866, %v3870
          %v3874 = vsel %vm2343, %v3868, %v3872
          %s3875 = sadd.s32 %s2162, 47
          %s3876 = sld [smem:[#allocation16 + %s3875]]
          %v3877 = vstv %s3876
          %v3878 = vmul.f32 %v3873, %v3877
          %v3879 = vmul.f32 %v3874, %v3877
          %v3880 = vadd.f32 %v3849, %v3878
          %v3881 = vadd.f32 %v3850, %v3879
          %s3882 = sadd.s32 %s2170, 47
          %s3883 = sld [smem:[#allocation16 + %s3882]]
          %v3884 = vstv %s3883
          %v3885 = vmul.f32 %v3873, %v3884
          %v3886 = vmul.f32 %v3874, %v3884
          %v3887 = vadd.f32 %v3856, %v3885
          %v3888 = vadd.f32 %v3857, %v3886
          %s3889 = sadd.s32 %s2178, 47
          %s3890 = sld [smem:[#allocation16 + %s3889]]
          %v3891 = vstv %s3890
          %v3892 = vmul.f32 %v3873, %v3891
          %v3893 = vmul.f32 %v3874, %v3891
          %v3894 = vadd.f32 %v3863, %v3892
          %v3895 = vadd.f32 %v3864, %v3893
          %3896 = vrot.lane.b32.xlu0 %v3675, 125
          %v3897 = vpop.permute.xlu0 %3896
          %3898 = vrot.lane.b32.xlu0 %v3680, 125
          %v3899 = vpop.permute.xlu0 %3898
          %3900 = vrot.lane.b32.xlu0 %v3678, 125
          %v3901 = vpop.permute.xlu0 %3900
          %3902 = vrot.lane.b32.xlu0 %v3682, 125
          %v3903 = vpop.permute.xlu0 %3902
          %v3904 = vsel %vm2375, %v3897, %v3901
          %v3905 = vsel %vm2375, %v3899, %v3903
          %s3906 = sadd.s32 %s2162, 48
          %s3907 = sld [smem:[#allocation16 + %s3906]]
          %v3908 = vstv %s3907
          %v3909 = vmul.f32 %v3904, %v3908
          %v3910 = vmul.f32 %v3905, %v3908
          %v3911 = vadd.f32 %v3880, %v3909
          %v3912 = vadd.f32 %v3881, %v3910
          %s3913 = sadd.s32 %s2170, 48
          %s3914 = sld [smem:[#allocation16 + %s3913]]
          %v3915 = vstv %s3914
          %v3916 = vmul.f32 %v3904, %v3915
          %v3917 = vmul.f32 %v3905, %v3915
          %v3918 = vadd.f32 %v3887, %v3916
          %v3919 = vadd.f32 %v3888, %v3917
          %s3920 = sadd.s32 %s2178, 48
          %s3921 = sld [smem:[#allocation16 + %s3920]]
          %v3922 = vstv %s3921
          %v3923 = vmul.f32 %v3904, %v3922
          %v3924 = vmul.f32 %v3905, %v3922
          %v3925 = vadd.f32 %v3894, %v3923
          %v3926 = vadd.f32 %v3895, %v3924
        $region127: #{tpu_custom_call.1} parent=63 // loop_footer
          %s2111 = sadd.s32 1, %s2107
        $region128: #{tpu_custom_call.1} parent=63 // loop_footer_branch
          %2106 = sbr.rel target = $region124
        $region129: #{tpu_custom_call.1} parent=63 // loop_exit
          _
        %s3927 = sld [smem:[#allocation18]]
        %v3928 = vstv %s3927
        %v3929 = vadd.f32 %v2112, %v3928
        %v3930 = vadd.f32 %v2113, %v3928
        %v3931 = vmax.f32 %v3929, 0.0
        %v3932 = vmax.f32 %v3930, 0.0
        %s3933 = sld [smem:[#allocation18 + $0x1]]
        %v3934 = vstv %s3933
        %v3935 = vadd.f32 %v2114, %v3934
        %v3936 = vadd.f32 %v2115, %v3934
        %v3937 = vmax.f32 %v3935, 0.0
        %v3938 = vmax.f32 %v3936, 0.0
        %s3939 = sld [smem:[#allocation18 + $0x2]]
        %v3940 = vstv %s3939
        %v3941 = vadd.f32 %v2116, %v3940
        %v3942 = vadd.f32 %v2117, %v3940
        %v3943 = vmax.f32 %v3941, 0.0
        %v3944 = vmax.f32 %v3942, 0.0
        %3945 = vst [vmem:[%s583 + $0x10] sm:$0xff] %v3931
        %3946 = vst [vmem:[%s583 + $0x20] sm:$0xff] %v3932
        %3947 = vst [vmem:[%s590 + $0x10] sm:$0xff] %v3937
        %3948 = vst [vmem:[%s590 + $0x20] sm:$0xff] %v3938
        %3949 = vst [vmem:[%s597 + $0x10] sm:$0xff] %v3943
        %3950 = vst [vmem:[%s597 + $0x20] sm:$0xff] %v3944
        loop: start=0, step=1, limit=12
        $region130: #{tpu_custom_call.1} parent=63 // loop_pre_header
          _
        $region131: #{tpu_custom_call.1} parent=63 // loop_header
          %s3952 = sphi 0, %s3956
          %p3953 = scmp.ge.s32.totalorder %s3952, 12
          %v3957 = vphi 0.0, %v4327
          %v3958 = vphi 0.0, %v4328
          %v3959 = vphi 0.0, %v4334
          %v3960 = vphi 0.0, %v4335
          %v3961 = vphi 0.0, %v4341
          %v3962 = vphi 0.0, %v4342
        $region132: #{tpu_custom_call.1} parent=63 // loop_header_branch
          %3955 = sbr.rel (%p3953) target = $region136
        $region133: #{tpu_custom_call.1} parent=63 // loop_body
          %s3963 = smul.u32 %s3952, 8
          %s3964 = smul.addr %s3963, 8
          %s3965 = scalar_lea.vmem [#allocation2], %s3964
          %v3966 = vld [vmem:[%s3965] sm:$0x80]
          %v3967 = vld [vmem:[%s3965 + $0x8] sm:$0x80]
          %v3968 = vld [vmem:[%s3965 + $0x10] sm:$0xff]
          %v3969 = vld [vmem:[%s3965 + $0x18] sm:$0xff]
          %v3970 = vld [vmem:[%s3965 + $0x20] sm:$0x7f]
          %v3971 = vld [vmem:[%s3965 + $0x28] sm:$0x7f]
          %vm3978 = vcmask 1040384
          %v3979 = vrot.slane %v3966, 7
          %v3980 = vrot.slane %v3968, 7
          %v3981 = vsel %vm3978, %v3979, %v3980
          %v3982 = vrot.slane %v3967, 7
          %v3983 = vrot.slane %v3969, 7
          %v3984 = vsel %vm3978, %v3982, %v3983
          %v3985 = vrot.slane %v3970, 7
          %v3986 = vsel %vm3978, %v3980, %v3985
          %v3987 = vrot.slane %v3971, 7
          %v3988 = vsel %vm3978, %v3983, %v3987
          %3993 = vrot.lane.b32.xlu0 %v3981, 1
          %v3994 = vpop.permute.xlu0 %3993
          %3995 = vrot.lane.b32.xlu0 %v3986, 1
          %v3996 = vpop.permute.xlu0 %3995
          %3997 = vrot.lane.b32.xlu0 %v3984, 1
          %v3998 = vpop.permute.xlu0 %3997
          %3999 = vrot.lane.b32.xlu0 %v3988, 1
          %v4000 = vpop.permute.xlu0 %3999
          %v4001 = vlaneseq
          %v4002 = vand.u32 %v4001, 127
          %vm4003 = vcmp.lt.s32.totalorder %v4002, 1
          %v4004 = vsel %vm4003, %v3998, %v3994
          %v4005 = vsel %vm4003, %v4000, %v3996
          %s4006 = smul.u32 %s3952, 9
          %s4007 = sld [smem:[#allocation20 + %s4006]]
          %v4008 = vstv %s4007
          %v4009 = vmul.f32 %v4004, %v4008
          %v4010 = vmul.f32 %v4005, %v4008
          %v4011 = vadd.f32 %v3957, %v4009
          %v4012 = vadd.f32 %v3958, %v4010
          %s4013 = sadd.s32 %s3952, 12
          %s4014 = smul.u32 %s4013, 9
          %s4015 = sld [smem:[#allocation20 + %s4014]]
          %v4016 = vstv %s4015
          %v4017 = vmul.f32 %v4004, %v4016
          %v4018 = vmul.f32 %v4005, %v4016
          %v4019 = vadd.f32 %v3959, %v4017
          %v4020 = vadd.f32 %v3960, %v4018
          %s4021 = sadd.s32 %s3952, 24
          %s4022 = smul.u32 %s4021, 9
          %s4023 = sld [smem:[#allocation20 + %s4022]]
          %v4024 = vstv %s4023
          %v4025 = vmul.f32 %v4004, %v4024
          %v4026 = vmul.f32 %v4005, %v4024
          %v4027 = vadd.f32 %v3961, %v4025
          %v4028 = vadd.f32 %v3962, %v4026
          %s4029 = sadd.s32 %s4006, 1
          %s4030 = sld [smem:[#allocation20 + %s4029]]
          %v4031 = vstv %s4030
          %v4032 = vmul.f32 %v3966, %v4031
          %v4033 = vmul.f32 %v3968, %v4031
          %v4034 = vmul.f32 %v3970, %v4031
          %v4038 = vrot.slane %v4032, 7
          %v4039 = vrot.slane %v4033, 7
          %v4040 = vsel %vm3978, %v4038, %v4039
          %v4041 = vrot.slane %v4034, 7
          %v4042 = vsel %vm3978, %v4039, %v4041
          %v4045 = vadd.f32 %v4011, %v4040
          %v4046 = vadd.f32 %v4012, %v4042
          %s4047 = sadd.s32 %s4014, 1
          %s4048 = sld [smem:[#allocation20 + %s4047]]
          %v4049 = vstv %s4048
          %v4050 = vmul.f32 %v3966, %v4049
          %v4051 = vmul.f32 %v3968, %v4049
          %v4052 = vmul.f32 %v3970, %v4049
          %v4056 = vrot.slane %v4050, 7
          %v4057 = vrot.slane %v4051, 7
          %v4058 = vsel %vm3978, %v4056, %v4057
          %v4059 = vrot.slane %v4052, 7
          %v4060 = vsel %vm3978, %v4057, %v4059
          %v4063 = vadd.f32 %v4019, %v4058
          %v4064 = vadd.f32 %v4020, %v4060
          %s4065 = sadd.s32 %s4022, 1
          %s4066 = sld [smem:[#allocation20 + %s4065]]
          %v4067 = vstv %s4066
          %v4068 = vmul.f32 %v3966, %v4067
          %v4069 = vmul.f32 %v3968, %v4067
          %v4070 = vmul.f32 %v3970, %v4067
          %v4074 = vrot.slane %v4068, 7
          %v4075 = vrot.slane %v4069, 7
          %v4076 = vsel %vm3978, %v4074, %v4075
          %v4077 = vrot.slane %v4070, 7
          %v4078 = vsel %vm3978, %v4075, %v4077
          %v4081 = vadd.f32 %v4027, %v4076
          %v4082 = vadd.f32 %v4028, %v4078
          %4083 = vrot.lane.b32.xlu0 %v3981, 127
          %v4084 = vpop.permute.xlu0 %4083
          %4085 = vrot.lane.b32.xlu0 %v3986, 127
          %v4086 = vpop.permute.xlu0 %4085
          %4087 = vrot.lane.b32.xlu0 %v3984, 127
          %v4088 = vpop.permute.xlu0 %4087
          %4089 = vrot.lane.b32.xlu0 %v3988, 127
          %v4090 = vpop.permute.xlu0 %4089
          %vm4091 = vcmp.lt.s32.totalorder %v4002, 127
          %v4092 = vsel %vm4091, %v4084, %v4088
          %v4093 = vsel %vm4091, %v4086, %v4090
          %s4094 = sadd.s32 %s4006, 2
          %s4095 = sld [smem:[#allocation20 + %s4094]]
          %v4096 = vstv %s4095
          %v4097 = vmul.f32 %v4092, %v4096
          %v4098 = vmul.f32 %v4093, %v4096
          %v4099 = vadd.f32 %v4045, %v4097
          %v4100 = vadd.f32 %v4046, %v4098
          %s4101 = sadd.s32 %s4014, 2
          %s4102 = sld [smem:[#allocation20 + %s4101]]
          %v4103 = vstv %s4102
          %v4104 = vmul.f32 %v4092, %v4103
          %v4105 = vmul.f32 %v4093, %v4103
          %v4106 = vadd.f32 %v4063, %v4104
          %v4107 = vadd.f32 %v4064, %v4105
          %s4108 = sadd.s32 %s4022, 2
          %s4109 = sld [smem:[#allocation20 + %s4108]]
          %v4110 = vstv %s4109
          %v4111 = vmul.f32 %v4092, %v4110
          %v4112 = vmul.f32 %v4093, %v4110
          %v4113 = vadd.f32 %v4081, %v4111
          %v4114 = vadd.f32 %v4082, %v4112
          %v4115 = vld [vmem:[%s3965 + $0x20] sm:$0xff]
          %v4116 = vld [vmem:[%s3965 + $0x28] sm:$0xff]
          %4117 = vrot.lane.b32.xlu0 %v3968, 1
          %v4118 = vpop.permute.xlu0 %4117
          %4119 = vrot.lane.b32.xlu0 %v4115, 1
          %v4120 = vpop.permute.xlu0 %4119
          %4121 = vrot.lane.b32.xlu0 %v3969, 1
          %v4122 = vpop.permute.xlu0 %4121
          %4123 = vrot.lane.b32.xlu0 %v4116, 1
          %v4124 = vpop.permute.xlu0 %4123
          %v4125 = vsel %vm4003, %v4122, %v4118
          %v4126 = vsel %vm4003, %v4124, %v4120
          %s4127 = sadd.s32 %s4006, 3
          %s4128 = sld [smem:[#allocation20 + %s4127]]
          %v4129 = vstv %s4128
          %v4130 = vmul.f32 %v4125, %v4129
          %v4131 = vmul.f32 %v4126, %v4129
          %v4132 = vadd.f32 %v4099, %v4130
          %v4133 = vadd.f32 %v4100, %v4131
          %s4134 = sadd.s32 %s4014, 3
          %s4135 = sld [smem:[#allocation20 + %s4134]]
          %v4136 = vstv %s4135
          %v4137 = vmul.f32 %v4125, %v4136
          %v4138 = vmul.f32 %v4126, %v4136
          %v4139 = vadd.f32 %v4106, %v4137
          %v4140 = vadd.f32 %v4107, %v4138
          %s4141 = sadd.s32 %s4022, 3
          %s4142 = sld [smem:[#allocation20 + %s4141]]
          %v4143 = vstv %s4142
          %v4144 = vmul.f32 %v4125, %v4143
          %v4145 = vmul.f32 %v4126, %v4143
          %v4146 = vadd.f32 %v4113, %v4144
          %v4147 = vadd.f32 %v4114, %v4145
          %s4148 = sadd.s32 %s4006, 4
          %s4149 = sld [smem:[#allocation20 + %s4148]]
          %v4150 = vstv %s4149
          %v4151 = vmul.f32 %v3968, %v4150
          %v4152 = vmul.f32 %v4115, %v4150
          %v4153 = vadd.f32 %v4132, %v4151
          %v4154 = vadd.f32 %v4133, %v4152
          %s4155 = sadd.s32 %s4014, 4
          %s4156 = sld [smem:[#allocation20 + %s4155]]
          %v4157 = vstv %s4156
          %v4158 = vmul.f32 %v3968, %v4157
          %v4159 = vmul.f32 %v4115, %v4157
          %v4160 = vadd.f32 %v4139, %v4158
          %v4161 = vadd.f32 %v4140, %v4159
          %s4162 = sadd.s32 %s4022, 4
          %s4163 = sld [smem:[#allocation20 + %s4162]]
          %v4164 = vstv %s4163
          %v4165 = vmul.f32 %v3968, %v4164
          %v4166 = vmul.f32 %v4115, %v4164
          %v4167 = vadd.f32 %v4146, %v4165
          %v4168 = vadd.f32 %v4147, %v4166
          %4169 = vrot.lane.b32.xlu0 %v3968, 127
          %v4170 = vpop.permute.xlu0 %4169
          %4171 = vrot.lane.b32.xlu0 %v4115, 127
          %v4172 = vpop.permute.xlu0 %4171
          %4173 = vrot.lane.b32.xlu0 %v3969, 127
          %v4174 = vpop.permute.xlu0 %4173
          %4175 = vrot.lane.b32.xlu0 %v4116, 127
          %v4176 = vpop.permute.xlu0 %4175
          %v4177 = vsel %vm4091, %v4170, %v4174
          %v4178 = vsel %vm4091, %v4172, %v4176
          %s4179 = sadd.s32 %s4006, 5
          %s4180 = sld [smem:[#allocation20 + %s4179]]
          %v4181 = vstv %s4180
          %v4182 = vmul.f32 %v4177, %v4181
          %v4183 = vmul.f32 %v4178, %v4181
          %v4184 = vadd.f32 %v4153, %v4182
          %v4185 = vadd.f32 %v4154, %v4183
          %s4186 = sadd.s32 %s4014, 5
          %s4187 = sld [smem:[#allocation20 + %s4186]]
          %v4188 = vstv %s4187
          %v4189 = vmul.f32 %v4177, %v4188
          %v4190 = vmul.f32 %v4178, %v4188
          %v4191 = vadd.f32 %v4160, %v4189
          %v4192 = vadd.f32 %v4161, %v4190
          %s4193 = sadd.s32 %s4022, 5
          %s4194 = sld [smem:[#allocation20 + %s4193]]
          %v4195 = vstv %s4194
          %v4196 = vmul.f32 %v4177, %v4195
          %v4197 = vmul.f32 %v4178, %v4195
          %v4198 = vadd.f32 %v4167, %v4196
          %v4199 = vadd.f32 %v4168, %v4197
          %v4200 = vld [vmem:[%s3965 + $0x10] sm:$0xfe]
          %v4201 = vld [vmem:[%s3965 + $0x18] sm:$0xfe]
          %v4202 = vld [vmem:[%s3965 + $0x20] sm:$0xff]
          %v4203 = vld [vmem:[%s3965 + $0x28] sm:$0xff]
          %v4204 = vld [vmem:[%s3965 + $0x30] sm:$0x1]
          %v4205 = vld [vmem:[%s3965 + $0x38] sm:$0x1]
          %vm4212 = vcmask 1046528
          %v4213 = vrot.slane %v4200, 1
          %v4214 = vrot.slane %v4202, 1
          %v4215 = vsel %vm4212, %v4213, %v4214
          %v4216 = vrot.slane %v4201, 1
          %v4217 = vrot.slane %v4203, 1
          %v4218 = vsel %vm4212, %v4216, %v4217
          %v4219 = vrot.slane %v4204, 1
          %v4220 = vsel %vm4212, %v4214, %v4219
          %v4221 = vrot.slane %v4205, 1
          %v4222 = vsel %vm4212, %v4217, %v4221
          %4227 = vrot.lane.b32.xlu0 %v4215, 1
          %v4228 = vpop.permute.xlu0 %4227
          %4229 = vrot.lane.b32.xlu0 %v4220, 1
          %v4230 = vpop.permute.xlu0 %4229
          %4231 = vrot.lane.b32.xlu0 %v4218, 1
          %v4232 = vpop.permute.xlu0 %4231
          %4233 = vrot.lane.b32.xlu0 %v4222, 1
          %v4234 = vpop.permute.xlu0 %4233
          %v4235 = vsel %vm4003, %v4232, %v4228
          %v4236 = vsel %vm4003, %v4234, %v4230
          %s4237 = sadd.s32 %s4006, 6
          %s4238 = sld [smem:[#allocation20 + %s4237]]
          %v4239 = vstv %s4238
          %v4240 = vmul.f32 %v4235, %v4239
          %v4241 = vmul.f32 %v4236, %v4239
          %v4242 = vadd.f32 %v4184, %v4240
          %v4243 = vadd.f32 %v4185, %v4241
          %s4244 = sadd.s32 %s4014, 6
          %s4245 = sld [smem:[#allocation20 + %s4244]]
          %v4246 = vstv %s4245
          %v4247 = vmul.f32 %v4235, %v4246
          %v4248 = vmul.f32 %v4236, %v4246
          %v4249 = vadd.f32 %v4191, %v4247
          %v4250 = vadd.f32 %v4192, %v4248
          %s4251 = sadd.s32 %s4022, 6
          %s4252 = sld [smem:[#allocation20 + %s4251]]
          %v4253 = vstv %s4252
          %v4254 = vmul.f32 %v4235, %v4253
          %v4255 = vmul.f32 %v4236, %v4253
          %v4256 = vadd.f32 %v4198, %v4254
          %v4257 = vadd.f32 %v4199, %v4255
          %s4258 = sadd.s32 %s4006, 7
          %s4259 = sld [smem:[#allocation20 + %s4258]]
          %v4260 = vstv %s4259
          %v4261 = vmul.f32 %v4200, %v4260
          %v4262 = vmul.f32 %v4202, %v4260
          %v4263 = vmul.f32 %v4204, %v4260
          %v4267 = vrot.slane %v4261, 1
          %v4268 = vrot.slane %v4262, 1
          %v4269 = vsel %vm4212, %v4267, %v4268
          %v4270 = vrot.slane %v4263, 1
          %v4271 = vsel %vm4212, %v4268, %v4270
          %v4274 = vadd.f32 %v4242, %v4269
          %v4275 = vadd.f32 %v4243, %v4271
          %s4276 = sadd.s32 %s4014, 7
          %s4277 = sld [smem:[#allocation20 + %s4276]]
          %v4278 = vstv %s4277
          %v4279 = vmul.f32 %v4200, %v4278
          %v4280 = vmul.f32 %v4202, %v4278
          %v4281 = vmul.f32 %v4204, %v4278
          %v4285 = vrot.slane %v4279, 1
          %v4286 = vrot.slane %v4280, 1
          %v4287 = vsel %vm4212, %v4285, %v4286
          %v4288 = vrot.slane %v4281, 1
          %v4289 = vsel %vm4212, %v4286, %v4288
          %v4292 = vadd.f32 %v4249, %v4287
          %v4293 = vadd.f32 %v4250, %v4289
          %s4294 = sadd.s32 %s4022, 7
          %s4295 = sld [smem:[#allocation20 + %s4294]]
          %v4296 = vstv %s4295
          %v4297 = vmul.f32 %v4200, %v4296
          %v4298 = vmul.f32 %v4202, %v4296
          %v4299 = vmul.f32 %v4204, %v4296
          %v4303 = vrot.slane %v4297, 1
          %v4304 = vrot.slane %v4298, 1
          %v4305 = vsel %vm4212, %v4303, %v4304
          %v4306 = vrot.slane %v4299, 1
          %v4307 = vsel %vm4212, %v4304, %v4306
          %v4310 = vadd.f32 %v4256, %v4305
          %v4311 = vadd.f32 %v4257, %v4307
          %4312 = vrot.lane.b32.xlu0 %v4215, 127
          %v4313 = vpop.permute.xlu0 %4312
          %4314 = vrot.lane.b32.xlu0 %v4220, 127
          %v4315 = vpop.permute.xlu0 %4314
          %4316 = vrot.lane.b32.xlu0 %v4218, 127
          %v4317 = vpop.permute.xlu0 %4316
          %4318 = vrot.lane.b32.xlu0 %v4222, 127
          %v4319 = vpop.permute.xlu0 %4318
          %v4320 = vsel %vm4091, %v4313, %v4317
          %v4321 = vsel %vm4091, %v4315, %v4319
          %s4322 = sadd.s32 %s4006, 8
          %s4323 = sld [smem:[#allocation20 + %s4322]]
          %v4324 = vstv %s4323
          %v4325 = vmul.f32 %v4320, %v4324
          %v4326 = vmul.f32 %v4321, %v4324
          %v4327 = vadd.f32 %v4274, %v4325
          %v4328 = vadd.f32 %v4275, %v4326
          %s4329 = sadd.s32 %s4014, 8
          %s4330 = sld [smem:[#allocation20 + %s4329]]
          %v4331 = vstv %s4330
          %v4332 = vmul.f32 %v4320, %v4331
          %v4333 = vmul.f32 %v4321, %v4331
          %v4334 = vadd.f32 %v4292, %v4332
          %v4335 = vadd.f32 %v4293, %v4333
          %s4336 = sadd.s32 %s4022, 8
          %s4337 = sld [smem:[#allocation20 + %s4336]]
          %v4338 = vstv %s4337
          %v4339 = vmul.f32 %v4320, %v4338
          %v4340 = vmul.f32 %v4321, %v4338
          %v4341 = vadd.f32 %v4310, %v4339
          %v4342 = vadd.f32 %v4311, %v4340
        $region134: #{tpu_custom_call.1} parent=63 // loop_footer
          %s3956 = sadd.s32 1, %s3952
        $region135: #{tpu_custom_call.1} parent=63 // loop_footer_branch
          %3951 = sbr.rel target = $region131
        $region136: #{tpu_custom_call.1} parent=63 // loop_exit
          _
        %s4343 = sld [smem:[#allocation21]]
        %v4344 = vstv %s4343
        %v4345 = vadd.f32 %v3957, %v4344
        %v4346 = vadd.f32 %v3958, %v4344
        %v4347 = vmax.f32 %v4345, 0.0
        %v4348 = vmax.f32 %v4346, 0.0
        %s4349 = sld [smem:[#allocation21 + $0x1]]
        %v4350 = vstv %s4349
        %v4351 = vadd.f32 %v3959, %v4350
        %v4352 = vadd.f32 %v3960, %v4350
        %v4353 = vmax.f32 %v4351, 0.0
        %v4354 = vmax.f32 %v4352, 0.0
        %s4355 = sld [smem:[#allocation21 + $0x2]]
        %v4356 = vstv %s4355
        %v4357 = vadd.f32 %v3961, %v4356
        %v4358 = vadd.f32 %v3962, %v4356
        %v4359 = vmax.f32 %v4357, 0.0
        %v4360 = vmax.f32 %v4358, 0.0
        %v4361 = vld [vmem:[%s441] sm:$0xff]
        %v4362 = vld [vmem:[%s441 + $0x8] sm:$0xff]
        %v4363 = vmul.f32 %v4347, %v4361
        %v4364 = vmul.f32 %v4348, %v4362
        %v4365 = vsub.f32 %v4363, %v4347
        %v4366 = vsub.f32 %v4364, %v4348
        %v4367 = vadd.f32 %v4365, 1.0
        %v4368 = vadd.f32 %v4366, 1.0
        %v4369 = vmax.f32 %v4367, 0.0
        %v4370 = vmax.f32 %v4368, 0.0
        %4371 = vst [vmem:[%s520] sm:$0xff] %v4369
        %4372 = vst [vmem:[%s520 + $0x8] sm:$0xff] %v4370
        %v4373 = vld [vmem:[%s610] sm:$0xff]
        %v4374 = vld [vmem:[%s610 + $0x8] sm:$0xff]
        %v4375 = vmul.f32 %v4353, %v4373
        %v4376 = vmul.f32 %v4354, %v4374
        %v4377 = vsub.f32 %v4375, %v4353
        %v4378 = vsub.f32 %v4376, %v4354
        %v4379 = vadd.f32 %v4377, 1.0
        %v4380 = vadd.f32 %v4378, 1.0
        %v4381 = vmax.f32 %v4379, 0.0
        %v4382 = vmax.f32 %v4380, 0.0
        %s4383 = scalar_lea.vmem %s520, 16 [#allocation23]
        %4384 = vst [vmem:[%s4383] sm:$0xff] %v4381
        %4385 = vst [vmem:[%s4383 + $0x8] sm:$0xff] %v4382
        %v4386 = vld [vmem:[%s619] sm:$0xff]
        %v4387 = vld [vmem:[%s619 + $0x8] sm:$0xff]
        %v4388 = vmul.f32 %v4359, %v4386
        %v4389 = vmul.f32 %v4360, %v4387
        %v4390 = vsub.f32 %v4388, %v4359
        %v4391 = vsub.f32 %v4389, %v4360
        %v4392 = vadd.f32 %v4390, 1.0
        %v4393 = vadd.f32 %v4391, 1.0
        %v4394 = vmax.f32 %v4392, 0.0
        %v4395 = vmax.f32 %v4393, 0.0
        %s4396 = scalar_lea.vmem %s520, 32 [#allocation23]
        %4397 = vst [vmem:[%s4396] sm:$0xff] %v4394
        %4398 = vst [vmem:[%s4396 + $0x8] sm:$0xff] %v4395
        %s4399 = sand.u32 %s279, 1
        %s4400 = scalar_lea.sflag [#allocation5], %s4399
        %s4401 = sand.u32 %s279, 1
        %s4402 = smul.addr %s4401, 48
        %s4403 = scalar_lea.vmem [#allocation23], %s4402
        // Predicated region
        $region137: #{tpu_custom_call.1} parent=63 // pred_check
          %p4404 = pneg %p289
        $region138: #{tpu_custom_call.1} parent=63 // pred_check_branch
          %4406 = sbr.rel (%p4404) target = $region140
        $region139: #{tpu_custom_call.1} parent=63 // pred_region
          %s4408 = ssub.s32 768, 768
          %4409 = vsyncadd %s4400, %s4408
          %s4410 = smul.addr %s35, 6
          %s4411 = smul.addr %s4410, 128
          %s4412 = scalar_lea.hbm %s11, %s4411
          %s4413 = sshll.u32 %s4403, 4
          %s4414 = int_to_ptr.vmem [resolvable:$true] %s4413
          %4419 = dma.vmem_to_hbm [thread:$0]  %s4414, 768, %s4412, %s4400, 128, 128, 8
        $region140: #{tpu_custom_call.1} parent=63 // pred_fallthru
          _
      $region64: #{tpu_custom_call.1} parent=5 // pred_fallthru
        _
      %p4420 = scmp.le.s32.totalorder 2, %s30
      // Predicated region
      $region141: #{tpu_custom_call.1} parent=5 // pred_check
        %p4421 = pneg %p4420
      $region142: #{tpu_custom_call.1} parent=5 // pred_check_branch
        %4423 = sbr.rel (%p4421) target = $region144
      $region143: #{tpu_custom_call.1} parent=5 // pred_region
        %s4424 = ssub.s32 %s30, 2
        // Predicated region
        $region145: #{tpu_custom_call.1} parent=143 // pred_check
          %p4425 = pneg %p295
        $region146: #{tpu_custom_call.1} parent=143 // pred_check_branch
          %4427 = sbr.rel (%p4425) target = $region148
        $region147: #{tpu_custom_call.1} parent=143 // pred_region
          %s4428 = sand.u32 %s280, 1
          %s4429 = scalar_lea.sflag [#allocation5], %s4428
          %s4430 = sand.u32 %s280, 1
          %s4431 = smul.addr %s4430, 48
          %s4432 = scalar_lea.vmem [#allocation23], %s4431
          %4433 = dma.done %s4429, 768
        $region148: #{tpu_custom_call.1} parent=143 // pred_fallthru
          _
      $region144: #{tpu_custom_call.1} parent=5 // pred_fallthru
        _
    $region6: #{tpu_custom_call.1} parent=1 // loop_footer
      %s34 = sadd.s32 1, %s30
    $region7: #{tpu_custom_call.1} parent=1 // loop_footer_branch
      %29 = sbr.rel target = $region3
    $region8: #{tpu_custom_call.1} parent=1 // loop_exit
      _
    %4434 = vsyncpa [#allocation4], 1
    %s4435 = scalar_lea.sflag [#allocation4], 1
    %4436 = vsyncpa %s4435, 1
    %4437 = vsyncpa [#allocation5], 1
    %s4438 = scalar_lea.sflag [#allocation5], 1
    %4439 = vsyncpa %s4438, 1
    %4440 = vsyncpa [#allocation6], 1
    %s4441 = scalar_lea.sflag [#allocation6], 1
    %4442 = vsyncpa %s4441, 1
    %4443 = vsyncpa [#allocation10], 1
    %4444 = vsyncpa [#allocation13], 1
    %4445 = vsyncpa [#allocation19], 1
    %4446 = vsyncpa [#allocation7], 1
    %s4447 = scalar_lea.sflag [#allocation7], 1
    %4448 = vsyncpa %s4447, 1
    %4449 = vsyncpa [#allocation17], 1
    %4450 = vsyncpa [#allocation22], 1

</llo_original>
